<compile_context>
chip_gen: v6e
topology: v6e:2x2x1
jax: 0.10.0
libtpu: 0.0.40
codegen_flags: <defaults>
</compile_context>

<pallas_src>
import functools

import numpy as np

import jax
import jax.numpy as jnp
from jax import lax
from jax.experimental import pallas as pl
from jax.experimental.pallas import tpu as pltpu

_LANE = 128


def _round_up(x, m):
    return ((x + m - 1) // m) * m


# TODO(synk): PyTorch F.gelu defaults to the exact erf GELU; erf has no
# guaranteed Mosaic lowering, so kernel AND reference use the tanh approx.
def _gelu(x):
    c = 0.7978845608028654  # sqrt(2/pi)
    return 0.5 * x * (1.0 + jnp.tanh(c * (x + 0.044715 * x * x * x)))


# ---------------------------------------------------------------------------
# In-kernel 3x3 conv: 9 shifted matmuls over the flat (rows*Wb, C) layout.
# ---------------------------------------------------------------------------
def _conv_taps(g_buf, w_ref, out_rows, Wb, Cm_p):
    """g_buf: VMEM ref (out_rows+2, Wb, C) zero-padded input (pad cols = 0,
    out-of-image rows = 0). w_ref: (9, C, Cout) bf16 taps, t = ky*3+kx.
    Returns f32 accumulator (out_rows*Wb, Cout)."""
    L = out_rows * Wb
    cout = w_ref.shape[-1]
    acc = jnp.zeros((L, cout), jnp.float32)
    for t in range(9):
        dy, dx = divmod(t, 3)
        slab = g_buf[dy:dy + out_rows, :, :].reshape(L, Cm_p)
        if dx != 1:
            # flat shift by (dx-1); zero pad columns absorb the wraparound,
            # so every interior output column is exact.
            slab = pltpu.roll(slab, shift=(1 - dx) % L, axis=0)
        acc = acc + jnp.dot(slab.astype(jnp.bfloat16), w_ref[t],
                            preferred_element_type=jnp.float32)
    return acc


# ---------------------------------------------------------------------------
# Fused Block kernel.
# ---------------------------------------------------------------------------
def _block_kernel(x_hbm, w1, b1, w2, b2, w3, b3, w4, b4, pmat,
                  o_ref, x_vmem, g1_buf, g2_buf,
                  *, H, W, th, residual):
    n = pl.program_id(0)
    i = pl.program_id(1)

    RH, Wb, Cin_p = x_vmem.shape           # RH = th + 4 (2-row conv halo)
    Cm_p = g1_buf.shape[-1]
    th2 = g2_buf.shape[0]                  # th + 2
    tho, Wo, Cout_p = o_ref.shape[1], o_ref.shape[2], o_ref.shape[3]

    # Manual halo DMA: image-n rows [i*th - 2, i*th + th + 2) (padded coords).
    row0 = n * (H + 4) + i * th            # x_hbm is (N*(H+4), Wb, Cin_p)
    pltpu.sync_copy(x_hbm.at[pl.ds(row0, RH)], x_vmem)
    xin = x_vmem[...]                      # f32 (RH, Wb, Cin_p)

    def _mask(nrows, img_row0):
        r = lax.broadcasted_iota(jnp.int32, (nrows, Wb, Cm_p), 0) + img_row0
        c = lax.broadcasted_iota(jnp.int32, (nrows, Wb, Cm_p), 1)
        return (r >= 0) & (r < H) & (c >= 1) & (c <= W)

    # ---- c1 (1x1) -----------------------------------------------------------
    a1 = jnp.dot(_gelu(xin.reshape(RH * Wb, Cin_p)).astype(jnp.bfloat16),
                 w1[...], preferred_element_type=jnp.float32) + b1[...]
    g1 = _gelu(a1).reshape(RH, Wb, Cm_p)
    g1_buf[...] = jnp.where(_mask(RH, i * th - 2), g1, 0.0)

    # ---- c2 (3x3 as 9 shifted matmuls), keep a 1-row halo for c3 ------------
    a2 = _conv_taps(g1_buf, w2, th2, Wb, Cm_p) + b2[...]
    g2 = _gelu(a2).reshape(th2, Wb, Cm_p)
    g2_buf[...] = jnp.where(_mask(th2, i * th - 1), g2, 0.0)

    # ---- c3 (3x3) ------------------------------------------------------------
    a3 = _conv_taps(g2_buf, w3, th, Wb, Cm_p) + b3[...]
    g3 = _gelu(a3)                                             # (th*Wb, Cm_p)

    # ---- c4 (1x1) + residual --------------------------------------------------
    y = jnp.dot(g3.astype(jnp.bfloat16), w4[...],
                preferred_element_type=jnp.float32) + b4[...]
    if residual:
        y = y + xin[2:2 + th, :, :].reshape(th * Wb, Cin_p)

    # ---- fused interior-column selection + average pooling --------------------
    out = jnp.dot(pmat[...], y, preferred_element_type=jnp.float32)
    o_ref[...] = out.reshape(1, tho, Wo, Cout_p).astype(o_ref.dtype)


# ---------------------------------------------------------------------------
# Host-side parameter / pooling-matrix preparation (one-time glue).
# ---------------------------------------------------------------------------
def _prep_1x1(w, cin_p, cout_p):
    cout, cin = int(w.shape[0]), int(w.shape[1])
    wt = jnp.transpose(w.reshape(cout, cin), (1, 0)).astype(jnp.bfloat16)
    return jnp.zeros((cin_p, cout_p), jnp.bfloat16).at[:cin, :cout].set(wt)


def _prep_kxk_as_3x3(w, cin_p, cout_p):
    """Embed a (cout, cin, k, k) conv weight (k in {1,3}) into 9 bf16 taps."""
    cout, cin, kh, _ = (int(s) for s in w.shape)
    out = jnp.zeros((9, cin_p, cout_p), jnp.bfloat16)
    wt = jnp.transpose(w, (2, 3, 1, 0)).astype(jnp.bfloat16)   # (kh,kw,ci,co)
    if kh == 3:
        return out.at[:, :cin, :cout].set(wt.reshape(9, cin, cout))
    return out.at[4, :cin, :cout].set(wt.reshape(cin, cout))   # 1x1 -> centre


def _prep_bias(b, c_p):
    c = int(b.shape[0])
    return jnp.zeros((1, c_p), jnp.float32).at[0, :c].set(b.astype(jnp.float32))


def _pool_matrix(th, W, Wb, d):
    """(th//d * W//d, th*Wb) matrix: selects interior columns and averages
    non-overlapping d x d windows (d=1 -> pure interior selection)."""
    tho, Wo = th // d, W // d
    p = np.zeros((tho * Wo, th * Wb), np.float32)
    inv = 1.0 / float(d * d)
    for r in range(tho):
        for j in range(Wo):
            for a in range(d):
                for b in range(d):
                    p[r * Wo + j, (r * d + a) * Wb + 1 + j * d + b] = inv
    return jnp.asarray(p)


def _pick_tile_rows(H, d, target):
    best = d
    for t in range(d, min(max(target, d), H) + 1, d):
        if H % t == 0:
            best = t
    return best


# ---------------------------------------------------------------------------
# Block forward (NCHW in / NCHW out, like the PyTorch module).
# ---------------------------------------------------------------------------
@functools.partial(jax.jit,
                   static_argnames=("residual", "down_rate", "use_3x3",
                                    "tile_rows"))
def block_forward(params, x_nchw, *, residual=False, down_rate=None,
                  use_3x3=True, tile_rows=8):
    N, Cin, H, W = x_nchw.shape
    Cm = params["w1"].shape[0]
    Cout = params["w4"].shape[0]
    d = 1 if down_rate is None else int(down_rate)
    # TODO(synk): PyTorch avg_pool2d floor-crops non-divisible H/W; we require
    # divisibility for the fused pooling path.
    assert H % d == 0 and W % d == 0
    if residual:
        assert Cin == Cout, "residual path requires in_width == out_width"
    assert params["w2"].shape[-1] == (3 if use_3x3 else 1)

    Cin_p = _round_up(Cin, _LANE)
    Cm_p = _round_up(Cm, _LANE)
    Cout_p = _round_up(Cout, _LANE)
    Wb = _round_up(W + 2, 8)               # >=1 zero column on each side
    th = _pick_tile_rows(H, d, tile_rows)  # output rows per grid step
    RH = th + 4
    tho, Wo, Ho = th // d, W // d, H // d

    # TODO(synk): NCHW<->NHWC transposes remain XLA glue; a production model
    # would keep activations NHWC end-to-end.
    x = jnp.transpose(x_nchw, (0, 2, 3, 1)).astype(jnp.float32)
    x_pad = jnp.zeros((N, H + 4, Wb, Cin_p), jnp.float32)
    x_pad = x_pad.at[:, 2:H + 2, 1:W + 1, :Cin].set(x)
    x_flat = x_pad.reshape(N * (H + 4), Wb, Cin_p)

    w1 = _prep_1x1(params["w1"], Cin_p, Cm_p)
    w2 = _prep_kxk_as_3x3(params["w2"], Cm_p, Cm_p)
    w3 = _prep_kxk_as_3x3(params["w3"], Cm_p, Cm_p)
    w4 = _prep_1x1(params["w4"], Cm_p, Cout_p)
    b1 = _prep_bias(params["b1"], Cm_p)
    b2 = _prep_bias(params["b2"], Cm_p)
    b3 = _prep_bias(params["b3"], Cm_p)
    b4 = _prep_bias(params["b4"], Cout_p)
    pmat = _pool_matrix(th, W, Wb, d)

    kernel = functools.partial(_block_kernel, H=H, W=W, th=th,
                               residual=residual)

    out_full = pl.pallas_call(
        kernel,
        out_shape=jax.ShapeDtypeStruct((N, Ho, Wo, Cout_p), jnp.float32),
        grid=(N, H // th),
        in_specs=[
            pl.BlockSpec(memory_space=pl.ANY),                       # x (HBM)
            pl.BlockSpec((Cin_p, Cm_p), lambda n, i: (0, 0)),        # w1
            pl.BlockSpec((1, Cm_p), lambda n, i: (0, 0)),            # b1
            pl.BlockSpec((9, Cm_p, Cm_p), lambda n, i: (0, 0, 0)),   # w2
            pl.BlockSpec((1, Cm_p), lambda n, i: (0, 0)),            # b2
            pl.BlockSpec((9, Cm_p, Cm_p), lambda n, i: (0, 0, 0)),   # w3
            pl.BlockSpec((1, Cm_p), lambda n, i: (0, 0)),            # b3
            pl.BlockSpec((Cm_p, Cout_p), lambda n, i: (0, 0)),       # w4
            pl.BlockSpec((1, Cout_p), lambda n, i: (0, 0)),          # b4
            pl.BlockSpec((tho * Wo, th * Wb), lambda n, i: (0, 0)),  # pool mat
        ],
        out_specs=pl.BlockSpec((1, tho, Wo, Cout_p),
                               lambda n, i: (n, i, 0, 0)),
        scratch_shapes=[
            pltpu.VMEM((RH, Wb, Cin_p), jnp.float32),   # halo input tile
            pltpu.VMEM((RH, Wb, Cm_p), jnp.float32),    # g1 (+2 halo)
            pltpu.VMEM((th + 2, Wb, Cm_p), jnp.float32),  # g2 (+1 halo)
        ],
        compiler_params=pltpu.CompilerParams(
            dimension_semantics=("parallel", "parallel"),
            vmem_limit_bytes=32 * 1024 * 1024,
        ),
    )(x_flat, w1, b1, w2, b2, w3, b3, w4, b4, pmat)

    out = out_full[:, :, :, :Cout]
    return jnp.transpose(out, (0, 3, 1, 2))   # back to NCHW


# ---------------------------------------------------------------------------
# Parameter init (PyTorch Conv2d layout (cout, cin, kh, kw); zero_bias=True).
# ---------------------------------------------------------------------------
def init_block_params(key, in_width, middle_width, out_width, *,
                      use_3x3=True, zero_last=False):
    k1, k2, k3, k4 = jax.random.split(key, 4)

    def conv_w(k, cout, cin, ksz):
        bound = 1.0 / np.sqrt(cin * ksz * ksz)
        return jax.random.uniform(k, (cout, cin, ksz, ksz), jnp.float32,
                                  -bound, bound)

    ksz = 3 if use_3x3 else 1
    w4 = conv_w(k4, out_width, middle_width, 1)
    if zero_last:
        w4 = jnp.zeros_like(w4)
    return dict(
        w1=conv_w(k1, middle_width, in_width, 1),
        b1=jnp.zeros((middle_width,), jnp.float32),
        w2=conv_w(k2, middle_width, middle_width, ksz),
        b2=jnp.zeros((middle_width,), jnp.float32),
        w3=conv_w(k3, middle_width, middle_width, ksz),
        b3=jnp.zeros((middle_width,), jnp.float32),
        w4=w4,
        b4=jnp.zeros((out_width,), jnp.float32),
    )


# ---------------------------------------------------------------------------
# Pure-JAX reference (same tanh GELU) for correctness checking.
# ---------------------------------------------------------------------------
def reference_block(params, x_nchw, *, residual=False, down_rate=None,
                    use_3x3=True):
    def conv(x, w, b, pad):
        y = lax.conv_general_dilated(
            x, w, window_strides=(1, 1), padding=[(pad, pad), (pad, pad)],
            dimension_numbers=("NCHW", "OIHW", "NCHW"))
        return y + b.reshape(1, -1, 1, 1)

    p = 1 if use_3x3 else 0
    h = conv(_gelu(x_nchw), params["w1"], params["b1"], 0)
    h = conv(_gelu(h), params["w2"], params["b2"], p)
    h = conv(_gelu(h), params["w3"], params["b3"], p)
    h = conv(_gelu(h), params["w4"], params["b4"], 0)
    out = x_nchw + h if residual else h
    if down_rate is not None:
        d = down_rate
        N, C, H, W = out.shape
        out = out.reshape(N, C, H // d, d, W // d, d).mean(axis=(3, 5))
    return out


if __name__ == "__main__":
    key = jax.random.PRNGKey(0)
    kx, kp = jax.random.split(key)

    N, Cin, H, W = 2, 4, 16, 16
    Cm, Cout = 8, 4

    x = jax.random.normal(kx, (N, Cin, H, W), jnp.float32)
    params = init_block_params(kp, Cin, Cm, Cout, use_3x3=True,
                               zero_last=False)

    # residual + avg-pool downsampling configuration (in_width == out_width)
    y1 = jax.block_until_ready(
        block_forward(params, x, residual=True, down_rate=2, use_3x3=True))
    assert y1.shape == (N, Cout, H // 2, W // 2), y1.shape
    r1 = reference_block(params, x, residual=True, down_rate=2, use_3x3=True)
    err1 = float(jnp.max(jnp.abs(y1 - r1)))
    assert err1 < 3e-2, f"residual+pool mismatch, max err {err1}"

    # plain (default) configuration
    y2 = jax.block_until_ready(
        block_forward(params, x, residual=False, down_rate=None,
                      use_3x3=True))
    assert y2.shape == (N, Cout, H, W), y2.shape
    r2 = reference_block(params, x, residual=False, down_rate=None,
                         use_3x3=True)
    err2 = float(jnp.max(jnp.abs(y2 - r2)))
    assert err2 < 3e-2, f"plain mismatch, max err {err2}"

    assert bool(jnp.all(jnp.isfinite(y1))) and bool(jnp.all(jnp.isfinite(y2)))
    print("KERNEL_OK")
</pallas_src>

<mosaic_0001>
module attributes {stable_mosaic.version = 11 : i64} {
  func.func @_block_kernel(%arg0: i32, %arg1: i32, %arg2: memref<40x24x128xf32, #tpu.memory_space<any>>, %arg3: memref<128x128xbf16, #tpu.memory_space<vmem>>, %arg4: memref<1x128xf32, #tpu.memory_space<vmem>>, %arg5: memref<9x128x128xbf16, #tpu.memory_space<vmem>>, %arg6: memref<1x128xf32, #tpu.memory_space<vmem>>, %arg7: memref<9x128x128xbf16, #tpu.memory_space<vmem>>, %arg8: memref<1x128xf32, #tpu.memory_space<vmem>>, %arg9: memref<128x128xbf16, #tpu.memory_space<vmem>>, %arg10: memref<1x128xf32, #tpu.memory_space<vmem>>, %arg11: memref<32x192xf32, #tpu.memory_space<vmem>>, %arg12: memref<1x4x8x128xf32, #tpu.memory_space<vmem>>, %arg13: memref<12x24x128xf32, #tpu.memory_space<vmem>>, %arg14: memref<12x24x128xf32, #tpu.memory_space<vmem>>, %arg15: memref<10x24x128xf32, #tpu.memory_space<vmem>>) attributes {dimension_semantics = [#tpu.dimension_semantics<parallel>, #tpu.dimension_semantics<parallel>], iteration_bounds = array<i64: 2, 2>, scalar_prefetch = 0 : i64, scratch_operands = 3 : i64, tpu.core_type = #tpu.core_type<tc>, window_params = [{}, {pipeline_mode = #tpu.pipeline_mode<synchronous>, transform_indices = @transform_1, window_bounds = array<i64: 128, 128>}, {pipeline_mode = #tpu.pipeline_mode<synchronous>, transform_indices = @transform_2, window_bounds = array<i64: 1, 128>}, {pipeline_mode = #tpu.pipeline_mode<synchronous>, transform_indices = @transform_3, window_bounds = array<i64: 9, 128, 128>}, {pipeline_mode = #tpu.pipeline_mode<synchronous>, transform_indices = @transform_4, window_bounds = array<i64: 1, 128>}, {pipeline_mode = #tpu.pipeline_mode<synchronous>, transform_indices = @transform_5, window_bounds = array<i64: 9, 128, 128>}, {pipeline_mode = #tpu.pipeline_mode<synchronous>, transform_indices = @transform_6, window_bounds = array<i64: 1, 128>}, {pipeline_mode = #tpu.pipeline_mode<synchronous>, transform_indices = @transform_7, window_bounds = array<i64: 128, 128>}, {pipeline_mode = #tpu.pipeline_mode<synchronous>, transform_indices = @transform_8, window_bounds = array<i64: 1, 128>}, {pipeline_mode = #tpu.pipeline_mode<synchronous>, transform_indices = @transform_9, window_bounds = array<i64: 32, 192>}, {transform_indices = @transform_10, window_bounds = array<i64: 1, 4, 8, 128>}]} {
    %c20_i32 = arith.constant 20 : i32
    %0 = arith.muli %arg0, %c20_i32 : i32
    %c8_i32 = arith.constant 8 : i32
    %1 = arith.muli %arg1, %c8_i32 : i32
    %2 = arith.addi %0, %1 : i32
    "tpu.region"() ({
      %264 = tpu.sem_alloc : memref<!tpu.dma_semaphore, #tpu.memory_space<semaphore_mem>>
      %c0_i32_184 = arith.constant 0 : i32
      %c0_i32_185 = arith.constant 0 : i32
      %265 = tpu.memref_slice %arg2[%2, %c0_i32_184, %c0_i32_185] : memref<40x24x128xf32, #tpu.memory_space<any>> -> memref<12x24x128xf32, #tpu.memory_space<any>>
      tpu.enqueue_dma source(%265 : memref<12x24x128xf32, #tpu.memory_space<any>>) target(%arg13 : memref<12x24x128xf32, #tpu.memory_space<vmem>>) target_semaphore(%264 : memref<!tpu.dma_semaphore, #tpu.memory_space<semaphore_mem>>)
      %c0_i32_186 = arith.constant 0 : i32
      %c0_i32_187 = arith.constant 0 : i32
      %266 = tpu.memref_slice %arg2[%2, %c0_i32_186, %c0_i32_187] : memref<40x24x128xf32, #tpu.memory_space<any>> -> memref<12x24x128xf32, #tpu.memory_space<any>>
      tpu.wait_dma2 semaphore(%264 : memref<!tpu.dma_semaphore, #tpu.memory_space<semaphore_mem>>) src(%266 : memref<12x24x128xf32, #tpu.memory_space<any>>) dst(%arg13 : memref<12x24x128xf32, #tpu.memory_space<vmem>>)
      tpu.yield
    }) : () -> ()
    %c0 = arith.constant 0 : index
    %c0_0 = arith.constant 0 : index
    %c0_1 = arith.constant 0 : index
    %3 = vector.load %arg13[%c0, %c0_0, %c0_1] : memref<12x24x128xf32, #tpu.memory_space<vmem>>, vector<12x24x128xf32>
    %4 = vector.shape_cast %3 : vector<12x24x128xf32> to vector<288x128xf32>
    %cst = arith.constant 5.000000e-01 : f32
    %5 = vector.broadcast %cst : f32 to vector<288x128xf32>
    %6 = arith.mulf %5, %4 : vector<288x128xf32>
    %cst_2 = arith.constant 4.471500e-02 : f32
    %7 = vector.broadcast %cst_2 : f32 to vector<288x128xf32>
    %8 = arith.mulf %7, %4 : vector<288x128xf32>
    %9 = arith.mulf %8, %4 : vector<288x128xf32>
    %10 = arith.mulf %9, %4 : vector<288x128xf32>
    %11 = arith.addf %4, %10 : vector<288x128xf32>
    %cst_3 = arith.constant 0.797884583 : f32
    %12 = vector.broadcast %cst_3 : f32 to vector<288x128xf32>
    %13 = arith.mulf %12, %11 : vector<288x128xf32>
    %14 = math.tanh %13 : vector<288x128xf32>
    %cst_4 = arith.constant 1.000000e+00 : f32
    %15 = vector.broadcast %cst_4 : f32 to vector<288x128xf32>
    %16 = arith.addf %15, %14 : vector<288x128xf32>
    %17 = arith.mulf %6, %16 : vector<288x128xf32>
    %18 = arith.truncf %17 : vector<288x128xf32> to vector<288x128xbf16>
    %c0_5 = arith.constant 0 : index
    %c0_6 = arith.constant 0 : index
    %19 = vector.load %arg3[%c0_5, %c0_6] : memref<128x128xbf16, #tpu.memory_space<vmem>>, vector<128x128xbf16>
    %cst_7 = arith.constant dense<0.000000e+00> : vector<288x128xf32>
    %20 = tpu.matmul %18, %19, %cst_7 {dimension_numbers = #tpu.dot_dimension_numbers<[1], [0], [0], [1], [0, 0, 1, 1], [], []>} : vector<288x128xbf16>, vector<128x128xbf16>, vector<288x128xf32> -> vector<288x128xf32>
    %c0_8 = arith.constant 0 : index
    %c0_9 = arith.constant 0 : index
    %21 = vector.load %arg4[%c0_8, %c0_9] : memref<1x128xf32, #tpu.memory_space<vmem>>, vector<1x128xf32>
    %22 = vector.broadcast %21 : vector<1x128xf32> to vector<288x128xf32>
    %23 = arith.addf %20, %22 : vector<288x128xf32>
    %cst_10 = arith.constant 5.000000e-01 : f32
    %24 = vector.broadcast %cst_10 : f32 to vector<288x128xf32>
    %25 = arith.mulf %24, %23 : vector<288x128xf32>
    %cst_11 = arith.constant 4.471500e-02 : f32
    %26 = vector.broadcast %cst_11 : f32 to vector<288x128xf32>
    %27 = arith.mulf %26, %23 : vector<288x128xf32>
    %28 = arith.mulf %27, %23 : vector<288x128xf32>
    %29 = arith.mulf %28, %23 : vector<288x128xf32>
    %30 = arith.addf %23, %29 : vector<288x128xf32>
    %cst_12 = arith.constant 0.797884583 : f32
    %31 = vector.broadcast %cst_12 : f32 to vector<288x128xf32>
    %32 = arith.mulf %31, %30 : vector<288x128xf32>
    %33 = math.tanh %32 : vector<288x128xf32>
    %cst_13 = arith.constant 1.000000e+00 : f32
    %34 = vector.broadcast %cst_13 : f32 to vector<288x128xf32>
    %35 = arith.addf %34, %33 : vector<288x128xf32>
    %36 = arith.mulf %25, %35 : vector<288x128xf32>
    %37 = vector.shape_cast %36 : vector<288x128xf32> to vector<12x24x128xf32>
    %c8_i32_14 = arith.constant 8 : i32
    %38 = arith.muli %arg1, %c8_i32_14 : i32
    %c2_i32 = arith.constant 2 : i32
    %39 = arith.subi %38, %c2_i32 : i32
    %40 = tpu.iota {dimensions = array<i32: 0>} : vector<12x24x128xi32>
    %41 = vector.broadcast %39 : i32 to vector<12x24x128xi32>
    %42 = arith.addi %40, %41 : vector<12x24x128xi32>
    %43 = tpu.iota {dimensions = array<i32: 1>} : vector<12x24x128xi32>
    %c0_i32 = arith.constant 0 : i32
    %44 = vector.broadcast %c0_i32 : i32 to vector<12x24x128xi32>
    %45 = arith.cmpi sge, %42, %44 : vector<12x24x128xi32>
    %c16_i32 = arith.constant 16 : i32
    %46 = vector.broadcast %c16_i32 : i32 to vector<12x24x128xi32>
    %47 = arith.cmpi slt, %42, %46 : vector<12x24x128xi32>
    %48 = arith.andi %45, %47 : vector<12x24x128xi1>
    %c1_i32 = arith.constant 1 : i32
    %49 = vector.broadcast %c1_i32 : i32 to vector<12x24x128xi32>
    %50 = arith.cmpi sge, %43, %49 : vector<12x24x128xi32>
    %51 = arith.andi %48, %50 : vector<12x24x128xi1>
    %c16_i32_15 = arith.constant 16 : i32
    %52 = vector.broadcast %c16_i32_15 : i32 to vector<12x24x128xi32>
    %53 = arith.cmpi sle, %43, %52 : vector<12x24x128xi32>
    %54 = arith.andi %51, %53 : vector<12x24x128xi1>
    %cst_16 = arith.constant 0.000000e+00 : f32
    %55 = vector.broadcast %cst_16 : f32 to vector<12x24x128xf32>
    %56 = arith.select %54, %37, %55 : vector<12x24x128xi1>, vector<12x24x128xf32>
    %c0_17 = arith.constant 0 : index
    %c0_18 = arith.constant 0 : index
    %c0_19 = arith.constant 0 : index
    %57 = vector.load %arg14[%c0_17, %c0_18, %c0_19] : memref<12x24x128xf32, #tpu.memory_space<vmem>>, vector<12x24x128xf32>
    tpu.vector_store %arg14[%c0_17, %c0_18, %c0_19], %56 {strides = array<i32>} : memref<12x24x128xf32, #tpu.memory_space<vmem>>, vector<12x24x128xf32>,
    %cst_20 = arith.constant 0.000000e+00 : f32
    %58 = vector.broadcast %cst_20 : f32 to vector<240x128xf32>
    %c0_21 = arith.constant 0 : index
    %c0_22 = arith.constant 0 : index
    %c0_23 = arith.constant 0 : index
    %59 = vector.load %arg14[%c0_21, %c0_22, %c0_23] : memref<12x24x128xf32, #tpu.memory_space<vmem>>, vector<10x24x128xf32>
    %60 = vector.shape_cast %59 : vector<10x24x128xf32> to vector<240x128xf32>
    %c1_i32_24 = arith.constant 1 : i32
    %61 = tpu.dynamic_rotate %60 by %c1_i32_24 dim 0 : vector<240x128xf32>, i32 -> vector<240x128xf32>
    %62 = arith.truncf %61 : vector<240x128xf32> to vector<240x128xbf16>
    %c0_25 = arith.constant 0 : index
    %c0_26 = arith.constant 0 : index
    %c0_27 = arith.constant 0 : index
    %63 = vector.load %arg5[%c0_25, %c0_26, %c0_27] : memref<9x128x128xbf16, #tpu.memory_space<vmem>>, vector<1x128x128xbf16>
    %64 = vector.shape_cast %63 : vector<1x128x128xbf16> to vector<128x128xbf16>
    %cst_28 = arith.constant dense<0.000000e+00> : vector<240x128xf32>
    %65 = tpu.matmul %62, %64, %cst_28 {dimension_numbers = #tpu.dot_dimension_numbers<[1], [0], [0], [1], [0, 0, 1, 1], [], []>} : vector<240x128xbf16>, vector<128x128xbf16>, vector<240x128xf32> -> vector<240x128xf32>
    %66 = arith.addf %58, %65 : vector<240x128xf32>
    %c0_29 = arith.constant 0 : index
    %c0_30 = arith.constant 0 : index
    %c0_31 = arith.constant 0 : index
    %67 = vector.load %arg14[%c0_29, %c0_30, %c0_31] : memref<12x24x128xf32, #tpu.memory_space<vmem>>, vector<10x24x128xf32>
    %68 = vector.shape_cast %67 : vector<10x24x128xf32> to vector<240x128xf32>
    %69 = arith.truncf %68 : vector<240x128xf32> to vector<240x128xbf16>
    %c1 = arith.constant 1 : index
    %c0_32 = arith.constant 0 : index
    %c0_33 = arith.constant 0 : index
    %70 = vector.load %arg5[%c1, %c0_32, %c0_33] : memref<9x128x128xbf16, #tpu.memory_space<vmem>>, vector<1x128x128xbf16>
    %71 = vector.shape_cast %70 : vector<1x128x128xbf16> to vector<128x128xbf16>
    %cst_34 = arith.constant dense<0.000000e+00> : vector<240x128xf32>
    %72 = tpu.matmul %69, %71, %cst_34 {dimension_numbers = #tpu.dot_dimension_numbers<[1], [0], [0], [1], [0, 0, 1, 1], [], []>} : vector<240x128xbf16>, vector<128x128xbf16>, vector<240x128xf32> -> vector<240x128xf32>
    %73 = arith.addf %66, %72 : vector<240x128xf32>
    %c0_35 = arith.constant 0 : index
    %c0_36 = arith.constant 0 : index
    %c0_37 = arith.constant 0 : index
    %74 = vector.load %arg14[%c0_35, %c0_36, %c0_37] : memref<12x24x128xf32, #tpu.memory_space<vmem>>, vector<10x24x128xf32>
    %75 = vector.shape_cast %74 : vector<10x24x128xf32> to vector<240x128xf32>
    %c239_i32 = arith.constant 239 : i32
    %76 = tpu.dynamic_rotate %75 by %c239_i32 dim 0 : vector<240x128xf32>, i32 -> vector<240x128xf32>
    %77 = arith.truncf %76 : vector<240x128xf32> to vector<240x128xbf16>
    %c2 = arith.constant 2 : index
    %c0_38 = arith.constant 0 : index
    %c0_39 = arith.constant 0 : index
    %78 = vector.load %arg5[%c2, %c0_38, %c0_39] : memref<9x128x128xbf16, #tpu.memory_space<vmem>>, vector<1x128x128xbf16>
    %79 = vector.shape_cast %78 : vector<1x128x128xbf16> to vector<128x128xbf16>
    %cst_40 = arith.constant dense<0.000000e+00> : vector<240x128xf32>
    %80 = tpu.matmul %77, %79, %cst_40 {dimension_numbers = #tpu.dot_dimension_numbers<[1], [0], [0], [1], [0, 0, 1, 1], [], []>} : vector<240x128xbf16>, vector<128x128xbf16>, vector<240x128xf32> -> vector<240x128xf32>
    %81 = arith.addf %73, %80 : vector<240x128xf32>
    %c1_41 = arith.constant 1 : index
    %c0_42 = arith.constant 0 : index
    %c0_43 = arith.constant 0 : index
    %82 = vector.load %arg14[%c1_41, %c0_42, %c0_43] : memref<12x24x128xf32, #tpu.memory_space<vmem>>, vector<10x24x128xf32>
    %83 = vector.shape_cast %82 : vector<10x24x128xf32> to vector<240x128xf32>
    %c1_i32_44 = arith.constant 1 : i32
    %84 = tpu.dynamic_rotate %83 by %c1_i32_44 dim 0 : vector<240x128xf32>, i32 -> vector<240x128xf32>
    %85 = arith.truncf %84 : vector<240x128xf32> to vector<240x128xbf16>
    %c3 = arith.constant 3 : index
    %c0_45 = arith.constant 0 : index
    %c0_46 = arith.constant 0 : index
    %86 = vector.load %arg5[%c3, %c0_45, %c0_46] : memref<9x128x128xbf16, #tpu.memory_space<vmem>>, vector<1x128x128xbf16>
    %87 = vector.shape_cast %86 : vector<1x128x128xbf16> to vector<128x128xbf16>
    %cst_47 = arith.constant dense<0.000000e+00> : vector<240x128xf32>
    %88 = tpu.matmul %85, %87, %cst_47 {dimension_numbers = #tpu.dot_dimension_numbers<[1], [0], [0], [1], [0, 0, 1, 1], [], []>} : vector<240x128xbf16>, vector<128x128xbf16>, vector<240x128xf32> -> vector<240x128xf32>
    %89 = arith.addf %81, %88 : vector<240x128xf32>
    %c1_48 = arith.constant 1 : index
    %c0_49 = arith.constant 0 : index
    %c0_50 = arith.constant 0 : index
    %90 = vector.load %arg14[%c1_48, %c0_49, %c0_50] : memref<12x24x128xf32, #tpu.memory_space<vmem>>, vector<10x24x128xf32>
    %91 = vector.shape_cast %90 : vector<10x24x128xf32> to vector<240x128xf32>
    %92 = arith.truncf %91 : vector<240x128xf32> to vector<240x128xbf16>
    %c4 = arith.constant 4 : index
    %c0_51 = arith.constant 0 : index
    %c0_52 = arith.constant 0 : index
    %93 = vector.load %arg5[%c4, %c0_51, %c0_52] : memref<9x128x128xbf16, #tpu.memory_space<vmem>>, vector<1x128x128xbf16>
    %94 = vector.shape_cast %93 : vector<1x128x128xbf16> to vector<128x128xbf16>
    %cst_53 = arith.constant dense<0.000000e+00> : vector<240x128xf32>
    %95 = tpu.matmul %92, %94, %cst_53 {dimension_numbers = #tpu.dot_dimension_numbers<[1], [0], [0], [1], [0, 0, 1, 1], [], []>} : vector<240x128xbf16>, vector<128x128xbf16>, vector<240x128xf32> -> vector<240x128xf32>
    %96 = arith.addf %89, %95 : vector<240x128xf32>
    %c1_54 = arith.constant 1 : index
    %c0_55 = arith.constant 0 : index
    %c0_56 = arith.constant 0 : index
    %97 = vector.load %arg14[%c1_54, %c0_55, %c0_56] : memref<12x24x128xf32, #tpu.memory_space<vmem>>, vector<10x24x128xf32>
    %98 = vector.shape_cast %97 : vector<10x24x128xf32> to vector<240x128xf32>
    %c239_i32_57 = arith.constant 239 : i32
    %99 = tpu.dynamic_rotate %98 by %c239_i32_57 dim 0 : vector<240x128xf32>, i32 -> vector<240x128xf32>
    %100 = arith.truncf %99 : vector<240x128xf32> to vector<240x128xbf16>
    %c5 = arith.constant 5 : index
    %c0_58 = arith.constant 0 : index
    %c0_59 = arith.constant 0 : index
    %101 = vector.load %arg5[%c5, %c0_58, %c0_59] : memref<9x128x128xbf16, #tpu.memory_space<vmem>>, vector<1x128x128xbf16>
    %102 = vector.shape_cast %101 : vector<1x128x128xbf16> to vector<128x128xbf16>
    %cst_60 = arith.constant dense<0.000000e+00> : vector<240x128xf32>
    %103 = tpu.matmul %100, %102, %cst_60 {dimension_numbers = #tpu.dot_dimension_numbers<[1], [0], [0], [1], [0, 0, 1, 1], [], []>} : vector<240x128xbf16>, vector<128x128xbf16>, vector<240x128xf32> -> vector<240x128xf32>
    %104 = arith.addf %96, %103 : vector<240x128xf32>
    %c2_61 = arith.constant 2 : index
    %c0_62 = arith.constant 0 : index
    %c0_63 = arith.constant 0 : index
    %105 = vector.load %arg14[%c2_61, %c0_62, %c0_63] : memref<12x24x128xf32, #tpu.memory_space<vmem>>, vector<10x24x128xf32>
    %106 = vector.shape_cast %105 : vector<10x24x128xf32> to vector<240x128xf32>
    %c1_i32_64 = arith.constant 1 : i32
    %107 = tpu.dynamic_rotate %106 by %c1_i32_64 dim 0 : vector<240x128xf32>, i32 -> vector<240x128xf32>
    %108 = arith.truncf %107 : vector<240x128xf32> to vector<240x128xbf16>
    %c6 = arith.constant 6 : index
    %c0_65 = arith.constant 0 : index
    %c0_66 = arith.constant 0 : index
    %109 = vector.load %arg5[%c6, %c0_65, %c0_66] : memref<9x128x128xbf16, #tpu.memory_space<vmem>>, vector<1x128x128xbf16>
    %110 = vector.shape_cast %109 : vector<1x128x128xbf16> to vector<128x128xbf16>
    %cst_67 = arith.constant dense<0.000000e+00> : vector<240x128xf32>
    %111 = tpu.matmul %108, %110, %cst_67 {dimension_numbers = #tpu.dot_dimension_numbers<[1], [0], [0], [1], [0, 0, 1, 1], [], []>} : vector<240x128xbf16>, vector<128x128xbf16>, vector<240x128xf32> -> vector<240x128xf32>
    %112 = arith.addf %104, %111 : vector<240x128xf32>
    %c2_68 = arith.constant 2 : index
    %c0_69 = arith.constant 0 : index
    %c0_70 = arith.constant 0 : index
    %113 = vector.load %arg14[%c2_68, %c0_69, %c0_70] : memref<12x24x128xf32, #tpu.memory_space<vmem>>, vector<10x24x128xf32>
    %114 = vector.shape_cast %113 : vector<10x24x128xf32> to vector<240x128xf32>
    %115 = arith.truncf %114 : vector<240x128xf32> to vector<240x128xbf16>
    %c7 = arith.constant 7 : index
    %c0_71 = arith.constant 0 : index
    %c0_72 = arith.constant 0 : index
    %116 = vector.load %arg5[%c7, %c0_71, %c0_72] : memref<9x128x128xbf16, #tpu.memory_space<vmem>>, vector<1x128x128xbf16>
    %117 = vector.shape_cast %116 : vector<1x128x128xbf16> to vector<128x128xbf16>
    %cst_73 = arith.constant dense<0.000000e+00> : vector<240x128xf32>
    %118 = tpu.matmul %115, %117, %cst_73 {dimension_numbers = #tpu.dot_dimension_numbers<[1], [0], [0], [1], [0, 0, 1, 1], [], []>} : vector<240x128xbf16>, vector<128x128xbf16>, vector<240x128xf32> -> vector<240x128xf32>
    %119 = arith.addf %112, %118 : vector<240x128xf32>
    %c2_74 = arith.constant 2 : index
    %c0_75 = arith.constant 0 : index
    %c0_76 = arith.constant 0 : index
    %120 = vector.load %arg14[%c2_74, %c0_75, %c0_76] : memref<12x24x128xf32, #tpu.memory_space<vmem>>, vector<10x24x128xf32>
    %121 = vector.shape_cast %120 : vector<10x24x128xf32> to vector<240x128xf32>
    %c239_i32_77 = arith.constant 239 : i32
    %122 = tpu.dynamic_rotate %121 by %c239_i32_77 dim 0 : vector<240x128xf32>, i32 -> vector<240x128xf32>
    %123 = arith.truncf %122 : vector<240x128xf32> to vector<240x128xbf16>
    %c8 = arith.constant 8 : index
    %c0_78 = arith.constant 0 : index
    %c0_79 = arith.constant 0 : index
    %124 = vector.load %arg5[%c8, %c0_78, %c0_79] : memref<9x128x128xbf16, #tpu.memory_space<vmem>>, vector<1x128x128xbf16>
    %125 = vector.shape_cast %124 : vector<1x128x128xbf16> to vector<128x128xbf16>
    %cst_80 = arith.constant dense<0.000000e+00> : vector<240x128xf32>
    %126 = tpu.matmul %123, %125, %cst_80 {dimension_numbers = #tpu.dot_dimension_numbers<[1], [0], [0], [1], [0, 0, 1, 1], [], []>} : vector<240x128xbf16>, vector<128x128xbf16>, vector<240x128xf32> -> vector<240x128xf32>
    %127 = arith.addf %119, %126 : vector<240x128xf32>
    %c0_81 = arith.constant 0 : index
    %c0_82 = arith.constant 0 : index
    %128 = vector.load %arg6[%c0_81, %c0_82] : memref<1x128xf32, #tpu.memory_space<vmem>>, vector<1x128xf32>
    %129 = vector.broadcast %128 : vector<1x128xf32> to vector<240x128xf32>
    %130 = arith.addf %127, %129 : vector<240x128xf32>
    %cst_83 = arith.constant 5.000000e-01 : f32
    %131 = vector.broadcast %cst_83 : f32 to vector<240x128xf32>
    %132 = arith.mulf %131, %130 : vector<240x128xf32>
    %cst_84 = arith.constant 4.471500e-02 : f32
    %133 = vector.broadcast %cst_84 : f32 to vector<240x128xf32>
    %134 = arith.mulf %133, %130 : vector<240x128xf32>
    %135 = arith.mulf %134, %130 : vector<240x128xf32>
    %136 = arith.mulf %135, %130 : vector<240x128xf32>
    %137 = arith.addf %130, %136 : vector<240x128xf32>
    %cst_85 = arith.constant 0.797884583 : f32
    %138 = vector.broadcast %cst_85 : f32 to vector<240x128xf32>
    %139 = arith.mulf %138, %137 : vector<240x128xf32>
    %140 = math.tanh %139 : vector<240x128xf32>
    %cst_86 = arith.constant 1.000000e+00 : f32
    %141 = vector.broadcast %cst_86 : f32 to vector<240x128xf32>
    %142 = arith.addf %141, %140 : vector<240x128xf32>
    %143 = arith.mulf %132, %142 : vector<240x128xf32>
    %144 = vector.shape_cast %143 : vector<240x128xf32> to vector<10x24x128xf32>
    %c8_i32_87 = arith.constant 8 : i32
    %145 = arith.muli %arg1, %c8_i32_87 : i32
    %c1_i32_88 = arith.constant 1 : i32
    %146 = arith.subi %145, %c1_i32_88 : i32
    %147 = tpu.iota {dimensions = array<i32: 0>} : vector<10x24x128xi32>
    %148 = vector.broadcast %146 : i32 to vector<10x24x128xi32>
    %149 = arith.addi %147, %148 : vector<10x24x128xi32>
    %150 = tpu.iota {dimensions = array<i32: 1>} : vector<10x24x128xi32>
    %c0_i32_89 = arith.constant 0 : i32
    %151 = vector.broadcast %c0_i32_89 : i32 to vector<10x24x128xi32>
    %152 = arith.cmpi sge, %149, %151 : vector<10x24x128xi32>
    %c16_i32_90 = arith.constant 16 : i32
    %153 = vector.broadcast %c16_i32_90 : i32 to vector<10x24x128xi32>
    %154 = arith.cmpi slt, %149, %153 : vector<10x24x128xi32>
    %155 = arith.andi %152, %154 : vector<10x24x128xi1>
    %c1_i32_91 = arith.constant 1 : i32
    %156 = vector.broadcast %c1_i32_91 : i32 to vector<10x24x128xi32>
    %157 = arith.cmpi sge, %150, %156 : vector<10x24x128xi32>
    %158 = arith.andi %155, %157 : vector<10x24x128xi1>
    %c16_i32_92 = arith.constant 16 : i32
    %159 = vector.broadcast %c16_i32_92 : i32 to vector<10x24x128xi32>
    %160 = arith.cmpi sle, %150, %159 : vector<10x24x128xi32>
    %161 = arith.andi %158, %160 : vector<10x24x128xi1>
    %cst_93 = arith.constant 0.000000e+00 : f32
    %162 = vector.broadcast %cst_93 : f32 to vector<10x24x128xf32>
    %163 = arith.select %161, %144, %162 : vector<10x24x128xi1>, vector<10x24x128xf32>
    %c0_94 = arith.constant 0 : index
    %c0_95 = arith.constant 0 : index
    %c0_96 = arith.constant 0 : index
    %164 = vector.load %arg15[%c0_94, %c0_95, %c0_96] : memref<10x24x128xf32, #tpu.memory_space<vmem>>, vector<10x24x128xf32>
    tpu.vector_store %arg15[%c0_94, %c0_95, %c0_96], %163 {strides = array<i32>} : memref<10x24x128xf32, #tpu.memory_space<vmem>>, vector<10x24x128xf32>,
    %cst_97 = arith.constant 0.000000e+00 : f32
    %165 = vector.broadcast %cst_97 : f32 to vector<192x128xf32>
    %c0_98 = arith.constant 0 : index
    %c0_99 = arith.constant 0 : index
    %c0_100 = arith.constant 0 : index
    %166 = vector.load %arg15[%c0_98, %c0_99, %c0_100] : memref<10x24x128xf32, #tpu.memory_space<vmem>>, vector<8x24x128xf32>
    %167 = vector.shape_cast %166 : vector<8x24x128xf32> to vector<192x128xf32>
    %c1_i32_101 = arith.constant 1 : i32
    %168 = tpu.dynamic_rotate %167 by %c1_i32_101 dim 0 : vector<192x128xf32>, i32 -> vector<192x128xf32>
    %169 = arith.truncf %168 : vector<192x128xf32> to vector<192x128xbf16>
    %c0_102 = arith.constant 0 : index
    %c0_103 = arith.constant 0 : index
    %c0_104 = arith.constant 0 : index
    %170 = vector.load %arg7[%c0_102, %c0_103, %c0_104] : memref<9x128x128xbf16, #tpu.memory_space<vmem>>, vector<1x128x128xbf16>
    %171 = vector.shape_cast %170 : vector<1x128x128xbf16> to vector<128x128xbf16>
    %cst_105 = arith.constant dense<0.000000e+00> : vector<192x128xf32>
    %172 = tpu.matmul %169, %171, %cst_105 {dimension_numbers = #tpu.dot_dimension_numbers<[1], [0], [0], [1], [0, 0, 1, 1], [], []>} : vector<192x128xbf16>, vector<128x128xbf16>, vector<192x128xf32> -> vector<192x128xf32>
    %173 = arith.addf %165, %172 : vector<192x128xf32>
    %c0_106 = arith.constant 0 : index
    %c0_107 = arith.constant 0 : index
    %c0_108 = arith.constant 0 : index
    %174 = vector.load %arg15[%c0_106, %c0_107, %c0_108] : memref<10x24x128xf32, #tpu.memory_space<vmem>>, vector<8x24x128xf32>
    %175 = vector.shape_cast %174 : vector<8x24x128xf32> to vector<192x128xf32>
    %176 = arith.truncf %175 : vector<192x128xf32> to vector<192x128xbf16>
    %c1_109 = arith.constant 1 : index
    %c0_110 = arith.constant 0 : index
    %c0_111 = arith.constant 0 : index
    %177 = vector.load %arg7[%c1_109, %c0_110, %c0_111] : memref<9x128x128xbf16, #tpu.memory_space<vmem>>, vector<1x128x128xbf16>
    %178 = vector.shape_cast %177 : vector<1x128x128xbf16> to vector<128x128xbf16>
    %cst_112 = arith.constant dense<0.000000e+00> : vector<192x128xf32>
    %179 = tpu.matmul %176, %178, %cst_112 {dimension_numbers = #tpu.dot_dimension_numbers<[1], [0], [0], [1], [0, 0, 1, 1], [], []>} : vector<192x128xbf16>, vector<128x128xbf16>, vector<192x128xf32> -> vector<192x128xf32>
    %180 = arith.addf %173, %179 : vector<192x128xf32>
    %c0_113 = arith.constant 0 : index
    %c0_114 = arith.constant 0 : index
    %c0_115 = arith.constant 0 : index
    %181 = vector.load %arg15[%c0_113, %c0_114, %c0_115] : memref<10x24x128xf32, #tpu.memory_space<vmem>>, vector<8x24x128xf32>
    %182 = vector.shape_cast %181 : vector<8x24x128xf32> to vector<192x128xf32>
    %c191_i32 = arith.constant 191 : i32
    %183 = tpu.dynamic_rotate %182 by %c191_i32 dim 0 : vector<192x128xf32>, i32 -> vector<192x128xf32>
    %184 = arith.truncf %183 : vector<192x128xf32> to vector<192x128xbf16>
    %c2_116 = arith.constant 2 : index
    %c0_117 = arith.constant 0 : index
    %c0_118 = arith.constant 0 : index
    %185 = vector.load %arg7[%c2_116, %c0_117, %c0_118] : memref<9x128x128xbf16, #tpu.memory_space<vmem>>, vector<1x128x128xbf16>
    %186 = vector.shape_cast %185 : vector<1x128x128xbf16> to vector<128x128xbf16>
    %cst_119 = arith.constant dense<0.000000e+00> : vector<192x128xf32>
    %187 = tpu.matmul %184, %186, %cst_119 {dimension_numbers = #tpu.dot_dimension_numbers<[1], [0], [0], [1], [0, 0, 1, 1], [], []>} : vector<192x128xbf16>, vector<128x128xbf16>, vector<192x128xf32> -> vector<192x128xf32>
    %188 = arith.addf %180, %187 : vector<192x128xf32>
    %c1_120 = arith.constant 1 : index
    %c0_121 = arith.constant 0 : index
    %c0_122 = arith.constant 0 : index
    %189 = vector.load %arg15[%c1_120, %c0_121, %c0_122] : memref<10x24x128xf32, #tpu.memory_space<vmem>>, vector<8x24x128xf32>
    %190 = vector.shape_cast %189 : vector<8x24x128xf32> to vector<192x128xf32>
    %c1_i32_123 = arith.constant 1 : i32
    %191 = tpu.dynamic_rotate %190 by %c1_i32_123 dim 0 : vector<192x128xf32>, i32 -> vector<192x128xf32>
    %192 = arith.truncf %191 : vector<192x128xf32> to vector<192x128xbf16>
    %c3_124 = arith.constant 3 : index
    %c0_125 = arith.constant 0 : index
    %c0_126 = arith.constant 0 : index
    %193 = vector.load %arg7[%c3_124, %c0_125, %c0_126] : memref<9x128x128xbf16, #tpu.memory_space<vmem>>, vector<1x128x128xbf16>
    %194 = vector.shape_cast %193 : vector<1x128x128xbf16> to vector<128x128xbf16>
    %cst_127 = arith.constant dense<0.000000e+00> : vector<192x128xf32>
    %195 = tpu.matmul %192, %194, %cst_127 {dimension_numbers = #tpu.dot_dimension_numbers<[1], [0], [0], [1], [0, 0, 1, 1], [], []>} : vector<192x128xbf16>, vector<128x128xbf16>, vector<192x128xf32> -> vector<192x128xf32>
    %196 = arith.addf %188, %195 : vector<192x128xf32>
    %c1_128 = arith.constant 1 : index
    %c0_129 = arith.constant 0 : index
    %c0_130 = arith.constant 0 : index
    %197 = vector.load %arg15[%c1_128, %c0_129, %c0_130] : memref<10x24x128xf32, #tpu.memory_space<vmem>>, vector<8x24x128xf32>
    %198 = vector.shape_cast %197 : vector<8x24x128xf32> to vector<192x128xf32>
    %199 = arith.truncf %198 : vector<192x128xf32> to vector<192x128xbf16>
    %c4_131 = arith.constant 4 : index
    %c0_132 = arith.constant 0 : index
    %c0_133 = arith.constant 0 : index
    %200 = vector.load %arg7[%c4_131, %c0_132, %c0_133] : memref<9x128x128xbf16, #tpu.memory_space<vmem>>, vector<1x128x128xbf16>
    %201 = vector.shape_cast %200 : vector<1x128x128xbf16> to vector<128x128xbf16>
    %cst_134 = arith.constant dense<0.000000e+00> : vector<192x128xf32>
    %202 = tpu.matmul %199, %201, %cst_134 {dimension_numbers = #tpu.dot_dimension_numbers<[1], [0], [0], [1], [0, 0, 1, 1], [], []>} : vector<192x128xbf16>, vector<128x128xbf16>, vector<192x128xf32> -> vector<192x128xf32>
    %203 = arith.addf %196, %202 : vector<192x128xf32>
    %c1_135 = arith.constant 1 : index
    %c0_136 = arith.constant 0 : index
    %c0_137 = arith.constant 0 : index
    %204 = vector.load %arg15[%c1_135, %c0_136, %c0_137] : memref<10x24x128xf32, #tpu.memory_space<vmem>>, vector<8x24x128xf32>
    %205 = vector.shape_cast %204 : vector<8x24x128xf32> to vector<192x128xf32>
    %c191_i32_138 = arith.constant 191 : i32
    %206 = tpu.dynamic_rotate %205 by %c191_i32_138 dim 0 : vector<192x128xf32>, i32 -> vector<192x128xf32>
    %207 = arith.truncf %206 : vector<192x128xf32> to vector<192x128xbf16>
    %c5_139 = arith.constant 5 : index
    %c0_140 = arith.constant 0 : index
    %c0_141 = arith.constant 0 : index
    %208 = vector.load %arg7[%c5_139, %c0_140, %c0_141] : memref<9x128x128xbf16, #tpu.memory_space<vmem>>, vector<1x128x128xbf16>
    %209 = vector.shape_cast %208 : vector<1x128x128xbf16> to vector<128x128xbf16>
    %cst_142 = arith.constant dense<0.000000e+00> : vector<192x128xf32>
    %210 = tpu.matmul %207, %209, %cst_142 {dimension_numbers = #tpu.dot_dimension_numbers<[1], [0], [0], [1], [0, 0, 1, 1], [], []>} : vector<192x128xbf16>, vector<128x128xbf16>, vector<192x128xf32> -> vector<192x128xf32>
    %211 = arith.addf %203, %210 : vector<192x128xf32>
    %c2_143 = arith.constant 2 : index
    %c0_144 = arith.constant 0 : index
    %c0_145 = arith.constant 0 : index
    %212 = vector.load %arg15[%c2_143, %c0_144, %c0_145] : memref<10x24x128xf32, #tpu.memory_space<vmem>>, vector<8x24x128xf32>
    %213 = vector.shape_cast %212 : vector<8x24x128xf32> to vector<192x128xf32>
    %c1_i32_146 = arith.constant 1 : i32
    %214 = tpu.dynamic_rotate %213 by %c1_i32_146 dim 0 : vector<192x128xf32>, i32 -> vector<192x128xf32>
    %215 = arith.truncf %214 : vector<192x128xf32> to vector<192x128xbf16>
    %c6_147 = arith.constant 6 : index
    %c0_148 = arith.constant 0 : index
    %c0_149 = arith.constant 0 : index
    %216 = vector.load %arg7[%c6_147, %c0_148, %c0_149] : memref<9x128x128xbf16, #tpu.memory_space<vmem>>, vector<1x128x128xbf16>
    %217 = vector.shape_cast %216 : vector<1x128x128xbf16> to vector<128x128xbf16>
    %cst_150 = arith.constant dense<0.000000e+00> : vector<192x128xf32>
    %218 = tpu.matmul %215, %217, %cst_150 {dimension_numbers = #tpu.dot_dimension_numbers<[1], [0], [0], [1], [0, 0, 1, 1], [], []>} : vector<192x128xbf16>, vector<128x128xbf16>, vector<192x128xf32> -> vector<192x128xf32>
    %219 = arith.addf %211, %218 : vector<192x128xf32>
    %c2_151 = arith.constant 2 : index
    %c0_152 = arith.constant 0 : index
    %c0_153 = arith.constant 0 : index
    %220 = vector.load %arg15[%c2_151, %c0_152, %c0_153] : memref<10x24x128xf32, #tpu.memory_space<vmem>>, vector<8x24x128xf32>
    %221 = vector.shape_cast %220 : vector<8x24x128xf32> to vector<192x128xf32>
    %222 = arith.truncf %221 : vector<192x128xf32> to vector<192x128xbf16>
    %c7_154 = arith.constant 7 : index
    %c0_155 = arith.constant 0 : index
    %c0_156 = arith.constant 0 : index
    %223 = vector.load %arg7[%c7_154, %c0_155, %c0_156] : memref<9x128x128xbf16, #tpu.memory_space<vmem>>, vector<1x128x128xbf16>
    %224 = vector.shape_cast %223 : vector<1x128x128xbf16> to vector<128x128xbf16>
    %cst_157 = arith.constant dense<0.000000e+00> : vector<192x128xf32>
    %225 = tpu.matmul %222, %224, %cst_157 {dimension_numbers = #tpu.dot_dimension_numbers<[1], [0], [0], [1], [0, 0, 1, 1], [], []>} : vector<192x128xbf16>, vector<128x128xbf16>, vector<192x128xf32> -> vector<192x128xf32>
    %226 = arith.addf %219, %225 : vector<192x128xf32>
    %c2_158 = arith.constant 2 : index
    %c0_159 = arith.constant 0 : index
    %c0_160 = arith.constant 0 : index
    %227 = vector.load %arg15[%c2_158, %c0_159, %c0_160] : memref<10x24x128xf32, #tpu.memory_space<vmem>>, vector<8x24x128xf32>
    %228 = vector.shape_cast %227 : vector<8x24x128xf32> to vector<192x128xf32>
    %c191_i32_161 = arith.constant 191 : i32
    %229 = tpu.dynamic_rotate %228 by %c191_i32_161 dim 0 : vector<192x128xf32>, i32 -> vector<192x128xf32>
    %230 = arith.truncf %229 : vector<192x128xf32> to vector<192x128xbf16>
    %c8_162 = arith.constant 8 : index
    %c0_163 = arith.constant 0 : index
    %c0_164 = arith.constant 0 : index
    %231 = vector.load %arg7[%c8_162, %c0_163, %c0_164] : memref<9x128x128xbf16, #tpu.memory_space<vmem>>, vector<1x128x128xbf16>
    %232 = vector.shape_cast %231 : vector<1x128x128xbf16> to vector<128x128xbf16>
    %cst_165 = arith.constant dense<0.000000e+00> : vector<192x128xf32>
    %233 = tpu.matmul %230, %232, %cst_165 {dimension_numbers = #tpu.dot_dimension_numbers<[1], [0], [0], [1], [0, 0, 1, 1], [], []>} : vector<192x128xbf16>, vector<128x128xbf16>, vector<192x128xf32> -> vector<192x128xf32>
    %234 = arith.addf %226, %233 : vector<192x128xf32>
    %c0_166 = arith.constant 0 : index
    %c0_167 = arith.constant 0 : index
    %235 = vector.load %arg8[%c0_166, %c0_167] : memref<1x128xf32, #tpu.memory_space<vmem>>, vector<1x128xf32>
    %236 = vector.broadcast %235 : vector<1x128xf32> to vector<192x128xf32>
    %237 = arith.addf %234, %236 : vector<192x128xf32>
    %cst_168 = arith.constant 5.000000e-01 : f32
    %238 = vector.broadcast %cst_168 : f32 to vector<192x128xf32>
    %239 = arith.mulf %238, %237 : vector<192x128xf32>
    %cst_169 = arith.constant 4.471500e-02 : f32
    %240 = vector.broadcast %cst_169 : f32 to vector<192x128xf32>
    %241 = arith.mulf %240, %237 : vector<192x128xf32>
    %242 = arith.mulf %241, %237 : vector<192x128xf32>
    %243 = arith.mulf %242, %237 : vector<192x128xf32>
    %244 = arith.addf %237, %243 : vector<192x128xf32>
    %cst_170 = arith.constant 0.797884583 : f32
    %245 = vector.broadcast %cst_170 : f32 to vector<192x128xf32>
    %246 = arith.mulf %245, %244 : vector<192x128xf32>
    %247 = math.tanh %246 : vector<192x128xf32>
    %cst_171 = arith.constant 1.000000e+00 : f32
    %248 = vector.broadcast %cst_171 : f32 to vector<192x128xf32>
    %249 = arith.addf %248, %247 : vector<192x128xf32>
    %250 = arith.mulf %239, %249 : vector<192x128xf32>
    %251 = arith.truncf %250 : vector<192x128xf32> to vector<192x128xbf16>
    %c0_172 = arith.constant 0 : index
    %c0_173 = arith.constant 0 : index
    %252 = vector.load %arg9[%c0_172, %c0_173] : memref<128x128xbf16, #tpu.memory_space<vmem>>, vector<128x128xbf16>
    %cst_174 = arith.constant dense<0.000000e+00> : vector<192x128xf32>
    %253 = tpu.matmul %251, %252, %cst_174 {dimension_numbers = #tpu.dot_dimension_numbers<[1], [0], [0], [1], [0, 0, 1, 1], [], []>} : vector<192x128xbf16>, vector<128x128xbf16>, vector<192x128xf32> -> vector<192x128xf32>
    %c0_175 = arith.constant 0 : index
    %c0_176 = arith.constant 0 : index
    %254 = vector.load %arg10[%c0_175, %c0_176] : memref<1x128xf32, #tpu.memory_space<vmem>>, vector<1x128xf32>
    %255 = vector.broadcast %254 : vector<1x128xf32> to vector<192x128xf32>
    %256 = arith.addf %253, %255 : vector<192x128xf32>
    %257 = vector.extract_strided_slice %3 {offsets = [2, 0, 0], sizes = [8, 24, 128], strides = [1, 1, 1]} : vector<12x24x128xf32> to vector<8x24x128xf32>
    %258 = vector.shape_cast %257 : vector<8x24x128xf32> to vector<192x128xf32>
    %259 = arith.addf %256, %258 : vector<192x128xf32>
    %c0_177 = arith.constant 0 : index
    %c0_178 = arith.constant 0 : index
    %260 = vector.load %arg11[%c0_177, %c0_178] : memref<32x192xf32, #tpu.memory_space<vmem>>, vector<32x192xf32>
    %cst_179 = arith.constant dense<0.000000e+00> : vector<32x128xf32>
    %261 = tpu.matmul %260, %259, %cst_179 {dimension_numbers = #tpu.dot_dimension_numbers<[1], [0], [0], [1], [0, 0, 1, 1], [], []>} : vector<32x192xf32>, vector<192x128xf32>, vector<32x128xf32> -> vector<32x128xf32>
    %262 = vector.shape_cast %261 : vector<32x128xf32> to vector<1x4x8x128xf32>
    %c0_180 = arith.constant 0 : index
    %c0_181 = arith.constant 0 : index
    %c0_182 = arith.constant 0 : index
    %c0_183 = arith.constant 0 : index
    %263 = vector.load %arg12[%c0_180, %c0_181, %c0_182, %c0_183] : memref<1x4x8x128xf32, #tpu.memory_space<vmem>>, vector<1x4x8x128xf32>
    tpu.vector_store %arg12[%c0_180, %c0_181, %c0_182, %c0_183], %262 {strides = array<i32>} : memref<1x4x8x128xf32, #tpu.memory_space<vmem>>, vector<1x4x8x128xf32>,
    return
  }
  func.func @transform_1(%arg0: i32, %arg1: i32) -> (i32, i32) {
    %c0_i32 = arith.constant 0 : i32
    %c0_i32_0 = arith.constant 0 : i32
    %c0_i32_1 = arith.constant 0 : i32
    return %c0_i32, %c0_i32_0 : i32, i32
  }
  func.func @transform_2(%arg0: i32, %arg1: i32) -> (i32, i32) {
    %c0_i32 = arith.constant 0 : i32
    %c0_i32_0 = arith.constant 0 : i32
    %c0_i32_1 = arith.constant 0 : i32
    return %c0_i32, %c0_i32_0 : i32, i32
  }
  func.func @transform_3(%arg0: i32, %arg1: i32) -> (i32, i32, i32) {
    %c0_i32 = arith.constant 0 : i32
    %c0_i32_0 = arith.constant 0 : i32
    %c0_i32_1 = arith.constant 0 : i32
    %c0_i32_2 = arith.constant 0 : i32
    return %c0_i32, %c0_i32_0, %c0_i32_1 : i32, i32, i32
  }
  func.func @transform_4(%arg0: i32, %arg1: i32) -> (i32, i32) {
    %c0_i32 = arith.constant 0 : i32
    %c0_i32_0 = arith.constant 0 : i32
    %c0_i32_1 = arith.constant 0 : i32
    return %c0_i32, %c0_i32_0 : i32, i32
  }
  func.func @transform_5(%arg0: i32, %arg1: i32) -> (i32, i32, i32) {
    %c0_i32 = arith.constant 0 : i32
    %c0_i32_0 = arith.constant 0 : i32
    %c0_i32_1 = arith.constant 0 : i32
    %c0_i32_2 = arith.constant 0 : i32
    return %c0_i32, %c0_i32_0, %c0_i32_1 : i32, i32, i32
  }
  func.func @transform_6(%arg0: i32, %arg1: i32) -> (i32, i32) {
    %c0_i32 = arith.constant 0 : i32
    %c0_i32_0 = arith.constant 0 : i32
    %c0_i32_1 = arith.constant 0 : i32
    return %c0_i32, %c0_i32_0 : i32, i32
  }
  func.func @transform_7(%arg0: i32, %arg1: i32) -> (i32, i32) {
    %c0_i32 = arith.constant 0 : i32
    %c0_i32_0 = arith.constant 0 : i32
    %c0_i32_1 = arith.constant 0 : i32
    return %c0_i32, %c0_i32_0 : i32, i32
  }
  func.func @transform_8(%arg0: i32, %arg1: i32) -> (i32, i32) {
    %c0_i32 = arith.constant 0 : i32
    %c0_i32_0 = arith.constant 0 : i32
    %c0_i32_1 = arith.constant 0 : i32
    return %c0_i32, %c0_i32_0 : i32, i32
  }
  func.func @transform_9(%arg0: i32, %arg1: i32) -> (i32, i32) {
    %c0_i32 = arith.constant 0 : i32
    %c0_i32_0 = arith.constant 0 : i32
    %c0_i32_1 = arith.constant 0 : i32
    return %c0_i32, %c0_i32_0 : i32, i32
  }
  func.func @transform_10(%arg0: i32, %arg1: i32) -> (i32, i32, i32, i32) {
    %c0_i32 = arith.constant 0 : i32
    %c0_i32_0 = arith.constant 0 : i32
    %c0_i32_1 = arith.constant 0 : i32
    return %arg0, %arg1, %c0_i32, %c0_i32_0 : i32, i32, i32, i32
  }
}

</mosaic_0001>

<llo_original>
// kernel: block_forward.1
$region0: #{block_forward.1}
  #allocation0 [shape = 'u32[]', space=smem, size = 0x4, offset = 0x4, fixed_abs, tag = 'smem constant byte address 0x4 - core index']
  #allocation1 [shape = 'u32[144,128]{1,0:T(1,128)}', space=vmem, size = 0x12000, scoped, tag = 'internal scratch']
  #allocation2 [shape = 'f32[12,24,128]{2,1,0:T(8,128)}', space=vmem, size = 0x24000, scoped, tag = 'scratch operand']
  #allocation3 [shape = 'f32[12,24,128]{2,1,0:T(8,128)}', space=vmem, size = 0x24000, scoped, tag = 'scratch operand']
  #allocation4 [shape = 'f32[10,24,128]{2,1,0:T(8,128)}', space=vmem, size = 0x1e000, scoped, tag = 'scratch operand']
  #allocation6 [shape = 's32[]', space=sflag, size = 0x4, offset = 0, fixed_abs, tag = 'sflag constant byte address 0x0 - dummy sync flag']
  %s0 = inlined_call_operand.vmem [shape: f32[40,24,128], index: 0, kind: input, shape index: {}]
  %s1 = inlined_call_operand.vmem [shape: bf16[128,128], index: 1, kind: input, shape index: {}]
  %s2 = inlined_call_operand.vmem [shape: f32[1,128], index: 2, kind: input, shape index: {}]
  %s3 = inlined_call_operand.vmem [shape: bf16[9,128,128], index: 3, kind: input, shape index: {}]
  %s4 = inlined_call_operand.vmem [shape: f32[1,128], index: 4, kind: input, shape index: {}]
  %s5 = inlined_call_operand.vmem [shape: bf16[9,128,128], index: 5, kind: input, shape index: {}]
  %s6 = inlined_call_operand.vmem [shape: f32[1,128], index: 6, kind: input, shape index: {}]
  %s7 = inlined_call_operand.vmem [shape: bf16[128,128], index: 7, kind: input, shape index: {}]
  %s8 = inlined_call_operand.vmem [shape: f32[1,128], index: 8, kind: input, shape index: {}]
  %s9 = inlined_call_operand.vmem [shape: f32[32,192], index: 9, kind: input, shape index: {}]
  %s10 = inlined_call_operand.vmem [shape: f32[2,8,8,128], index: 10, kind: output, shape index: {}]
  %s11 = sld [smem:[#allocation0]]
  $region104: #{block_forward.1} parent=0
    _
  %s13 = ssub.s32 1, %s11
  %s14 = scalar_select 0, %s13, %s11
  loop: start=0, step=1, limit=6
  $region2: #{block_forward.1} parent=0 // loop_pre_header
    _
  $region3: #{block_forward.1} parent=0 // loop_header
    %s16 = sphi 0, %s20
    %p17 = scmp.ge.s32.totalorder %s16, 6
    %s23 = sphi 0, %s35
    %s24 = sphi 0, %s31
    %s25 = sphi 0, %s23
    %s26 = sphi 0, %s24
    %s27 = sphi 0, %s25
    %s28 = sphi 0, %s26
    %s36 = sphi 0, %s36
    %s38 = sphi 0, %s36
    %s39 = sphi 0, %s38
    %s53 = sphi 0, %s39
    %s57 = sphi 0, %s57
    %s59 = sphi 0, %s57
    %s60 = sphi 0, %s59
    %s74 = sphi 0, %s60
    %s78 = sphi 0, %s78
    %s80 = sphi 0, %s78
    %s81 = sphi 0, %s80
    %s95 = sphi 0, %s81
    %s99 = sphi 0, %s99
    %s101 = sphi 0, %s99
    %s102 = sphi 0, %s101
    %s116 = sphi 0, %s102
    %s120 = sphi 0, %s120
    %s122 = sphi 0, %s120
    %s123 = sphi 0, %s122
    %s137 = sphi 0, %s123
    %s141 = sphi 0, %s141
    %s143 = sphi 0, %s141
    %s144 = sphi 0, %s143
    %s158 = sphi 0, %s144
    %s162 = sphi 0, %s162
    %s164 = sphi 0, %s162
    %s165 = sphi 0, %s164
    %s179 = sphi 0, %s165
    %s183 = sphi 0, %s183
    %s185 = sphi 0, %s183
    %s186 = sphi 0, %s185
    %s200 = sphi 0, %s186
    %s204 = sphi 0, %s204
    %s206 = sphi 0, %s204
    %s207 = sphi 0, %s206
    %s221 = sphi 0, %s207
    %s229 = sphi 0, %s231
    %s232 = sphi 0, %s229
    %s233 = sphi 0, %s232
    %s249 = sphi 0, %s233
  $region4: #{block_forward.1} parent=0 // loop_header_branch
    %19 = sbr.rel (%p17) target = $region8
  $region5: #{block_forward.1} parent=0 // loop_body
    %s21 = ssub.s32 %s16, 1
    %s22 = ssub.s32 %s16, 2
    %s29 = sadd.s32 1, %s24
    %p30 = scmp.ge.s32.totalorder %s29, 2
    %s31 = scalar_select %p30, 0, %s29
    %s32 = sadd.s32 1, %s23
    %s33 = scalar_select %p30, %s32, %s23
    %p34 = scmp.ge.s32.totalorder %s33, 2
    %s35 = scalar_select %p34, 0, %s33
    %s37 = sadd.s32 %s36, 1
    %p40 = scmp.eq.s32.totalorder %s16, 3
    %p41 = scmp.ne.s32.totalorder %s36, %s38
    %p42 = scmp.eq.s32.totalorder %s16, 0
    %p43 = por %p41, %p42
    %p44 = scmp.ne.s32.totalorder %s36, %s38
    %p45 = scmp.eq.s32.totalorder %s21, 3
    %p46 = por %p44, %p45
    %p47 = scmp.ne.s32.totalorder %s38, %s39
    %p48 = scmp.eq.s32.totalorder %s21, 0
    %p49 = por %p47, %p48
    %p50 = scmp.ne.s32.totalorder %s38, %s39
    %p51 = scmp.eq.s32.totalorder %s22, 3
    %p52 = por %p50, %p51
    %p54 = scmp.ne.s32.totalorder %s39, %s53
    %p55 = scmp.eq.s32.totalorder %s22, 0
    %p56 = por %p54, %p55
    %s58 = sadd.s32 %s57, 1
    %p61 = scmp.eq.s32.totalorder %s16, 3
    %p62 = scmp.ne.s32.totalorder %s57, %s59
    %p63 = scmp.eq.s32.totalorder %s16, 0
    %p64 = por %p62, %p63
    %p65 = scmp.ne.s32.totalorder %s57, %s59
    %p66 = scmp.eq.s32.totalorder %s21, 3
    %p67 = por %p65, %p66
    %p68 = scmp.ne.s32.totalorder %s59, %s60
    %p69 = scmp.eq.s32.totalorder %s21, 0
    %p70 = por %p68, %p69
    %p71 = scmp.ne.s32.totalorder %s59, %s60
    %p72 = scmp.eq.s32.totalorder %s22, 3
    %p73 = por %p71, %p72
    %p75 = scmp.ne.s32.totalorder %s60, %s74
    %p76 = scmp.eq.s32.totalorder %s22, 0
    %p77 = por %p75, %p76
    %s79 = sadd.s32 %s78, 1
    %p82 = scmp.eq.s32.totalorder %s16, 3
    %p83 = scmp.ne.s32.totalorder %s78, %s80
    %p84 = scmp.eq.s32.totalorder %s16, 0
    %p85 = por %p83, %p84
    %p86 = scmp.ne.s32.totalorder %s78, %s80
    %p87 = scmp.eq.s32.totalorder %s21, 3
    %p88 = por %p86, %p87
    %p89 = scmp.ne.s32.totalorder %s80, %s81
    %p90 = scmp.eq.s32.totalorder %s21, 0
    %p91 = por %p89, %p90
    %p92 = scmp.ne.s32.totalorder %s80, %s81
    %p93 = scmp.eq.s32.totalorder %s22, 3
    %p94 = por %p92, %p93
    %p96 = scmp.ne.s32.totalorder %s81, %s95
    %p97 = scmp.eq.s32.totalorder %s22, 0
    %p98 = por %p96, %p97
    %s100 = sadd.s32 %s99, 1
    %p103 = scmp.eq.s32.totalorder %s16, 3
    %p104 = scmp.ne.s32.totalorder %s99, %s101
    %p105 = scmp.eq.s32.totalorder %s16, 0
    %p106 = por %p104, %p105
    %p107 = scmp.ne.s32.totalorder %s99, %s101
    %p108 = scmp.eq.s32.totalorder %s21, 3
    %p109 = por %p107, %p108
    %p110 = scmp.ne.s32.totalorder %s101, %s102
    %p111 = scmp.eq.s32.totalorder %s21, 0
    %p112 = por %p110, %p111
    %p113 = scmp.ne.s32.totalorder %s101, %s102
    %p114 = scmp.eq.s32.totalorder %s22, 3
    %p115 = por %p113, %p114
    %p117 = scmp.ne.s32.totalorder %s102, %s116
    %p118 = scmp.eq.s32.totalorder %s22, 0
    %p119 = por %p117, %p118
    %s121 = sadd.s32 %s120, 1
    %p124 = scmp.eq.s32.totalorder %s16, 3
    %p125 = scmp.ne.s32.totalorder %s120, %s122
    %p126 = scmp.eq.s32.totalorder %s16, 0
    %p127 = por %p125, %p126
    %p128 = scmp.ne.s32.totalorder %s120, %s122
    %p129 = scmp.eq.s32.totalorder %s21, 3
    %p130 = por %p128, %p129
    %p131 = scmp.ne.s32.totalorder %s122, %s123
    %p132 = scmp.eq.s32.totalorder %s21, 0
    %p133 = por %p131, %p132
    %p134 = scmp.ne.s32.totalorder %s122, %s123
    %p135 = scmp.eq.s32.totalorder %s22, 3
    %p136 = por %p134, %p135
    %p138 = scmp.ne.s32.totalorder %s123, %s137
    %p139 = scmp.eq.s32.totalorder %s22, 0
    %p140 = por %p138, %p139
    %s142 = sadd.s32 %s141, 1
    %p145 = scmp.eq.s32.totalorder %s16, 3
    %p146 = scmp.ne.s32.totalorder %s141, %s143
    %p147 = scmp.eq.s32.totalorder %s16, 0
    %p148 = por %p146, %p147
    %p149 = scmp.ne.s32.totalorder %s141, %s143
    %p150 = scmp.eq.s32.totalorder %s21, 3
    %p151 = por %p149, %p150
    %p152 = scmp.ne.s32.totalorder %s143, %s144
    %p153 = scmp.eq.s32.totalorder %s21, 0
    %p154 = por %p152, %p153
    %p155 = scmp.ne.s32.totalorder %s143, %s144
    %p156 = scmp.eq.s32.totalorder %s22, 3
    %p157 = por %p155, %p156
    %p159 = scmp.ne.s32.totalorder %s144, %s158
    %p160 = scmp.eq.s32.totalorder %s22, 0
    %p161 = por %p159, %p160
    %s163 = sadd.s32 %s162, 1
    %p166 = scmp.eq.s32.totalorder %s16, 3
    %p167 = scmp.ne.s32.totalorder %s162, %s164
    %p168 = scmp.eq.s32.totalorder %s16, 0
    %p169 = por %p167, %p168
    %p170 = scmp.ne.s32.totalorder %s162, %s164
    %p171 = scmp.eq.s32.totalorder %s21, 3
    %p172 = por %p170, %p171
    %p173 = scmp.ne.s32.totalorder %s164, %s165
    %p174 = scmp.eq.s32.totalorder %s21, 0
    %p175 = por %p173, %p174
    %p176 = scmp.ne.s32.totalorder %s164, %s165
    %p177 = scmp.eq.s32.totalorder %s22, 3
    %p178 = por %p176, %p177
    %p180 = scmp.ne.s32.totalorder %s165, %s179
    %p181 = scmp.eq.s32.totalorder %s22, 0
    %p182 = por %p180, %p181
    %s184 = sadd.s32 %s183, 1
    %p187 = scmp.eq.s32.totalorder %s16, 3
    %p188 = scmp.ne.s32.totalorder %s183, %s185
    %p189 = scmp.eq.s32.totalorder %s16, 0
    %p190 = por %p188, %p189
    %p191 = scmp.ne.s32.totalorder %s183, %s185
    %p192 = scmp.eq.s32.totalorder %s21, 3
    %p193 = por %p191, %p192
    %p194 = scmp.ne.s32.totalorder %s185, %s186
    %p195 = scmp.eq.s32.totalorder %s21, 0
    %p196 = por %p194, %p195
    %p197 = scmp.ne.s32.totalorder %s185, %s186
    %p198 = scmp.eq.s32.totalorder %s22, 3
    %p199 = por %p197, %p198
    %p201 = scmp.ne.s32.totalorder %s186, %s200
    %p202 = scmp.eq.s32.totalorder %s22, 0
    %p203 = por %p201, %p202
    %s205 = sadd.s32 %s204, 1
    %p208 = scmp.eq.s32.totalorder %s16, 3
    %p209 = scmp.ne.s32.totalorder %s204, %s206
    %p210 = scmp.eq.s32.totalorder %s16, 0
    %p211 = por %p209, %p210
    %p212 = scmp.ne.s32.totalorder %s204, %s206
    %p213 = scmp.eq.s32.totalorder %s21, 3
    %p214 = por %p212, %p213
    %p215 = scmp.ne.s32.totalorder %s206, %s207
    %p216 = scmp.eq.s32.totalorder %s21, 0
    %p217 = por %p215, %p216
    %p218 = scmp.ne.s32.totalorder %s206, %s207
    %p219 = scmp.eq.s32.totalorder %s22, 3
    %p220 = por %p218, %p219
    %p222 = scmp.ne.s32.totalorder %s207, %s221
    %p223 = scmp.eq.s32.totalorder %s22, 0
    %p224 = por %p222, %p223
    %s225 = ssub.s32 %s23, %s35
    %s226 = ssub.s32 %s24, %s31
    %s227 = sor.u32 %s225, %s226
    %p228 = scmp.eq.s32.totalorder %s227, 0
    %s230 = sadd.s32 %s229, 1
    %s231 = scalar_select %p228, %s229, %s230
    %p234 = pneg %p228
    %p235 = scmp.eq.s32.totalorder %s16, 3
    %p236 = por %p234, %p235
    %p237 = scmp.ne.s32.totalorder %s229, %s232
    %p238 = scmp.eq.s32.totalorder %s16, 0
    %p239 = por %p237, %p238
    %p240 = scmp.ne.s32.totalorder %s229, %s232
    %p241 = scmp.eq.s32.totalorder %s21, 3
    %p242 = por %p240, %p241
    %p243 = scmp.ne.s32.totalorder %s232, %s233
    %p244 = scmp.eq.s32.totalorder %s21, 0
    %p245 = por %p243, %p244
    %p246 = scmp.ne.s32.totalorder %s232, %s233
    %p247 = scmp.eq.s32.totalorder %s22, 3
    %p248 = por %p246, %p247
    %p250 = scmp.ne.s32.totalorder %s233, %s249
    %p251 = scmp.eq.s32.totalorder %s22, 0
    %p252 = por %p250, %p251
    %p253 = scmp.le.s32.totalorder 1, %s16
    %p254 = scmp.lt.s32.totalorder %s16, 5
    %p255 = pnand %p253, %p254
    %p256 = pneg %p255
    // Predicated region
    $region9: #{block_forward.1} parent=5 // pred_check
      _
    $region10: #{block_forward.1} parent=5 // pred_check_branch
      %258 = sbr.rel (%p255) target = $region12
    $region11: #{block_forward.1} parent=5 // pred_region
      %s259 = ssub.s32 %s16, 1
      // Predicated region
      $region13: #{block_forward.1} parent=11 // pred_check
        %p260 = pneg %p49
      $region14: #{block_forward.1} parent=11 // pred_check_branch
        %262 = sbr.rel (%p260) target = $region16
      $region15: #{block_forward.1} parent=11 // pred_region
        _
      $region16: #{block_forward.1} parent=11 // pred_fallthru
        _
      // Predicated region
      $region17: #{block_forward.1} parent=11 // pred_check
        %p263 = pneg %p70
      $region18: #{block_forward.1} parent=11 // pred_check_branch
        %265 = sbr.rel (%p263) target = $region20
      $region19: #{block_forward.1} parent=11 // pred_region
        _
      $region20: #{block_forward.1} parent=11 // pred_fallthru
        _
      // Predicated region
      $region21: #{block_forward.1} parent=11 // pred_check
        %p266 = pneg %p91
      $region22: #{block_forward.1} parent=11 // pred_check_branch
        %268 = sbr.rel (%p266) target = $region24
      $region23: #{block_forward.1} parent=11 // pred_region
        _
      $region24: #{block_forward.1} parent=11 // pred_fallthru
        _
      // Predicated region
      $region25: #{block_forward.1} parent=11 // pred_check
        %p269 = pneg %p112
      $region26: #{block_forward.1} parent=11 // pred_check_branch
        %271 = sbr.rel (%p269) target = $region28
      $region27: #{block_forward.1} parent=11 // pred_region
        _
      $region28: #{block_forward.1} parent=11 // pred_fallthru
        _
      // Predicated region
      $region29: #{block_forward.1} parent=11 // pred_check
        %p272 = pneg %p133
      $region30: #{block_forward.1} parent=11 // pred_check_branch
        %274 = sbr.rel (%p272) target = $region32
      $region31: #{block_forward.1} parent=11 // pred_region
        _
      $region32: #{block_forward.1} parent=11 // pred_fallthru
        _
      // Predicated region
      $region33: #{block_forward.1} parent=11 // pred_check
        %p275 = pneg %p154
      $region34: #{block_forward.1} parent=11 // pred_check_branch
        %277 = sbr.rel (%p275) target = $region36
      $region35: #{block_forward.1} parent=11 // pred_region
        _
      $region36: #{block_forward.1} parent=11 // pred_fallthru
        _
      // Predicated region
      $region37: #{block_forward.1} parent=11 // pred_check
        %p278 = pneg %p175
      $region38: #{block_forward.1} parent=11 // pred_check_branch
        %280 = sbr.rel (%p278) target = $region40
      $region39: #{block_forward.1} parent=11 // pred_region
        _
      $region40: #{block_forward.1} parent=11 // pred_fallthru
        _
      // Predicated region
      $region41: #{block_forward.1} parent=11 // pred_check
        %p281 = pneg %p196
      $region42: #{block_forward.1} parent=11 // pred_check_branch
        %283 = sbr.rel (%p281) target = $region44
      $region43: #{block_forward.1} parent=11 // pred_region
        _
      $region44: #{block_forward.1} parent=11 // pred_fallthru
        _
      // Predicated region
      $region45: #{block_forward.1} parent=11 // pred_check
        %p284 = pneg %p217
      $region46: #{block_forward.1} parent=11 // pred_check_branch
        %286 = sbr.rel (%p284) target = $region48
      $region47: #{block_forward.1} parent=11 // pred_region
        _
      $region48: #{block_forward.1} parent=11 // pred_fallthru
        _
    $region12: #{block_forward.1} parent=5 // pred_fallthru
      _
    %p287 = scmp.lt.s32.totalorder %s16, 4
    // Predicated region
    $region49: #{block_forward.1} parent=5 // pred_check
      %p288 = pneg %p287
    $region50: #{block_forward.1} parent=5 // pred_check_branch
      %290 = sbr.rel (%p288) target = $region52
    $region51: #{block_forward.1} parent=5 // pred_region
      _
    $region52: #{block_forward.1} parent=5 // pred_fallthru
      _
    %p291 = scmp.le.s32.totalorder 1, %s16
    %p292 = scmp.lt.s32.totalorder %s16, 5
    %p293 = pnand %p291, %p292
    %p294 = pneg %p293
    // Predicated region
    $region53: #{block_forward.1} parent=5 // pred_check
      _
    $region54: #{block_forward.1} parent=5 // pred_check_branch
      %296 = sbr.rel (%p293) target = $region56
    $region55: #{block_forward.1} parent=5 // pred_region
      %s297 = ssub.s32 %s16, 1
      %p298 = pneg %p49
      %p299 = pneg %p46
      %p300 = pneg %p70
      %p301 = pneg %p67
      %p302 = pneg %p91
      %p303 = pneg %p88
      %p304 = pneg %p112
      %p305 = pneg %p109
      %p306 = pneg %p133
      %p307 = pneg %p130
      %p308 = pneg %p154
      %p309 = pneg %p151
      %p310 = pneg %p175
      %p311 = pneg %p172
      %p312 = pneg %p196
      %p313 = pneg %p193
      %p314 = pneg %p217
      %p315 = pneg %p214
      %p316 = pneg %p245
      %p317 = pneg %p242
      %s318 = smul.u32 4, %s26
      %p319 = scmp.lt.s32.totalorder %s25, 1
      %s320 = scalar_select %p319, %s25, 1
      %p321 = scmp.lt.s32.totalorder %s318, 7
      %s322 = scalar_select %p321, %s318, 7
      %s323 = smul.addr %s320, 8
      %s324 = sadd.s32 %s322, %s323
      %s325 = smul.addr %s324, 8
      %s326 = scalar_lea.vmem %s10, %s325
      %s327 = smul.u32 4, %s26
      %p328 = scmp.lt.s32.totalorder %s25, 1
      %s329 = scalar_select %p328, %s25, 1
      %p330 = scmp.lt.s32.totalorder %s327, 7
      %s331 = scalar_select %p330, %s327, 7
      %s332 = smul.addr %s329, 8
      %s333 = sadd.s32 %s331, %s332
      %s334 = smul.addr %s333, 8
      %s335 = scalar_lea.vmem %s10, %s334
      %s336 = smul.u32 4, %s26
      %s338 = smul.u32 %s25, 20
      %s339 = smul.u32 %s26, 8
      %s340 = sadd.s32 %s338, %s339
      $region57: #{block_forward.1} parent=55
        #allocation5 [shape = 's32[1]{0}', space=sflag, size = 0x4, scoped, tag = 'scoped memory for block_forward.1']
        %s341 = smul.u32 %s340, 24
        %s342 = scalar_lea.vmem %s0, %s341
        %p344 = scmp.lt.u32.totalorder 288, 8
        %p345 = pneg %p344
        // Predicated region
        $region58: #{block_forward.1} parent=57 // pred_check
          _
        $region59: #{block_forward.1} parent=57 // pred_check_branch
          %347 = sbr.rel (%p344) target = $region61
        $region60: #{block_forward.1} parent=57 // pred_region
          %s363 = sand.u32 288, 7
          %p364 = scmp.eq.s32.totalorder %s363, 0
          // Predicated region
          $region73: #{block_forward.1} parent=60 // pred_check
            %p365 = pneg %p364
          $region74: #{block_forward.1} parent=60 // pred_check_branch
            %367 = sbr.rel (%p365) target = $region76
          $region75: #{block_forward.1} parent=60 // pred_region
            loop: start=0, step=1, limit=1
            $region77: #{block_forward.1} parent=75 // loop_pre_header
              _
            $region78: #{block_forward.1} parent=75 // loop_header
              %s369 = sphi 0, %s373
              %p370 = scmp.ge.s32.totalorder %s369, 1
              %s374 = sphi %s342, %s342
              %s375 = sphi [#allocation2], [#allocation2]
            $region79: #{block_forward.1} parent=75 // loop_header_branch
              %372 = sbr.rel (%p370) target = $region83
            $region80: #{block_forward.1} parent=75 // loop_body
              %v376 = vld [vmem:[%s374] sm:$0xff]
              %377 = vst [vmem:[%s375] sm:$0xff] %v376
              %v378 = vld [vmem:[%s374 + $0x8] sm:$0xff]
              %379 = vst [vmem:[%s375 + $0x8] sm:$0xff] %v378
              %v380 = vld [vmem:[%s374 + $0x10] sm:$0xff]
              %381 = vst [vmem:[%s375 + $0x10] sm:$0xff] %v380
              %v382 = vld [vmem:[%s374 + $0x18] sm:$0xff]
              %383 = vst [vmem:[%s375 + $0x18] sm:$0xff] %v382
              %v384 = vld [vmem:[%s374 + $0x20] sm:$0xff]
              %385 = vst [vmem:[%s375 + $0x20] sm:$0xff] %v384
              %v386 = vld [vmem:[%s374 + $0x28] sm:$0xff]
              %387 = vst [vmem:[%s375 + $0x28] sm:$0xff] %v386
              %v388 = vld [vmem:[%s374 + $0x30] sm:$0xff]
              %389 = vst [vmem:[%s375 + $0x30] sm:$0xff] %v388
              %v390 = vld [vmem:[%s374 + $0x38] sm:$0xff]
              %391 = vst [vmem:[%s375 + $0x38] sm:$0xff] %v390
              %v392 = vld [vmem:[%s374 + $0x40] sm:$0xff]
              %393 = vst [vmem:[%s375 + $0x40] sm:$0xff] %v392
              %v394 = vld [vmem:[%s374 + $0x48] sm:$0xff]
              %395 = vst [vmem:[%s375 + $0x48] sm:$0xff] %v394
              %v396 = vld [vmem:[%s374 + $0x50] sm:$0xff]
              %397 = vst [vmem:[%s375 + $0x50] sm:$0xff] %v396
              %v398 = vld [vmem:[%s374 + $0x58] sm:$0xff]
              %399 = vst [vmem:[%s375 + $0x58] sm:$0xff] %v398
              %v400 = vld [vmem:[%s374 + $0x60] sm:$0xff]
              %401 = vst [vmem:[%s375 + $0x60] sm:$0xff] %v400
              %v402 = vld [vmem:[%s374 + $0x68] sm:$0xff]
              %403 = vst [vmem:[%s375 + $0x68] sm:$0xff] %v402
              %v404 = vld [vmem:[%s374 + $0x70] sm:$0xff]
              %405 = vst [vmem:[%s375 + $0x70] sm:$0xff] %v404
              %v406 = vld [vmem:[%s374 + $0x78] sm:$0xff]
              %407 = vst [vmem:[%s375 + $0x78] sm:$0xff] %v406
              %v408 = vld [vmem:[%s374 + $0x80] sm:$0xff]
              %409 = vst [vmem:[%s375 + $0x80] sm:$0xff] %v408
              %v410 = vld [vmem:[%s374 + $0x88] sm:$0xff]
              %411 = vst [vmem:[%s375 + $0x88] sm:$0xff] %v410
              %v412 = vld [vmem:[%s374 + $0x90] sm:$0xff]
              %413 = vst [vmem:[%s375 + $0x90] sm:$0xff] %v412
              %v414 = vld [vmem:[%s374 + $0x98] sm:$0xff]
              %415 = vst [vmem:[%s375 + $0x98] sm:$0xff] %v414
              %v416 = vld [vmem:[%s374 + $0xa0] sm:$0xff]
              %417 = vst [vmem:[%s375 + $0xa0] sm:$0xff] %v416
              %v418 = vld [vmem:[%s374 + $0xa8] sm:$0xff]
              %419 = vst [vmem:[%s375 + $0xa8] sm:$0xff] %v418
              %v420 = vld [vmem:[%s374 + $0xb0] sm:$0xff]
              %421 = vst [vmem:[%s375 + $0xb0] sm:$0xff] %v420
              %v422 = vld [vmem:[%s374 + $0xb8] sm:$0xff]
              %423 = vst [vmem:[%s375 + $0xb8] sm:$0xff] %v422
              %v424 = vld [vmem:[%s374 + $0xc0] sm:$0xff]
              %425 = vst [vmem:[%s375 + $0xc0] sm:$0xff] %v424
              %v426 = vld [vmem:[%s374 + $0xc8] sm:$0xff]
              %427 = vst [vmem:[%s375 + $0xc8] sm:$0xff] %v426
              %v428 = vld [vmem:[%s374 + $0xd0] sm:$0xff]
              %429 = vst [vmem:[%s375 + $0xd0] sm:$0xff] %v428
              %v430 = vld [vmem:[%s374 + $0xd8] sm:$0xff]
              %431 = vst [vmem:[%s375 + $0xd8] sm:$0xff] %v430
              %v432 = vld [vmem:[%s374 + $0xe0] sm:$0xff]
              %433 = vst [vmem:[%s375 + $0xe0] sm:$0xff] %v432
              %v434 = vld [vmem:[%s374 + $0xe8] sm:$0xff]
              %435 = vst [vmem:[%s375 + $0xe8] sm:$0xff] %v434
              %v436 = vld [vmem:[%s374 + $0xf0] sm:$0xff]
              %437 = vst [vmem:[%s375 + $0xf0] sm:$0xff] %v436
              %v438 = vld [vmem:[%s374 + $0xf8] sm:$0xff]
              %439 = vst [vmem:[%s375 + $0xf8] sm:$0xff] %v438
              %v440 = vld [vmem:[%s374 + $0x100] sm:$0xff]
              %441 = vst [vmem:[%s375 + $0x100] sm:$0xff] %v440
              %v442 = vld [vmem:[%s374 + $0x108] sm:$0xff]
              %443 = vst [vmem:[%s375 + $0x108] sm:$0xff] %v442
              %v444 = vld [vmem:[%s374 + $0x110] sm:$0xff]
              %445 = vst [vmem:[%s375 + $0x110] sm:$0xff] %v444
              %v446 = vld [vmem:[%s374 + $0x118] sm:$0xff]
              %447 = vst [vmem:[%s375 + $0x118] sm:$0xff] %v446
            $region81: #{block_forward.1} parent=75 // loop_footer
              %s373 = sadd.s32 1, %s369
            $region82: #{block_forward.1} parent=75 // loop_footer_branch
              %368 = sbr.rel target = $region78
            $region83: #{block_forward.1} parent=75 // loop_exit
              _
          $region76: #{block_forward.1} parent=60 // pred_fallthru
            _
          %p448 = pneg %p364
          // Predicated region
          $region84: #{block_forward.1} parent=60 // pred_check
            _
          $region85: #{block_forward.1} parent=60 // pred_check_branch
            %450 = sbr.rel (%p364) target = $region87
          $region86: #{block_forward.1} parent=60 // pred_region
            %s451 = sand.u32 288, 7
          $region87: #{block_forward.1} parent=60 // pred_fallthru
            _
        $region61: #{block_forward.1} parent=57 // pred_fallthru
          _
        // Predicated region
        $region62: #{block_forward.1} parent=57 // pred_check
          %p348 = pneg %p344
        $region63: #{block_forward.1} parent=57 // pred_check_branch
          %350 = sbr.rel (%p348) target = $region65
        $region64: #{block_forward.1} parent=57 // pred_region
          %s351 = sshll.u32 1, 288
          %s352 = ssub.s32 %s351, 1
          loop: start=0, step=1, limit=1
          $region66: #{block_forward.1} parent=64 // loop_pre_header
            _
          $region67: #{block_forward.1} parent=64 // loop_header
            %s354 = sphi 0, %s358
            %p355 = scmp.ge.s32.totalorder %s354, 1
            %s359 = sphi %s342, %s342
            %s360 = sphi [#allocation2], [#allocation2]
          $region68: #{block_forward.1} parent=64 // loop_header_branch
            %357 = sbr.rel (%p355) target = $region72
          $region69: #{block_forward.1} parent=64 // loop_body
            %v361 = vld [vmem:[%s359] sm:%s352]
            %362 = vst [vmem:[%s360] sm:%s352] %v361
          $region70: #{block_forward.1} parent=64 // loop_footer
            %s358 = sadd.s32 1, %s354
          $region71: #{block_forward.1} parent=64 // loop_footer_branch
            %353 = sbr.rel target = $region67
          $region72: #{block_forward.1} parent=64 // loop_exit
            _
        $region65: #{block_forward.1} parent=57 // pred_fallthru
          _
        // Predicated region
        $region88: #{block_forward.1} parent=57 // pred_check
          _
        $region89: #{block_forward.1} parent=57 // pred_check_branch
          %454 = sbr.rel (0) target = $region91
        $region90: #{block_forward.1} parent=57 // pred_region
          %455 = vsyncadd [#allocation5], 4608
        $region91: #{block_forward.1} parent=57 // pred_fallthru
          _
        %s456 = smul.u32 12, 24
        %s457 = smul.u32 %s456, 1
        %s458 = sshll.u32 %s457, 4
        %459 = dma.done [#allocation5], %s458
      %v460 = vld [vmem:[#allocation2] sm:$0xff]
      %v461 = vld [vmem:[#allocation2 + $0x8] sm:$0xff]
      %v462 = vld [vmem:[#allocation2 + $0x10] sm:$0xff]
      %v463 = vld [vmem:[#allocation2 + $0x18] sm:$0xff]
      %v464 = vld [vmem:[#allocation2 + $0x20] sm:$0xff]
      %v465 = vld [vmem:[#allocation2 + $0x28] sm:$0xff]
      %v466 = vld [vmem:[#allocation2 + $0x30] sm:$0xff]
      %v467 = vld [vmem:[#allocation2 + $0x38] sm:$0xff]
      %v468 = vld [vmem:[#allocation2 + $0x40] sm:$0xff]
      %v469 = vld [vmem:[#allocation2 + $0x48] sm:$0xff]
      %v470 = vld [vmem:[#allocation2 + $0x50] sm:$0xff]
      %v471 = vld [vmem:[#allocation2 + $0x58] sm:$0xff]
      %v472 = vld [vmem:[#allocation2 + $0x60] sm:$0xff]
      %v473 = vld [vmem:[#allocation2 + $0x68] sm:$0xff]
      %v474 = vld [vmem:[#allocation2 + $0x70] sm:$0xff]
      %v475 = vld [vmem:[#allocation2 + $0x78] sm:$0xff]
      %v476 = vld [vmem:[#allocation2 + $0x80] sm:$0xff]
      %v477 = vld [vmem:[#allocation2 + $0x88] sm:$0xff]
      %v478 = vld [vmem:[#allocation2 + $0x90] sm:$0xff]
      %v479 = vld [vmem:[#allocation2 + $0x98] sm:$0xff]
      %v480 = vld [vmem:[#allocation2 + $0xa0] sm:$0xff]
      %v481 = vld [vmem:[#allocation2 + $0xa8] sm:$0xff]
      %v482 = vld [vmem:[#allocation2 + $0xb0] sm:$0xff]
      %v483 = vld [vmem:[#allocation2 + $0xb8] sm:$0xff]
      %v484 = vld [vmem:[#allocation2 + $0xc0] sm:$0xff]
      %v485 = vld [vmem:[#allocation2 + $0xc8] sm:$0xff]
      %v486 = vld [vmem:[#allocation2 + $0xd0] sm:$0xff]
      %v487 = vld [vmem:[#allocation2 + $0xd8] sm:$0xff]
      %v488 = vld [vmem:[#allocation2 + $0xe0] sm:$0xff]
      %v489 = vld [vmem:[#allocation2 + $0xe8] sm:$0xff]
      %v490 = vld [vmem:[#allocation2 + $0xf0] sm:$0xff]
      %v491 = vld [vmem:[#allocation2 + $0xf8] sm:$0xff]
      %v492 = vld [vmem:[#allocation2 + $0x100] sm:$0xff]
      %v493 = vld [vmem:[#allocation2 + $0x108] sm:$0xff]
      %v494 = vld [vmem:[#allocation2 + $0x110] sm:$0xff]
      %v495 = vld [vmem:[#allocation2 + $0x118] sm:$0xff]
      %v496 = vmul.f32 %v460, 0.5
      %v497 = vmul.f32 %v461, 0.5
      %v498 = vmul.f32 %v462, 0.5
      %v499 = vmul.f32 %v463, 0.5
      %v500 = vmul.f32 %v464, 0.5
      %v501 = vmul.f32 %v465, 0.5
      %v502 = vmul.f32 %v466, 0.5
      %v503 = vmul.f32 %v467, 0.5
      %v504 = vmul.f32 %v468, 0.5
      %v505 = vmul.f32 %v469, 0.5
      %v506 = vmul.f32 %v470, 0.5
      %v507 = vmul.f32 %v471, 0.5
      %v508 = vmul.f32 %v472, 0.5
      %v509 = vmul.f32 %v473, 0.5
      %v510 = vmul.f32 %v474, 0.5
      %v511 = vmul.f32 %v475, 0.5
      %v512 = vmul.f32 %v476, 0.5
      %v513 = vmul.f32 %v477, 0.5
      %v514 = vmul.f32 %v478, 0.5
      %v515 = vmul.f32 %v479, 0.5
      %v516 = vmul.f32 %v480, 0.5
      %v517 = vmul.f32 %v481, 0.5
      %v518 = vmul.f32 %v482, 0.5
      %v519 = vmul.f32 %v483, 0.5
      %v520 = vmul.f32 %v484, 0.5
      %v521 = vmul.f32 %v485, 0.5
      %v522 = vmul.f32 %v486, 0.5
      %v523 = vmul.f32 %v487, 0.5
      %v524 = vmul.f32 %v488, 0.5
      %v525 = vmul.f32 %v489, 0.5
      %v526 = vmul.f32 %v490, 0.5
      %v527 = vmul.f32 %v491, 0.5
      %v528 = vmul.f32 %v492, 0.5
      %v529 = vmul.f32 %v493, 0.5
      %v530 = vmul.f32 %v494, 0.5
      %v531 = vmul.f32 %v495, 0.5
      %v532 = vmul.f32 %v460, 0.044715
      %v533 = vmul.f32 %v461, 0.044715
      %v534 = vmul.f32 %v462, 0.044715
      %v535 = vmul.f32 %v463, 0.044715
      %v536 = vmul.f32 %v464, 0.044715
      %v537 = vmul.f32 %v465, 0.044715
      %v538 = vmul.f32 %v466, 0.044715
      %v539 = vmul.f32 %v467, 0.044715
      %v540 = vmul.f32 %v468, 0.044715
      %v541 = vmul.f32 %v469, 0.044715
      %v542 = vmul.f32 %v470, 0.044715
      %v543 = vmul.f32 %v471, 0.044715
      %v544 = vmul.f32 %v472, 0.044715
      %v545 = vmul.f32 %v473, 0.044715
      %v546 = vmul.f32 %v474, 0.044715
      %v547 = vmul.f32 %v475, 0.044715
      %v548 = vmul.f32 %v476, 0.044715
      %v549 = vmul.f32 %v477, 0.044715
      %v550 = vmul.f32 %v478, 0.044715
      %v551 = vmul.f32 %v479, 0.044715
      %v552 = vmul.f32 %v480, 0.044715
      %v553 = vmul.f32 %v481, 0.044715
      %v554 = vmul.f32 %v482, 0.044715
      %v555 = vmul.f32 %v483, 0.044715
      %v556 = vmul.f32 %v484, 0.044715
      %v557 = vmul.f32 %v485, 0.044715
      %v558 = vmul.f32 %v486, 0.044715
      %v559 = vmul.f32 %v487, 0.044715
      %v560 = vmul.f32 %v488, 0.044715
      %v561 = vmul.f32 %v489, 0.044715
      %v562 = vmul.f32 %v490, 0.044715
      %v563 = vmul.f32 %v491, 0.044715
      %v564 = vmul.f32 %v492, 0.044715
      %v565 = vmul.f32 %v493, 0.044715
      %v566 = vmul.f32 %v494, 0.044715
      %v567 = vmul.f32 %v495, 0.044715
      %v568 = vmul.f32 %v532, %v460
      %v569 = vmul.f32 %v533, %v461
      %v570 = vmul.f32 %v534, %v462
      %v571 = vmul.f32 %v535, %v463
      %v572 = vmul.f32 %v536, %v464
      %v573 = vmul.f32 %v537, %v465
      %v574 = vmul.f32 %v538, %v466
      %v575 = vmul.f32 %v539, %v467
      %v576 = vmul.f32 %v540, %v468
      %v577 = vmul.f32 %v541, %v469
      %v578 = vmul.f32 %v542, %v470
      %v579 = vmul.f32 %v543, %v471
      %v580 = vmul.f32 %v544, %v472
      %v581 = vmul.f32 %v545, %v473
      %v582 = vmul.f32 %v546, %v474
      %v583 = vmul.f32 %v547, %v475
      %v584 = vmul.f32 %v548, %v476
      %v585 = vmul.f32 %v549, %v477
      %v586 = vmul.f32 %v550, %v478
      %v587 = vmul.f32 %v551, %v479
      %v588 = vmul.f32 %v552, %v480
      %v589 = vmul.f32 %v553, %v481
      %v590 = vmul.f32 %v554, %v482
      %v591 = vmul.f32 %v555, %v483
      %v592 = vmul.f32 %v556, %v484
      %v593 = vmul.f32 %v557, %v485
      %v594 = vmul.f32 %v558, %v486
      %v595 = vmul.f32 %v559, %v487
      %v596 = vmul.f32 %v560, %v488
      %v597 = vmul.f32 %v561, %v489
      %v598 = vmul.f32 %v562, %v490
      %v599 = vmul.f32 %v563, %v491
      %v600 = vmul.f32 %v564, %v492
      %v601 = vmul.f32 %v565, %v493
      %v602 = vmul.f32 %v566, %v494
      %v603 = vmul.f32 %v567, %v495
      %v604 = vmul.f32 %v568, %v460
      %v605 = vmul.f32 %v569, %v461
      %v606 = vmul.f32 %v570, %v462
      %v607 = vmul.f32 %v571, %v463
      %v608 = vmul.f32 %v572, %v464
      %v609 = vmul.f32 %v573, %v465
      %v610 = vmul.f32 %v574, %v466
      %v611 = vmul.f32 %v575, %v467
      %v612 = vmul.f32 %v576, %v468
      %v613 = vmul.f32 %v577, %v469
      %v614 = vmul.f32 %v578, %v470
      %v615 = vmul.f32 %v579, %v471
      %v616 = vmul.f32 %v580, %v472
      %v617 = vmul.f32 %v581, %v473
      %v618 = vmul.f32 %v582, %v474
      %v619 = vmul.f32 %v583, %v475
      %v620 = vmul.f32 %v584, %v476
      %v621 = vmul.f32 %v585, %v477
      %v622 = vmul.f32 %v586, %v478
      %v623 = vmul.f32 %v587, %v479
      %v624 = vmul.f32 %v588, %v480
      %v625 = vmul.f32 %v589, %v481
      %v626 = vmul.f32 %v590, %v482
      %v627 = vmul.f32 %v591, %v483
      %v628 = vmul.f32 %v592, %v484
      %v629 = vmul.f32 %v593, %v485
      %v630 = vmul.f32 %v594, %v486
      %v631 = vmul.f32 %v595, %v487
      %v632 = vmul.f32 %v596, %v488
      %v633 = vmul.f32 %v597, %v489
      %v634 = vmul.f32 %v598, %v490
      %v635 = vmul.f32 %v599, %v491
      %v636 = vmul.f32 %v600, %v492
      %v637 = vmul.f32 %v601, %v493
      %v638 = vmul.f32 %v602, %v494
      %v639 = vmul.f32 %v603, %v495
      %v640 = vadd.f32 %v460, %v604
      %v641 = vadd.f32 %v461, %v605
      %v642 = vadd.f32 %v462, %v606
      %v643 = vadd.f32 %v463, %v607
      %v644 = vadd.f32 %v464, %v608
      %v645 = vadd.f32 %v465, %v609
      %v646 = vadd.f32 %v466, %v610
      %v647 = vadd.f32 %v467, %v611
      %v648 = vadd.f32 %v468, %v612
      %v649 = vadd.f32 %v469, %v613
      %v650 = vadd.f32 %v470, %v614
      %v651 = vadd.f32 %v471, %v615
      %v652 = vadd.f32 %v472, %v616
      %v653 = vadd.f32 %v473, %v617
      %v654 = vadd.f32 %v474, %v618
      %v655 = vadd.f32 %v475, %v619
      %v656 = vadd.f32 %v476, %v620
      %v657 = vadd.f32 %v477, %v621
      %v658 = vadd.f32 %v478, %v622
      %v659 = vadd.f32 %v479, %v623
      %v660 = vadd.f32 %v480, %v624
      %v661 = vadd.f32 %v481, %v625
      %v662 = vadd.f32 %v482, %v626
      %v663 = vadd.f32 %v483, %v627
      %v664 = vadd.f32 %v484, %v628
      %v665 = vadd.f32 %v485, %v629
      %v666 = vadd.f32 %v486, %v630
      %v667 = vadd.f32 %v487, %v631
      %v668 = vadd.f32 %v488, %v632
      %v669 = vadd.f32 %v489, %v633
      %v670 = vadd.f32 %v490, %v634
      %v671 = vadd.f32 %v491, %v635
      %v672 = vadd.f32 %v492, %v636
      %v673 = vadd.f32 %v493, %v637
      %v674 = vadd.f32 %v494, %v638
      %v675 = vadd.f32 %v495, %v639
      %v676 = vmul.f32 %v640, 0.7978846
      %v677 = vmul.f32 %v641, 0.7978846
      %v678 = vmul.f32 %v642, 0.7978846
      %v679 = vmul.f32 %v643, 0.7978846
      %v680 = vmul.f32 %v644, 0.7978846
      %v681 = vmul.f32 %v645, 0.7978846
      %v682 = vmul.f32 %v646, 0.7978846
      %v683 = vmul.f32 %v647, 0.7978846
      %v684 = vmul.f32 %v648, 0.7978846
      %v685 = vmul.f32 %v649, 0.7978846
      %v686 = vmul.f32 %v650, 0.7978846
      %v687 = vmul.f32 %v651, 0.7978846
      %v688 = vmul.f32 %v652, 0.7978846
      %v689 = vmul.f32 %v653, 0.7978846
      %v690 = vmul.f32 %v654, 0.7978846
      %v691 = vmul.f32 %v655, 0.7978846
      %v692 = vmul.f32 %v656, 0.7978846
      %v693 = vmul.f32 %v657, 0.7978846
      %v694 = vmul.f32 %v658, 0.7978846
      %v695 = vmul.f32 %v659, 0.7978846
      %v696 = vmul.f32 %v660, 0.7978846
      %v697 = vmul.f32 %v661, 0.7978846
      %v698 = vmul.f32 %v662, 0.7978846
      %v699 = vmul.f32 %v663, 0.7978846
      %v700 = vmul.f32 %v664, 0.7978846
      %v701 = vmul.f32 %v665, 0.7978846
      %v702 = vmul.f32 %v666, 0.7978846
      %v703 = vmul.f32 %v667, 0.7978846
      %v704 = vmul.f32 %v668, 0.7978846
      %v705 = vmul.f32 %v669, 0.7978846
      %v706 = vmul.f32 %v670, 0.7978846
      %v707 = vmul.f32 %v671, 0.7978846
      %v708 = vmul.f32 %v672, 0.7978846
      %v709 = vmul.f32 %v673, 0.7978846
      %v710 = vmul.f32 %v674, 0.7978846
      %v711 = vmul.f32 %v675, 0.7978846
      %v712 = vtanh.pop %v676
      %v713 = vtanh.pop %v677
      %v714 = vtanh.pop %v678
      %v715 = vtanh.pop %v679
      %v716 = vtanh.pop %v680
      %v717 = vtanh.pop %v681
      %v718 = vtanh.pop %v682
      %v719 = vtanh.pop %v683
      %v720 = vtanh.pop %v684
      %v721 = vtanh.pop %v685
      %v722 = vtanh.pop %v686
      %v723 = vtanh.pop %v687
      %v724 = vtanh.pop %v688
      %v725 = vtanh.pop %v689
      %v726 = vtanh.pop %v690
      %v727 = vtanh.pop %v691
      %v728 = vtanh.pop %v692
      %v729 = vtanh.pop %v693
      %v730 = vtanh.pop %v694
      %v731 = vtanh.pop %v695
      %v732 = vtanh.pop %v696
      %v733 = vtanh.pop %v697
      %v734 = vtanh.pop %v698
      %v735 = vtanh.pop %v699
      %v736 = vtanh.pop %v700
      %v737 = vtanh.pop %v701
      %v738 = vtanh.pop %v702
      %v739 = vtanh.pop %v703
      %v740 = vtanh.pop %v704
      %v741 = vtanh.pop %v705
      %v742 = vtanh.pop %v706
      %v743 = vtanh.pop %v707
      %v744 = vtanh.pop %v708
      %v745 = vtanh.pop %v709
      %v746 = vtanh.pop %v710
      %v747 = vtanh.pop %v711
      %v748 = vadd.f32 %v712, 1.0
      %v749 = vadd.f32 %v713, 1.0
      %v750 = vadd.f32 %v714, 1.0
      %v751 = vadd.f32 %v715, 1.0
      %v752 = vadd.f32 %v716, 1.0
      %v753 = vadd.f32 %v717, 1.0
      %v754 = vadd.f32 %v718, 1.0
      %v755 = vadd.f32 %v719, 1.0
      %v756 = vadd.f32 %v720, 1.0
      %v757 = vadd.f32 %v721, 1.0
      %v758 = vadd.f32 %v722, 1.0
      %v759 = vadd.f32 %v723, 1.0
      %v760 = vadd.f32 %v724, 1.0
      %v761 = vadd.f32 %v725, 1.0
      %v762 = vadd.f32 %v726, 1.0
      %v763 = vadd.f32 %v727, 1.0
      %v764 = vadd.f32 %v728, 1.0
      %v765 = vadd.f32 %v729, 1.0
      %v766 = vadd.f32 %v730, 1.0
      %v767 = vadd.f32 %v731, 1.0
      %v768 = vadd.f32 %v732, 1.0
      %v769 = vadd.f32 %v733, 1.0
      %v770 = vadd.f32 %v734, 1.0
      %v771 = vadd.f32 %v735, 1.0
      %v772 = vadd.f32 %v736, 1.0
      %v773 = vadd.f32 %v737, 1.0
      %v774 = vadd.f32 %v738, 1.0
      %v775 = vadd.f32 %v739, 1.0
      %v776 = vadd.f32 %v740, 1.0
      %v777 = vadd.f32 %v741, 1.0
      %v778 = vadd.f32 %v742, 1.0
      %v779 = vadd.f32 %v743, 1.0
      %v780 = vadd.f32 %v744, 1.0
      %v781 = vadd.f32 %v745, 1.0
      %v782 = vadd.f32 %v746, 1.0
      %v783 = vadd.f32 %v747, 1.0
      %v784 = vmul.f32 %v496, %v748
      %v785 = vmul.f32 %v497, %v749
      %v786 = vmul.f32 %v498, %v750
      %v787 = vmul.f32 %v499, %v751
      %v788 = vmul.f32 %v500, %v752
      %v789 = vmul.f32 %v501, %v753
      %v790 = vmul.f32 %v502, %v754
      %v791 = vmul.f32 %v503, %v755
      %v792 = vmul.f32 %v504, %v756
      %v793 = vmul.f32 %v505, %v757
      %v794 = vmul.f32 %v506, %v758
      %v795 = vmul.f32 %v507, %v759
      %v796 = vmul.f32 %v508, %v760
      %v797 = vmul.f32 %v509, %v761
      %v798 = vmul.f32 %v510, %v762
      %v799 = vmul.f32 %v511, %v763
      %v800 = vmul.f32 %v512, %v764
      %v801 = vmul.f32 %v513, %v765
      %v802 = vmul.f32 %v514, %v766
      %v803 = vmul.f32 %v515, %v767
      %v804 = vmul.f32 %v516, %v768
      %v805 = vmul.f32 %v517, %v769
      %v806 = vmul.f32 %v518, %v770
      %v807 = vmul.f32 %v519, %v771
      %v808 = vmul.f32 %v520, %v772
      %v809 = vmul.f32 %v521, %v773
      %v810 = vmul.f32 %v522, %v774
      %v811 = vmul.f32 %v523, %v775
      %v812 = vmul.f32 %v524, %v776
      %v813 = vmul.f32 %v525, %v777
      %v814 = vmul.f32 %v526, %v778
      %v815 = vmul.f32 %v527, %v779
      %v816 = vmul.f32 %v528, %v780
      %v817 = vmul.f32 %v529, %v781
      %v818 = vmul.f32 %v530, %v782
      %v819 = vmul.f32 %v531, %v783
      %v820 = vpack.c.bf16 %v785, %v784
      %v821 = vpack.c.bf16 %v787, %v786
      %v822 = vpack.c.bf16 %v789, %v788
      %v823 = vpack.c.bf16 %v791, %v790
      %v824 = vpack.c.bf16 %v793, %v792
      %v825 = vpack.c.bf16 %v795, %v794
      %v826 = vpack.c.bf16 %v797, %v796
      %v827 = vpack.c.bf16 %v799, %v798
      %v828 = vpack.c.bf16 %v801, %v800
      %v829 = vpack.c.bf16 %v803, %v802
      %v830 = vpack.c.bf16 %v805, %v804
      %v831 = vpack.c.bf16 %v807, %v806
      %v832 = vpack.c.bf16 %v809, %v808
      %v833 = vpack.c.bf16 %v811, %v810
      %v834 = vpack.c.bf16 %v813, %v812
      %v835 = vpack.c.bf16 %v815, %v814
      %v836 = vpack.c.bf16 %v817, %v816
      %v837 = vpack.c.bf16 %v819, %v818
      %v838 = vld [vmem:[%s1] sm:$0xf]
      %v839 = vld [vmem:[%s1 + $0x4] sm:$0xf]
      %v840 = vld [vmem:[%s1 + $0x8] sm:$0xf]
      %v841 = vld [vmem:[%s1 + $0xc] sm:$0xf]
      %v842 = vld [vmem:[%s1 + $0x10] sm:$0xf]
      %v843 = vld [vmem:[%s1 + $0x14] sm:$0xf]
      %v844 = vld [vmem:[%s1 + $0x18] sm:$0xf]
      %v845 = vld [vmem:[%s1 + $0x1c] sm:$0xf]
      %v846 = vld [vmem:[%s1 + $0x20] sm:$0xf]
      %v847 = vld [vmem:[%s1 + $0x24] sm:$0xf]
      %v848 = vld [vmem:[%s1 + $0x28] sm:$0xf]
      %v849 = vld [vmem:[%s1 + $0x2c] sm:$0xf]
      %v850 = vld [vmem:[%s1 + $0x30] sm:$0xf]
      %v851 = vld [vmem:[%s1 + $0x34] sm:$0xf]
      %v852 = vld [vmem:[%s1 + $0x38] sm:$0xf]
      %v853 = vld [vmem:[%s1 + $0x3c] sm:$0xf]
      %v854 = vld [vmem:[%s2] sm:$0x1]
      %v856 = vlaneseq
      %v857 = vshrl.u32 %v856, 7
      %v858 = vsub.s32 0, %v857
      %v859 = vrot.slane %v854, %v858
      %v877 = vunpack.c.l.b16 %v838
      %v878 = vunpack.c.l.b16 %v839
      %v879 = vunpack.c.l.b16 %v840
      %v880 = vunpack.c.l.b16 %v841
      %v881 = vunpack.c.l.b16 %v842
      %v882 = vunpack.c.l.b16 %v843
      %v883 = vunpack.c.l.b16 %v844
      %v884 = vunpack.c.l.b16 %v845
      %v885 = vunpack.c.l.b16 %v846
      %v886 = vunpack.c.l.b16 %v847
      %v887 = vunpack.c.l.b16 %v848
      %v888 = vunpack.c.l.b16 %v849
      %v889 = vunpack.c.l.b16 %v850
      %v890 = vunpack.c.l.b16 %v851
      %v891 = vunpack.c.l.b16 %v852
      %v892 = vunpack.c.l.b16 %v853
      %v893 = vpack.c.b16 %v878, %v877
      %v894 = vpack.c.b16 %v880, %v879
      %v895 = vpack.c.b16 %v882, %v881
      %v896 = vpack.c.b16 %v884, %v883
      %v897 = vpack.c.b16 %v886, %v885
      %v898 = vpack.c.b16 %v888, %v887
      %v899 = vpack.c.b16 %v890, %v889
      %v900 = vpack.c.b16 %v892, %v891
      %909 = vmatprep.subr.bf16.mxu0 0
      %910 = vmatpush1.bf16.msra.mxu0 %v900
      %911 = vmatprep.subr.bf16.mxu0 0
      %912 = vmatpush1.bf16.msra.mxu0 %v899
      %913 = vmatprep.subr.bf16.mxu0 0
      %914 = vmatpush1.bf16.msra.mxu0 %v898
      %915 = vmatprep.subr.bf16.mxu0 0
      %916 = vmatpush1.bf16.msra.mxu0 %v897
      %917 = vmatprep.subr.bf16.mxu0 0
      %918 = vmatpush1.bf16.msra.mxu0 %v896
      %919 = vmatprep.subr.bf16.mxu0 0
      %920 = vmatpush1.bf16.msra.mxu0 %v895
      %921 = vmatprep.subr.bf16.mxu0 0
      %922 = vmatpush1.bf16.msra.mxu0 %v894
      %923 = vmatprep.subr.bf16.mxu0 0
      %924 = vmatpush1.bf16.msra.mxu0 %v893
      %925 = vmatprep.subr.bf16.mxu0 0
      %926 = vmatpush2.bf16.msra.mxu0 0
      %927 = vmatprep.subr.bf16.mxu0 0
      %928 = vmatpush2.bf16.msra.mxu0 0
      %929 = vmatprep.subr.bf16.mxu0 0
      %930 = vmatpush2.bf16.msra.mxu0 0
      %931 = vmatprep.subr.bf16.mxu0 0
      %932 = vmatpush2.bf16.msra.mxu0 0
      %933 = vmatprep.subr.bf16.mxu0 0
      %934 = vmatpush2.bf16.msra.mxu0 0
      %935 = vmatprep.subr.bf16.mxu0 0
      %936 = vmatpush2.bf16.msra.mxu0 0
      %937 = vmatprep.subr.bf16.mxu0 0
      %938 = vmatpush2.bf16.msra.mxu0 0
      %939 = vmatprep.subr.bf16.mxu0 0
      %940 = vmatpush2.bf16.msra.mxu0 0
      %941 = vmatprep.mubr.bf16.mxu0 0
      %942 = vmatmul.mubr.bf16.gmra.mxu0 %v820
      %v943 = vpop.f32.mrf.mxu0
      %v944 = vadd.f32 %v859, %v943
      %v945 = vpop.f32.mrf.mxu0
      %v946 = vpop.f32.mrf.mxu0
      %v947 = vadd.f32 %v859, %v946
      %v948 = vpop.f32.mrf.mxu0
      %949 = vmatprep.mubr.bf16.mxu0 0
      %950 = vmatmul.mubr.bf16.gmra.mxu0 %v821
      %v951 = vpop.f32.mrf.mxu0
      %v952 = vadd.f32 %v859, %v951
      %v953 = vpop.f32.mrf.mxu0
      %v954 = vpop.f32.mrf.mxu0
      %v955 = vadd.f32 %v859, %v954
      %v956 = vpop.f32.mrf.mxu0
      %957 = vmatprep.mubr.bf16.mxu0 0
      %958 = vmatmul.mubr.bf16.gmra.mxu0 %v822
      %v959 = vpop.f32.mrf.mxu0
      %v960 = vadd.f32 %v859, %v959
      %v961 = vpop.f32.mrf.mxu0
      %v962 = vpop.f32.mrf.mxu0
      %v963 = vadd.f32 %v859, %v962
      %v964 = vpop.f32.mrf.mxu0
      %965 = vmatprep.mubr.bf16.mxu0 0
      %966 = vmatmul.mubr.bf16.gmra.mxu0 %v823
      %v967 = vpop.f32.mrf.mxu0
      %v968 = vadd.f32 %v859, %v967
      %v969 = vpop.f32.mrf.mxu0
      %v970 = vpop.f32.mrf.mxu0
      %v971 = vadd.f32 %v859, %v970
      %v972 = vpop.f32.mrf.mxu0
      %973 = vmatprep.mubr.bf16.mxu0 0
      %974 = vmatmul.mubr.bf16.gmra.mxu0 %v824
      %v975 = vpop.f32.mrf.mxu0
      %v976 = vadd.f32 %v859, %v975
      %v977 = vpop.f32.mrf.mxu0
      %v978 = vpop.f32.mrf.mxu0
      %v979 = vadd.f32 %v859, %v978
      %v980 = vpop.f32.mrf.mxu0
      %981 = vmatprep.mubr.bf16.mxu0 0
      %982 = vmatmul.mubr.bf16.gmra.mxu0 %v825
      %v983 = vpop.f32.mrf.mxu0
      %v984 = vadd.f32 %v859, %v983
      %v985 = vpop.f32.mrf.mxu0
      %v986 = vpop.f32.mrf.mxu0
      %v987 = vadd.f32 %v859, %v986
      %v988 = vpop.f32.mrf.mxu0
      %989 = vmatprep.mubr.bf16.mxu0 0
      %990 = vmatmul.mubr.bf16.gmra.mxu0 %v826
      %v991 = vpop.f32.mrf.mxu0
      %v992 = vadd.f32 %v859, %v991
      %v993 = vpop.f32.mrf.mxu0
      %v994 = vpop.f32.mrf.mxu0
      %v995 = vadd.f32 %v859, %v994
      %v996 = vpop.f32.mrf.mxu0
      %997 = vmatprep.mubr.bf16.mxu0 0
      %998 = vmatmul.mubr.bf16.gmra.mxu0 %v827
      %v999 = vpop.f32.mrf.mxu0
      %v1000 = vadd.f32 %v859, %v999
      %v1001 = vpop.f32.mrf.mxu0
      %v1002 = vpop.f32.mrf.mxu0
      %v1003 = vadd.f32 %v859, %v1002
      %v1004 = vpop.f32.mrf.mxu0
      %1005 = vmatprep.mubr.bf16.mxu0 0
      %1006 = vmatmul.mubr.bf16.gmra.mxu0 %v828
      %v1007 = vpop.f32.mrf.mxu0
      %v1008 = vadd.f32 %v859, %v1007
      %v1009 = vpop.f32.mrf.mxu0
      %v1010 = vpop.f32.mrf.mxu0
      %v1011 = vadd.f32 %v859, %v1010
      %v1012 = vpop.f32.mrf.mxu0
      %1013 = vmatprep.mubr.bf16.mxu0 0
      %1014 = vmatmul.mubr.bf16.gmra.mxu0 %v829
      %v1015 = vpop.f32.mrf.mxu0
      %v1016 = vadd.f32 %v859, %v1015
      %v1017 = vpop.f32.mrf.mxu0
      %v1018 = vpop.f32.mrf.mxu0
      %v1019 = vadd.f32 %v859, %v1018
      %v1020 = vpop.f32.mrf.mxu0
      %1021 = vmatprep.mubr.bf16.mxu0 0
      %1022 = vmatmul.mubr.bf16.gmra.mxu0 %v830
      %v1023 = vpop.f32.mrf.mxu0
      %v1024 = vadd.f32 %v859, %v1023
      %v1025 = vpop.f32.mrf.mxu0
      %v1026 = vpop.f32.mrf.mxu0
      %v1027 = vadd.f32 %v859, %v1026
      %v1028 = vpop.f32.mrf.mxu0
      %1029 = vmatprep.mubr.bf16.mxu0 0
      %1030 = vmatmul.mubr.bf16.gmra.mxu0 %v831
      %v1031 = vpop.f32.mrf.mxu0
      %v1032 = vadd.f32 %v859, %v1031
      %v1033 = vpop.f32.mrf.mxu0
      %v1034 = vpop.f32.mrf.mxu0
      %v1035 = vadd.f32 %v859, %v1034
      %v1036 = vpop.f32.mrf.mxu0
      %1037 = vmatprep.mubr.bf16.mxu0 0
      %1038 = vmatmul.mubr.bf16.gmra.mxu0 %v832
      %v1039 = vpop.f32.mrf.mxu0
      %v1040 = vadd.f32 %v859, %v1039
      %v1041 = vpop.f32.mrf.mxu0
      %v1042 = vpop.f32.mrf.mxu0
      %v1043 = vadd.f32 %v859, %v1042
      %v1044 = vpop.f32.mrf.mxu0
      %1045 = vmatprep.mubr.bf16.mxu0 0
      %1046 = vmatmul.mubr.bf16.gmra.mxu0 %v833
      %v1047 = vpop.f32.mrf.mxu0
      %v1048 = vadd.f32 %v859, %v1047
      %v1049 = vpop.f32.mrf.mxu0
      %v1050 = vpop.f32.mrf.mxu0
      %v1051 = vadd.f32 %v859, %v1050
      %v1052 = vpop.f32.mrf.mxu0
      %1053 = vmatprep.mubr.bf16.mxu0 0
      %1054 = vmatmul.mubr.bf16.gmra.mxu0 %v834
      %v1055 = vpop.f32.mrf.mxu0
      %v1056 = vadd.f32 %v859, %v1055
      %v1057 = vpop.f32.mrf.mxu0
      %v1058 = vpop.f32.mrf.mxu0
      %v1059 = vadd.f32 %v859, %v1058
      %v1060 = vpop.f32.mrf.mxu0
      %1061 = vmatprep.mubr.bf16.mxu0 0
      %1062 = vmatmul.mubr.bf16.gmra.mxu0 %v835
      %v1063 = vpop.f32.mrf.mxu0
      %v1064 = vadd.f32 %v859, %v1063
      %v1065 = vpop.f32.mrf.mxu0
      %v1066 = vpop.f32.mrf.mxu0
      %v1067 = vadd.f32 %v859, %v1066
      %v1068 = vpop.f32.mrf.mxu0
      %1069 = vmatprep.mubr.bf16.mxu0 0
      %1070 = vmatmul.mubr.bf16.gmra.mxu0 %v836
      %v1071 = vpop.f32.mrf.mxu0
      %v1072 = vadd.f32 %v859, %v1071
      %v1073 = vpop.f32.mrf.mxu0
      %v1074 = vpop.f32.mrf.mxu0
      %v1075 = vadd.f32 %v859, %v1074
      %v1076 = vpop.f32.mrf.mxu0
      %1077 = vmatprep.mubr.bf16.mxu0 0
      %1078 = vmatmul.mubr.bf16.gmra.mxu0 %v837
      %v1079 = vpop.f32.mrf.mxu0
      %v1080 = vadd.f32 %v859, %v1079
      %v1081 = vpop.f32.mrf.mxu0
      %v1082 = vpop.f32.mrf.mxu0
      %v1083 = vadd.f32 %v859, %v1082
      %v1084 = vpop.f32.mrf.mxu0
      %1085 = vdwg.mxu0
      %v1086 = vmul.f32 %v944, 0.5
      %v1087 = vmul.f32 %v947, 0.5
      %v1088 = vmul.f32 %v952, 0.5
      %v1089 = vmul.f32 %v955, 0.5
      %v1090 = vmul.f32 %v960, 0.5
      %v1091 = vmul.f32 %v963, 0.5
      %v1092 = vmul.f32 %v968, 0.5
      %v1093 = vmul.f32 %v971, 0.5
      %v1094 = vmul.f32 %v976, 0.5
      %v1095 = vmul.f32 %v979, 0.5
      %v1096 = vmul.f32 %v984, 0.5
      %v1097 = vmul.f32 %v987, 0.5
      %v1098 = vmul.f32 %v992, 0.5
      %v1099 = vmul.f32 %v995, 0.5
      %v1100 = vmul.f32 %v1000, 0.5
      %v1101 = vmul.f32 %v1003, 0.5
      %v1102 = vmul.f32 %v1008, 0.5
      %v1103 = vmul.f32 %v1011, 0.5
      %v1104 = vmul.f32 %v1016, 0.5
      %v1105 = vmul.f32 %v1019, 0.5
      %v1106 = vmul.f32 %v1024, 0.5
      %v1107 = vmul.f32 %v1027, 0.5
      %v1108 = vmul.f32 %v1032, 0.5
      %v1109 = vmul.f32 %v1035, 0.5
      %v1110 = vmul.f32 %v1040, 0.5
      %v1111 = vmul.f32 %v1043, 0.5
      %v1112 = vmul.f32 %v1048, 0.5
      %v1113 = vmul.f32 %v1051, 0.5
      %v1114 = vmul.f32 %v1056, 0.5
      %v1115 = vmul.f32 %v1059, 0.5
      %v1116 = vmul.f32 %v1064, 0.5
      %v1117 = vmul.f32 %v1067, 0.5
      %v1118 = vmul.f32 %v1072, 0.5
      %v1119 = vmul.f32 %v1075, 0.5
      %v1120 = vmul.f32 %v1080, 0.5
      %v1121 = vmul.f32 %v1083, 0.5
      %v1122 = vmul.f32 %v944, 0.044715
      %v1123 = vmul.f32 %v947, 0.044715
      %v1124 = vmul.f32 %v952, 0.044715
      %v1125 = vmul.f32 %v955, 0.044715
      %v1126 = vmul.f32 %v960, 0.044715
      %v1127 = vmul.f32 %v963, 0.044715
      %v1128 = vmul.f32 %v968, 0.044715
      %v1129 = vmul.f32 %v971, 0.044715
      %v1130 = vmul.f32 %v976, 0.044715
      %v1131 = vmul.f32 %v979, 0.044715
      %v1132 = vmul.f32 %v984, 0.044715
      %v1133 = vmul.f32 %v987, 0.044715
      %v1134 = vmul.f32 %v992, 0.044715
      %v1135 = vmul.f32 %v995, 0.044715
      %v1136 = vmul.f32 %v1000, 0.044715
      %v1137 = vmul.f32 %v1003, 0.044715
      %v1138 = vmul.f32 %v1008, 0.044715
      %v1139 = vmul.f32 %v1011, 0.044715
      %v1140 = vmul.f32 %v1016, 0.044715
      %v1141 = vmul.f32 %v1019, 0.044715
      %v1142 = vmul.f32 %v1024, 0.044715
      %v1143 = vmul.f32 %v1027, 0.044715
      %v1144 = vmul.f32 %v1032, 0.044715
      %v1145 = vmul.f32 %v1035, 0.044715
      %v1146 = vmul.f32 %v1040, 0.044715
      %v1147 = vmul.f32 %v1043, 0.044715
      %v1148 = vmul.f32 %v1048, 0.044715
      %v1149 = vmul.f32 %v1051, 0.044715
      %v1150 = vmul.f32 %v1056, 0.044715
      %v1151 = vmul.f32 %v1059, 0.044715
      %v1152 = vmul.f32 %v1064, 0.044715
      %v1153 = vmul.f32 %v1067, 0.044715
      %v1154 = vmul.f32 %v1072, 0.044715
      %v1155 = vmul.f32 %v1075, 0.044715
      %v1156 = vmul.f32 %v1080, 0.044715
      %v1157 = vmul.f32 %v1083, 0.044715
      %v1158 = vmul.f32 %v1122, %v944
      %v1159 = vmul.f32 %v1123, %v947
      %v1160 = vmul.f32 %v1124, %v952
      %v1161 = vmul.f32 %v1125, %v955
      %v1162 = vmul.f32 %v1126, %v960
      %v1163 = vmul.f32 %v1127, %v963
      %v1164 = vmul.f32 %v1128, %v968
      %v1165 = vmul.f32 %v1129, %v971
      %v1166 = vmul.f32 %v1130, %v976
      %v1167 = vmul.f32 %v1131, %v979
      %v1168 = vmul.f32 %v1132, %v984
      %v1169 = vmul.f32 %v1133, %v987
      %v1170 = vmul.f32 %v1134, %v992
      %v1171 = vmul.f32 %v1135, %v995
      %v1172 = vmul.f32 %v1136, %v1000
      %v1173 = vmul.f32 %v1137, %v1003
      %v1174 = vmul.f32 %v1138, %v1008
      %v1175 = vmul.f32 %v1139, %v1011
      %v1176 = vmul.f32 %v1140, %v1016
      %v1177 = vmul.f32 %v1141, %v1019
      %v1178 = vmul.f32 %v1142, %v1024
      %v1179 = vmul.f32 %v1143, %v1027
      %v1180 = vmul.f32 %v1144, %v1032
      %v1181 = vmul.f32 %v1145, %v1035
      %v1182 = vmul.f32 %v1146, %v1040
      %v1183 = vmul.f32 %v1147, %v1043
      %v1184 = vmul.f32 %v1148, %v1048
      %v1185 = vmul.f32 %v1149, %v1051
      %v1186 = vmul.f32 %v1150, %v1056
      %v1187 = vmul.f32 %v1151, %v1059
      %v1188 = vmul.f32 %v1152, %v1064
      %v1189 = vmul.f32 %v1153, %v1067
      %v1190 = vmul.f32 %v1154, %v1072
      %v1191 = vmul.f32 %v1155, %v1075
      %v1192 = vmul.f32 %v1156, %v1080
      %v1193 = vmul.f32 %v1157, %v1083
      %v1194 = vmul.f32 %v1158, %v944
      %v1195 = vmul.f32 %v1159, %v947
      %v1196 = vmul.f32 %v1160, %v952
      %v1197 = vmul.f32 %v1161, %v955
      %v1198 = vmul.f32 %v1162, %v960
      %v1199 = vmul.f32 %v1163, %v963
      %v1200 = vmul.f32 %v1164, %v968
      %v1201 = vmul.f32 %v1165, %v971
      %v1202 = vmul.f32 %v1166, %v976
      %v1203 = vmul.f32 %v1167, %v979
      %v1204 = vmul.f32 %v1168, %v984
      %v1205 = vmul.f32 %v1169, %v987
      %v1206 = vmul.f32 %v1170, %v992
      %v1207 = vmul.f32 %v1171, %v995
      %v1208 = vmul.f32 %v1172, %v1000
      %v1209 = vmul.f32 %v1173, %v1003
      %v1210 = vmul.f32 %v1174, %v1008
      %v1211 = vmul.f32 %v1175, %v1011
      %v1212 = vmul.f32 %v1176, %v1016
      %v1213 = vmul.f32 %v1177, %v1019
      %v1214 = vmul.f32 %v1178, %v1024
      %v1215 = vmul.f32 %v1179, %v1027
      %v1216 = vmul.f32 %v1180, %v1032
      %v1217 = vmul.f32 %v1181, %v1035
      %v1218 = vmul.f32 %v1182, %v1040
      %v1219 = vmul.f32 %v1183, %v1043
      %v1220 = vmul.f32 %v1184, %v1048
      %v1221 = vmul.f32 %v1185, %v1051
      %v1222 = vmul.f32 %v1186, %v1056
      %v1223 = vmul.f32 %v1187, %v1059
      %v1224 = vmul.f32 %v1188, %v1064
      %v1225 = vmul.f32 %v1189, %v1067
      %v1226 = vmul.f32 %v1190, %v1072
      %v1227 = vmul.f32 %v1191, %v1075
      %v1228 = vmul.f32 %v1192, %v1080
      %v1229 = vmul.f32 %v1193, %v1083
      %v1230 = vadd.f32 %v944, %v1194
      %v1231 = vadd.f32 %v947, %v1195
      %v1232 = vadd.f32 %v952, %v1196
      %v1233 = vadd.f32 %v955, %v1197
      %v1234 = vadd.f32 %v960, %v1198
      %v1235 = vadd.f32 %v963, %v1199
      %v1236 = vadd.f32 %v968, %v1200
      %v1237 = vadd.f32 %v971, %v1201
      %v1238 = vadd.f32 %v976, %v1202
      %v1239 = vadd.f32 %v979, %v1203
      %v1240 = vadd.f32 %v984, %v1204
      %v1241 = vadd.f32 %v987, %v1205
      %v1242 = vadd.f32 %v992, %v1206
      %v1243 = vadd.f32 %v995, %v1207
      %v1244 = vadd.f32 %v1000, %v1208
      %v1245 = vadd.f32 %v1003, %v1209
      %v1246 = vadd.f32 %v1008, %v1210
      %v1247 = vadd.f32 %v1011, %v1211
      %v1248 = vadd.f32 %v1016, %v1212
      %v1249 = vadd.f32 %v1019, %v1213
      %v1250 = vadd.f32 %v1024, %v1214
      %v1251 = vadd.f32 %v1027, %v1215
      %v1252 = vadd.f32 %v1032, %v1216
      %v1253 = vadd.f32 %v1035, %v1217
      %v1254 = vadd.f32 %v1040, %v1218
      %v1255 = vadd.f32 %v1043, %v1219
      %v1256 = vadd.f32 %v1048, %v1220
      %v1257 = vadd.f32 %v1051, %v1221
      %v1258 = vadd.f32 %v1056, %v1222
      %v1259 = vadd.f32 %v1059, %v1223
      %v1260 = vadd.f32 %v1064, %v1224
      %v1261 = vadd.f32 %v1067, %v1225
      %v1262 = vadd.f32 %v1072, %v1226
      %v1263 = vadd.f32 %v1075, %v1227
      %v1264 = vadd.f32 %v1080, %v1228
      %v1265 = vadd.f32 %v1083, %v1229
      %v1266 = vmul.f32 %v1230, 0.7978846
      %v1267 = vmul.f32 %v1231, 0.7978846
      %v1268 = vmul.f32 %v1232, 0.7978846
      %v1269 = vmul.f32 %v1233, 0.7978846
      %v1270 = vmul.f32 %v1234, 0.7978846
      %v1271 = vmul.f32 %v1235, 0.7978846
      %v1272 = vmul.f32 %v1236, 0.7978846
      %v1273 = vmul.f32 %v1237, 0.7978846
      %v1274 = vmul.f32 %v1238, 0.7978846
      %v1275 = vmul.f32 %v1239, 0.7978846
      %v1276 = vmul.f32 %v1240, 0.7978846
      %v1277 = vmul.f32 %v1241, 0.7978846
      %v1278 = vmul.f32 %v1242, 0.7978846
      %v1279 = vmul.f32 %v1243, 0.7978846
      %v1280 = vmul.f32 %v1244, 0.7978846
      %v1281 = vmul.f32 %v1245, 0.7978846
      %v1282 = vmul.f32 %v1246, 0.7978846
      %v1283 = vmul.f32 %v1247, 0.7978846
      %v1284 = vmul.f32 %v1248, 0.7978846
      %v1285 = vmul.f32 %v1249, 0.7978846
      %v1286 = vmul.f32 %v1250, 0.7978846
      %v1287 = vmul.f32 %v1251, 0.7978846
      %v1288 = vmul.f32 %v1252, 0.7978846
      %v1289 = vmul.f32 %v1253, 0.7978846
      %v1290 = vmul.f32 %v1254, 0.7978846
      %v1291 = vmul.f32 %v1255, 0.7978846
      %v1292 = vmul.f32 %v1256, 0.7978846
      %v1293 = vmul.f32 %v1257, 0.7978846
      %v1294 = vmul.f32 %v1258, 0.7978846
      %v1295 = vmul.f32 %v1259, 0.7978846
      %v1296 = vmul.f32 %v1260, 0.7978846
      %v1297 = vmul.f32 %v1261, 0.7978846
      %v1298 = vmul.f32 %v1262, 0.7978846
      %v1299 = vmul.f32 %v1263, 0.7978846
      %v1300 = vmul.f32 %v1264, 0.7978846
      %v1301 = vmul.f32 %v1265, 0.7978846
      %v1302 = vtanh.pop %v1266
      %v1303 = vtanh.pop %v1267
      %v1304 = vtanh.pop %v1268
      %v1305 = vtanh.pop %v1269
      %v1306 = vtanh.pop %v1270
      %v1307 = vtanh.pop %v1271
      %v1308 = vtanh.pop %v1272
      %v1309 = vtanh.pop %v1273
      %v1310 = vtanh.pop %v1274
      %v1311 = vtanh.pop %v1275
      %v1312 = vtanh.pop %v1276
      %v1313 = vtanh.pop %v1277
      %v1314 = vtanh.pop %v1278
      %v1315 = vtanh.pop %v1279
      %v1316 = vtanh.pop %v1280
      %v1317 = vtanh.pop %v1281
      %v1318 = vtanh.pop %v1282
      %v1319 = vtanh.pop %v1283
      %v1320 = vtanh.pop %v1284
      %v1321 = vtanh.pop %v1285
      %v1322 = vtanh.pop %v1286
      %v1323 = vtanh.pop %v1287
      %v1324 = vtanh.pop %v1288
      %v1325 = vtanh.pop %v1289
      %v1326 = vtanh.pop %v1290
      %v1327 = vtanh.pop %v1291
      %v1328 = vtanh.pop %v1292
      %v1329 = vtanh.pop %v1293
      %v1330 = vtanh.pop %v1294
      %v1331 = vtanh.pop %v1295
      %v1332 = vtanh.pop %v1296
      %v1333 = vtanh.pop %v1297
      %v1334 = vtanh.pop %v1298
      %v1335 = vtanh.pop %v1299
      %v1336 = vtanh.pop %v1300
      %v1337 = vtanh.pop %v1301
      %v1338 = vadd.f32 %v1302, 1.0
      %v1339 = vadd.f32 %v1303, 1.0
      %v1340 = vadd.f32 %v1304, 1.0
      %v1341 = vadd.f32 %v1305, 1.0
      %v1342 = vadd.f32 %v1306, 1.0
      %v1343 = vadd.f32 %v1307, 1.0
      %v1344 = vadd.f32 %v1308, 1.0
      %v1345 = vadd.f32 %v1309, 1.0
      %v1346 = vadd.f32 %v1310, 1.0
      %v1347 = vadd.f32 %v1311, 1.0
      %v1348 = vadd.f32 %v1312, 1.0
      %v1349 = vadd.f32 %v1313, 1.0
      %v1350 = vadd.f32 %v1314, 1.0
      %v1351 = vadd.f32 %v1315, 1.0
      %v1352 = vadd.f32 %v1316, 1.0
      %v1353 = vadd.f32 %v1317, 1.0
      %v1354 = vadd.f32 %v1318, 1.0
      %v1355 = vadd.f32 %v1319, 1.0
      %v1356 = vadd.f32 %v1320, 1.0
      %v1357 = vadd.f32 %v1321, 1.0
      %v1358 = vadd.f32 %v1322, 1.0
      %v1359 = vadd.f32 %v1323, 1.0
      %v1360 = vadd.f32 %v1324, 1.0
      %v1361 = vadd.f32 %v1325, 1.0
      %v1362 = vadd.f32 %v1326, 1.0
      %v1363 = vadd.f32 %v1327, 1.0
      %v1364 = vadd.f32 %v1328, 1.0
      %v1365 = vadd.f32 %v1329, 1.0
      %v1366 = vadd.f32 %v1330, 1.0
      %v1367 = vadd.f32 %v1331, 1.0
      %v1368 = vadd.f32 %v1332, 1.0
      %v1369 = vadd.f32 %v1333, 1.0
      %v1370 = vadd.f32 %v1334, 1.0
      %v1371 = vadd.f32 %v1335, 1.0
      %v1372 = vadd.f32 %v1336, 1.0
      %v1373 = vadd.f32 %v1337, 1.0
      %v1374 = vmul.f32 %v1086, %v1338
      %v1375 = vmul.f32 %v1087, %v1339
      %v1376 = vmul.f32 %v1088, %v1340
      %v1377 = vmul.f32 %v1089, %v1341
      %v1378 = vmul.f32 %v1090, %v1342
      %v1379 = vmul.f32 %v1091, %v1343
      %v1380 = vmul.f32 %v1092, %v1344
      %v1381 = vmul.f32 %v1093, %v1345
      %v1382 = vmul.f32 %v1094, %v1346
      %v1383 = vmul.f32 %v1095, %v1347
      %v1384 = vmul.f32 %v1096, %v1348
      %v1385 = vmul.f32 %v1097, %v1349
      %v1386 = vmul.f32 %v1098, %v1350
      %v1387 = vmul.f32 %v1099, %v1351
      %v1388 = vmul.f32 %v1100, %v1352
      %v1389 = vmul.f32 %v1101, %v1353
      %v1390 = vmul.f32 %v1102, %v1354
      %v1391 = vmul.f32 %v1103, %v1355
      %v1392 = vmul.f32 %v1104, %v1356
      %v1393 = vmul.f32 %v1105, %v1357
      %v1394 = vmul.f32 %v1106, %v1358
      %v1395 = vmul.f32 %v1107, %v1359
      %v1396 = vmul.f32 %v1108, %v1360
      %v1397 = vmul.f32 %v1109, %v1361
      %v1398 = vmul.f32 %v1110, %v1362
      %v1399 = vmul.f32 %v1111, %v1363
      %v1400 = vmul.f32 %v1112, %v1364
      %v1401 = vmul.f32 %v1113, %v1365
      %v1402 = vmul.f32 %v1114, %v1366
      %v1403 = vmul.f32 %v1115, %v1367
      %v1404 = vmul.f32 %v1116, %v1368
      %v1405 = vmul.f32 %v1117, %v1369
      %v1406 = vmul.f32 %v1118, %v1370
      %v1407 = vmul.f32 %v1119, %v1371
      %v1408 = vmul.f32 %v1120, %v1372
      %v1409 = vmul.f32 %v1121, %v1373
      %s1410 = ssub.s32 %s339, 2
      %v1411 = vstv %s1410
      %v1412 = vadd.s32 %v1411, 1
      %v1413 = vadd.s32 %v1411, 2
      %v1414 = vadd.s32 %v1411, 3
      %v1415 = vadd.s32 %v1411, 4
      %v1416 = vadd.s32 %v1411, 5
      %v1417 = vadd.s32 %v1411, 6
      %v1418 = vadd.s32 %v1411, 7
      %v1419 = vadd.s32 %v1411, 8
      %v1420 = vadd.s32 %v1411, 9
      %v1421 = vadd.s32 %v1411, 10
      %v1422 = vadd.s32 %v1411, 11
      %v1423 = vlaneseq
      %v1424 = vshrl.u32 %v1423, 7
      %v1425 = vadd.s32 %v1424, 8
      %v1426 = vadd.s32 %v1424, 16
      %vm1427 = vcmp.ge.s32.totalorder %v1411, 0
      %vm1428 = vcmp.ge.s32.totalorder %v1412, 0
      %vm1429 = vcmp.ge.s32.totalorder %v1413, 0
      %vm1430 = vcmp.ge.s32.totalorder %v1414, 0
      %vm1431 = vcmp.ge.s32.totalorder %v1415, 0
      %vm1432 = vcmp.ge.s32.totalorder %v1416, 0
      %vm1433 = vcmp.ge.s32.totalorder %v1417, 0
      %vm1434 = vcmp.ge.s32.totalorder %v1418, 0
      %vm1435 = vcmp.ge.s32.totalorder %v1419, 0
      %vm1436 = vcmp.ge.s32.totalorder %v1420, 0
      %vm1437 = vcmp.ge.s32.totalorder %v1421, 0
      %vm1438 = vcmp.ge.s32.totalorder %v1422, 0
      %vm1439 = vcmp.lt.s32.totalorder %v1411, 16
      %vm1440 = vcmp.lt.s32.totalorder %v1412, 16
      %vm1441 = vcmp.lt.s32.totalorder %v1413, 16
      %vm1442 = vcmp.lt.s32.totalorder %v1414, 16
      %vm1443 = vcmp.lt.s32.totalorder %v1415, 16
      %vm1444 = vcmp.lt.s32.totalorder %v1416, 16
      %vm1445 = vcmp.lt.s32.totalorder %v1417, 16
      %vm1446 = vcmp.lt.s32.totalorder %v1418, 16
      %vm1447 = vcmp.lt.s32.totalorder %v1419, 16
      %vm1448 = vcmp.lt.s32.totalorder %v1420, 16
      %vm1449 = vcmp.lt.s32.totalorder %v1421, 16
      %vm1450 = vcmp.lt.s32.totalorder %v1422, 16
      %vm1451 = vmand %vm1427, %vm1439
      %vm1452 = vmand %vm1428, %vm1440
      %vm1453 = vmand %vm1429, %vm1441
      %vm1454 = vmand %vm1430, %vm1442
      %vm1455 = vmand %vm1431, %vm1443
      %vm1456 = vmand %vm1432, %vm1444
      %vm1457 = vmand %vm1433, %vm1445
      %vm1458 = vmand %vm1434, %vm1446
      %vm1459 = vmand %vm1435, %vm1447
      %vm1460 = vmand %vm1436, %vm1448
      %vm1461 = vmand %vm1437, %vm1449
      %vm1462 = vmand %vm1438, %vm1450
      %vm1463 = vcmp.ge.s32.totalorder %v1424, 1
      %vm1464 = vcmp.ge.s32.totalorder %v1425, 1
      %vm1465 = vcmp.ge.s32.totalorder %v1426, 1
      %vm1466 = vmand %vm1451, %vm1463
      %vm1467 = vmand %vm1451, %vm1464
      %vm1468 = vmand %vm1451, %vm1465
      %vm1469 = vmand %vm1452, %vm1463
      %vm1470 = vmand %vm1452, %vm1464
      %vm1471 = vmand %vm1452, %vm1465
      %vm1472 = vmand %vm1453, %vm1463
      %vm1473 = vmand %vm1453, %vm1464
      %vm1474 = vmand %vm1453, %vm1465
      %vm1475 = vmand %vm1454, %vm1463
      %vm1476 = vmand %vm1454, %vm1464
      %vm1477 = vmand %vm1454, %vm1465
      %vm1478 = vmand %vm1455, %vm1463
      %vm1479 = vmand %vm1455, %vm1464
      %vm1480 = vmand %vm1455, %vm1465
      %vm1481 = vmand %vm1456, %vm1463
      %vm1482 = vmand %vm1456, %vm1464
      %vm1483 = vmand %vm1456, %vm1465
      %vm1484 = vmand %vm1457, %vm1463
      %vm1485 = vmand %vm1457, %vm1464
      %vm1486 = vmand %vm1457, %vm1465
      %vm1487 = vmand %vm1458, %vm1463
      %vm1488 = vmand %vm1458, %vm1464
      %vm1489 = vmand %vm1458, %vm1465
      %vm1490 = vmand %vm1459, %vm1463
      %vm1491 = vmand %vm1459, %vm1464
      %vm1492 = vmand %vm1459, %vm1465
      %vm1493 = vmand %vm1460, %vm1463
      %vm1494 = vmand %vm1460, %vm1464
      %vm1495 = vmand %vm1460, %vm1465
      %vm1496 = vmand %vm1461, %vm1463
      %vm1497 = vmand %vm1461, %vm1464
      %vm1498 = vmand %vm1461, %vm1465
      %vm1499 = vmand %vm1462, %vm1463
      %vm1500 = vmand %vm1462, %vm1464
      %vm1501 = vmand %vm1462, %vm1465
      %vm1502 = vcmp.le.s32.totalorder %v1424, 16
      %vm1503 = vcmp.le.s32.totalorder %v1425, 16
      %vm1504 = vcmp.le.s32.totalorder %v1426, 16
      %vm1505 = vmand %vm1466, %vm1502
      %vm1506 = vmand %vm1467, %vm1503
      %vm1507 = vmand %vm1468, %vm1504
      %vm1508 = vmand %vm1469, %vm1502
      %vm1509 = vmand %vm1470, %vm1503
      %vm1510 = vmand %vm1471, %vm1504
      %vm1511 = vmand %vm1472, %vm1502
      %vm1512 = vmand %vm1473, %vm1503
      %vm1513 = vmand %vm1474, %vm1504
      %vm1514 = vmand %vm1475, %vm1502
      %vm1515 = vmand %vm1476, %vm1503
      %vm1516 = vmand %vm1477, %vm1504
      %vm1517 = vmand %vm1478, %vm1502
      %vm1518 = vmand %vm1479, %vm1503
      %vm1519 = vmand %vm1480, %vm1504
      %vm1520 = vmand %vm1481, %vm1502
      %vm1521 = vmand %vm1482, %vm1503
      %vm1522 = vmand %vm1483, %vm1504
      %vm1523 = vmand %vm1484, %vm1502
      %vm1524 = vmand %vm1485, %vm1503
      %vm1525 = vmand %vm1486, %vm1504
      %vm1526 = vmand %vm1487, %vm1502
      %vm1527 = vmand %vm1488, %vm1503
      %vm1528 = vmand %vm1489, %vm1504
      %vm1529 = vmand %vm1490, %vm1502
      %vm1530 = vmand %vm1491, %vm1503
      %vm1531 = vmand %vm1492, %vm1504
      %vm1532 = vmand %vm1493, %vm1502
      %vm1533 = vmand %vm1494, %vm1503
      %vm1534 = vmand %vm1495, %vm1504
      %vm1535 = vmand %vm1496, %vm1502
      %vm1536 = vmand %vm1497, %vm1503
      %vm1537 = vmand %vm1498, %vm1504
      %vm1538 = vmand %vm1499, %vm1502
      %vm1539 = vmand %vm1500, %vm1503
      %vm1540 = vmand %vm1501, %vm1504
      %v1541 = vsel %vm1505, %v1374, 0.0
      %v1542 = vsel %vm1506, %v1375, 0.0
      %v1543 = vsel %vm1507, %v1376, 0.0
      %v1544 = vsel %vm1508, %v1377, 0.0
      %v1545 = vsel %vm1509, %v1378, 0.0
      %v1546 = vsel %vm1510, %v1379, 0.0
      %v1547 = vsel %vm1511, %v1380, 0.0
      %v1548 = vsel %vm1512, %v1381, 0.0
      %v1549 = vsel %vm1513, %v1382, 0.0
      %v1550 = vsel %vm1514, %v1383, 0.0
      %v1551 = vsel %vm1515, %v1384, 0.0
      %v1552 = vsel %vm1516, %v1385, 0.0
      %v1553 = vsel %vm1517, %v1386, 0.0
      %v1554 = vsel %vm1518, %v1387, 0.0
      %v1555 = vsel %vm1519, %v1388, 0.0
      %v1556 = vsel %vm1520, %v1389, 0.0
      %v1557 = vsel %vm1521, %v1390, 0.0
      %v1558 = vsel %vm1522, %v1391, 0.0
      %v1559 = vsel %vm1523, %v1392, 0.0
      %v1560 = vsel %vm1524, %v1393, 0.0
      %v1561 = vsel %vm1525, %v1394, 0.0
      %v1562 = vsel %vm1526, %v1395, 0.0
      %v1563 = vsel %vm1527, %v1396, 0.0
      %v1564 = vsel %vm1528, %v1397, 0.0
      %v1565 = vsel %vm1529, %v1398, 0.0
      %v1566 = vsel %vm1530, %v1399, 0.0
      %v1567 = vsel %vm1531, %v1400, 0.0
      %v1568 = vsel %vm1532, %v1401, 0.0
      %v1569 = vsel %vm1533, %v1402, 0.0
      %v1570 = vsel %vm1534, %v1403, 0.0
      %v1571 = vsel %vm1535, %v1404, 0.0
      %v1572 = vsel %vm1536, %v1405, 0.0
      %v1573 = vsel %vm1537, %v1406, 0.0
      %v1574 = vsel %vm1538, %v1407, 0.0
      %v1575 = vsel %vm1539, %v1408, 0.0
      %v1576 = vsel %vm1540, %v1409, 0.0
      %1577 = vst [vmem:[#allocation3] sm:$0xff] %v1541
      %1578 = vst [vmem:[#allocation3 + $0x8] sm:$0xff] %v1542
      %1579 = vst [vmem:[#allocation3 + $0x10] sm:$0xff] %v1543
      %1580 = vst [vmem:[#allocation3 + $0x18] sm:$0xff] %v1544
      %1581 = vst [vmem:[#allocation3 + $0x20] sm:$0xff] %v1545
      %1582 = vst [vmem:[#allocation3 + $0x28] sm:$0xff] %v1546
      %1583 = vst [vmem:[#allocation3 + $0x30] sm:$0xff] %v1547
      %1584 = vst [vmem:[#allocation3 + $0x38] sm:$0xff] %v1548
      %1585 = vst [vmem:[#allocation3 + $0x40] sm:$0xff] %v1549
      %1586 = vst [vmem:[#allocation3 + $0x48] sm:$0xff] %v1550
      %1587 = vst [vmem:[#allocation3 + $0x50] sm:$0xff] %v1551
      %1588 = vst [vmem:[#allocation3 + $0x58] sm:$0xff] %v1552
      %1589 = vst [vmem:[#allocation3 + $0x60] sm:$0xff] %v1553
      %1590 = vst [vmem:[#allocation3 + $0x68] sm:$0xff] %v1554
      %1591 = vst [vmem:[#allocation3 + $0x70] sm:$0xff] %v1555
      %1592 = vst [vmem:[#allocation3 + $0x78] sm:$0xff] %v1556
      %1593 = vst [vmem:[#allocation3 + $0x80] sm:$0xff] %v1557
      %1594 = vst [vmem:[#allocation3 + $0x88] sm:$0xff] %v1558
      %1595 = vst [vmem:[#allocation3 + $0x90] sm:$0xff] %v1559
      %1596 = vst [vmem:[#allocation3 + $0x98] sm:$0xff] %v1560
      %1597 = vst [vmem:[#allocation3 + $0xa0] sm:$0xff] %v1561
      %1598 = vst [vmem:[#allocation3 + $0xa8] sm:$0xff] %v1562
      %1599 = vst [vmem:[#allocation3 + $0xb0] sm:$0xff] %v1563
      %1600 = vst [vmem:[#allocation3 + $0xb8] sm:$0xff] %v1564
      %1601 = vst [vmem:[#allocation3 + $0xc0] sm:$0xff] %v1565
      %1602 = vst [vmem:[#allocation3 + $0xc8] sm:$0xff] %v1566
      %1603 = vst [vmem:[#allocation3 + $0xd0] sm:$0xff] %v1567
      %1604 = vst [vmem:[#allocation3 + $0xd8] sm:$0xff] %v1568
      %1605 = vst [vmem:[#allocation3 + $0xe0] sm:$0xff] %v1569
      %1606 = vst [vmem:[#allocation3 + $0xe8] sm:$0xff] %v1570
      %1607 = vst [vmem:[#allocation3 + $0xf0] sm:$0xff] %v1571
      %1608 = vst [vmem:[#allocation3 + $0xf8] sm:$0xff] %v1572
      %1609 = vst [vmem:[#allocation3 + $0x100] sm:$0xff] %v1573
      %1610 = vst [vmem:[#allocation3 + $0x108] sm:$0xff] %v1574
      %1611 = vst [vmem:[#allocation3 + $0x110] sm:$0xff] %v1575
      %1612 = vst [vmem:[#allocation3 + $0x118] sm:$0xff] %v1576
      %v1613 = vld [vmem:[#allocation3] sm:$0xff]
      %v1614 = vld [vmem:[#allocation3 + $0x8] sm:$0xff]
      %v1615 = vld [vmem:[#allocation3 + $0x10] sm:$0xff]
      %v1616 = vld [vmem:[#allocation3 + $0x18] sm:$0xff]
      %v1617 = vld [vmem:[#allocation3 + $0x20] sm:$0xff]
      %v1618 = vld [vmem:[#allocation3 + $0x28] sm:$0xff]
      %v1619 = vld [vmem:[#allocation3 + $0x30] sm:$0xff]
      %v1620 = vld [vmem:[#allocation3 + $0x38] sm:$0xff]
      %v1621 = vld [vmem:[#allocation3 + $0x40] sm:$0xff]
      %v1622 = vld [vmem:[#allocation3 + $0x48] sm:$0xff]
      %v1623 = vld [vmem:[#allocation3 + $0x50] sm:$0xff]
      %v1624 = vld [vmem:[#allocation3 + $0x58] sm:$0xff]
      %v1625 = vld [vmem:[#allocation3 + $0x60] sm:$0xff]
      %v1626 = vld [vmem:[#allocation3 + $0x68] sm:$0xff]
      %v1627 = vld [vmem:[#allocation3 + $0x70] sm:$0xff]
      %v1628 = vld [vmem:[#allocation3 + $0x78] sm:$0xff]
      %v1629 = vld [vmem:[#allocation3 + $0x80] sm:$0xff]
      %v1630 = vld [vmem:[#allocation3 + $0x88] sm:$0xff]
      %v1631 = vld [vmem:[#allocation3 + $0x90] sm:$0xff]
      %v1632 = vld [vmem:[#allocation3 + $0x98] sm:$0xff]
      %v1633 = vld [vmem:[#allocation3 + $0xa0] sm:$0xff]
      %v1634 = vld [vmem:[#allocation3 + $0xa8] sm:$0xff]
      %v1635 = vld [vmem:[#allocation3 + $0xb0] sm:$0xff]
      %v1636 = vld [vmem:[#allocation3 + $0xb8] sm:$0xff]
      %v1637 = vld [vmem:[#allocation3 + $0xc0] sm:$0xff]
      %v1638 = vld [vmem:[#allocation3 + $0xc8] sm:$0xff]
      %v1639 = vld [vmem:[#allocation3 + $0xd0] sm:$0xff]
      %v1640 = vld [vmem:[#allocation3 + $0xd8] sm:$0xff]
      %v1641 = vld [vmem:[#allocation3 + $0xe0] sm:$0xff]
      %v1642 = vld [vmem:[#allocation3 + $0xe8] sm:$0xff]
      %v1643 = vrot.slane %v1613, 7
      %v1644 = vrot.slane %v1614, 7
      %v1645 = vrot.slane %v1615, 7
      %v1646 = vrot.slane %v1616, 7
      %v1647 = vrot.slane %v1617, 7
      %v1648 = vrot.slane %v1618, 7
      %v1649 = vrot.slane %v1619, 7
      %v1650 = vrot.slane %v1620, 7
      %v1651 = vrot.slane %v1621, 7
      %v1652 = vrot.slane %v1622, 7
      %v1653 = vrot.slane %v1623, 7
      %v1654 = vrot.slane %v1624, 7
      %v1655 = vrot.slane %v1625, 7
      %v1656 = vrot.slane %v1626, 7
      %v1657 = vrot.slane %v1627, 7
      %v1658 = vrot.slane %v1628, 7
      %v1659 = vrot.slane %v1629, 7
      %v1660 = vrot.slane %v1630, 7
      %v1661 = vrot.slane %v1631, 7
      %v1662 = vrot.slane %v1632, 7
      %v1663 = vrot.slane %v1633, 7
      %v1664 = vrot.slane %v1634, 7
      %v1665 = vrot.slane %v1635, 7
      %v1666 = vrot.slane %v1636, 7
      %v1667 = vrot.slane %v1637, 7
      %v1668 = vrot.slane %v1638, 7
      %v1669 = vrot.slane %v1639, 7
      %v1670 = vrot.slane %v1640, 7
      %v1671 = vrot.slane %v1641, 7
      %v1672 = vrot.slane %v1642, 7
      %vm1673 = vcmp.lt.s32.totalorder %v1424, 1
      %v1674 = vsel %vm1673, %v1671, %v1672
      %v1675 = vsel %vm1673, %v1670, %v1671
      %v1676 = vsel %vm1673, %v1669, %v1670
      %v1677 = vsel %vm1673, %v1668, %v1669
      %v1678 = vsel %vm1673, %v1667, %v1668
      %v1679 = vsel %vm1673, %v1666, %v1667
      %v1680 = vsel %vm1673, %v1665, %v1666
      %v1681 = vsel %vm1673, %v1664, %v1665
      %v1682 = vsel %vm1673, %v1663, %v1664
      %v1683 = vsel %vm1673, %v1662, %v1663
      %v1684 = vsel %vm1673, %v1661, %v1662
      %v1685 = vsel %vm1673, %v1660, %v1661
      %v1686 = vsel %vm1673, %v1659, %v1660
      %v1687 = vsel %vm1673, %v1658, %v1659
      %v1688 = vsel %vm1673, %v1657, %v1658
      %v1689 = vsel %vm1673, %v1656, %v1657
      %v1690 = vsel %vm1673, %v1655, %v1656
      %v1691 = vsel %vm1673, %v1654, %v1655
      %v1692 = vsel %vm1673, %v1653, %v1654
      %v1693 = vsel %vm1673, %v1652, %v1653
      %v1694 = vsel %vm1673, %v1651, %v1652
      %v1695 = vsel %vm1673, %v1650, %v1651
      %v1696 = vsel %vm1673, %v1649, %v1650
      %v1697 = vsel %vm1673, %v1648, %v1649
      %v1698 = vsel %vm1673, %v1647, %v1648
      %v1699 = vsel %vm1673, %v1646, %v1647
      %v1700 = vsel %vm1673, %v1645, %v1646
      %v1701 = vsel %vm1673, %v1644, %v1645
      %v1702 = vsel %vm1673, %v1643, %v1644
      %v1703 = vsel %vm1673, %v1672, %v1643
      %v1704 = vpack.c.bf16 %v1702, %v1703
      %v1705 = vpack.c.bf16 %v1700, %v1701
      %v1706 = vpack.c.bf16 %v1698, %v1699
      %v1707 = vpack.c.bf16 %v1696, %v1697
      %v1708 = vpack.c.bf16 %v1694, %v1695
      %v1709 = vpack.c.bf16 %v1692, %v1693
      %v1710 = vpack.c.bf16 %v1690, %v1691
      %v1711 = vpack.c.bf16 %v1688, %v1689
      %v1712 = vpack.c.bf16 %v1686, %v1687
      %v1713 = vpack.c.bf16 %v1684, %v1685
      %v1714 = vpack.c.bf16 %v1682, %v1683
      %v1715 = vpack.c.bf16 %v1680, %v1681
      %v1716 = vpack.c.bf16 %v1678, %v1679
      %v1717 = vpack.c.bf16 %v1676, %v1677
      %v1718 = vpack.c.bf16 %v1674, %v1675
      %v1719 = vld [vmem:[%s3] sm:$0xf]
      %v1720 = vld [vmem:[%s3 + $0x4] sm:$0xf]
      %v1721 = vld [vmem:[%s3 + $0x8] sm:$0xf]
      %v1722 = vld [vmem:[%s3 + $0xc] sm:$0xf]
      %v1723 = vld [vmem:[%s3 + $0x10] sm:$0xf]
      %v1724 = vld [vmem:[%s3 + $0x14] sm:$0xf]
      %v1725 = vld [vmem:[%s3 + $0x18] sm:$0xf]
      %v1726 = vld [vmem:[%s3 + $0x1c] sm:$0xf]
      %v1727 = vld [vmem:[%s3 + $0x20] sm:$0xf]
      %v1728 = vld [vmem:[%s3 + $0x24] sm:$0xf]
      %v1729 = vld [vmem:[%s3 + $0x28] sm:$0xf]
      %v1730 = vld [vmem:[%s3 + $0x2c] sm:$0xf]
      %v1731 = vld [vmem:[%s3 + $0x30] sm:$0xf]
      %v1732 = vld [vmem:[%s3 + $0x34] sm:$0xf]
      %v1733 = vld [vmem:[%s3 + $0x38] sm:$0xf]
      %v1734 = vld [vmem:[%s3 + $0x3c] sm:$0xf]
      %v1735 = vpack.c.bf16 %v1614, %v1613
      %v1736 = vpack.c.bf16 %v1616, %v1615
      %v1737 = vpack.c.bf16 %v1618, %v1617
      %v1738 = vpack.c.bf16 %v1620, %v1619
      %v1739 = vpack.c.bf16 %v1622, %v1621
      %v1740 = vpack.c.bf16 %v1624, %v1623
      %v1741 = vpack.c.bf16 %v1626, %v1625
      %v1742 = vpack.c.bf16 %v1628, %v1627
      %v1743 = vpack.c.bf16 %v1630, %v1629
      %v1744 = vpack.c.bf16 %v1632, %v1631
      %v1745 = vpack.c.bf16 %v1634, %v1633
      %v1746 = vpack.c.bf16 %v1636, %v1635
      %v1747 = vpack.c.bf16 %v1638, %v1637
      %v1748 = vpack.c.bf16 %v1640, %v1639
      %v1749 = vpack.c.bf16 %v1642, %v1641
      %s1750 = scalar_lea.vmem %s3, 64
      %v1751 = vld [vmem:[%s1750] sm:$0xf]
      %v1752 = vld [vmem:[%s1750 + $0x4] sm:$0xf]
      %v1753 = vld [vmem:[%s1750 + $0x8] sm:$0xf]
      %v1754 = vld [vmem:[%s1750 + $0xc] sm:$0xf]
      %v1755 = vld [vmem:[%s1750 + $0x10] sm:$0xf]
      %v1756 = vld [vmem:[%s1750 + $0x14] sm:$0xf]
      %v1757 = vld [vmem:[%s1750 + $0x18] sm:$0xf]
      %v1758 = vld [vmem:[%s1750 + $0x1c] sm:$0xf]
      %v1759 = vld [vmem:[%s1750 + $0x20] sm:$0xf]
      %v1760 = vld [vmem:[%s1750 + $0x24] sm:$0xf]
      %v1761 = vld [vmem:[%s1750 + $0x28] sm:$0xf]
      %v1762 = vld [vmem:[%s1750 + $0x2c] sm:$0xf]
      %v1763 = vld [vmem:[%s1750 + $0x30] sm:$0xf]
      %v1764 = vld [vmem:[%s1750 + $0x34] sm:$0xf]
      %v1765 = vld [vmem:[%s1750 + $0x38] sm:$0xf]
      %v1766 = vld [vmem:[%s1750 + $0x3c] sm:$0xf]
      %v1783 = vunpack.c.l.b16 %v1751
      %v1784 = vunpack.c.l.b16 %v1752
      %v1785 = vunpack.c.l.b16 %v1753
      %v1786 = vunpack.c.l.b16 %v1754
      %v1787 = vunpack.c.l.b16 %v1755
      %v1788 = vunpack.c.l.b16 %v1756
      %v1789 = vunpack.c.l.b16 %v1757
      %v1790 = vunpack.c.l.b16 %v1758
      %v1791 = vunpack.c.l.b16 %v1759
      %v1792 = vunpack.c.l.b16 %v1760
      %v1793 = vunpack.c.l.b16 %v1761
      %v1794 = vunpack.c.l.b16 %v1762
      %v1795 = vunpack.c.l.b16 %v1763
      %v1796 = vunpack.c.l.b16 %v1764
      %v1797 = vunpack.c.l.b16 %v1765
      %v1798 = vunpack.c.l.b16 %v1766
      %v1799 = vpack.c.b16 %v1784, %v1783
      %v1800 = vpack.c.b16 %v1786, %v1785
      %v1801 = vpack.c.b16 %v1788, %v1787
      %v1802 = vpack.c.b16 %v1790, %v1789
      %v1803 = vpack.c.b16 %v1792, %v1791
      %v1804 = vpack.c.b16 %v1794, %v1793
      %v1805 = vpack.c.b16 %v1796, %v1795
      %v1806 = vpack.c.b16 %v1798, %v1797
      %1815 = vmatprep.subr.bf16.mxu0 0
      %1816 = vmatpush1.bf16.msra.mxu0 %v1806
      %1817 = vmatprep.subr.bf16.mxu0 0
      %1818 = vmatpush1.bf16.msra.mxu0 %v1805
      %1819 = vmatprep.subr.bf16.mxu0 0
      %1820 = vmatpush1.bf16.msra.mxu0 %v1804
      %1821 = vmatprep.subr.bf16.mxu0 0
      %1822 = vmatpush1.bf16.msra.mxu0 %v1803
      %1823 = vmatprep.subr.bf16.mxu0 0
      %1824 = vmatpush1.bf16.msra.mxu0 %v1802
      %1825 = vmatprep.subr.bf16.mxu0 0
      %1826 = vmatpush1.bf16.msra.mxu0 %v1801
      %1827 = vmatprep.subr.bf16.mxu0 0
      %1828 = vmatpush1.bf16.msra.mxu0 %v1800
      %1829 = vmatprep.subr.bf16.mxu0 0
      %1830 = vmatpush1.bf16.msra.mxu0 %v1799
      %1831 = vmatprep.subr.bf16.mxu0 0
      %1832 = vmatpush2.bf16.msra.mxu0 0
      %1833 = vmatprep.subr.bf16.mxu0 0
      %1834 = vmatpush2.bf16.msra.mxu0 0
      %1835 = vmatprep.subr.bf16.mxu0 0
      %1836 = vmatpush2.bf16.msra.mxu0 0
      %1837 = vmatprep.subr.bf16.mxu0 0
      %1838 = vmatpush2.bf16.msra.mxu0 0
      %1839 = vmatprep.subr.bf16.mxu0 0
      %1840 = vmatpush2.bf16.msra.mxu0 0
      %1841 = vmatprep.subr.bf16.mxu0 0
      %1842 = vmatpush2.bf16.msra.mxu0 0
      %1843 = vmatprep.subr.bf16.mxu0 0
      %1844 = vmatpush2.bf16.msra.mxu0 0
      %1845 = vmatprep.subr.bf16.mxu0 0
      %1846 = vmatpush2.bf16.msra.mxu0 0
      %1847 = vmatprep.mubr.bf16.mxu0 0
      %1848 = vmatmul.mubr.bf16.gmra.mxu0 %v1735
      %v1849 = vpop.f32.mrf.mxu0
      %v1850 = vadd.f32 0.0, %v1849
      %v1851 = vpop.f32.mrf.mxu0
      %v1852 = vpop.f32.mrf.mxu0
      %v1853 = vadd.f32 0.0, %v1852
      %v1854 = vpop.f32.mrf.mxu0
      %1855 = vmatprep.mubr.bf16.mxu0 0
      %1856 = vmatmul.mubr.bf16.gmra.mxu0 %v1736
      %v1857 = vpop.f32.mrf.mxu0
      %v1858 = vadd.f32 0.0, %v1857
      %v1859 = vpop.f32.mrf.mxu0
      %v1860 = vpop.f32.mrf.mxu0
      %v1861 = vadd.f32 0.0, %v1860
      %v1862 = vpop.f32.mrf.mxu0
      %1863 = vmatprep.mubr.bf16.mxu0 0
      %1864 = vmatmul.mubr.bf16.gmra.mxu0 %v1737
      %v1865 = vpop.f32.mrf.mxu0
      %v1866 = vadd.f32 0.0, %v1865
      %v1867 = vpop.f32.mrf.mxu0
      %v1868 = vpop.f32.mrf.mxu0
      %v1869 = vadd.f32 0.0, %v1868
      %v1870 = vpop.f32.mrf.mxu0
      %1871 = vmatprep.mubr.bf16.mxu0 0
      %1872 = vmatmul.mubr.bf16.gmra.mxu0 %v1738
      %v1873 = vpop.f32.mrf.mxu0
      %v1874 = vadd.f32 0.0, %v1873
      %v1875 = vpop.f32.mrf.mxu0
      %v1876 = vpop.f32.mrf.mxu0
      %v1877 = vadd.f32 0.0, %v1876
      %v1878 = vpop.f32.mrf.mxu0
      %1879 = vmatprep.mubr.bf16.mxu0 0
      %1880 = vmatmul.mubr.bf16.gmra.mxu0 %v1739
      %v1881 = vpop.f32.mrf.mxu0
      %v1882 = vadd.f32 0.0, %v1881
      %v1883 = vpop.f32.mrf.mxu0
      %v1884 = vpop.f32.mrf.mxu0
      %v1885 = vadd.f32 0.0, %v1884
      %v1886 = vpop.f32.mrf.mxu0
      %1887 = vmatprep.mubr.bf16.mxu0 0
      %1888 = vmatmul.mubr.bf16.gmra.mxu0 %v1740
      %v1889 = vpop.f32.mrf.mxu0
      %v1890 = vadd.f32 0.0, %v1889
      %v1891 = vpop.f32.mrf.mxu0
      %v1892 = vpop.f32.mrf.mxu0
      %v1893 = vadd.f32 0.0, %v1892
      %v1894 = vpop.f32.mrf.mxu0
      %1895 = vmatprep.mubr.bf16.mxu0 0
      %1896 = vmatmul.mubr.bf16.gmra.mxu0 %v1741
      %v1897 = vpop.f32.mrf.mxu0
      %v1898 = vadd.f32 0.0, %v1897
      %v1899 = vpop.f32.mrf.mxu0
      %v1900 = vpop.f32.mrf.mxu0
      %v1901 = vadd.f32 0.0, %v1900
      %v1902 = vpop.f32.mrf.mxu0
      %1903 = vmatprep.mubr.bf16.mxu0 0
      %1904 = vmatmul.mubr.bf16.gmra.mxu0 %v1742
      %v1905 = vpop.f32.mrf.mxu0
      %v1906 = vadd.f32 0.0, %v1905
      %v1907 = vpop.f32.mrf.mxu0
      %v1908 = vpop.f32.mrf.mxu0
      %v1909 = vadd.f32 0.0, %v1908
      %v1910 = vpop.f32.mrf.mxu0
      %1911 = vmatprep.mubr.bf16.mxu0 0
      %1912 = vmatmul.mubr.bf16.gmra.mxu0 %v1743
      %v1913 = vpop.f32.mrf.mxu0
      %v1914 = vadd.f32 0.0, %v1913
      %v1915 = vpop.f32.mrf.mxu0
      %v1916 = vpop.f32.mrf.mxu0
      %v1917 = vadd.f32 0.0, %v1916
      %v1918 = vpop.f32.mrf.mxu0
      %1919 = vmatprep.mubr.bf16.mxu0 0
      %1920 = vmatmul.mubr.bf16.gmra.mxu0 %v1744
      %v1921 = vpop.f32.mrf.mxu0
      %v1922 = vadd.f32 0.0, %v1921
      %v1923 = vpop.f32.mrf.mxu0
      %v1924 = vpop.f32.mrf.mxu0
      %v1925 = vadd.f32 0.0, %v1924
      %v1926 = vpop.f32.mrf.mxu0
      %1927 = vmatprep.mubr.bf16.mxu0 0
      %1928 = vmatmul.mubr.bf16.gmra.mxu0 %v1745
      %v1929 = vpop.f32.mrf.mxu0
      %v1930 = vadd.f32 0.0, %v1929
      %v1931 = vpop.f32.mrf.mxu0
      %v1932 = vpop.f32.mrf.mxu0
      %v1933 = vadd.f32 0.0, %v1932
      %v1934 = vpop.f32.mrf.mxu0
      %1935 = vmatprep.mubr.bf16.mxu0 0
      %1936 = vmatmul.mubr.bf16.gmra.mxu0 %v1746
      %v1937 = vpop.f32.mrf.mxu0
      %v1938 = vadd.f32 0.0, %v1937
      %v1939 = vpop.f32.mrf.mxu0
      %v1940 = vpop.f32.mrf.mxu0
      %v1941 = vadd.f32 0.0, %v1940
      %v1942 = vpop.f32.mrf.mxu0
      %1943 = vmatprep.mubr.bf16.mxu0 0
      %1944 = vmatmul.mubr.bf16.gmra.mxu0 %v1747
      %v1945 = vpop.f32.mrf.mxu0
      %v1946 = vadd.f32 0.0, %v1945
      %v1947 = vpop.f32.mrf.mxu0
      %v1948 = vpop.f32.mrf.mxu0
      %v1949 = vadd.f32 0.0, %v1948
      %v1950 = vpop.f32.mrf.mxu0
      %1951 = vmatprep.mubr.bf16.mxu0 0
      %1952 = vmatmul.mubr.bf16.gmra.mxu0 %v1748
      %v1953 = vpop.f32.mrf.mxu0
      %v1954 = vadd.f32 0.0, %v1953
      %v1955 = vpop.f32.mrf.mxu0
      %v1956 = vpop.f32.mrf.mxu0
      %v1957 = vadd.f32 0.0, %v1956
      %v1958 = vpop.f32.mrf.mxu0
      %1959 = vmatprep.mubr.bf16.mxu0 0
      %1960 = vmatmul.mubr.bf16.gmra.mxu0 %v1749
      %v1961 = vpop.f32.mrf.mxu0
      %v1962 = vadd.f32 0.0, %v1961
      %v1963 = vpop.f32.mrf.mxu0
      %v1964 = vpop.f32.mrf.mxu0
      %v1965 = vadd.f32 0.0, %v1964
      %v1966 = vpop.f32.mrf.mxu0
      %1967 = vdwg.mxu0
      %v1984 = vunpack.c.l.b16 %v1719
      %v1985 = vunpack.c.l.b16 %v1720
      %v1986 = vunpack.c.l.b16 %v1721
      %v1987 = vunpack.c.l.b16 %v1722
      %v1988 = vunpack.c.l.b16 %v1723
      %v1989 = vunpack.c.l.b16 %v1724
      %v1990 = vunpack.c.l.b16 %v1725
      %v1991 = vunpack.c.l.b16 %v1726
      %v1992 = vunpack.c.l.b16 %v1727
      %v1993 = vunpack.c.l.b16 %v1728
      %v1994 = vunpack.c.l.b16 %v1729
      %v1995 = vunpack.c.l.b16 %v1730
      %v1996 = vunpack.c.l.b16 %v1731
      %v1997 = vunpack.c.l.b16 %v1732
      %v1998 = vunpack.c.l.b16 %v1733
      %v1999 = vunpack.c.l.b16 %v1734
      %v2000 = vpack.c.b16 %v1985, %v1984
      %v2001 = vpack.c.b16 %v1987, %v1986
      %v2002 = vpack.c.b16 %v1989, %v1988
      %v2003 = vpack.c.b16 %v1991, %v1990
      %v2004 = vpack.c.b16 %v1993, %v1992
      %v2005 = vpack.c.b16 %v1995, %v1994
      %v2006 = vpack.c.b16 %v1997, %v1996
      %v2007 = vpack.c.b16 %v1999, %v1998
      %2016 = vmatprep.subr.bf16.mxu0 0
      %2017 = vmatpush1.bf16.msra.mxu0 %v2007
      %2018 = vmatprep.subr.bf16.mxu0 0
      %2019 = vmatpush1.bf16.msra.mxu0 %v2006
      %2020 = vmatprep.subr.bf16.mxu0 0
      %2021 = vmatpush1.bf16.msra.mxu0 %v2005
      %2022 = vmatprep.subr.bf16.mxu0 0
      %2023 = vmatpush1.bf16.msra.mxu0 %v2004
      %2024 = vmatprep.subr.bf16.mxu0 0
      %2025 = vmatpush1.bf16.msra.mxu0 %v2003
      %2026 = vmatprep.subr.bf16.mxu0 0
      %2027 = vmatpush1.bf16.msra.mxu0 %v2002
      %2028 = vmatprep.subr.bf16.mxu0 0
      %2029 = vmatpush1.bf16.msra.mxu0 %v2001
      %2030 = vmatprep.subr.bf16.mxu0 0
      %2031 = vmatpush1.bf16.msra.mxu0 %v2000
      %2032 = vmatprep.subr.bf16.mxu0 0
      %2033 = vmatpush2.bf16.msra.mxu0 0
      %2034 = vmatprep.subr.bf16.mxu0 0
      %2035 = vmatpush2.bf16.msra.mxu0 0
      %2036 = vmatprep.subr.bf16.mxu0 0
      %2037 = vmatpush2.bf16.msra.mxu0 0
      %2038 = vmatprep.subr.bf16.mxu0 0
      %2039 = vmatpush2.bf16.msra.mxu0 0
      %2040 = vmatprep.subr.bf16.mxu0 0
      %2041 = vmatpush2.bf16.msra.mxu0 0
      %2042 = vmatprep.subr.bf16.mxu0 0
      %2043 = vmatpush2.bf16.msra.mxu0 0
      %2044 = vmatprep.subr.bf16.mxu0 0
      %2045 = vmatpush2.bf16.msra.mxu0 0
      %2046 = vmatprep.subr.bf16.mxu0 0
      %2047 = vmatpush2.bf16.msra.mxu0 0
      %2048 = vmatprep.mubr.bf16.mxu0 0
      %2049 = vmatmul.mubr.bf16.gmra.mxu0 %v1704
      %v2050 = vpop.f32.mrf.mxu0
      %v2051 = vadd.f32 %v1850, %v2050
      %v2052 = vpop.f32.mrf.mxu0
      %v2053 = vpop.f32.mrf.mxu0
      %v2054 = vadd.f32 %v1853, %v2053
      %v2055 = vpop.f32.mrf.mxu0
      %2056 = vmatprep.mubr.bf16.mxu0 0
      %2057 = vmatmul.mubr.bf16.gmra.mxu0 %v1705
      %v2058 = vpop.f32.mrf.mxu0
      %v2059 = vadd.f32 %v1858, %v2058
      %v2060 = vpop.f32.mrf.mxu0
      %v2061 = vpop.f32.mrf.mxu0
      %v2062 = vadd.f32 %v1861, %v2061
      %v2063 = vpop.f32.mrf.mxu0
      %2064 = vmatprep.mubr.bf16.mxu0 0
      %2065 = vmatmul.mubr.bf16.gmra.mxu0 %v1706
      %v2066 = vpop.f32.mrf.mxu0
      %v2067 = vadd.f32 %v1866, %v2066
      %v2068 = vpop.f32.mrf.mxu0
      %v2069 = vpop.f32.mrf.mxu0
      %v2070 = vadd.f32 %v1869, %v2069
      %v2071 = vpop.f32.mrf.mxu0
      %2072 = vmatprep.mubr.bf16.mxu0 0
      %2073 = vmatmul.mubr.bf16.gmra.mxu0 %v1707
      %v2074 = vpop.f32.mrf.mxu0
      %v2075 = vadd.f32 %v1874, %v2074
      %v2076 = vpop.f32.mrf.mxu0
      %v2077 = vpop.f32.mrf.mxu0
      %v2078 = vadd.f32 %v1877, %v2077
      %v2079 = vpop.f32.mrf.mxu0
      %2080 = vmatprep.mubr.bf16.mxu0 0
      %2081 = vmatmul.mubr.bf16.gmra.mxu0 %v1708
      %v2082 = vpop.f32.mrf.mxu0
      %v2083 = vadd.f32 %v1882, %v2082
      %v2084 = vpop.f32.mrf.mxu0
      %v2085 = vpop.f32.mrf.mxu0
      %v2086 = vadd.f32 %v1885, %v2085
      %v2087 = vpop.f32.mrf.mxu0
      %2088 = vmatprep.mubr.bf16.mxu0 0
      %2089 = vmatmul.mubr.bf16.gmra.mxu0 %v1709
      %v2090 = vpop.f32.mrf.mxu0
      %v2091 = vadd.f32 %v1890, %v2090
      %v2092 = vpop.f32.mrf.mxu0
      %v2093 = vpop.f32.mrf.mxu0
      %v2094 = vadd.f32 %v1893, %v2093
      %v2095 = vpop.f32.mrf.mxu0
      %2096 = vmatprep.mubr.bf16.mxu0 0
      %2097 = vmatmul.mubr.bf16.gmra.mxu0 %v1710
      %v2098 = vpop.f32.mrf.mxu0
      %v2099 = vadd.f32 %v1898, %v2098
      %v2100 = vpop.f32.mrf.mxu0
      %v2101 = vpop.f32.mrf.mxu0
      %v2102 = vadd.f32 %v1901, %v2101
      %v2103 = vpop.f32.mrf.mxu0
      %2104 = vmatprep.mubr.bf16.mxu0 0
      %2105 = vmatmul.mubr.bf16.gmra.mxu0 %v1711
      %v2106 = vpop.f32.mrf.mxu0
      %v2107 = vadd.f32 %v1906, %v2106
      %v2108 = vpop.f32.mrf.mxu0
      %v2109 = vpop.f32.mrf.mxu0
      %v2110 = vadd.f32 %v1909, %v2109
      %v2111 = vpop.f32.mrf.mxu0
      %2112 = vmatprep.mubr.bf16.mxu0 0
      %2113 = vmatmul.mubr.bf16.gmra.mxu0 %v1712
      %v2114 = vpop.f32.mrf.mxu0
      %v2115 = vadd.f32 %v1914, %v2114
      %v2116 = vpop.f32.mrf.mxu0
      %v2117 = vpop.f32.mrf.mxu0
      %v2118 = vadd.f32 %v1917, %v2117
      %v2119 = vpop.f32.mrf.mxu0
      %2120 = vmatprep.mubr.bf16.mxu0 0
      %2121 = vmatmul.mubr.bf16.gmra.mxu0 %v1713
      %v2122 = vpop.f32.mrf.mxu0
      %v2123 = vadd.f32 %v1922, %v2122
      %v2124 = vpop.f32.mrf.mxu0
      %v2125 = vpop.f32.mrf.mxu0
      %v2126 = vadd.f32 %v1925, %v2125
      %v2127 = vpop.f32.mrf.mxu0
      %2128 = vmatprep.mubr.bf16.mxu0 0
      %2129 = vmatmul.mubr.bf16.gmra.mxu0 %v1714
      %v2130 = vpop.f32.mrf.mxu0
      %v2131 = vadd.f32 %v1930, %v2130
      %v2132 = vpop.f32.mrf.mxu0
      %v2133 = vpop.f32.mrf.mxu0
      %v2134 = vadd.f32 %v1933, %v2133
      %v2135 = vpop.f32.mrf.mxu0
      %2136 = vmatprep.mubr.bf16.mxu0 0
      %2137 = vmatmul.mubr.bf16.gmra.mxu0 %v1715
      %v2138 = vpop.f32.mrf.mxu0
      %v2139 = vadd.f32 %v1938, %v2138
      %v2140 = vpop.f32.mrf.mxu0
      %v2141 = vpop.f32.mrf.mxu0
      %v2142 = vadd.f32 %v1941, %v2141
      %v2143 = vpop.f32.mrf.mxu0
      %2144 = vmatprep.mubr.bf16.mxu0 0
      %2145 = vmatmul.mubr.bf16.gmra.mxu0 %v1716
      %v2146 = vpop.f32.mrf.mxu0
      %v2147 = vadd.f32 %v1946, %v2146
      %v2148 = vpop.f32.mrf.mxu0
      %v2149 = vpop.f32.mrf.mxu0
      %v2150 = vadd.f32 %v1949, %v2149
      %v2151 = vpop.f32.mrf.mxu0
      %2152 = vmatprep.mubr.bf16.mxu0 0
      %2153 = vmatmul.mubr.bf16.gmra.mxu0 %v1717
      %v2154 = vpop.f32.mrf.mxu0
      %v2155 = vadd.f32 %v1954, %v2154
      %v2156 = vpop.f32.mrf.mxu0
      %v2157 = vpop.f32.mrf.mxu0
      %v2158 = vadd.f32 %v1957, %v2157
      %v2159 = vpop.f32.mrf.mxu0
      %2160 = vmatprep.mubr.bf16.mxu0 0
      %2161 = vmatmul.mubr.bf16.gmra.mxu0 %v1718
      %v2162 = vpop.f32.mrf.mxu0
      %v2163 = vadd.f32 %v1962, %v2162
      %v2164 = vpop.f32.mrf.mxu0
      %v2165 = vpop.f32.mrf.mxu0
      %v2166 = vadd.f32 %v1965, %v2165
      %v2167 = vpop.f32.mrf.mxu0
      %2168 = vdwg.mxu0
      %v2169 = vrot.slane %v1613, 1
      %v2170 = vrot.slane %v1614, 1
      %v2171 = vrot.slane %v1615, 1
      %v2172 = vrot.slane %v1616, 1
      %v2173 = vrot.slane %v1617, 1
      %v2174 = vrot.slane %v1618, 1
      %v2175 = vrot.slane %v1619, 1
      %v2176 = vrot.slane %v1620, 1
      %v2177 = vrot.slane %v1621, 1
      %v2178 = vrot.slane %v1622, 1
      %v2179 = vrot.slane %v1623, 1
      %v2180 = vrot.slane %v1624, 1
      %v2181 = vrot.slane %v1625, 1
      %v2182 = vrot.slane %v1626, 1
      %v2183 = vrot.slane %v1627, 1
      %v2184 = vrot.slane %v1628, 1
      %v2185 = vrot.slane %v1629, 1
      %v2186 = vrot.slane %v1630, 1
      %v2187 = vrot.slane %v1631, 1
      %v2188 = vrot.slane %v1632, 1
      %v2189 = vrot.slane %v1633, 1
      %v2190 = vrot.slane %v1634, 1
      %v2191 = vrot.slane %v1635, 1
      %v2192 = vrot.slane %v1636, 1
      %v2193 = vrot.slane %v1637, 1
      %v2194 = vrot.slane %v1638, 1
      %v2195 = vrot.slane %v1639, 1
      %v2196 = vrot.slane %v1640, 1
      %v2197 = vrot.slane %v1641, 1
      %v2198 = vrot.slane %v1642, 1
      %vm2199 = vcmp.lt.s32.totalorder %v1424, 7
      %v2200 = vsel %vm2199, %v2197, %v2198
      %v2201 = vsel %vm2199, %v2196, %v2197
      %v2202 = vsel %vm2199, %v2195, %v2196
      %v2203 = vsel %vm2199, %v2194, %v2195
      %v2204 = vsel %vm2199, %v2193, %v2194
      %v2205 = vsel %vm2199, %v2192, %v2193
      %v2206 = vsel %vm2199, %v2191, %v2192
      %v2207 = vsel %vm2199, %v2190, %v2191
      %v2208 = vsel %vm2199, %v2189, %v2190
      %v2209 = vsel %vm2199, %v2188, %v2189
      %v2210 = vsel %vm2199, %v2187, %v2188
      %v2211 = vsel %vm2199, %v2186, %v2187
      %v2212 = vsel %vm2199, %v2185, %v2186
      %v2213 = vsel %vm2199, %v2184, %v2185
      %v2214 = vsel %vm2199, %v2183, %v2184
      %v2215 = vsel %vm2199, %v2182, %v2183
      %v2216 = vsel %vm2199, %v2181, %v2182
      %v2217 = vsel %vm2199, %v2180, %v2181
      %v2218 = vsel %vm2199, %v2179, %v2180
      %v2219 = vsel %vm2199, %v2178, %v2179
      %v2220 = vsel %vm2199, %v2177, %v2178
      %v2221 = vsel %vm2199, %v2176, %v2177
      %v2222 = vsel %vm2199, %v2175, %v2176
      %v2223 = vsel %vm2199, %v2174, %v2175
      %v2224 = vsel %vm2199, %v2173, %v2174
      %v2225 = vsel %vm2199, %v2172, %v2173
      %v2226 = vsel %vm2199, %v2171, %v2172
      %v2227 = vsel %vm2199, %v2170, %v2171
      %v2228 = vsel %vm2199, %v2169, %v2170
      %v2229 = vsel %vm2199, %v2198, %v2169
      %v2230 = vpack.c.bf16 %v2227, %v2228
      %v2231 = vpack.c.bf16 %v2225, %v2226
      %v2232 = vpack.c.bf16 %v2223, %v2224
      %v2233 = vpack.c.bf16 %v2221, %v2222
      %v2234 = vpack.c.bf16 %v2219, %v2220
      %v2235 = vpack.c.bf16 %v2217, %v2218
      %v2236 = vpack.c.bf16 %v2215, %v2216
      %v2237 = vpack.c.bf16 %v2213, %v2214
      %v2238 = vpack.c.bf16 %v2211, %v2212
      %v2239 = vpack.c.bf16 %v2209, %v2210
      %v2240 = vpack.c.bf16 %v2207, %v2208
      %v2241 = vpack.c.bf16 %v2205, %v2206
      %v2242 = vpack.c.bf16 %v2203, %v2204
      %v2243 = vpack.c.bf16 %v2201, %v2202
      %v2244 = vpack.c.bf16 %v2229, %v2200
      %s2245 = scalar_lea.vmem %s3, 128
      %v2246 = vld [vmem:[%s2245] sm:$0xf]
      %v2247 = vld [vmem:[%s2245 + $0x4] sm:$0xf]
      %v2248 = vld [vmem:[%s2245 + $0x8] sm:$0xf]
      %v2249 = vld [vmem:[%s2245 + $0xc] sm:$0xf]
      %v2250 = vld [vmem:[%s2245 + $0x10] sm:$0xf]
      %v2251 = vld [vmem:[%s2245 + $0x14] sm:$0xf]
      %v2252 = vld [vmem:[%s2245 + $0x18] sm:$0xf]
      %v2253 = vld [vmem:[%s2245 + $0x1c] sm:$0xf]
      %v2254 = vld [vmem:[%s2245 + $0x20] sm:$0xf]
      %v2255 = vld [vmem:[%s2245 + $0x24] sm:$0xf]
      %v2256 = vld [vmem:[%s2245 + $0x28] sm:$0xf]
      %v2257 = vld [vmem:[%s2245 + $0x2c] sm:$0xf]
      %v2258 = vld [vmem:[%s2245 + $0x30] sm:$0xf]
      %v2259 = vld [vmem:[%s2245 + $0x34] sm:$0xf]
      %v2260 = vld [vmem:[%s2245 + $0x38] sm:$0xf]
      %v2261 = vld [vmem:[%s2245 + $0x3c] sm:$0xf]
      %v2278 = vunpack.c.l.b16 %v2246
      %v2279 = vunpack.c.l.b16 %v2247
      %v2280 = vunpack.c.l.b16 %v2248
      %v2281 = vunpack.c.l.b16 %v2249
      %v2282 = vunpack.c.l.b16 %v2250
      %v2283 = vunpack.c.l.b16 %v2251
      %v2284 = vunpack.c.l.b16 %v2252
      %v2285 = vunpack.c.l.b16 %v2253
      %v2286 = vunpack.c.l.b16 %v2254
      %v2287 = vunpack.c.l.b16 %v2255
      %v2288 = vunpack.c.l.b16 %v2256
      %v2289 = vunpack.c.l.b16 %v2257
      %v2290 = vunpack.c.l.b16 %v2258
      %v2291 = vunpack.c.l.b16 %v2259
      %v2292 = vunpack.c.l.b16 %v2260
      %v2293 = vunpack.c.l.b16 %v2261
      %v2294 = vpack.c.b16 %v2279, %v2278
      %v2295 = vpack.c.b16 %v2281, %v2280
      %v2296 = vpack.c.b16 %v2283, %v2282
      %v2297 = vpack.c.b16 %v2285, %v2284
      %v2298 = vpack.c.b16 %v2287, %v2286
      %v2299 = vpack.c.b16 %v2289, %v2288
      %v2300 = vpack.c.b16 %v2291, %v2290
      %v2301 = vpack.c.b16 %v2293, %v2292
      %2310 = vmatprep.subr.bf16.mxu0 0
      %2311 = vmatpush1.bf16.msra.mxu0 %v2301
      %2312 = vmatprep.subr.bf16.mxu0 0
      %2313 = vmatpush1.bf16.msra.mxu0 %v2300
      %2314 = vmatprep.subr.bf16.mxu0 0
      %2315 = vmatpush1.bf16.msra.mxu0 %v2299
      %2316 = vmatprep.subr.bf16.mxu0 0
      %2317 = vmatpush1.bf16.msra.mxu0 %v2298
      %2318 = vmatprep.subr.bf16.mxu0 0
      %2319 = vmatpush1.bf16.msra.mxu0 %v2297
      %2320 = vmatprep.subr.bf16.mxu0 0
      %2321 = vmatpush1.bf16.msra.mxu0 %v2296
      %2322 = vmatprep.subr.bf16.mxu0 0
      %2323 = vmatpush1.bf16.msra.mxu0 %v2295
      %2324 = vmatprep.subr.bf16.mxu0 0
      %2325 = vmatpush1.bf16.msra.mxu0 %v2294
      %2326 = vmatprep.subr.bf16.mxu0 0
      %2327 = vmatpush2.bf16.msra.mxu0 0
      %2328 = vmatprep.subr.bf16.mxu0 0
      %2329 = vmatpush2.bf16.msra.mxu0 0
      %2330 = vmatprep.subr.bf16.mxu0 0
      %2331 = vmatpush2.bf16.msra.mxu0 0
      %2332 = vmatprep.subr.bf16.mxu0 0
      %2333 = vmatpush2.bf16.msra.mxu0 0
      %2334 = vmatprep.subr.bf16.mxu0 0
      %2335 = vmatpush2.bf16.msra.mxu0 0
      %2336 = vmatprep.subr.bf16.mxu0 0
      %2337 = vmatpush2.bf16.msra.mxu0 0
      %2338 = vmatprep.subr.bf16.mxu0 0
      %2339 = vmatpush2.bf16.msra.mxu0 0
      %2340 = vmatprep.subr.bf16.mxu0 0
      %2341 = vmatpush2.bf16.msra.mxu0 0
      %2342 = vmatprep.mubr.bf16.mxu0 0
      %2343 = vmatmul.mubr.bf16.gmra.mxu0 %v2230
      %v2344 = vpop.f32.mrf.mxu0
      %v2345 = vadd.f32 0.0, %v2344
      %v2346 = vpop.f32.mrf.mxu0
      %v2347 = vpop.f32.mrf.mxu0
      %v2348 = vadd.f32 0.0, %v2347
      %v2349 = vpop.f32.mrf.mxu0
      %2350 = vmatprep.mubr.bf16.mxu0 0
      %2351 = vmatmul.mubr.bf16.gmra.mxu0 %v2231
      %v2352 = vpop.f32.mrf.mxu0
      %v2353 = vadd.f32 0.0, %v2352
      %v2354 = vpop.f32.mrf.mxu0
      %v2355 = vpop.f32.mrf.mxu0
      %v2356 = vadd.f32 0.0, %v2355
      %v2357 = vpop.f32.mrf.mxu0
      %2358 = vmatprep.mubr.bf16.mxu0 0
      %2359 = vmatmul.mubr.bf16.gmra.mxu0 %v2232
      %v2360 = vpop.f32.mrf.mxu0
      %v2361 = vadd.f32 0.0, %v2360
      %v2362 = vpop.f32.mrf.mxu0
      %v2363 = vpop.f32.mrf.mxu0
      %v2364 = vadd.f32 0.0, %v2363
      %v2365 = vpop.f32.mrf.mxu0
      %2366 = vmatprep.mubr.bf16.mxu0 0
      %2367 = vmatmul.mubr.bf16.gmra.mxu0 %v2233
      %v2368 = vpop.f32.mrf.mxu0
      %v2369 = vadd.f32 0.0, %v2368
      %v2370 = vpop.f32.mrf.mxu0
      %v2371 = vpop.f32.mrf.mxu0
      %v2372 = vadd.f32 0.0, %v2371
      %v2373 = vpop.f32.mrf.mxu0
      %2374 = vmatprep.mubr.bf16.mxu0 0
      %2375 = vmatmul.mubr.bf16.gmra.mxu0 %v2234
      %v2376 = vpop.f32.mrf.mxu0
      %v2377 = vadd.f32 0.0, %v2376
      %v2378 = vpop.f32.mrf.mxu0
      %v2379 = vpop.f32.mrf.mxu0
      %v2380 = vadd.f32 0.0, %v2379
      %v2381 = vpop.f32.mrf.mxu0
      %2382 = vmatprep.mubr.bf16.mxu0 0
      %2383 = vmatmul.mubr.bf16.gmra.mxu0 %v2235
      %v2384 = vpop.f32.mrf.mxu0
      %v2385 = vadd.f32 0.0, %v2384
      %v2386 = vpop.f32.mrf.mxu0
      %v2387 = vpop.f32.mrf.mxu0
      %v2388 = vadd.f32 0.0, %v2387
      %v2389 = vpop.f32.mrf.mxu0
      %2390 = vmatprep.mubr.bf16.mxu0 0
      %2391 = vmatmul.mubr.bf16.gmra.mxu0 %v2236
      %v2392 = vpop.f32.mrf.mxu0
      %v2393 = vadd.f32 0.0, %v2392
      %v2394 = vpop.f32.mrf.mxu0
      %v2395 = vpop.f32.mrf.mxu0
      %v2396 = vadd.f32 0.0, %v2395
      %v2397 = vpop.f32.mrf.mxu0
      %2398 = vmatprep.mubr.bf16.mxu0 0
      %2399 = vmatmul.mubr.bf16.gmra.mxu0 %v2237
      %v2400 = vpop.f32.mrf.mxu0
      %v2401 = vadd.f32 0.0, %v2400
      %v2402 = vpop.f32.mrf.mxu0
      %v2403 = vpop.f32.mrf.mxu0
      %v2404 = vadd.f32 0.0, %v2403
      %v2405 = vpop.f32.mrf.mxu0
      %2406 = vmatprep.mubr.bf16.mxu0 0
      %2407 = vmatmul.mubr.bf16.gmra.mxu0 %v2238
      %v2408 = vpop.f32.mrf.mxu0
      %v2409 = vadd.f32 0.0, %v2408
      %v2410 = vpop.f32.mrf.mxu0
      %v2411 = vpop.f32.mrf.mxu0
      %v2412 = vadd.f32 0.0, %v2411
      %v2413 = vpop.f32.mrf.mxu0
      %2414 = vmatprep.mubr.bf16.mxu0 0
      %2415 = vmatmul.mubr.bf16.gmra.mxu0 %v2239
      %v2416 = vpop.f32.mrf.mxu0
      %v2417 = vadd.f32 0.0, %v2416
      %v2418 = vpop.f32.mrf.mxu0
      %v2419 = vpop.f32.mrf.mxu0
      %v2420 = vadd.f32 0.0, %v2419
      %v2421 = vpop.f32.mrf.mxu0
      %2422 = vmatprep.mubr.bf16.mxu0 0
      %2423 = vmatmul.mubr.bf16.gmra.mxu0 %v2240
      %v2424 = vpop.f32.mrf.mxu0
      %v2425 = vadd.f32 0.0, %v2424
      %v2426 = vpop.f32.mrf.mxu0
      %v2427 = vpop.f32.mrf.mxu0
      %v2428 = vadd.f32 0.0, %v2427
      %v2429 = vpop.f32.mrf.mxu0
      %2430 = vmatprep.mubr.bf16.mxu0 0
      %2431 = vmatmul.mubr.bf16.gmra.mxu0 %v2241
      %v2432 = vpop.f32.mrf.mxu0
      %v2433 = vadd.f32 0.0, %v2432
      %v2434 = vpop.f32.mrf.mxu0
      %v2435 = vpop.f32.mrf.mxu0
      %v2436 = vadd.f32 0.0, %v2435
      %v2437 = vpop.f32.mrf.mxu0
      %2438 = vmatprep.mubr.bf16.mxu0 0
      %2439 = vmatmul.mubr.bf16.gmra.mxu0 %v2242
      %v2440 = vpop.f32.mrf.mxu0
      %v2441 = vadd.f32 0.0, %v2440
      %v2442 = vpop.f32.mrf.mxu0
      %v2443 = vpop.f32.mrf.mxu0
      %v2444 = vadd.f32 0.0, %v2443
      %v2445 = vpop.f32.mrf.mxu0
      %2446 = vmatprep.mubr.bf16.mxu0 0
      %2447 = vmatmul.mubr.bf16.gmra.mxu0 %v2243
      %v2448 = vpop.f32.mrf.mxu0
      %v2449 = vadd.f32 0.0, %v2448
      %v2450 = vpop.f32.mrf.mxu0
      %v2451 = vpop.f32.mrf.mxu0
      %v2452 = vadd.f32 0.0, %v2451
      %v2453 = vpop.f32.mrf.mxu0
      %2454 = vmatprep.mubr.bf16.mxu0 0
      %2455 = vmatmul.mubr.bf16.gmra.mxu0 %v2244
      %v2456 = vpop.f32.mrf.mxu0
      %v2457 = vadd.f32 0.0, %v2456
      %v2458 = vpop.f32.mrf.mxu0
      %v2459 = vpop.f32.mrf.mxu0
      %v2460 = vadd.f32 0.0, %v2459
      %v2461 = vpop.f32.mrf.mxu0
      %2462 = vdwg.mxu0
      %v2463 = vadd.f32 %v2051, %v2345
      %v2464 = vadd.f32 %v2054, %v2348
      %v2465 = vadd.f32 %v2059, %v2353
      %v2466 = vadd.f32 %v2062, %v2356
      %v2467 = vadd.f32 %v2067, %v2361
      %v2468 = vadd.f32 %v2070, %v2364
      %v2469 = vadd.f32 %v2075, %v2369
      %v2470 = vadd.f32 %v2078, %v2372
      %v2471 = vadd.f32 %v2083, %v2377
      %v2472 = vadd.f32 %v2086, %v2380
      %v2473 = vadd.f32 %v2091, %v2385
      %v2474 = vadd.f32 %v2094, %v2388
      %v2475 = vadd.f32 %v2099, %v2393
      %v2476 = vadd.f32 %v2102, %v2396
      %v2477 = vadd.f32 %v2107, %v2401
      %v2478 = vadd.f32 %v2110, %v2404
      %v2479 = vadd.f32 %v2115, %v2409
      %v2480 = vadd.f32 %v2118, %v2412
      %v2481 = vadd.f32 %v2123, %v2417
      %v2482 = vadd.f32 %v2126, %v2420
      %v2483 = vadd.f32 %v2131, %v2425
      %v2484 = vadd.f32 %v2134, %v2428
      %v2485 = vadd.f32 %v2139, %v2433
      %v2486 = vadd.f32 %v2142, %v2436
      %v2487 = vadd.f32 %v2147, %v2441
      %v2488 = vadd.f32 %v2150, %v2444
      %v2489 = vadd.f32 %v2155, %v2449
      %v2490 = vadd.f32 %v2158, %v2452
      %v2491 = vadd.f32 %v2163, %v2457
      %v2492 = vadd.f32 %v2166, %v2460
      %s2493 = scalar_lea.vmem [#allocation3], 24
      %v2494 = vld [vmem:[%s2493] sm:$0xff]
      %v2495 = vld [vmem:[%s2493 + $0x8] sm:$0xff]
      %v2496 = vld [vmem:[%s2493 + $0x10] sm:$0xff]
      %v2497 = vld [vmem:[%s2493 + $0x18] sm:$0xff]
      %v2498 = vld [vmem:[%s2493 + $0x20] sm:$0xff]
      %v2499 = vld [vmem:[%s2493 + $0x28] sm:$0xff]
      %v2500 = vld [vmem:[%s2493 + $0x30] sm:$0xff]
      %v2501 = vld [vmem:[%s2493 + $0x38] sm:$0xff]
      %v2502 = vld [vmem:[%s2493 + $0x40] sm:$0xff]
      %v2503 = vld [vmem:[%s2493 + $0x48] sm:$0xff]
      %v2504 = vld [vmem:[%s2493 + $0x50] sm:$0xff]
      %v2505 = vld [vmem:[%s2493 + $0x58] sm:$0xff]
      %v2506 = vld [vmem:[%s2493 + $0x60] sm:$0xff]
      %v2507 = vld [vmem:[%s2493 + $0x68] sm:$0xff]
      %v2508 = vld [vmem:[%s2493 + $0x70] sm:$0xff]
      %v2509 = vld [vmem:[%s2493 + $0x78] sm:$0xff]
      %v2510 = vld [vmem:[%s2493 + $0x80] sm:$0xff]
      %v2511 = vld [vmem:[%s2493 + $0x88] sm:$0xff]
      %v2512 = vld [vmem:[%s2493 + $0x90] sm:$0xff]
      %v2513 = vld [vmem:[%s2493 + $0x98] sm:$0xff]
      %v2514 = vld [vmem:[%s2493 + $0xa0] sm:$0xff]
      %v2515 = vld [vmem:[%s2493 + $0xa8] sm:$0xff]
      %v2516 = vld [vmem:[%s2493 + $0xb0] sm:$0xff]
      %v2517 = vld [vmem:[%s2493 + $0xb8] sm:$0xff]
      %v2518 = vld [vmem:[%s2493 + $0xc0] sm:$0xff]
      %v2519 = vld [vmem:[%s2493 + $0xc8] sm:$0xff]
      %v2520 = vld [vmem:[%s2493 + $0xd0] sm:$0xff]
      %v2521 = vld [vmem:[%s2493 + $0xd8] sm:$0xff]
      %v2522 = vld [vmem:[%s2493 + $0xe0] sm:$0xff]
      %v2523 = vld [vmem:[%s2493 + $0xe8] sm:$0xff]
      %v2524 = vrot.slane %v2494, 7
      %v2525 = vrot.slane %v2495, 7
      %v2526 = vrot.slane %v2496, 7
      %v2527 = vrot.slane %v2497, 7
      %v2528 = vrot.slane %v2498, 7
      %v2529 = vrot.slane %v2499, 7
      %v2530 = vrot.slane %v2500, 7
      %v2531 = vrot.slane %v2501, 7
      %v2532 = vrot.slane %v2502, 7
      %v2533 = vrot.slane %v2503, 7
      %v2534 = vrot.slane %v2504, 7
      %v2535 = vrot.slane %v2505, 7
      %v2536 = vrot.slane %v2506, 7
      %v2537 = vrot.slane %v2507, 7
      %v2538 = vrot.slane %v2508, 7
      %v2539 = vrot.slane %v2509, 7
      %v2540 = vrot.slane %v2510, 7
      %v2541 = vrot.slane %v2511, 7
      %v2542 = vrot.slane %v2512, 7
      %v2543 = vrot.slane %v2513, 7
      %v2544 = vrot.slane %v2514, 7
      %v2545 = vrot.slane %v2515, 7
      %v2546 = vrot.slane %v2516, 7
      %v2547 = vrot.slane %v2517, 7
      %v2548 = vrot.slane %v2518, 7
      %v2549 = vrot.slane %v2519, 7
      %v2550 = vrot.slane %v2520, 7
      %v2551 = vrot.slane %v2521, 7
      %v2552 = vrot.slane %v2522, 7
      %v2553 = vrot.slane %v2523, 7
      %v2554 = vsel %vm1673, %v2552, %v2553
      %v2555 = vsel %vm1673, %v2551, %v2552
      %v2556 = vsel %vm1673, %v2550, %v2551
      %v2557 = vsel %vm1673, %v2549, %v2550
      %v2558 = vsel %vm1673, %v2548, %v2549
      %v2559 = vsel %vm1673, %v2547, %v2548
      %v2560 = vsel %vm1673, %v2546, %v2547
      %v2561 = vsel %vm1673, %v2545, %v2546
      %v2562 = vsel %vm1673, %v2544, %v2545
      %v2563 = vsel %vm1673, %v2543, %v2544
      %v2564 = vsel %vm1673, %v2542, %v2543
      %v2565 = vsel %vm1673, %v2541, %v2542
      %v2566 = vsel %vm1673, %v2540, %v2541
      %v2567 = vsel %vm1673, %v2539, %v2540
      %v2568 = vsel %vm1673, %v2538, %v2539
      %v2569 = vsel %vm1673, %v2537, %v2538
      %v2570 = vsel %vm1673, %v2536, %v2537
      %v2571 = vsel %vm1673, %v2535, %v2536
      %v2572 = vsel %vm1673, %v2534, %v2535
      %v2573 = vsel %vm1673, %v2533, %v2534
      %v2574 = vsel %vm1673, %v2532, %v2533
      %v2575 = vsel %vm1673, %v2531, %v2532
      %v2576 = vsel %vm1673, %v2530, %v2531
      %v2577 = vsel %vm1673, %v2529, %v2530
      %v2578 = vsel %vm1673, %v2528, %v2529
      %v2579 = vsel %vm1673, %v2527, %v2528
      %v2580 = vsel %vm1673, %v2526, %v2527
      %v2581 = vsel %vm1673, %v2525, %v2526
      %v2582 = vsel %vm1673, %v2524, %v2525
      %v2583 = vsel %vm1673, %v2553, %v2524
      %v2584 = vpack.c.bf16 %v2582, %v2583
      %v2585 = vpack.c.bf16 %v2580, %v2581
      %v2586 = vpack.c.bf16 %v2578, %v2579
      %v2587 = vpack.c.bf16 %v2576, %v2577
      %v2588 = vpack.c.bf16 %v2574, %v2575
      %v2589 = vpack.c.bf16 %v2572, %v2573
      %v2590 = vpack.c.bf16 %v2570, %v2571
      %v2591 = vpack.c.bf16 %v2568, %v2569
      %v2592 = vpack.c.bf16 %v2566, %v2567
      %v2593 = vpack.c.bf16 %v2564, %v2565
      %v2594 = vpack.c.bf16 %v2562, %v2563
      %v2595 = vpack.c.bf16 %v2560, %v2561
      %v2596 = vpack.c.bf16 %v2558, %v2559
      %v2597 = vpack.c.bf16 %v2556, %v2557
      %v2598 = vpack.c.bf16 %v2554, %v2555
      %s2599 = scalar_lea.vmem %s3, 192
      %v2600 = vld [vmem:[%s2599] sm:$0xf]
      %v2601 = vld [vmem:[%s2599 + $0x4] sm:$0xf]
      %v2602 = vld [vmem:[%s2599 + $0x8] sm:$0xf]
      %v2603 = vld [vmem:[%s2599 + $0xc] sm:$0xf]
      %v2604 = vld [vmem:[%s2599 + $0x10] sm:$0xf]
      %v2605 = vld [vmem:[%s2599 + $0x14] sm:$0xf]
      %v2606 = vld [vmem:[%s2599 + $0x18] sm:$0xf]
      %v2607 = vld [vmem:[%s2599 + $0x1c] sm:$0xf]
      %v2608 = vld [vmem:[%s2599 + $0x20] sm:$0xf]
      %v2609 = vld [vmem:[%s2599 + $0x24] sm:$0xf]
      %v2610 = vld [vmem:[%s2599 + $0x28] sm:$0xf]
      %v2611 = vld [vmem:[%s2599 + $0x2c] sm:$0xf]
      %v2612 = vld [vmem:[%s2599 + $0x30] sm:$0xf]
      %v2613 = vld [vmem:[%s2599 + $0x34] sm:$0xf]
      %v2614 = vld [vmem:[%s2599 + $0x38] sm:$0xf]
      %v2615 = vld [vmem:[%s2599 + $0x3c] sm:$0xf]
      %v2632 = vunpack.c.l.b16 %v2600
      %v2633 = vunpack.c.l.b16 %v2601
      %v2634 = vunpack.c.l.b16 %v2602
      %v2635 = vunpack.c.l.b16 %v2603
      %v2636 = vunpack.c.l.b16 %v2604
      %v2637 = vunpack.c.l.b16 %v2605
      %v2638 = vunpack.c.l.b16 %v2606
      %v2639 = vunpack.c.l.b16 %v2607
      %v2640 = vunpack.c.l.b16 %v2608
      %v2641 = vunpack.c.l.b16 %v2609
      %v2642 = vunpack.c.l.b16 %v2610
      %v2643 = vunpack.c.l.b16 %v2611
      %v2644 = vunpack.c.l.b16 %v2612
      %v2645 = vunpack.c.l.b16 %v2613
      %v2646 = vunpack.c.l.b16 %v2614
      %v2647 = vunpack.c.l.b16 %v2615
      %v2648 = vpack.c.b16 %v2633, %v2632
      %v2649 = vpack.c.b16 %v2635, %v2634
      %v2650 = vpack.c.b16 %v2637, %v2636
      %v2651 = vpack.c.b16 %v2639, %v2638
      %v2652 = vpack.c.b16 %v2641, %v2640
      %v2653 = vpack.c.b16 %v2643, %v2642
      %v2654 = vpack.c.b16 %v2645, %v2644
      %v2655 = vpack.c.b16 %v2647, %v2646
      %2664 = vmatprep.subr.bf16.mxu0 0
      %2665 = vmatpush1.bf16.msra.mxu0 %v2655
      %2666 = vmatprep.subr.bf16.mxu0 0
      %2667 = vmatpush1.bf16.msra.mxu0 %v2654
      %2668 = vmatprep.subr.bf16.mxu0 0
      %2669 = vmatpush1.bf16.msra.mxu0 %v2653
      %2670 = vmatprep.subr.bf16.mxu0 0
      %2671 = vmatpush1.bf16.msra.mxu0 %v2652
      %2672 = vmatprep.subr.bf16.mxu0 0
      %2673 = vmatpush1.bf16.msra.mxu0 %v2651
      %2674 = vmatprep.subr.bf16.mxu0 0
      %2675 = vmatpush1.bf16.msra.mxu0 %v2650
      %2676 = vmatprep.subr.bf16.mxu0 0
      %2677 = vmatpush1.bf16.msra.mxu0 %v2649
      %2678 = vmatprep.subr.bf16.mxu0 0
      %2679 = vmatpush1.bf16.msra.mxu0 %v2648
      %2680 = vmatprep.subr.bf16.mxu0 0
      %2681 = vmatpush2.bf16.msra.mxu0 0
      %2682 = vmatprep.subr.bf16.mxu0 0
      %2683 = vmatpush2.bf16.msra.mxu0 0
      %2684 = vmatprep.subr.bf16.mxu0 0
      %2685 = vmatpush2.bf16.msra.mxu0 0
      %2686 = vmatprep.subr.bf16.mxu0 0
      %2687 = vmatpush2.bf16.msra.mxu0 0
      %2688 = vmatprep.subr.bf16.mxu0 0
      %2689 = vmatpush2.bf16.msra.mxu0 0
      %2690 = vmatprep.subr.bf16.mxu0 0
      %2691 = vmatpush2.bf16.msra.mxu0 0
      %2692 = vmatprep.subr.bf16.mxu0 0
      %2693 = vmatpush2.bf16.msra.mxu0 0
      %2694 = vmatprep.subr.bf16.mxu0 0
      %2695 = vmatpush2.bf16.msra.mxu0 0
      %2696 = vmatprep.mubr.bf16.mxu0 0
      %2697 = vmatmul.mubr.bf16.gmra.mxu0 %v2584
      %v2698 = vpop.f32.mrf.mxu0
      %v2699 = vadd.f32 0.0, %v2698
      %v2700 = vpop.f32.mrf.mxu0
      %v2701 = vpop.f32.mrf.mxu0
      %v2702 = vadd.f32 0.0, %v2701
      %v2703 = vpop.f32.mrf.mxu0
      %2704 = vmatprep.mubr.bf16.mxu0 0
      %2705 = vmatmul.mubr.bf16.gmra.mxu0 %v2585
      %v2706 = vpop.f32.mrf.mxu0
      %v2707 = vadd.f32 0.0, %v2706
      %v2708 = vpop.f32.mrf.mxu0
      %v2709 = vpop.f32.mrf.mxu0
      %v2710 = vadd.f32 0.0, %v2709
      %v2711 = vpop.f32.mrf.mxu0
      %2712 = vmatprep.mubr.bf16.mxu0 0
      %2713 = vmatmul.mubr.bf16.gmra.mxu0 %v2586
      %v2714 = vpop.f32.mrf.mxu0
      %v2715 = vadd.f32 0.0, %v2714
      %v2716 = vpop.f32.mrf.mxu0
      %v2717 = vpop.f32.mrf.mxu0
      %v2718 = vadd.f32 0.0, %v2717
      %v2719 = vpop.f32.mrf.mxu0
      %2720 = vmatprep.mubr.bf16.mxu0 0
      %2721 = vmatmul.mubr.bf16.gmra.mxu0 %v2587
      %v2722 = vpop.f32.mrf.mxu0
      %v2723 = vadd.f32 0.0, %v2722
      %v2724 = vpop.f32.mrf.mxu0
      %v2725 = vpop.f32.mrf.mxu0
      %v2726 = vadd.f32 0.0, %v2725
      %v2727 = vpop.f32.mrf.mxu0
      %2728 = vmatprep.mubr.bf16.mxu0 0
      %2729 = vmatmul.mubr.bf16.gmra.mxu0 %v2588
      %v2730 = vpop.f32.mrf.mxu0
      %v2731 = vadd.f32 0.0, %v2730
      %v2732 = vpop.f32.mrf.mxu0
      %v2733 = vpop.f32.mrf.mxu0
      %v2734 = vadd.f32 0.0, %v2733
      %v2735 = vpop.f32.mrf.mxu0
      %2736 = vmatprep.mubr.bf16.mxu0 0
      %2737 = vmatmul.mubr.bf16.gmra.mxu0 %v2589
      %v2738 = vpop.f32.mrf.mxu0
      %v2739 = vadd.f32 0.0, %v2738
      %v2740 = vpop.f32.mrf.mxu0
      %v2741 = vpop.f32.mrf.mxu0
      %v2742 = vadd.f32 0.0, %v2741
      %v2743 = vpop.f32.mrf.mxu0
      %2744 = vmatprep.mubr.bf16.mxu0 0
      %2745 = vmatmul.mubr.bf16.gmra.mxu0 %v2590
      %v2746 = vpop.f32.mrf.mxu0
      %v2747 = vadd.f32 0.0, %v2746
      %v2748 = vpop.f32.mrf.mxu0
      %v2749 = vpop.f32.mrf.mxu0
      %v2750 = vadd.f32 0.0, %v2749
      %v2751 = vpop.f32.mrf.mxu0
      %2752 = vmatprep.mubr.bf16.mxu0 0
      %2753 = vmatmul.mubr.bf16.gmra.mxu0 %v2591
      %v2754 = vpop.f32.mrf.mxu0
      %v2755 = vadd.f32 0.0, %v2754
      %v2756 = vpop.f32.mrf.mxu0
      %v2757 = vpop.f32.mrf.mxu0
      %v2758 = vadd.f32 0.0, %v2757
      %v2759 = vpop.f32.mrf.mxu0
      %2760 = vmatprep.mubr.bf16.mxu0 0
      %2761 = vmatmul.mubr.bf16.gmra.mxu0 %v2592
      %v2762 = vpop.f32.mrf.mxu0
      %v2763 = vadd.f32 0.0, %v2762
      %v2764 = vpop.f32.mrf.mxu0
      %v2765 = vpop.f32.mrf.mxu0
      %v2766 = vadd.f32 0.0, %v2765
      %v2767 = vpop.f32.mrf.mxu0
      %2768 = vmatprep.mubr.bf16.mxu0 0
      %2769 = vmatmul.mubr.bf16.gmra.mxu0 %v2593
      %v2770 = vpop.f32.mrf.mxu0
      %v2771 = vadd.f32 0.0, %v2770
      %v2772 = vpop.f32.mrf.mxu0
      %v2773 = vpop.f32.mrf.mxu0
      %v2774 = vadd.f32 0.0, %v2773
      %v2775 = vpop.f32.mrf.mxu0
      %2776 = vmatprep.mubr.bf16.mxu0 0
      %2777 = vmatmul.mubr.bf16.gmra.mxu0 %v2594
      %v2778 = vpop.f32.mrf.mxu0
      %v2779 = vadd.f32 0.0, %v2778
      %v2780 = vpop.f32.mrf.mxu0
      %v2781 = vpop.f32.mrf.mxu0
      %v2782 = vadd.f32 0.0, %v2781
      %v2783 = vpop.f32.mrf.mxu0
      %2784 = vmatprep.mubr.bf16.mxu0 0
      %2785 = vmatmul.mubr.bf16.gmra.mxu0 %v2595
      %v2786 = vpop.f32.mrf.mxu0
      %v2787 = vadd.f32 0.0, %v2786
      %v2788 = vpop.f32.mrf.mxu0
      %v2789 = vpop.f32.mrf.mxu0
      %v2790 = vadd.f32 0.0, %v2789
      %v2791 = vpop.f32.mrf.mxu0
      %2792 = vmatprep.mubr.bf16.mxu0 0
      %2793 = vmatmul.mubr.bf16.gmra.mxu0 %v2596
      %v2794 = vpop.f32.mrf.mxu0
      %v2795 = vadd.f32 0.0, %v2794
      %v2796 = vpop.f32.mrf.mxu0
      %v2797 = vpop.f32.mrf.mxu0
      %v2798 = vadd.f32 0.0, %v2797
      %v2799 = vpop.f32.mrf.mxu0
      %2800 = vmatprep.mubr.bf16.mxu0 0
      %2801 = vmatmul.mubr.bf16.gmra.mxu0 %v2597
      %v2802 = vpop.f32.mrf.mxu0
      %v2803 = vadd.f32 0.0, %v2802
      %v2804 = vpop.f32.mrf.mxu0
      %v2805 = vpop.f32.mrf.mxu0
      %v2806 = vadd.f32 0.0, %v2805
      %v2807 = vpop.f32.mrf.mxu0
      %2808 = vmatprep.mubr.bf16.mxu0 0
      %2809 = vmatmul.mubr.bf16.gmra.mxu0 %v2598
      %v2810 = vpop.f32.mrf.mxu0
      %v2811 = vadd.f32 0.0, %v2810
      %v2812 = vpop.f32.mrf.mxu0
      %v2813 = vpop.f32.mrf.mxu0
      %v2814 = vadd.f32 0.0, %v2813
      %v2815 = vpop.f32.mrf.mxu0
      %2816 = vdwg.mxu0
      %v2817 = vadd.f32 %v2463, %v2699
      %v2818 = vadd.f32 %v2464, %v2702
      %v2819 = vadd.f32 %v2465, %v2707
      %v2820 = vadd.f32 %v2466, %v2710
      %v2821 = vadd.f32 %v2467, %v2715
      %v2822 = vadd.f32 %v2468, %v2718
      %v2823 = vadd.f32 %v2469, %v2723
      %v2824 = vadd.f32 %v2470, %v2726
      %v2825 = vadd.f32 %v2471, %v2731
      %v2826 = vadd.f32 %v2472, %v2734
      %v2827 = vadd.f32 %v2473, %v2739
      %v2828 = vadd.f32 %v2474, %v2742
      %v2829 = vadd.f32 %v2475, %v2747
      %v2830 = vadd.f32 %v2476, %v2750
      %v2831 = vadd.f32 %v2477, %v2755
      %v2832 = vadd.f32 %v2478, %v2758
      %v2833 = vadd.f32 %v2479, %v2763
      %v2834 = vadd.f32 %v2480, %v2766
      %v2835 = vadd.f32 %v2481, %v2771
      %v2836 = vadd.f32 %v2482, %v2774
      %v2837 = vadd.f32 %v2483, %v2779
      %v2838 = vadd.f32 %v2484, %v2782
      %v2839 = vadd.f32 %v2485, %v2787
      %v2840 = vadd.f32 %v2486, %v2790
      %v2841 = vadd.f32 %v2487, %v2795
      %v2842 = vadd.f32 %v2488, %v2798
      %v2843 = vadd.f32 %v2489, %v2803
      %v2844 = vadd.f32 %v2490, %v2806
      %v2845 = vadd.f32 %v2491, %v2811
      %v2846 = vadd.f32 %v2492, %v2814
      %v2847 = vpack.c.bf16 %v2495, %v2494
      %v2848 = vpack.c.bf16 %v2497, %v2496
      %v2849 = vpack.c.bf16 %v2499, %v2498
      %v2850 = vpack.c.bf16 %v2501, %v2500
      %v2851 = vpack.c.bf16 %v2503, %v2502
      %v2852 = vpack.c.bf16 %v2505, %v2504
      %v2853 = vpack.c.bf16 %v2507, %v2506
      %v2854 = vpack.c.bf16 %v2509, %v2508
      %v2855 = vpack.c.bf16 %v2511, %v2510
      %v2856 = vpack.c.bf16 %v2513, %v2512
      %v2857 = vpack.c.bf16 %v2515, %v2514
      %v2858 = vpack.c.bf16 %v2517, %v2516
      %v2859 = vpack.c.bf16 %v2519, %v2518
      %v2860 = vpack.c.bf16 %v2521, %v2520
      %v2861 = vpack.c.bf16 %v2523, %v2522
      %s2862 = scalar_lea.vmem %s3, 256
      %v2863 = vld [vmem:[%s2862] sm:$0xf]
      %v2864 = vld [vmem:[%s2862 + $0x4] sm:$0xf]
      %v2865 = vld [vmem:[%s2862 + $0x8] sm:$0xf]
      %v2866 = vld [vmem:[%s2862 + $0xc] sm:$0xf]
      %v2867 = vld [vmem:[%s2862 + $0x10] sm:$0xf]
      %v2868 = vld [vmem:[%s2862 + $0x14] sm:$0xf]
      %v2869 = vld [vmem:[%s2862 + $0x18] sm:$0xf]
      %v2870 = vld [vmem:[%s2862 + $0x1c] sm:$0xf]
      %v2871 = vld [vmem:[%s2862 + $0x20] sm:$0xf]
      %v2872 = vld [vmem:[%s2862 + $0x24] sm:$0xf]
      %v2873 = vld [vmem:[%s2862 + $0x28] sm:$0xf]
      %v2874 = vld [vmem:[%s2862 + $0x2c] sm:$0xf]
      %v2875 = vld [vmem:[%s2862 + $0x30] sm:$0xf]
      %v2876 = vld [vmem:[%s2862 + $0x34] sm:$0xf]
      %v2877 = vld [vmem:[%s2862 + $0x38] sm:$0xf]
      %v2878 = vld [vmem:[%s2862 + $0x3c] sm:$0xf]
      %v2895 = vunpack.c.l.b16 %v2863
      %v2896 = vunpack.c.l.b16 %v2864
      %v2897 = vunpack.c.l.b16 %v2865
      %v2898 = vunpack.c.l.b16 %v2866
      %v2899 = vunpack.c.l.b16 %v2867
      %v2900 = vunpack.c.l.b16 %v2868
      %v2901 = vunpack.c.l.b16 %v2869
      %v2902 = vunpack.c.l.b16 %v2870
      %v2903 = vunpack.c.l.b16 %v2871
      %v2904 = vunpack.c.l.b16 %v2872
      %v2905 = vunpack.c.l.b16 %v2873
      %v2906 = vunpack.c.l.b16 %v2874
      %v2907 = vunpack.c.l.b16 %v2875
      %v2908 = vunpack.c.l.b16 %v2876
      %v2909 = vunpack.c.l.b16 %v2877
      %v2910 = vunpack.c.l.b16 %v2878
      %v2911 = vpack.c.b16 %v2896, %v2895
      %v2912 = vpack.c.b16 %v2898, %v2897
      %v2913 = vpack.c.b16 %v2900, %v2899
      %v2914 = vpack.c.b16 %v2902, %v2901
      %v2915 = vpack.c.b16 %v2904, %v2903
      %v2916 = vpack.c.b16 %v2906, %v2905
      %v2917 = vpack.c.b16 %v2908, %v2907
      %v2918 = vpack.c.b16 %v2910, %v2909
      %2927 = vmatprep.subr.bf16.mxu0 0
      %2928 = vmatpush1.bf16.msra.mxu0 %v2918
      %2929 = vmatprep.subr.bf16.mxu0 0
      %2930 = vmatpush1.bf16.msra.mxu0 %v2917
      %2931 = vmatprep.subr.bf16.mxu0 0
      %2932 = vmatpush1.bf16.msra.mxu0 %v2916
      %2933 = vmatprep.subr.bf16.mxu0 0
      %2934 = vmatpush1.bf16.msra.mxu0 %v2915
      %2935 = vmatprep.subr.bf16.mxu0 0
      %2936 = vmatpush1.bf16.msra.mxu0 %v2914
      %2937 = vmatprep.subr.bf16.mxu0 0
      %2938 = vmatpush1.bf16.msra.mxu0 %v2913
      %2939 = vmatprep.subr.bf16.mxu0 0
      %2940 = vmatpush1.bf16.msra.mxu0 %v2912
      %2941 = vmatprep.subr.bf16.mxu0 0
      %2942 = vmatpush1.bf16.msra.mxu0 %v2911
      %2943 = vmatprep.subr.bf16.mxu0 0
      %2944 = vmatpush2.bf16.msra.mxu0 0
      %2945 = vmatprep.subr.bf16.mxu0 0
      %2946 = vmatpush2.bf16.msra.mxu0 0
      %2947 = vmatprep.subr.bf16.mxu0 0
      %2948 = vmatpush2.bf16.msra.mxu0 0
      %2949 = vmatprep.subr.bf16.mxu0 0
      %2950 = vmatpush2.bf16.msra.mxu0 0
      %2951 = vmatprep.subr.bf16.mxu0 0
      %2952 = vmatpush2.bf16.msra.mxu0 0
      %2953 = vmatprep.subr.bf16.mxu0 0
      %2954 = vmatpush2.bf16.msra.mxu0 0
      %2955 = vmatprep.subr.bf16.mxu0 0
      %2956 = vmatpush2.bf16.msra.mxu0 0
      %2957 = vmatprep.subr.bf16.mxu0 0
      %2958 = vmatpush2.bf16.msra.mxu0 0
      %2959 = vmatprep.mubr.bf16.mxu0 0
      %2960 = vmatmul.mubr.bf16.gmra.mxu0 %v2847
      %v2961 = vpop.f32.mrf.mxu0
      %v2962 = vadd.f32 0.0, %v2961
      %v2963 = vpop.f32.mrf.mxu0
      %v2964 = vpop.f32.mrf.mxu0
      %v2965 = vadd.f32 0.0, %v2964
      %v2966 = vpop.f32.mrf.mxu0
      %2967 = vmatprep.mubr.bf16.mxu0 0
      %2968 = vmatmul.mubr.bf16.gmra.mxu0 %v2848
      %v2969 = vpop.f32.mrf.mxu0
      %v2970 = vadd.f32 0.0, %v2969
      %v2971 = vpop.f32.mrf.mxu0
      %v2972 = vpop.f32.mrf.mxu0
      %v2973 = vadd.f32 0.0, %v2972
      %v2974 = vpop.f32.mrf.mxu0
      %2975 = vmatprep.mubr.bf16.mxu0 0
      %2976 = vmatmul.mubr.bf16.gmra.mxu0 %v2849
      %v2977 = vpop.f32.mrf.mxu0
      %v2978 = vadd.f32 0.0, %v2977
      %v2979 = vpop.f32.mrf.mxu0
      %v2980 = vpop.f32.mrf.mxu0
      %v2981 = vadd.f32 0.0, %v2980
      %v2982 = vpop.f32.mrf.mxu0
      %2983 = vmatprep.mubr.bf16.mxu0 0
      %2984 = vmatmul.mubr.bf16.gmra.mxu0 %v2850
      %v2985 = vpop.f32.mrf.mxu0
      %v2986 = vadd.f32 0.0, %v2985
      %v2987 = vpop.f32.mrf.mxu0
      %v2988 = vpop.f32.mrf.mxu0
      %v2989 = vadd.f32 0.0, %v2988
      %v2990 = vpop.f32.mrf.mxu0
      %2991 = vmatprep.mubr.bf16.mxu0 0
      %2992 = vmatmul.mubr.bf16.gmra.mxu0 %v2851
      %v2993 = vpop.f32.mrf.mxu0
      %v2994 = vadd.f32 0.0, %v2993
      %v2995 = vpop.f32.mrf.mxu0
      %v2996 = vpop.f32.mrf.mxu0
      %v2997 = vadd.f32 0.0, %v2996
      %v2998 = vpop.f32.mrf.mxu0
      %2999 = vmatprep.mubr.bf16.mxu0 0
      %3000 = vmatmul.mubr.bf16.gmra.mxu0 %v2852
      %v3001 = vpop.f32.mrf.mxu0
      %v3002 = vadd.f32 0.0, %v3001
      %v3003 = vpop.f32.mrf.mxu0
      %v3004 = vpop.f32.mrf.mxu0
      %v3005 = vadd.f32 0.0, %v3004
      %v3006 = vpop.f32.mrf.mxu0
      %3007 = vmatprep.mubr.bf16.mxu0 0
      %3008 = vmatmul.mubr.bf16.gmra.mxu0 %v2853
      %v3009 = vpop.f32.mrf.mxu0
      %v3010 = vadd.f32 0.0, %v3009
      %v3011 = vpop.f32.mrf.mxu0
      %v3012 = vpop.f32.mrf.mxu0
      %v3013 = vadd.f32 0.0, %v3012
      %v3014 = vpop.f32.mrf.mxu0
      %3015 = vmatprep.mubr.bf16.mxu0 0
      %3016 = vmatmul.mubr.bf16.gmra.mxu0 %v2854
      %v3017 = vpop.f32.mrf.mxu0
      %v3018 = vadd.f32 0.0, %v3017
      %v3019 = vpop.f32.mrf.mxu0
      %v3020 = vpop.f32.mrf.mxu0
      %v3021 = vadd.f32 0.0, %v3020
      %v3022 = vpop.f32.mrf.mxu0
      %3023 = vmatprep.mubr.bf16.mxu0 0
      %3024 = vmatmul.mubr.bf16.gmra.mxu0 %v2855
      %v3025 = vpop.f32.mrf.mxu0
      %v3026 = vadd.f32 0.0, %v3025
      %v3027 = vpop.f32.mrf.mxu0
      %v3028 = vpop.f32.mrf.mxu0
      %v3029 = vadd.f32 0.0, %v3028
      %v3030 = vpop.f32.mrf.mxu0
      %3031 = vmatprep.mubr.bf16.mxu0 0
      %3032 = vmatmul.mubr.bf16.gmra.mxu0 %v2856
      %v3033 = vpop.f32.mrf.mxu0
      %v3034 = vadd.f32 0.0, %v3033
      %v3035 = vpop.f32.mrf.mxu0
      %v3036 = vpop.f32.mrf.mxu0
      %v3037 = vadd.f32 0.0, %v3036
      %v3038 = vpop.f32.mrf.mxu0
      %3039 = vmatprep.mubr.bf16.mxu0 0
      %3040 = vmatmul.mubr.bf16.gmra.mxu0 %v2857
      %v3041 = vpop.f32.mrf.mxu0
      %v3042 = vadd.f32 0.0, %v3041
      %v3043 = vpop.f32.mrf.mxu0
      %v3044 = vpop.f32.mrf.mxu0
      %v3045 = vadd.f32 0.0, %v3044
      %v3046 = vpop.f32.mrf.mxu0
      %3047 = vmatprep.mubr.bf16.mxu0 0
      %3048 = vmatmul.mubr.bf16.gmra.mxu0 %v2858
      %v3049 = vpop.f32.mrf.mxu0
      %v3050 = vadd.f32 0.0, %v3049
      %v3051 = vpop.f32.mrf.mxu0
      %v3052 = vpop.f32.mrf.mxu0
      %v3053 = vadd.f32 0.0, %v3052
      %v3054 = vpop.f32.mrf.mxu0
      %3055 = vmatprep.mubr.bf16.mxu0 0
      %3056 = vmatmul.mubr.bf16.gmra.mxu0 %v2859
      %v3057 = vpop.f32.mrf.mxu0
      %v3058 = vadd.f32 0.0, %v3057
      %v3059 = vpop.f32.mrf.mxu0
      %v3060 = vpop.f32.mrf.mxu0
      %v3061 = vadd.f32 0.0, %v3060
      %v3062 = vpop.f32.mrf.mxu0
      %3063 = vmatprep.mubr.bf16.mxu0 0
      %3064 = vmatmul.mubr.bf16.gmra.mxu0 %v2860
      %v3065 = vpop.f32.mrf.mxu0
      %v3066 = vadd.f32 0.0, %v3065
      %v3067 = vpop.f32.mrf.mxu0
      %v3068 = vpop.f32.mrf.mxu0
      %v3069 = vadd.f32 0.0, %v3068
      %v3070 = vpop.f32.mrf.mxu0
      %3071 = vmatprep.mubr.bf16.mxu0 0
      %3072 = vmatmul.mubr.bf16.gmra.mxu0 %v2861
      %v3073 = vpop.f32.mrf.mxu0
      %v3074 = vadd.f32 0.0, %v3073
      %v3075 = vpop.f32.mrf.mxu0
      %v3076 = vpop.f32.mrf.mxu0
      %v3077 = vadd.f32 0.0, %v3076
      %v3078 = vpop.f32.mrf.mxu0
      %3079 = vdwg.mxu0
      %v3080 = vadd.f32 %v2817, %v2962
      %v3081 = vadd.f32 %v2818, %v2965
      %v3082 = vadd.f32 %v2819, %v2970
      %v3083 = vadd.f32 %v2820, %v2973
      %v3084 = vadd.f32 %v2821, %v2978
      %v3085 = vadd.f32 %v2822, %v2981
      %v3086 = vadd.f32 %v2823, %v2986
      %v3087 = vadd.f32 %v2824, %v2989
      %v3088 = vadd.f32 %v2825, %v2994
      %v3089 = vadd.f32 %v2826, %v2997
      %v3090 = vadd.f32 %v2827, %v3002
      %v3091 = vadd.f32 %v2828, %v3005
      %v3092 = vadd.f32 %v2829, %v3010
      %v3093 = vadd.f32 %v2830, %v3013
      %v3094 = vadd.f32 %v2831, %v3018
      %v3095 = vadd.f32 %v2832, %v3021
      %v3096 = vadd.f32 %v2833, %v3026
      %v3097 = vadd.f32 %v2834, %v3029
      %v3098 = vadd.f32 %v2835, %v3034
      %v3099 = vadd.f32 %v2836, %v3037
      %v3100 = vadd.f32 %v2837, %v3042
      %v3101 = vadd.f32 %v2838, %v3045
      %v3102 = vadd.f32 %v2839, %v3050
      %v3103 = vadd.f32 %v2840, %v3053
      %v3104 = vadd.f32 %v2841, %v3058
      %v3105 = vadd.f32 %v2842, %v3061
      %v3106 = vadd.f32 %v2843, %v3066
      %v3107 = vadd.f32 %v2844, %v3069
      %v3108 = vadd.f32 %v2845, %v3074
      %v3109 = vadd.f32 %v2846, %v3077
      %v3110 = vrot.slane %v2494, 1
      %v3111 = vrot.slane %v2495, 1
      %v3112 = vrot.slane %v2496, 1
      %v3113 = vrot.slane %v2497, 1
      %v3114 = vrot.slane %v2498, 1
      %v3115 = vrot.slane %v2499, 1
      %v3116 = vrot.slane %v2500, 1
      %v3117 = vrot.slane %v2501, 1
      %v3118 = vrot.slane %v2502, 1
      %v3119 = vrot.slane %v2503, 1
      %v3120 = vrot.slane %v2504, 1
      %v3121 = vrot.slane %v2505, 1
      %v3122 = vrot.slane %v2506, 1
      %v3123 = vrot.slane %v2507, 1
      %v3124 = vrot.slane %v2508, 1
      %v3125 = vrot.slane %v2509, 1
      %v3126 = vrot.slane %v2510, 1
      %v3127 = vrot.slane %v2511, 1
      %v3128 = vrot.slane %v2512, 1
      %v3129 = vrot.slane %v2513, 1
      %v3130 = vrot.slane %v2514, 1
      %v3131 = vrot.slane %v2515, 1
      %v3132 = vrot.slane %v2516, 1
      %v3133 = vrot.slane %v2517, 1
      %v3134 = vrot.slane %v2518, 1
      %v3135 = vrot.slane %v2519, 1
      %v3136 = vrot.slane %v2520, 1
      %v3137 = vrot.slane %v2521, 1
      %v3138 = vrot.slane %v2522, 1
      %v3139 = vrot.slane %v2523, 1
      %v3140 = vsel %vm2199, %v3138, %v3139
      %v3141 = vsel %vm2199, %v3137, %v3138
      %v3142 = vsel %vm2199, %v3136, %v3137
      %v3143 = vsel %vm2199, %v3135, %v3136
      %v3144 = vsel %vm2199, %v3134, %v3135
      %v3145 = vsel %vm2199, %v3133, %v3134
      %v3146 = vsel %vm2199, %v3132, %v3133
      %v3147 = vsel %vm2199, %v3131, %v3132
      %v3148 = vsel %vm2199, %v3130, %v3131
      %v3149 = vsel %vm2199, %v3129, %v3130
      %v3150 = vsel %vm2199, %v3128, %v3129
      %v3151 = vsel %vm2199, %v3127, %v3128
      %v3152 = vsel %vm2199, %v3126, %v3127
      %v3153 = vsel %vm2199, %v3125, %v3126
      %v3154 = vsel %vm2199, %v3124, %v3125
      %v3155 = vsel %vm2199, %v3123, %v3124
      %v3156 = vsel %vm2199, %v3122, %v3123
      %v3157 = vsel %vm2199, %v3121, %v3122
      %v3158 = vsel %vm2199, %v3120, %v3121
      %v3159 = vsel %vm2199, %v3119, %v3120
      %v3160 = vsel %vm2199, %v3118, %v3119
      %v3161 = vsel %vm2199, %v3117, %v3118
      %v3162 = vsel %vm2199, %v3116, %v3117
      %v3163 = vsel %vm2199, %v3115, %v3116
      %v3164 = vsel %vm2199, %v3114, %v3115
      %v3165 = vsel %vm2199, %v3113, %v3114
      %v3166 = vsel %vm2199, %v3112, %v3113
      %v3167 = vsel %vm2199, %v3111, %v3112
      %v3168 = vsel %vm2199, %v3110, %v3111
      %v3169 = vsel %vm2199, %v3139, %v3110
      %v3170 = vpack.c.bf16 %v3167, %v3168
      %v3171 = vpack.c.bf16 %v3165, %v3166
      %v3172 = vpack.c.bf16 %v3163, %v3164
      %v3173 = vpack.c.bf16 %v3161, %v3162
      %v3174 = vpack.c.bf16 %v3159, %v3160
      %v3175 = vpack.c.bf16 %v3157, %v3158
      %v3176 = vpack.c.bf16 %v3155, %v3156
      %v3177 = vpack.c.bf16 %v3153, %v3154
      %v3178 = vpack.c.bf16 %v3151, %v3152
      %v3179 = vpack.c.bf16 %v3149, %v3150
      %v3180 = vpack.c.bf16 %v3147, %v3148
      %v3181 = vpack.c.bf16 %v3145, %v3146
      %v3182 = vpack.c.bf16 %v3143, %v3144
      %v3183 = vpack.c.bf16 %v3141, %v3142
      %v3184 = vpack.c.bf16 %v3169, %v3140
      %s3185 = scalar_lea.vmem %s3, 320
      %v3186 = vld [vmem:[%s3185] sm:$0xf]
      %v3187 = vld [vmem:[%s3185 + $0x4] sm:$0xf]
      %v3188 = vld [vmem:[%s3185 + $0x8] sm:$0xf]
      %v3189 = vld [vmem:[%s3185 + $0xc] sm:$0xf]
      %v3190 = vld [vmem:[%s3185 + $0x10] sm:$0xf]
      %v3191 = vld [vmem:[%s3185 + $0x14] sm:$0xf]
      %v3192 = vld [vmem:[%s3185 + $0x18] sm:$0xf]
      %v3193 = vld [vmem:[%s3185 + $0x1c] sm:$0xf]
      %v3194 = vld [vmem:[%s3185 + $0x20] sm:$0xf]
      %v3195 = vld [vmem:[%s3185 + $0x24] sm:$0xf]
      %v3196 = vld [vmem:[%s3185 + $0x28] sm:$0xf]
      %v3197 = vld [vmem:[%s3185 + $0x2c] sm:$0xf]
      %v3198 = vld [vmem:[%s3185 + $0x30] sm:$0xf]
      %v3199 = vld [vmem:[%s3185 + $0x34] sm:$0xf]
      %v3200 = vld [vmem:[%s3185 + $0x38] sm:$0xf]
      %v3201 = vld [vmem:[%s3185 + $0x3c] sm:$0xf]
      %v3218 = vunpack.c.l.b16 %v3186
      %v3219 = vunpack.c.l.b16 %v3187
      %v3220 = vunpack.c.l.b16 %v3188
      %v3221 = vunpack.c.l.b16 %v3189
      %v3222 = vunpack.c.l.b16 %v3190
      %v3223 = vunpack.c.l.b16 %v3191
      %v3224 = vunpack.c.l.b16 %v3192
      %v3225 = vunpack.c.l.b16 %v3193
      %v3226 = vunpack.c.l.b16 %v3194
      %v3227 = vunpack.c.l.b16 %v3195
      %v3228 = vunpack.c.l.b16 %v3196
      %v3229 = vunpack.c.l.b16 %v3197
      %v3230 = vunpack.c.l.b16 %v3198
      %v3231 = vunpack.c.l.b16 %v3199
      %v3232 = vunpack.c.l.b16 %v3200
      %v3233 = vunpack.c.l.b16 %v3201
      %v3234 = vpack.c.b16 %v3219, %v3218
      %v3235 = vpack.c.b16 %v3221, %v3220
      %v3236 = vpack.c.b16 %v3223, %v3222
      %v3237 = vpack.c.b16 %v3225, %v3224
      %v3238 = vpack.c.b16 %v3227, %v3226
      %v3239 = vpack.c.b16 %v3229, %v3228
      %v3240 = vpack.c.b16 %v3231, %v3230
      %v3241 = vpack.c.b16 %v3233, %v3232
      %3250 = vmatprep.subr.bf16.mxu0 0
      %3251 = vmatpush1.bf16.msra.mxu0 %v3241
      %3252 = vmatprep.subr.bf16.mxu0 0
      %3253 = vmatpush1.bf16.msra.mxu0 %v3240
      %3254 = vmatprep.subr.bf16.mxu0 0
      %3255 = vmatpush1.bf16.msra.mxu0 %v3239
      %3256 = vmatprep.subr.bf16.mxu0 0
      %3257 = vmatpush1.bf16.msra.mxu0 %v3238
      %3258 = vmatprep.subr.bf16.mxu0 0
      %3259 = vmatpush1.bf16.msra.mxu0 %v3237
      %3260 = vmatprep.subr.bf16.mxu0 0
      %3261 = vmatpush1.bf16.msra.mxu0 %v3236
      %3262 = vmatprep.subr.bf16.mxu0 0
      %3263 = vmatpush1.bf16.msra.mxu0 %v3235
      %3264 = vmatprep.subr.bf16.mxu0 0
      %3265 = vmatpush1.bf16.msra.mxu0 %v3234
      %3266 = vmatprep.subr.bf16.mxu0 0
      %3267 = vmatpush2.bf16.msra.mxu0 0
      %3268 = vmatprep.subr.bf16.mxu0 0
      %3269 = vmatpush2.bf16.msra.mxu0 0
      %3270 = vmatprep.subr.bf16.mxu0 0
      %3271 = vmatpush2.bf16.msra.mxu0 0
      %3272 = vmatprep.subr.bf16.mxu0 0
      %3273 = vmatpush2.bf16.msra.mxu0 0
      %3274 = vmatprep.subr.bf16.mxu0 0
      %3275 = vmatpush2.bf16.msra.mxu0 0
      %3276 = vmatprep.subr.bf16.mxu0 0
      %3277 = vmatpush2.bf16.msra.mxu0 0
      %3278 = vmatprep.subr.bf16.mxu0 0
      %3279 = vmatpush2.bf16.msra.mxu0 0
      %3280 = vmatprep.subr.bf16.mxu0 0
      %3281 = vmatpush2.bf16.msra.mxu0 0
      %3282 = vmatprep.mubr.bf16.mxu0 0
      %3283 = vmatmul.mubr.bf16.gmra.mxu0 %v3170
      %v3284 = vpop.f32.mrf.mxu0
      %v3285 = vadd.f32 0.0, %v3284
      %v3286 = vpop.f32.mrf.mxu0
      %v3287 = vpop.f32.mrf.mxu0
      %v3288 = vadd.f32 0.0, %v3287
      %v3289 = vpop.f32.mrf.mxu0
      %3290 = vmatprep.mubr.bf16.mxu0 0
      %3291 = vmatmul.mubr.bf16.gmra.mxu0 %v3171
      %v3292 = vpop.f32.mrf.mxu0
      %v3293 = vadd.f32 0.0, %v3292
      %v3294 = vpop.f32.mrf.mxu0
      %v3295 = vpop.f32.mrf.mxu0
      %v3296 = vadd.f32 0.0, %v3295
      %v3297 = vpop.f32.mrf.mxu0
      %3298 = vmatprep.mubr.bf16.mxu0 0
      %3299 = vmatmul.mubr.bf16.gmra.mxu0 %v3172
      %v3300 = vpop.f32.mrf.mxu0
      %v3301 = vadd.f32 0.0, %v3300
      %v3302 = vpop.f32.mrf.mxu0
      %v3303 = vpop.f32.mrf.mxu0
      %v3304 = vadd.f32 0.0, %v3303
      %v3305 = vpop.f32.mrf.mxu0
      %3306 = vmatprep.mubr.bf16.mxu0 0
      %3307 = vmatmul.mubr.bf16.gmra.mxu0 %v3173
      %v3308 = vpop.f32.mrf.mxu0
      %v3309 = vadd.f32 0.0, %v3308
      %v3310 = vpop.f32.mrf.mxu0
      %v3311 = vpop.f32.mrf.mxu0
      %v3312 = vadd.f32 0.0, %v3311
      %v3313 = vpop.f32.mrf.mxu0
      %3314 = vmatprep.mubr.bf16.mxu0 0
      %3315 = vmatmul.mubr.bf16.gmra.mxu0 %v3174
      %v3316 = vpop.f32.mrf.mxu0
      %v3317 = vadd.f32 0.0, %v3316
      %v3318 = vpop.f32.mrf.mxu0
      %v3319 = vpop.f32.mrf.mxu0
      %v3320 = vadd.f32 0.0, %v3319
      %v3321 = vpop.f32.mrf.mxu0
      %3322 = vmatprep.mubr.bf16.mxu0 0
      %3323 = vmatmul.mubr.bf16.gmra.mxu0 %v3175
      %v3324 = vpop.f32.mrf.mxu0
      %v3325 = vadd.f32 0.0, %v3324
      %v3326 = vpop.f32.mrf.mxu0
      %v3327 = vpop.f32.mrf.mxu0
      %v3328 = vadd.f32 0.0, %v3327
      %v3329 = vpop.f32.mrf.mxu0
      %3330 = vmatprep.mubr.bf16.mxu0 0
      %3331 = vmatmul.mubr.bf16.gmra.mxu0 %v3176
      %v3332 = vpop.f32.mrf.mxu0
      %v3333 = vadd.f32 0.0, %v3332
      %v3334 = vpop.f32.mrf.mxu0
      %v3335 = vpop.f32.mrf.mxu0
      %v3336 = vadd.f32 0.0, %v3335
      %v3337 = vpop.f32.mrf.mxu0
      %3338 = vmatprep.mubr.bf16.mxu0 0
      %3339 = vmatmul.mubr.bf16.gmra.mxu0 %v3177
      %v3340 = vpop.f32.mrf.mxu0
      %v3341 = vadd.f32 0.0, %v3340
      %v3342 = vpop.f32.mrf.mxu0
      %v3343 = vpop.f32.mrf.mxu0
      %v3344 = vadd.f32 0.0, %v3343
      %v3345 = vpop.f32.mrf.mxu0
      %3346 = vmatprep.mubr.bf16.mxu0 0
      %3347 = vmatmul.mubr.bf16.gmra.mxu0 %v3178
      %v3348 = vpop.f32.mrf.mxu0
      %v3349 = vadd.f32 0.0, %v3348
      %v3350 = vpop.f32.mrf.mxu0
      %v3351 = vpop.f32.mrf.mxu0
      %v3352 = vadd.f32 0.0, %v3351
      %v3353 = vpop.f32.mrf.mxu0
      %3354 = vmatprep.mubr.bf16.mxu0 0
      %3355 = vmatmul.mubr.bf16.gmra.mxu0 %v3179
      %v3356 = vpop.f32.mrf.mxu0
      %v3357 = vadd.f32 0.0, %v3356
      %v3358 = vpop.f32.mrf.mxu0
      %v3359 = vpop.f32.mrf.mxu0
      %v3360 = vadd.f32 0.0, %v3359
      %v3361 = vpop.f32.mrf.mxu0
      %3362 = vmatprep.mubr.bf16.mxu0 0
      %3363 = vmatmul.mubr.bf16.gmra.mxu0 %v3180
      %v3364 = vpop.f32.mrf.mxu0
      %v3365 = vadd.f32 0.0, %v3364
      %v3366 = vpop.f32.mrf.mxu0
      %v3367 = vpop.f32.mrf.mxu0
      %v3368 = vadd.f32 0.0, %v3367
      %v3369 = vpop.f32.mrf.mxu0
      %3370 = vmatprep.mubr.bf16.mxu0 0
      %3371 = vmatmul.mubr.bf16.gmra.mxu0 %v3181
      %v3372 = vpop.f32.mrf.mxu0
      %v3373 = vadd.f32 0.0, %v3372
      %v3374 = vpop.f32.mrf.mxu0
      %v3375 = vpop.f32.mrf.mxu0
      %v3376 = vadd.f32 0.0, %v3375
      %v3377 = vpop.f32.mrf.mxu0
      %3378 = vmatprep.mubr.bf16.mxu0 0
      %3379 = vmatmul.mubr.bf16.gmra.mxu0 %v3182
      %v3380 = vpop.f32.mrf.mxu0
      %v3381 = vadd.f32 0.0, %v3380
      %v3382 = vpop.f32.mrf.mxu0
      %v3383 = vpop.f32.mrf.mxu0
      %v3384 = vadd.f32 0.0, %v3383
      %v3385 = vpop.f32.mrf.mxu0
      %3386 = vmatprep.mubr.bf16.mxu0 0
      %3387 = vmatmul.mubr.bf16.gmra.mxu0 %v3183
      %v3388 = vpop.f32.mrf.mxu0
      %v3389 = vadd.f32 0.0, %v3388
      %v3390 = vpop.f32.mrf.mxu0
      %v3391 = vpop.f32.mrf.mxu0
      %v3392 = vadd.f32 0.0, %v3391
      %v3393 = vpop.f32.mrf.mxu0
      %3394 = vmatprep.mubr.bf16.mxu0 0
      %3395 = vmatmul.mubr.bf16.gmra.mxu0 %v3184
      %v3396 = vpop.f32.mrf.mxu0
      %v3397 = vadd.f32 0.0, %v3396
      %v3398 = vpop.f32.mrf.mxu0
      %v3399 = vpop.f32.mrf.mxu0
      %v3400 = vadd.f32 0.0, %v3399
      %v3401 = vpop.f32.mrf.mxu0
      %3402 = vdwg.mxu0
      %v3403 = vadd.f32 %v3080, %v3285
      %v3404 = vadd.f32 %v3081, %v3288
      %v3405 = vadd.f32 %v3082, %v3293
      %v3406 = vadd.f32 %v3083, %v3296
      %v3407 = vadd.f32 %v3084, %v3301
      %v3408 = vadd.f32 %v3085, %v3304
      %v3409 = vadd.f32 %v3086, %v3309
      %v3410 = vadd.f32 %v3087, %v3312
      %v3411 = vadd.f32 %v3088, %v3317
      %v3412 = vadd.f32 %v3089, %v3320
      %v3413 = vadd.f32 %v3090, %v3325
      %v3414 = vadd.f32 %v3091, %v3328
      %v3415 = vadd.f32 %v3092, %v3333
      %v3416 = vadd.f32 %v3093, %v3336
      %v3417 = vadd.f32 %v3094, %v3341
      %v3418 = vadd.f32 %v3095, %v3344
      %v3419 = vadd.f32 %v3096, %v3349
      %v3420 = vadd.f32 %v3097, %v3352
      %v3421 = vadd.f32 %v3098, %v3357
      %v3422 = vadd.f32 %v3099, %v3360
      %v3423 = vadd.f32 %v3100, %v3365
      %v3424 = vadd.f32 %v3101, %v3368
      %v3425 = vadd.f32 %v3102, %v3373
      %v3426 = vadd.f32 %v3103, %v3376
      %v3427 = vadd.f32 %v3104, %v3381
      %v3428 = vadd.f32 %v3105, %v3384
      %v3429 = vadd.f32 %v3106, %v3389
      %v3430 = vadd.f32 %v3107, %v3392
      %v3431 = vadd.f32 %v3108, %v3397
      %v3432 = vadd.f32 %v3109, %v3400
      %s3433 = scalar_lea.vmem [#allocation3], 48
      %v3434 = vld [vmem:[%s3433] sm:$0xff]
      %v3435 = vld [vmem:[%s3433 + $0x8] sm:$0xff]
      %v3436 = vld [vmem:[%s3433 + $0x10] sm:$0xff]
      %v3437 = vld [vmem:[%s3433 + $0x18] sm:$0xff]
      %v3438 = vld [vmem:[%s3433 + $0x20] sm:$0xff]
      %v3439 = vld [vmem:[%s3433 + $0x28] sm:$0xff]
      %v3440 = vld [vmem:[%s3433 + $0x30] sm:$0xff]
      %v3441 = vld [vmem:[%s3433 + $0x38] sm:$0xff]
      %v3442 = vld [vmem:[%s3433 + $0x40] sm:$0xff]
      %v3443 = vld [vmem:[%s3433 + $0x48] sm:$0xff]
      %v3444 = vld [vmem:[%s3433 + $0x50] sm:$0xff]
      %v3445 = vld [vmem:[%s3433 + $0x58] sm:$0xff]
      %v3446 = vld [vmem:[%s3433 + $0x60] sm:$0xff]
      %v3447 = vld [vmem:[%s3433 + $0x68] sm:$0xff]
      %v3448 = vld [vmem:[%s3433 + $0x70] sm:$0xff]
      %v3449 = vld [vmem:[%s3433 + $0x78] sm:$0xff]
      %v3450 = vld [vmem:[%s3433 + $0x80] sm:$0xff]
      %v3451 = vld [vmem:[%s3433 + $0x88] sm:$0xff]
      %v3452 = vld [vmem:[%s3433 + $0x90] sm:$0xff]
      %v3453 = vld [vmem:[%s3433 + $0x98] sm:$0xff]
      %v3454 = vld [vmem:[%s3433 + $0xa0] sm:$0xff]
      %v3455 = vld [vmem:[%s3433 + $0xa8] sm:$0xff]
      %v3456 = vld [vmem:[%s3433 + $0xb0] sm:$0xff]
      %v3457 = vld [vmem:[%s3433 + $0xb8] sm:$0xff]
      %v3458 = vld [vmem:[%s3433 + $0xc0] sm:$0xff]
      %v3459 = vld [vmem:[%s3433 + $0xc8] sm:$0xff]
      %v3460 = vld [vmem:[%s3433 + $0xd0] sm:$0xff]
      %v3461 = vld [vmem:[%s3433 + $0xd8] sm:$0xff]
      %v3462 = vld [vmem:[%s3433 + $0xe0] sm:$0xff]
      %v3463 = vld [vmem:[%s3433 + $0xe8] sm:$0xff]
      %v3464 = vrot.slane %v3434, 7
      %v3465 = vrot.slane %v3435, 7
      %v3466 = vrot.slane %v3436, 7
      %v3467 = vrot.slane %v3437, 7
      %v3468 = vrot.slane %v3438, 7
      %v3469 = vrot.slane %v3439, 7
      %v3470 = vrot.slane %v3440, 7
      %v3471 = vrot.slane %v3441, 7
      %v3472 = vrot.slane %v3442, 7
      %v3473 = vrot.slane %v3443, 7
      %v3474 = vrot.slane %v3444, 7
      %v3475 = vrot.slane %v3445, 7
      %v3476 = vrot.slane %v3446, 7
      %v3477 = vrot.slane %v3447, 7
      %v3478 = vrot.slane %v3448, 7
      %v3479 = vrot.slane %v3449, 7
      %v3480 = vrot.slane %v3450, 7
      %v3481 = vrot.slane %v3451, 7
      %v3482 = vrot.slane %v3452, 7
      %v3483 = vrot.slane %v3453, 7
      %v3484 = vrot.slane %v3454, 7
      %v3485 = vrot.slane %v3455, 7
      %v3486 = vrot.slane %v3456, 7
      %v3487 = vrot.slane %v3457, 7
      %v3488 = vrot.slane %v3458, 7
      %v3489 = vrot.slane %v3459, 7
      %v3490 = vrot.slane %v3460, 7
      %v3491 = vrot.slane %v3461, 7
      %v3492 = vrot.slane %v3462, 7
      %v3493 = vrot.slane %v3463, 7
      %v3494 = vsel %vm1673, %v3492, %v3493
      %v3495 = vsel %vm1673, %v3491, %v3492
      %v3496 = vsel %vm1673, %v3490, %v3491
      %v3497 = vsel %vm1673, %v3489, %v3490
      %v3498 = vsel %vm1673, %v3488, %v3489
      %v3499 = vsel %vm1673, %v3487, %v3488
      %v3500 = vsel %vm1673, %v3486, %v3487
      %v3501 = vsel %vm1673, %v3485, %v3486
      %v3502 = vsel %vm1673, %v3484, %v3485
      %v3503 = vsel %vm1673, %v3483, %v3484
      %v3504 = vsel %vm1673, %v3482, %v3483
      %v3505 = vsel %vm1673, %v3481, %v3482
      %v3506 = vsel %vm1673, %v3480, %v3481
      %v3507 = vsel %vm1673, %v3479, %v3480
      %v3508 = vsel %vm1673, %v3478, %v3479
      %v3509 = vsel %vm1673, %v3477, %v3478
      %v3510 = vsel %vm1673, %v3476, %v3477
      %v3511 = vsel %vm1673, %v3475, %v3476
      %v3512 = vsel %vm1673, %v3474, %v3475
      %v3513 = vsel %vm1673, %v3473, %v3474
      %v3514 = vsel %vm1673, %v3472, %v3473
      %v3515 = vsel %vm1673, %v3471, %v3472
      %v3516 = vsel %vm1673, %v3470, %v3471
      %v3517 = vsel %vm1673, %v3469, %v3470
      %v3518 = vsel %vm1673, %v3468, %v3469
      %v3519 = vsel %vm1673, %v3467, %v3468
      %v3520 = vsel %vm1673, %v3466, %v3467
      %v3521 = vsel %vm1673, %v3465, %v3466
      %v3522 = vsel %vm1673, %v3464, %v3465
      %v3523 = vsel %vm1673, %v3493, %v3464
      %v3524 = vpack.c.bf16 %v3522, %v3523
      %v3525 = vpack.c.bf16 %v3520, %v3521
      %v3526 = vpack.c.bf16 %v3518, %v3519
      %v3527 = vpack.c.bf16 %v3516, %v3517
      %v3528 = vpack.c.bf16 %v3514, %v3515
      %v3529 = vpack.c.bf16 %v3512, %v3513
      %v3530 = vpack.c.bf16 %v3510, %v3511
      %v3531 = vpack.c.bf16 %v3508, %v3509
      %v3532 = vpack.c.bf16 %v3506, %v3507
      %v3533 = vpack.c.bf16 %v3504, %v3505
      %v3534 = vpack.c.bf16 %v3502, %v3503
      %v3535 = vpack.c.bf16 %v3500, %v3501
      %v3536 = vpack.c.bf16 %v3498, %v3499
      %v3537 = vpack.c.bf16 %v3496, %v3497
      %v3538 = vpack.c.bf16 %v3494, %v3495
      %s3539 = scalar_lea.vmem %s3, 384
      %v3540 = vld [vmem:[%s3539] sm:$0xf]
      %v3541 = vld [vmem:[%s3539 + $0x4] sm:$0xf]
      %v3542 = vld [vmem:[%s3539 + $0x8] sm:$0xf]
      %v3543 = vld [vmem:[%s3539 + $0xc] sm:$0xf]
      %v3544 = vld [vmem:[%s3539 + $0x10] sm:$0xf]
      %v3545 = vld [vmem:[%s3539 + $0x14] sm:$0xf]
      %v3546 = vld [vmem:[%s3539 + $0x18] sm:$0xf]
      %v3547 = vld [vmem:[%s3539 + $0x1c] sm:$0xf]
      %v3548 = vld [vmem:[%s3539 + $0x20] sm:$0xf]
      %v3549 = vld [vmem:[%s3539 + $0x24] sm:$0xf]
      %v3550 = vld [vmem:[%s3539 + $0x28] sm:$0xf]
      %v3551 = vld [vmem:[%s3539 + $0x2c] sm:$0xf]
      %v3552 = vld [vmem:[%s3539 + $0x30] sm:$0xf]
      %v3553 = vld [vmem:[%s3539 + $0x34] sm:$0xf]
      %v3554 = vld [vmem:[%s3539 + $0x38] sm:$0xf]
      %v3555 = vld [vmem:[%s3539 + $0x3c] sm:$0xf]
      %v3572 = vunpack.c.l.b16 %v3540
      %v3573 = vunpack.c.l.b16 %v3541
      %v3574 = vunpack.c.l.b16 %v3542
      %v3575 = vunpack.c.l.b16 %v3543
      %v3576 = vunpack.c.l.b16 %v3544
      %v3577 = vunpack.c.l.b16 %v3545
      %v3578 = vunpack.c.l.b16 %v3546
      %v3579 = vunpack.c.l.b16 %v3547
      %v3580 = vunpack.c.l.b16 %v3548
      %v3581 = vunpack.c.l.b16 %v3549
      %v3582 = vunpack.c.l.b16 %v3550
      %v3583 = vunpack.c.l.b16 %v3551
      %v3584 = vunpack.c.l.b16 %v3552
      %v3585 = vunpack.c.l.b16 %v3553
      %v3586 = vunpack.c.l.b16 %v3554
      %v3587 = vunpack.c.l.b16 %v3555
      %v3588 = vpack.c.b16 %v3573, %v3572
      %v3589 = vpack.c.b16 %v3575, %v3574
      %v3590 = vpack.c.b16 %v3577, %v3576
      %v3591 = vpack.c.b16 %v3579, %v3578
      %v3592 = vpack.c.b16 %v3581, %v3580
      %v3593 = vpack.c.b16 %v3583, %v3582
      %v3594 = vpack.c.b16 %v3585, %v3584
      %v3595 = vpack.c.b16 %v3587, %v3586
      %3604 = vmatprep.subr.bf16.mxu0 0
      %3605 = vmatpush1.bf16.msra.mxu0 %v3595
      %3606 = vmatprep.subr.bf16.mxu0 0
      %3607 = vmatpush1.bf16.msra.mxu0 %v3594
      %3608 = vmatprep.subr.bf16.mxu0 0
      %3609 = vmatpush1.bf16.msra.mxu0 %v3593
      %3610 = vmatprep.subr.bf16.mxu0 0
      %3611 = vmatpush1.bf16.msra.mxu0 %v3592
      %3612 = vmatprep.subr.bf16.mxu0 0
      %3613 = vmatpush1.bf16.msra.mxu0 %v3591
      %3614 = vmatprep.subr.bf16.mxu0 0
      %3615 = vmatpush1.bf16.msra.mxu0 %v3590
      %3616 = vmatprep.subr.bf16.mxu0 0
      %3617 = vmatpush1.bf16.msra.mxu0 %v3589
      %3618 = vmatprep.subr.bf16.mxu0 0
      %3619 = vmatpush1.bf16.msra.mxu0 %v3588
      %3620 = vmatprep.subr.bf16.mxu0 0
      %3621 = vmatpush2.bf16.msra.mxu0 0
      %3622 = vmatprep.subr.bf16.mxu0 0
      %3623 = vmatpush2.bf16.msra.mxu0 0
      %3624 = vmatprep.subr.bf16.mxu0 0
      %3625 = vmatpush2.bf16.msra.mxu0 0
      %3626 = vmatprep.subr.bf16.mxu0 0
      %3627 = vmatpush2.bf16.msra.mxu0 0
      %3628 = vmatprep.subr.bf16.mxu0 0
      %3629 = vmatpush2.bf16.msra.mxu0 0
      %3630 = vmatprep.subr.bf16.mxu0 0
      %3631 = vmatpush2.bf16.msra.mxu0 0
      %3632 = vmatprep.subr.bf16.mxu0 0
      %3633 = vmatpush2.bf16.msra.mxu0 0
      %3634 = vmatprep.subr.bf16.mxu0 0
      %3635 = vmatpush2.bf16.msra.mxu0 0
      %3636 = vmatprep.mubr.bf16.mxu0 0
      %3637 = vmatmul.mubr.bf16.gmra.mxu0 %v3524
      %v3638 = vpop.f32.mrf.mxu0
      %v3639 = vadd.f32 0.0, %v3638
      %v3640 = vpop.f32.mrf.mxu0
      %v3641 = vpop.f32.mrf.mxu0
      %v3642 = vadd.f32 0.0, %v3641
      %v3643 = vpop.f32.mrf.mxu0
      %3644 = vmatprep.mubr.bf16.mxu0 0
      %3645 = vmatmul.mubr.bf16.gmra.mxu0 %v3525
      %v3646 = vpop.f32.mrf.mxu0
      %v3647 = vadd.f32 0.0, %v3646
      %v3648 = vpop.f32.mrf.mxu0
      %v3649 = vpop.f32.mrf.mxu0
      %v3650 = vadd.f32 0.0, %v3649
      %v3651 = vpop.f32.mrf.mxu0
      %3652 = vmatprep.mubr.bf16.mxu0 0
      %3653 = vmatmul.mubr.bf16.gmra.mxu0 %v3526
      %v3654 = vpop.f32.mrf.mxu0
      %v3655 = vadd.f32 0.0, %v3654
      %v3656 = vpop.f32.mrf.mxu0
      %v3657 = vpop.f32.mrf.mxu0
      %v3658 = vadd.f32 0.0, %v3657
      %v3659 = vpop.f32.mrf.mxu0
      %3660 = vmatprep.mubr.bf16.mxu0 0
      %3661 = vmatmul.mubr.bf16.gmra.mxu0 %v3527
      %v3662 = vpop.f32.mrf.mxu0
      %v3663 = vadd.f32 0.0, %v3662
      %v3664 = vpop.f32.mrf.mxu0
      %v3665 = vpop.f32.mrf.mxu0
      %v3666 = vadd.f32 0.0, %v3665
      %v3667 = vpop.f32.mrf.mxu0
      %3668 = vmatprep.mubr.bf16.mxu0 0
      %3669 = vmatmul.mubr.bf16.gmra.mxu0 %v3528
      %v3670 = vpop.f32.mrf.mxu0
      %v3671 = vadd.f32 0.0, %v3670
      %v3672 = vpop.f32.mrf.mxu0
      %v3673 = vpop.f32.mrf.mxu0
      %v3674 = vadd.f32 0.0, %v3673
      %v3675 = vpop.f32.mrf.mxu0
      %3676 = vmatprep.mubr.bf16.mxu0 0
      %3677 = vmatmul.mubr.bf16.gmra.mxu0 %v3529
      %v3678 = vpop.f32.mrf.mxu0
      %v3679 = vadd.f32 0.0, %v3678
      %v3680 = vpop.f32.mrf.mxu0
      %v3681 = vpop.f32.mrf.mxu0
      %v3682 = vadd.f32 0.0, %v3681
      %v3683 = vpop.f32.mrf.mxu0
      %3684 = vmatprep.mubr.bf16.mxu0 0
      %3685 = vmatmul.mubr.bf16.gmra.mxu0 %v3530
      %v3686 = vpop.f32.mrf.mxu0
      %v3687 = vadd.f32 0.0, %v3686
      %v3688 = vpop.f32.mrf.mxu0
      %v3689 = vpop.f32.mrf.mxu0
      %v3690 = vadd.f32 0.0, %v3689
      %v3691 = vpop.f32.mrf.mxu0
      %3692 = vmatprep.mubr.bf16.mxu0 0
      %3693 = vmatmul.mubr.bf16.gmra.mxu0 %v3531
      %v3694 = vpop.f32.mrf.mxu0
      %v3695 = vadd.f32 0.0, %v3694
      %v3696 = vpop.f32.mrf.mxu0
      %v3697 = vpop.f32.mrf.mxu0
      %v3698 = vadd.f32 0.0, %v3697
      %v3699 = vpop.f32.mrf.mxu0
      %3700 = vmatprep.mubr.bf16.mxu0 0
      %3701 = vmatmul.mubr.bf16.gmra.mxu0 %v3532
      %v3702 = vpop.f32.mrf.mxu0
      %v3703 = vadd.f32 0.0, %v3702
      %v3704 = vpop.f32.mrf.mxu0
      %v3705 = vpop.f32.mrf.mxu0
      %v3706 = vadd.f32 0.0, %v3705
      %v3707 = vpop.f32.mrf.mxu0
      %3708 = vmatprep.mubr.bf16.mxu0 0
      %3709 = vmatmul.mubr.bf16.gmra.mxu0 %v3533
      %v3710 = vpop.f32.mrf.mxu0
      %v3711 = vadd.f32 0.0, %v3710
      %v3712 = vpop.f32.mrf.mxu0
      %v3713 = vpop.f32.mrf.mxu0
      %v3714 = vadd.f32 0.0, %v3713
      %v3715 = vpop.f32.mrf.mxu0
      %3716 = vmatprep.mubr.bf16.mxu0 0
      %3717 = vmatmul.mubr.bf16.gmra.mxu0 %v3534
      %v3718 = vpop.f32.mrf.mxu0
      %v3719 = vadd.f32 0.0, %v3718
      %v3720 = vpop.f32.mrf.mxu0
      %v3721 = vpop.f32.mrf.mxu0
      %v3722 = vadd.f32 0.0, %v3721
      %v3723 = vpop.f32.mrf.mxu0
      %3724 = vmatprep.mubr.bf16.mxu0 0
      %3725 = vmatmul.mubr.bf16.gmra.mxu0 %v3535
      %v3726 = vpop.f32.mrf.mxu0
      %v3727 = vadd.f32 0.0, %v3726
      %v3728 = vpop.f32.mrf.mxu0
      %v3729 = vpop.f32.mrf.mxu0
      %v3730 = vadd.f32 0.0, %v3729
      %v3731 = vpop.f32.mrf.mxu0
      %3732 = vmatprep.mubr.bf16.mxu0 0
      %3733 = vmatmul.mubr.bf16.gmra.mxu0 %v3536
      %v3734 = vpop.f32.mrf.mxu0
      %v3735 = vadd.f32 0.0, %v3734
      %v3736 = vpop.f32.mrf.mxu0
      %v3737 = vpop.f32.mrf.mxu0
      %v3738 = vadd.f32 0.0, %v3737
      %v3739 = vpop.f32.mrf.mxu0
      %3740 = vmatprep.mubr.bf16.mxu0 0
      %3741 = vmatmul.mubr.bf16.gmra.mxu0 %v3537
      %v3742 = vpop.f32.mrf.mxu0
      %v3743 = vadd.f32 0.0, %v3742
      %v3744 = vpop.f32.mrf.mxu0
      %v3745 = vpop.f32.mrf.mxu0
      %v3746 = vadd.f32 0.0, %v3745
      %v3747 = vpop.f32.mrf.mxu0
      %3748 = vmatprep.mubr.bf16.mxu0 0
      %3749 = vmatmul.mubr.bf16.gmra.mxu0 %v3538
      %v3750 = vpop.f32.mrf.mxu0
      %v3751 = vadd.f32 0.0, %v3750
      %v3752 = vpop.f32.mrf.mxu0
      %v3753 = vpop.f32.mrf.mxu0
      %v3754 = vadd.f32 0.0, %v3753
      %v3755 = vpop.f32.mrf.mxu0
      %3756 = vdwg.mxu0
      %v3757 = vadd.f32 %v3403, %v3639
      %v3758 = vadd.f32 %v3404, %v3642
      %v3759 = vadd.f32 %v3405, %v3647
      %v3760 = vadd.f32 %v3406, %v3650
      %v3761 = vadd.f32 %v3407, %v3655
      %v3762 = vadd.f32 %v3408, %v3658
      %v3763 = vadd.f32 %v3409, %v3663
      %v3764 = vadd.f32 %v3410, %v3666
      %v3765 = vadd.f32 %v3411, %v3671
      %v3766 = vadd.f32 %v3412, %v3674
      %v3767 = vadd.f32 %v3413, %v3679
      %v3768 = vadd.f32 %v3414, %v3682
      %v3769 = vadd.f32 %v3415, %v3687
      %v3770 = vadd.f32 %v3416, %v3690
      %v3771 = vadd.f32 %v3417, %v3695
      %v3772 = vadd.f32 %v3418, %v3698
      %v3773 = vadd.f32 %v3419, %v3703
      %v3774 = vadd.f32 %v3420, %v3706
      %v3775 = vadd.f32 %v3421, %v3711
      %v3776 = vadd.f32 %v3422, %v3714
      %v3777 = vadd.f32 %v3423, %v3719
      %v3778 = vadd.f32 %v3424, %v3722
      %v3779 = vadd.f32 %v3425, %v3727
      %v3780 = vadd.f32 %v3426, %v3730
      %v3781 = vadd.f32 %v3427, %v3735
      %v3782 = vadd.f32 %v3428, %v3738
      %v3783 = vadd.f32 %v3429, %v3743
      %v3784 = vadd.f32 %v3430, %v3746
      %v3785 = vadd.f32 %v3431, %v3751
      %v3786 = vadd.f32 %v3432, %v3754
      %v3787 = vpack.c.bf16 %v3435, %v3434
      %v3788 = vpack.c.bf16 %v3437, %v3436
      %v3789 = vpack.c.bf16 %v3439, %v3438
      %v3790 = vpack.c.bf16 %v3441, %v3440
      %v3791 = vpack.c.bf16 %v3443, %v3442
      %v3792 = vpack.c.bf16 %v3445, %v3444
      %v3793 = vpack.c.bf16 %v3447, %v3446
      %v3794 = vpack.c.bf16 %v3449, %v3448
      %v3795 = vpack.c.bf16 %v3451, %v3450
      %v3796 = vpack.c.bf16 %v3453, %v3452
      %v3797 = vpack.c.bf16 %v3455, %v3454
      %v3798 = vpack.c.bf16 %v3457, %v3456
      %v3799 = vpack.c.bf16 %v3459, %v3458
      %v3800 = vpack.c.bf16 %v3461, %v3460
      %v3801 = vpack.c.bf16 %v3463, %v3462
      %s3802 = scalar_lea.vmem %s3, 448
      %v3803 = vld [vmem:[%s3802] sm:$0xf]
      %v3804 = vld [vmem:[%s3802 + $0x4] sm:$0xf]
      %v3805 = vld [vmem:[%s3802 + $0x8] sm:$0xf]
      %v3806 = vld [vmem:[%s3802 + $0xc] sm:$0xf]
      %v3807 = vld [vmem:[%s3802 + $0x10] sm:$0xf]
      %v3808 = vld [vmem:[%s3802 + $0x14] sm:$0xf]
      %v3809 = vld [vmem:[%s3802 + $0x18] sm:$0xf]
      %v3810 = vld [vmem:[%s3802 + $0x1c] sm:$0xf]
      %v3811 = vld [vmem:[%s3802 + $0x20] sm:$0xf]
      %v3812 = vld [vmem:[%s3802 + $0x24] sm:$0xf]
      %v3813 = vld [vmem:[%s3802 + $0x28] sm:$0xf]
      %v3814 = vld [vmem:[%s3802 + $0x2c] sm:$0xf]
      %v3815 = vld [vmem:[%s3802 + $0x30] sm:$0xf]
      %v3816 = vld [vmem:[%s3802 + $0x34] sm:$0xf]
      %v3817 = vld [vmem:[%s3802 + $0x38] sm:$0xf]
      %v3818 = vld [vmem:[%s3802 + $0x3c] sm:$0xf]
      %v3835 = vunpack.c.l.b16 %v3803
      %v3836 = vunpack.c.l.b16 %v3804
      %v3837 = vunpack.c.l.b16 %v3805
      %v3838 = vunpack.c.l.b16 %v3806
      %v3839 = vunpack.c.l.b16 %v3807
      %v3840 = vunpack.c.l.b16 %v3808
      %v3841 = vunpack.c.l.b16 %v3809
      %v3842 = vunpack.c.l.b16 %v3810
      %v3843 = vunpack.c.l.b16 %v3811
      %v3844 = vunpack.c.l.b16 %v3812
      %v3845 = vunpack.c.l.b16 %v3813
      %v3846 = vunpack.c.l.b16 %v3814
      %v3847 = vunpack.c.l.b16 %v3815
      %v3848 = vunpack.c.l.b16 %v3816
      %v3849 = vunpack.c.l.b16 %v3817
      %v3850 = vunpack.c.l.b16 %v3818
      %v3851 = vpack.c.b16 %v3836, %v3835
      %v3852 = vpack.c.b16 %v3838, %v3837
      %v3853 = vpack.c.b16 %v3840, %v3839
      %v3854 = vpack.c.b16 %v3842, %v3841
      %v3855 = vpack.c.b16 %v3844, %v3843
      %v3856 = vpack.c.b16 %v3846, %v3845
      %v3857 = vpack.c.b16 %v3848, %v3847
      %v3858 = vpack.c.b16 %v3850, %v3849
      %3867 = vmatprep.subr.bf16.mxu0 0
      %3868 = vmatpush1.bf16.msra.mxu0 %v3858
      %3869 = vmatprep.subr.bf16.mxu0 0
      %3870 = vmatpush1.bf16.msra.mxu0 %v3857
      %3871 = vmatprep.subr.bf16.mxu0 0
      %3872 = vmatpush1.bf16.msra.mxu0 %v3856
      %3873 = vmatprep.subr.bf16.mxu0 0
      %3874 = vmatpush1.bf16.msra.mxu0 %v3855
      %3875 = vmatprep.subr.bf16.mxu0 0
      %3876 = vmatpush1.bf16.msra.mxu0 %v3854
      %3877 = vmatprep.subr.bf16.mxu0 0
      %3878 = vmatpush1.bf16.msra.mxu0 %v3853
      %3879 = vmatprep.subr.bf16.mxu0 0
      %3880 = vmatpush1.bf16.msra.mxu0 %v3852
      %3881 = vmatprep.subr.bf16.mxu0 0
      %3882 = vmatpush1.bf16.msra.mxu0 %v3851
      %3883 = vmatprep.subr.bf16.mxu0 0
      %3884 = vmatpush2.bf16.msra.mxu0 0
      %3885 = vmatprep.subr.bf16.mxu0 0
      %3886 = vmatpush2.bf16.msra.mxu0 0
      %3887 = vmatprep.subr.bf16.mxu0 0
      %3888 = vmatpush2.bf16.msra.mxu0 0
      %3889 = vmatprep.subr.bf16.mxu0 0
      %3890 = vmatpush2.bf16.msra.mxu0 0
      %3891 = vmatprep.subr.bf16.mxu0 0
      %3892 = vmatpush2.bf16.msra.mxu0 0
      %3893 = vmatprep.subr.bf16.mxu0 0
      %3894 = vmatpush2.bf16.msra.mxu0 0
      %3895 = vmatprep.subr.bf16.mxu0 0
      %3896 = vmatpush2.bf16.msra.mxu0 0
      %3897 = vmatprep.subr.bf16.mxu0 0
      %3898 = vmatpush2.bf16.msra.mxu0 0
      %3899 = vmatprep.mubr.bf16.mxu0 0
      %3900 = vmatmul.mubr.bf16.gmra.mxu0 %v3787
      %v3901 = vpop.f32.mrf.mxu0
      %v3902 = vadd.f32 0.0, %v3901
      %v3903 = vpop.f32.mrf.mxu0
      %v3904 = vpop.f32.mrf.mxu0
      %v3905 = vadd.f32 0.0, %v3904
      %v3906 = vpop.f32.mrf.mxu0
      %3907 = vmatprep.mubr.bf16.mxu0 0
      %3908 = vmatmul.mubr.bf16.gmra.mxu0 %v3788
      %v3909 = vpop.f32.mrf.mxu0
      %v3910 = vadd.f32 0.0, %v3909
      %v3911 = vpop.f32.mrf.mxu0
      %v3912 = vpop.f32.mrf.mxu0
      %v3913 = vadd.f32 0.0, %v3912
      %v3914 = vpop.f32.mrf.mxu0
      %3915 = vmatprep.mubr.bf16.mxu0 0
      %3916 = vmatmul.mubr.bf16.gmra.mxu0 %v3789
      %v3917 = vpop.f32.mrf.mxu0
      %v3918 = vadd.f32 0.0, %v3917
      %v3919 = vpop.f32.mrf.mxu0
      %v3920 = vpop.f32.mrf.mxu0
      %v3921 = vadd.f32 0.0, %v3920
      %v3922 = vpop.f32.mrf.mxu0
      %3923 = vmatprep.mubr.bf16.mxu0 0
      %3924 = vmatmul.mubr.bf16.gmra.mxu0 %v3790
      %v3925 = vpop.f32.mrf.mxu0
      %v3926 = vadd.f32 0.0, %v3925
      %v3927 = vpop.f32.mrf.mxu0
      %v3928 = vpop.f32.mrf.mxu0
      %v3929 = vadd.f32 0.0, %v3928
      %v3930 = vpop.f32.mrf.mxu0
      %3931 = vmatprep.mubr.bf16.mxu0 0
      %3932 = vmatmul.mubr.bf16.gmra.mxu0 %v3791
      %v3933 = vpop.f32.mrf.mxu0
      %v3934 = vadd.f32 0.0, %v3933
      %v3935 = vpop.f32.mrf.mxu0
      %v3936 = vpop.f32.mrf.mxu0
      %v3937 = vadd.f32 0.0, %v3936
      %v3938 = vpop.f32.mrf.mxu0
      %3939 = vmatprep.mubr.bf16.mxu0 0
      %3940 = vmatmul.mubr.bf16.gmra.mxu0 %v3792
      %v3941 = vpop.f32.mrf.mxu0
      %v3942 = vadd.f32 0.0, %v3941
      %v3943 = vpop.f32.mrf.mxu0
      %v3944 = vpop.f32.mrf.mxu0
      %v3945 = vadd.f32 0.0, %v3944
      %v3946 = vpop.f32.mrf.mxu0
      %3947 = vmatprep.mubr.bf16.mxu0 0
      %3948 = vmatmul.mubr.bf16.gmra.mxu0 %v3793
      %v3949 = vpop.f32.mrf.mxu0
      %v3950 = vadd.f32 0.0, %v3949
      %v3951 = vpop.f32.mrf.mxu0
      %v3952 = vpop.f32.mrf.mxu0
      %v3953 = vadd.f32 0.0, %v3952
      %v3954 = vpop.f32.mrf.mxu0
      %3955 = vmatprep.mubr.bf16.mxu0 0
      %3956 = vmatmul.mubr.bf16.gmra.mxu0 %v3794
      %v3957 = vpop.f32.mrf.mxu0
      %v3958 = vadd.f32 0.0, %v3957
      %v3959 = vpop.f32.mrf.mxu0
      %v3960 = vpop.f32.mrf.mxu0
      %v3961 = vadd.f32 0.0, %v3960
      %v3962 = vpop.f32.mrf.mxu0
      %3963 = vmatprep.mubr.bf16.mxu0 0
      %3964 = vmatmul.mubr.bf16.gmra.mxu0 %v3795
      %v3965 = vpop.f32.mrf.mxu0
      %v3966 = vadd.f32 0.0, %v3965
      %v3967 = vpop.f32.mrf.mxu0
      %v3968 = vpop.f32.mrf.mxu0
      %v3969 = vadd.f32 0.0, %v3968
      %v3970 = vpop.f32.mrf.mxu0
      %3971 = vmatprep.mubr.bf16.mxu0 0
      %3972 = vmatmul.mubr.bf16.gmra.mxu0 %v3796
      %v3973 = vpop.f32.mrf.mxu0
      %v3974 = vadd.f32 0.0, %v3973
      %v3975 = vpop.f32.mrf.mxu0
      %v3976 = vpop.f32.mrf.mxu0
      %v3977 = vadd.f32 0.0, %v3976
      %v3978 = vpop.f32.mrf.mxu0
      %3979 = vmatprep.mubr.bf16.mxu0 0
      %3980 = vmatmul.mubr.bf16.gmra.mxu0 %v3797
      %v3981 = vpop.f32.mrf.mxu0
      %v3982 = vadd.f32 0.0, %v3981
      %v3983 = vpop.f32.mrf.mxu0
      %v3984 = vpop.f32.mrf.mxu0
      %v3985 = vadd.f32 0.0, %v3984
      %v3986 = vpop.f32.mrf.mxu0
      %3987 = vmatprep.mubr.bf16.mxu0 0
      %3988 = vmatmul.mubr.bf16.gmra.mxu0 %v3798
      %v3989 = vpop.f32.mrf.mxu0
      %v3990 = vadd.f32 0.0, %v3989
      %v3991 = vpop.f32.mrf.mxu0
      %v3992 = vpop.f32.mrf.mxu0
      %v3993 = vadd.f32 0.0, %v3992
      %v3994 = vpop.f32.mrf.mxu0
      %3995 = vmatprep.mubr.bf16.mxu0 0
      %3996 = vmatmul.mubr.bf16.gmra.mxu0 %v3799
      %v3997 = vpop.f32.mrf.mxu0
      %v3998 = vadd.f32 0.0, %v3997
      %v3999 = vpop.f32.mrf.mxu0
      %v4000 = vpop.f32.mrf.mxu0
      %v4001 = vadd.f32 0.0, %v4000
      %v4002 = vpop.f32.mrf.mxu0
      %4003 = vmatprep.mubr.bf16.mxu0 0
      %4004 = vmatmul.mubr.bf16.gmra.mxu0 %v3800
      %v4005 = vpop.f32.mrf.mxu0
      %v4006 = vadd.f32 0.0, %v4005
      %v4007 = vpop.f32.mrf.mxu0
      %v4008 = vpop.f32.mrf.mxu0
      %v4009 = vadd.f32 0.0, %v4008
      %v4010 = vpop.f32.mrf.mxu0
      %4011 = vmatprep.mubr.bf16.mxu0 0
      %4012 = vmatmul.mubr.bf16.gmra.mxu0 %v3801
      %v4013 = vpop.f32.mrf.mxu0
      %v4014 = vadd.f32 0.0, %v4013
      %v4015 = vpop.f32.mrf.mxu0
      %v4016 = vpop.f32.mrf.mxu0
      %v4017 = vadd.f32 0.0, %v4016
      %v4018 = vpop.f32.mrf.mxu0
      %4019 = vdwg.mxu0
      %v4020 = vadd.f32 %v3757, %v3902
      %v4021 = vadd.f32 %v3758, %v3905
      %v4022 = vadd.f32 %v3759, %v3910
      %v4023 = vadd.f32 %v3760, %v3913
      %v4024 = vadd.f32 %v3761, %v3918
      %v4025 = vadd.f32 %v3762, %v3921
      %v4026 = vadd.f32 %v3763, %v3926
      %v4027 = vadd.f32 %v3764, %v3929
      %v4028 = vadd.f32 %v3765, %v3934
      %v4029 = vadd.f32 %v3766, %v3937
      %v4030 = vadd.f32 %v3767, %v3942
      %v4031 = vadd.f32 %v3768, %v3945
      %v4032 = vadd.f32 %v3769, %v3950
      %v4033 = vadd.f32 %v3770, %v3953
      %v4034 = vadd.f32 %v3771, %v3958
      %v4035 = vadd.f32 %v3772, %v3961
      %v4036 = vadd.f32 %v3773, %v3966
      %v4037 = vadd.f32 %v3774, %v3969
      %v4038 = vadd.f32 %v3775, %v3974
      %v4039 = vadd.f32 %v3776, %v3977
      %v4040 = vadd.f32 %v3777, %v3982
      %v4041 = vadd.f32 %v3778, %v3985
      %v4042 = vadd.f32 %v3779, %v3990
      %v4043 = vadd.f32 %v3780, %v3993
      %v4044 = vadd.f32 %v3781, %v3998
      %v4045 = vadd.f32 %v3782, %v4001
      %v4046 = vadd.f32 %v3783, %v4006
      %v4047 = vadd.f32 %v3784, %v4009
      %v4048 = vadd.f32 %v3785, %v4014
      %v4049 = vadd.f32 %v3786, %v4017
      %v4050 = vrot.slane %v3434, 1
      %v4051 = vrot.slane %v3435, 1
      %v4052 = vrot.slane %v3436, 1
      %v4053 = vrot.slane %v3437, 1
      %v4054 = vrot.slane %v3438, 1
      %v4055 = vrot.slane %v3439, 1
      %v4056 = vrot.slane %v3440, 1
      %v4057 = vrot.slane %v3441, 1
      %v4058 = vrot.slane %v3442, 1
      %v4059 = vrot.slane %v3443, 1
      %v4060 = vrot.slane %v3444, 1
      %v4061 = vrot.slane %v3445, 1
      %v4062 = vrot.slane %v3446, 1
      %v4063 = vrot.slane %v3447, 1
      %v4064 = vrot.slane %v3448, 1
      %v4065 = vrot.slane %v3449, 1
      %v4066 = vrot.slane %v3450, 1
      %v4067 = vrot.slane %v3451, 1
      %v4068 = vrot.slane %v3452, 1
      %v4069 = vrot.slane %v3453, 1
      %v4070 = vrot.slane %v3454, 1
      %v4071 = vrot.slane %v3455, 1
      %v4072 = vrot.slane %v3456, 1
      %v4073 = vrot.slane %v3457, 1
      %v4074 = vrot.slane %v3458, 1
      %v4075 = vrot.slane %v3459, 1
      %v4076 = vrot.slane %v3460, 1
      %v4077 = vrot.slane %v3461, 1
      %v4078 = vrot.slane %v3462, 1
      %v4079 = vrot.slane %v3463, 1
      %v4080 = vsel %vm2199, %v4078, %v4079
      %v4081 = vsel %vm2199, %v4077, %v4078
      %v4082 = vsel %vm2199, %v4076, %v4077
      %v4083 = vsel %vm2199, %v4075, %v4076
      %v4084 = vsel %vm2199, %v4074, %v4075
      %v4085 = vsel %vm2199, %v4073, %v4074
      %v4086 = vsel %vm2199, %v4072, %v4073
      %v4087 = vsel %vm2199, %v4071, %v4072
      %v4088 = vsel %vm2199, %v4070, %v4071
      %v4089 = vsel %vm2199, %v4069, %v4070
      %v4090 = vsel %vm2199, %v4068, %v4069
      %v4091 = vsel %vm2199, %v4067, %v4068
      %v4092 = vsel %vm2199, %v4066, %v4067
      %v4093 = vsel %vm2199, %v4065, %v4066
      %v4094 = vsel %vm2199, %v4064, %v4065
      %v4095 = vsel %vm2199, %v4063, %v4064
      %v4096 = vsel %vm2199, %v4062, %v4063
      %v4097 = vsel %vm2199, %v4061, %v4062
      %v4098 = vsel %vm2199, %v4060, %v4061
      %v4099 = vsel %vm2199, %v4059, %v4060
      %v4100 = vsel %vm2199, %v4058, %v4059
      %v4101 = vsel %vm2199, %v4057, %v4058
      %v4102 = vsel %vm2199, %v4056, %v4057
      %v4103 = vsel %vm2199, %v4055, %v4056
      %v4104 = vsel %vm2199, %v4054, %v4055
      %v4105 = vsel %vm2199, %v4053, %v4054
      %v4106 = vsel %vm2199, %v4052, %v4053
      %v4107 = vsel %vm2199, %v4051, %v4052
      %v4108 = vsel %vm2199, %v4050, %v4051
      %v4109 = vsel %vm2199, %v4079, %v4050
      %v4110 = vpack.c.bf16 %v4107, %v4108
      %v4111 = vpack.c.bf16 %v4105, %v4106
      %v4112 = vpack.c.bf16 %v4103, %v4104
      %v4113 = vpack.c.bf16 %v4101, %v4102
      %v4114 = vpack.c.bf16 %v4099, %v4100
      %v4115 = vpack.c.bf16 %v4097, %v4098
      %v4116 = vpack.c.bf16 %v4095, %v4096
      %v4117 = vpack.c.bf16 %v4093, %v4094
      %v4118 = vpack.c.bf16 %v4091, %v4092
      %v4119 = vpack.c.bf16 %v4089, %v4090
      %v4120 = vpack.c.bf16 %v4087, %v4088
      %v4121 = vpack.c.bf16 %v4085, %v4086
      %v4122 = vpack.c.bf16 %v4083, %v4084
      %v4123 = vpack.c.bf16 %v4081, %v4082
      %v4124 = vpack.c.bf16 %v4109, %v4080
      %s4125 = scalar_lea.vmem %s3, 512
      %v4126 = vld [vmem:[%s4125] sm:$0xf]
      %v4127 = vld [vmem:[%s4125 + $0x4] sm:$0xf]
      %v4128 = vld [vmem:[%s4125 + $0x8] sm:$0xf]
      %v4129 = vld [vmem:[%s4125 + $0xc] sm:$0xf]
      %v4130 = vld [vmem:[%s4125 + $0x10] sm:$0xf]
      %v4131 = vld [vmem:[%s4125 + $0x14] sm:$0xf]
      %v4132 = vld [vmem:[%s4125 + $0x18] sm:$0xf]
      %v4133 = vld [vmem:[%s4125 + $0x1c] sm:$0xf]
      %v4134 = vld [vmem:[%s4125 + $0x20] sm:$0xf]
      %v4135 = vld [vmem:[%s4125 + $0x24] sm:$0xf]
      %v4136 = vld [vmem:[%s4125 + $0x28] sm:$0xf]
      %v4137 = vld [vmem:[%s4125 + $0x2c] sm:$0xf]
      %v4138 = vld [vmem:[%s4125 + $0x30] sm:$0xf]
      %v4139 = vld [vmem:[%s4125 + $0x34] sm:$0xf]
      %v4140 = vld [vmem:[%s4125 + $0x38] sm:$0xf]
      %v4141 = vld [vmem:[%s4125 + $0x3c] sm:$0xf]
      %v4158 = vunpack.c.l.b16 %v4126
      %v4159 = vunpack.c.l.b16 %v4127
      %v4160 = vunpack.c.l.b16 %v4128
      %v4161 = vunpack.c.l.b16 %v4129
      %v4162 = vunpack.c.l.b16 %v4130
      %v4163 = vunpack.c.l.b16 %v4131
      %v4164 = vunpack.c.l.b16 %v4132
      %v4165 = vunpack.c.l.b16 %v4133
      %v4166 = vunpack.c.l.b16 %v4134
      %v4167 = vunpack.c.l.b16 %v4135
      %v4168 = vunpack.c.l.b16 %v4136
      %v4169 = vunpack.c.l.b16 %v4137
      %v4170 = vunpack.c.l.b16 %v4138
      %v4171 = vunpack.c.l.b16 %v4139
      %v4172 = vunpack.c.l.b16 %v4140
      %v4173 = vunpack.c.l.b16 %v4141
      %v4174 = vpack.c.b16 %v4159, %v4158
      %v4175 = vpack.c.b16 %v4161, %v4160
      %v4176 = vpack.c.b16 %v4163, %v4162
      %v4177 = vpack.c.b16 %v4165, %v4164
      %v4178 = vpack.c.b16 %v4167, %v4166
      %v4179 = vpack.c.b16 %v4169, %v4168
      %v4180 = vpack.c.b16 %v4171, %v4170
      %v4181 = vpack.c.b16 %v4173, %v4172
      %4190 = vmatprep.subr.bf16.mxu0 0
      %4191 = vmatpush1.bf16.msra.mxu0 %v4181
      %4192 = vmatprep.subr.bf16.mxu0 0
      %4193 = vmatpush1.bf16.msra.mxu0 %v4180
      %4194 = vmatprep.subr.bf16.mxu0 0
      %4195 = vmatpush1.bf16.msra.mxu0 %v4179
      %4196 = vmatprep.subr.bf16.mxu0 0
      %4197 = vmatpush1.bf16.msra.mxu0 %v4178
      %4198 = vmatprep.subr.bf16.mxu0 0
      %4199 = vmatpush1.bf16.msra.mxu0 %v4177
      %4200 = vmatprep.subr.bf16.mxu0 0
      %4201 = vmatpush1.bf16.msra.mxu0 %v4176
      %4202 = vmatprep.subr.bf16.mxu0 0
      %4203 = vmatpush1.bf16.msra.mxu0 %v4175
      %4204 = vmatprep.subr.bf16.mxu0 0
      %4205 = vmatpush1.bf16.msra.mxu0 %v4174
      %4206 = vmatprep.subr.bf16.mxu0 0
      %4207 = vmatpush2.bf16.msra.mxu0 0
      %4208 = vmatprep.subr.bf16.mxu0 0
      %4209 = vmatpush2.bf16.msra.mxu0 0
      %4210 = vmatprep.subr.bf16.mxu0 0
      %4211 = vmatpush2.bf16.msra.mxu0 0
      %4212 = vmatprep.subr.bf16.mxu0 0
      %4213 = vmatpush2.bf16.msra.mxu0 0
      %4214 = vmatprep.subr.bf16.mxu0 0
      %4215 = vmatpush2.bf16.msra.mxu0 0
      %4216 = vmatprep.subr.bf16.mxu0 0
      %4217 = vmatpush2.bf16.msra.mxu0 0
      %4218 = vmatprep.subr.bf16.mxu0 0
      %4219 = vmatpush2.bf16.msra.mxu0 0
      %4220 = vmatprep.subr.bf16.mxu0 0
      %4221 = vmatpush2.bf16.msra.mxu0 0
      %4222 = vmatprep.mubr.bf16.mxu0 0
      %4223 = vmatmul.mubr.bf16.gmra.mxu0 %v4110
      %v4224 = vpop.f32.mrf.mxu0
      %v4225 = vadd.f32 0.0, %v4224
      %v4226 = vpop.f32.mrf.mxu0
      %v4227 = vpop.f32.mrf.mxu0
      %v4228 = vadd.f32 0.0, %v4227
      %v4229 = vpop.f32.mrf.mxu0
      %4230 = vmatprep.mubr.bf16.mxu0 0
      %4231 = vmatmul.mubr.bf16.gmra.mxu0 %v4111
      %v4232 = vpop.f32.mrf.mxu0
      %v4233 = vadd.f32 0.0, %v4232
      %v4234 = vpop.f32.mrf.mxu0
      %v4235 = vpop.f32.mrf.mxu0
      %v4236 = vadd.f32 0.0, %v4235
      %v4237 = vpop.f32.mrf.mxu0
      %4238 = vmatprep.mubr.bf16.mxu0 0
      %4239 = vmatmul.mubr.bf16.gmra.mxu0 %v4112
      %v4240 = vpop.f32.mrf.mxu0
      %v4241 = vadd.f32 0.0, %v4240
      %v4242 = vpop.f32.mrf.mxu0
      %v4243 = vpop.f32.mrf.mxu0
      %v4244 = vadd.f32 0.0, %v4243
      %v4245 = vpop.f32.mrf.mxu0
      %4246 = vmatprep.mubr.bf16.mxu0 0
      %4247 = vmatmul.mubr.bf16.gmra.mxu0 %v4113
      %v4248 = vpop.f32.mrf.mxu0
      %v4249 = vadd.f32 0.0, %v4248
      %v4250 = vpop.f32.mrf.mxu0
      %v4251 = vpop.f32.mrf.mxu0
      %v4252 = vadd.f32 0.0, %v4251
      %v4253 = vpop.f32.mrf.mxu0
      %4254 = vmatprep.mubr.bf16.mxu0 0
      %4255 = vmatmul.mubr.bf16.gmra.mxu0 %v4114
      %v4256 = vpop.f32.mrf.mxu0
      %v4257 = vadd.f32 0.0, %v4256
      %v4258 = vpop.f32.mrf.mxu0
      %v4259 = vpop.f32.mrf.mxu0
      %v4260 = vadd.f32 0.0, %v4259
      %v4261 = vpop.f32.mrf.mxu0
      %4262 = vmatprep.mubr.bf16.mxu0 0
      %4263 = vmatmul.mubr.bf16.gmra.mxu0 %v4115
      %v4264 = vpop.f32.mrf.mxu0
      %v4265 = vadd.f32 0.0, %v4264
      %v4266 = vpop.f32.mrf.mxu0
      %v4267 = vpop.f32.mrf.mxu0
      %v4268 = vadd.f32 0.0, %v4267
      %v4269 = vpop.f32.mrf.mxu0
      %4270 = vmatprep.mubr.bf16.mxu0 0
      %4271 = vmatmul.mubr.bf16.gmra.mxu0 %v4116
      %v4272 = vpop.f32.mrf.mxu0
      %v4273 = vadd.f32 0.0, %v4272
      %v4274 = vpop.f32.mrf.mxu0
      %v4275 = vpop.f32.mrf.mxu0
      %v4276 = vadd.f32 0.0, %v4275
      %v4277 = vpop.f32.mrf.mxu0
      %4278 = vmatprep.mubr.bf16.mxu0 0
      %4279 = vmatmul.mubr.bf16.gmra.mxu0 %v4117
      %v4280 = vpop.f32.mrf.mxu0
      %v4281 = vadd.f32 0.0, %v4280
      %v4282 = vpop.f32.mrf.mxu0
      %v4283 = vpop.f32.mrf.mxu0
      %v4284 = vadd.f32 0.0, %v4283
      %v4285 = vpop.f32.mrf.mxu0
      %4286 = vmatprep.mubr.bf16.mxu0 0
      %4287 = vmatmul.mubr.bf16.gmra.mxu0 %v4118
      %v4288 = vpop.f32.mrf.mxu0
      %v4289 = vadd.f32 0.0, %v4288
      %v4290 = vpop.f32.mrf.mxu0
      %v4291 = vpop.f32.mrf.mxu0
      %v4292 = vadd.f32 0.0, %v4291
      %v4293 = vpop.f32.mrf.mxu0
      %4294 = vmatprep.mubr.bf16.mxu0 0
      %4295 = vmatmul.mubr.bf16.gmra.mxu0 %v4119
      %v4296 = vpop.f32.mrf.mxu0
      %v4297 = vadd.f32 0.0, %v4296
      %v4298 = vpop.f32.mrf.mxu0
      %v4299 = vpop.f32.mrf.mxu0
      %v4300 = vadd.f32 0.0, %v4299
      %v4301 = vpop.f32.mrf.mxu0
      %4302 = vmatprep.mubr.bf16.mxu0 0
      %4303 = vmatmul.mubr.bf16.gmra.mxu0 %v4120
      %v4304 = vpop.f32.mrf.mxu0
      %v4305 = vadd.f32 0.0, %v4304
      %v4306 = vpop.f32.mrf.mxu0
      %v4307 = vpop.f32.mrf.mxu0
      %v4308 = vadd.f32 0.0, %v4307
      %v4309 = vpop.f32.mrf.mxu0
      %4310 = vmatprep.mubr.bf16.mxu0 0
      %4311 = vmatmul.mubr.bf16.gmra.mxu0 %v4121
      %v4312 = vpop.f32.mrf.mxu0
      %v4313 = vadd.f32 0.0, %v4312
      %v4314 = vpop.f32.mrf.mxu0
      %v4315 = vpop.f32.mrf.mxu0
      %v4316 = vadd.f32 0.0, %v4315
      %v4317 = vpop.f32.mrf.mxu0
      %4318 = vmatprep.mubr.bf16.mxu0 0
      %4319 = vmatmul.mubr.bf16.gmra.mxu0 %v4122
      %v4320 = vpop.f32.mrf.mxu0
      %v4321 = vadd.f32 0.0, %v4320
      %v4322 = vpop.f32.mrf.mxu0
      %v4323 = vpop.f32.mrf.mxu0
      %v4324 = vadd.f32 0.0, %v4323
      %v4325 = vpop.f32.mrf.mxu0
      %4326 = vmatprep.mubr.bf16.mxu0 0
      %4327 = vmatmul.mubr.bf16.gmra.mxu0 %v4123
      %v4328 = vpop.f32.mrf.mxu0
      %v4329 = vadd.f32 0.0, %v4328
      %v4330 = vpop.f32.mrf.mxu0
      %v4331 = vpop.f32.mrf.mxu0
      %v4332 = vadd.f32 0.0, %v4331
      %v4333 = vpop.f32.mrf.mxu0
      %4334 = vmatprep.mubr.bf16.mxu0 0
      %4335 = vmatmul.mubr.bf16.gmra.mxu0 %v4124
      %v4336 = vpop.f32.mrf.mxu0
      %v4337 = vadd.f32 0.0, %v4336
      %v4338 = vpop.f32.mrf.mxu0
      %v4339 = vpop.f32.mrf.mxu0
      %v4340 = vadd.f32 0.0, %v4339
      %v4341 = vpop.f32.mrf.mxu0
      %4342 = vdwg.mxu0
      %v4343 = vadd.f32 %v4020, %v4225
      %v4344 = vadd.f32 %v4021, %v4228
      %v4345 = vadd.f32 %v4022, %v4233
      %v4346 = vadd.f32 %v4023, %v4236
      %v4347 = vadd.f32 %v4024, %v4241
      %v4348 = vadd.f32 %v4025, %v4244
      %v4349 = vadd.f32 %v4026, %v4249
      %v4350 = vadd.f32 %v4027, %v4252
      %v4351 = vadd.f32 %v4028, %v4257
      %v4352 = vadd.f32 %v4029, %v4260
      %v4353 = vadd.f32 %v4030, %v4265
      %v4354 = vadd.f32 %v4031, %v4268
      %v4355 = vadd.f32 %v4032, %v4273
      %v4356 = vadd.f32 %v4033, %v4276
      %v4357 = vadd.f32 %v4034, %v4281
      %v4358 = vadd.f32 %v4035, %v4284
      %v4359 = vadd.f32 %v4036, %v4289
      %v4360 = vadd.f32 %v4037, %v4292
      %v4361 = vadd.f32 %v4038, %v4297
      %v4362 = vadd.f32 %v4039, %v4300
      %v4363 = vadd.f32 %v4040, %v4305
      %v4364 = vadd.f32 %v4041, %v4308
      %v4365 = vadd.f32 %v4042, %v4313
      %v4366 = vadd.f32 %v4043, %v4316
      %v4367 = vadd.f32 %v4044, %v4321
      %v4368 = vadd.f32 %v4045, %v4324
      %v4369 = vadd.f32 %v4046, %v4329
      %v4370 = vadd.f32 %v4047, %v4332
      %v4371 = vadd.f32 %v4048, %v4337
      %v4372 = vadd.f32 %v4049, %v4340
      %v4373 = vld [vmem:[%s4] sm:$0x1]
      %v4375 = vlaneseq
      %v4376 = vshrl.u32 %v4375, 7
      %v4377 = vsub.s32 0, %v4376
      %v4378 = vrot.slane %v4373, %v4377
      %v4380 = vadd.f32 %v4343, %v4378
      %v4381 = vadd.f32 %v4344, %v4378
      %v4382 = vadd.f32 %v4345, %v4378
      %v4383 = vadd.f32 %v4346, %v4378
      %v4384 = vadd.f32 %v4347, %v4378
      %v4385 = vadd.f32 %v4348, %v4378
      %v4386 = vadd.f32 %v4349, %v4378
      %v4387 = vadd.f32 %v4350, %v4378
      %v4388 = vadd.f32 %v4351, %v4378
      %v4389 = vadd.f32 %v4352, %v4378
      %v4390 = vadd.f32 %v4353, %v4378
      %v4391 = vadd.f32 %v4354, %v4378
      %v4392 = vadd.f32 %v4355, %v4378
      %v4393 = vadd.f32 %v4356, %v4378
      %v4394 = vadd.f32 %v4357, %v4378
      %v4395 = vadd.f32 %v4358, %v4378
      %v4396 = vadd.f32 %v4359, %v4378
      %v4397 = vadd.f32 %v4360, %v4378
      %v4398 = vadd.f32 %v4361, %v4378
      %v4399 = vadd.f32 %v4362, %v4378
      %v4400 = vadd.f32 %v4363, %v4378
      %v4401 = vadd.f32 %v4364, %v4378
      %v4402 = vadd.f32 %v4365, %v4378
      %v4403 = vadd.f32 %v4366, %v4378
      %v4404 = vadd.f32 %v4367, %v4378
      %v4405 = vadd.f32 %v4368, %v4378
      %v4406 = vadd.f32 %v4369, %v4378
      %v4407 = vadd.f32 %v4370, %v4378
      %v4408 = vadd.f32 %v4371, %v4378
      %v4409 = vadd.f32 %v4372, %v4378
      %v4410 = vmul.f32 %v4380, 0.5
      %v4411 = vmul.f32 %v4381, 0.5
      %v4412 = vmul.f32 %v4382, 0.5
      %v4413 = vmul.f32 %v4383, 0.5
      %v4414 = vmul.f32 %v4384, 0.5
      %v4415 = vmul.f32 %v4385, 0.5
      %v4416 = vmul.f32 %v4386, 0.5
      %v4417 = vmul.f32 %v4387, 0.5
      %v4418 = vmul.f32 %v4388, 0.5
      %v4419 = vmul.f32 %v4389, 0.5
      %v4420 = vmul.f32 %v4390, 0.5
      %v4421 = vmul.f32 %v4391, 0.5
      %v4422 = vmul.f32 %v4392, 0.5
      %v4423 = vmul.f32 %v4393, 0.5
      %v4424 = vmul.f32 %v4394, 0.5
      %v4425 = vmul.f32 %v4395, 0.5
      %v4426 = vmul.f32 %v4396, 0.5
      %v4427 = vmul.f32 %v4397, 0.5
      %v4428 = vmul.f32 %v4398, 0.5
      %v4429 = vmul.f32 %v4399, 0.5
      %v4430 = vmul.f32 %v4400, 0.5
      %v4431 = vmul.f32 %v4401, 0.5
      %v4432 = vmul.f32 %v4402, 0.5
      %v4433 = vmul.f32 %v4403, 0.5
      %v4434 = vmul.f32 %v4404, 0.5
      %v4435 = vmul.f32 %v4405, 0.5
      %v4436 = vmul.f32 %v4406, 0.5
      %v4437 = vmul.f32 %v4407, 0.5
      %v4438 = vmul.f32 %v4408, 0.5
      %v4439 = vmul.f32 %v4409, 0.5
      %v4440 = vmul.f32 %v4380, 0.044715
      %v4441 = vmul.f32 %v4381, 0.044715
      %v4442 = vmul.f32 %v4382, 0.044715
      %v4443 = vmul.f32 %v4383, 0.044715
      %v4444 = vmul.f32 %v4384, 0.044715
      %v4445 = vmul.f32 %v4385, 0.044715
      %v4446 = vmul.f32 %v4386, 0.044715
      %v4447 = vmul.f32 %v4387, 0.044715
      %v4448 = vmul.f32 %v4388, 0.044715
      %v4449 = vmul.f32 %v4389, 0.044715
      %v4450 = vmul.f32 %v4390, 0.044715
      %v4451 = vmul.f32 %v4391, 0.044715
      %v4452 = vmul.f32 %v4392, 0.044715
      %v4453 = vmul.f32 %v4393, 0.044715
      %v4454 = vmul.f32 %v4394, 0.044715
      %v4455 = vmul.f32 %v4395, 0.044715
      %v4456 = vmul.f32 %v4396, 0.044715
      %v4457 = vmul.f32 %v4397, 0.044715
      %v4458 = vmul.f32 %v4398, 0.044715
      %v4459 = vmul.f32 %v4399, 0.044715
      %v4460 = vmul.f32 %v4400, 0.044715
      %v4461 = vmul.f32 %v4401, 0.044715
      %v4462 = vmul.f32 %v4402, 0.044715
      %v4463 = vmul.f32 %v4403, 0.044715
      %v4464 = vmul.f32 %v4404, 0.044715
      %v4465 = vmul.f32 %v4405, 0.044715
      %v4466 = vmul.f32 %v4406, 0.044715
      %v4467 = vmul.f32 %v4407, 0.044715
      %v4468 = vmul.f32 %v4408, 0.044715
      %v4469 = vmul.f32 %v4409, 0.044715
      %v4470 = vmul.f32 %v4440, %v4380
      %v4471 = vmul.f32 %v4441, %v4381
      %v4472 = vmul.f32 %v4442, %v4382
      %v4473 = vmul.f32 %v4443, %v4383
      %v4474 = vmul.f32 %v4444, %v4384
      %v4475 = vmul.f32 %v4445, %v4385
      %v4476 = vmul.f32 %v4446, %v4386
      %v4477 = vmul.f32 %v4447, %v4387
      %v4478 = vmul.f32 %v4448, %v4388
      %v4479 = vmul.f32 %v4449, %v4389
      %v4480 = vmul.f32 %v4450, %v4390
      %v4481 = vmul.f32 %v4451, %v4391
      %v4482 = vmul.f32 %v4452, %v4392
      %v4483 = vmul.f32 %v4453, %v4393
      %v4484 = vmul.f32 %v4454, %v4394
      %v4485 = vmul.f32 %v4455, %v4395
      %v4486 = vmul.f32 %v4456, %v4396
      %v4487 = vmul.f32 %v4457, %v4397
      %v4488 = vmul.f32 %v4458, %v4398
      %v4489 = vmul.f32 %v4459, %v4399
      %v4490 = vmul.f32 %v4460, %v4400
      %v4491 = vmul.f32 %v4461, %v4401
      %v4492 = vmul.f32 %v4462, %v4402
      %v4493 = vmul.f32 %v4463, %v4403
      %v4494 = vmul.f32 %v4464, %v4404
      %v4495 = vmul.f32 %v4465, %v4405
      %v4496 = vmul.f32 %v4466, %v4406
      %v4497 = vmul.f32 %v4467, %v4407
      %v4498 = vmul.f32 %v4468, %v4408
      %v4499 = vmul.f32 %v4469, %v4409
      %v4500 = vmul.f32 %v4470, %v4380
      %v4501 = vmul.f32 %v4471, %v4381
      %v4502 = vmul.f32 %v4472, %v4382
      %v4503 = vmul.f32 %v4473, %v4383
      %v4504 = vmul.f32 %v4474, %v4384
      %v4505 = vmul.f32 %v4475, %v4385
      %v4506 = vmul.f32 %v4476, %v4386
      %v4507 = vmul.f32 %v4477, %v4387
      %v4508 = vmul.f32 %v4478, %v4388
      %v4509 = vmul.f32 %v4479, %v4389
      %v4510 = vmul.f32 %v4480, %v4390
      %v4511 = vmul.f32 %v4481, %v4391
      %v4512 = vmul.f32 %v4482, %v4392
      %v4513 = vmul.f32 %v4483, %v4393
      %v4514 = vmul.f32 %v4484, %v4394
      %v4515 = vmul.f32 %v4485, %v4395
      %v4516 = vmul.f32 %v4486, %v4396
      %v4517 = vmul.f32 %v4487, %v4397
      %v4518 = vmul.f32 %v4488, %v4398
      %v4519 = vmul.f32 %v4489, %v4399
      %v4520 = vmul.f32 %v4490, %v4400
      %v4521 = vmul.f32 %v4491, %v4401
      %v4522 = vmul.f32 %v4492, %v4402
      %v4523 = vmul.f32 %v4493, %v4403
      %v4524 = vmul.f32 %v4494, %v4404
      %v4525 = vmul.f32 %v4495, %v4405
      %v4526 = vmul.f32 %v4496, %v4406
      %v4527 = vmul.f32 %v4497, %v4407
      %v4528 = vmul.f32 %v4498, %v4408
      %v4529 = vmul.f32 %v4499, %v4409
      %v4530 = vadd.f32 %v4380, %v4500
      %v4531 = vadd.f32 %v4381, %v4501
      %v4532 = vadd.f32 %v4382, %v4502
      %v4533 = vadd.f32 %v4383, %v4503
      %v4534 = vadd.f32 %v4384, %v4504
      %v4535 = vadd.f32 %v4385, %v4505
      %v4536 = vadd.f32 %v4386, %v4506
      %v4537 = vadd.f32 %v4387, %v4507
      %v4538 = vadd.f32 %v4388, %v4508
      %v4539 = vadd.f32 %v4389, %v4509
      %v4540 = vadd.f32 %v4390, %v4510
      %v4541 = vadd.f32 %v4391, %v4511
      %v4542 = vadd.f32 %v4392, %v4512
      %v4543 = vadd.f32 %v4393, %v4513
      %v4544 = vadd.f32 %v4394, %v4514
      %v4545 = vadd.f32 %v4395, %v4515
      %v4546 = vadd.f32 %v4396, %v4516
      %v4547 = vadd.f32 %v4397, %v4517
      %v4548 = vadd.f32 %v4398, %v4518
      %v4549 = vadd.f32 %v4399, %v4519
      %v4550 = vadd.f32 %v4400, %v4520
      %v4551 = vadd.f32 %v4401, %v4521
      %v4552 = vadd.f32 %v4402, %v4522
      %v4553 = vadd.f32 %v4403, %v4523
      %v4554 = vadd.f32 %v4404, %v4524
      %v4555 = vadd.f32 %v4405, %v4525
      %v4556 = vadd.f32 %v4406, %v4526
      %v4557 = vadd.f32 %v4407, %v4527
      %v4558 = vadd.f32 %v4408, %v4528
      %v4559 = vadd.f32 %v4409, %v4529
      %v4560 = vmul.f32 %v4530, 0.7978846
      %v4561 = vmul.f32 %v4531, 0.7978846
      %v4562 = vmul.f32 %v4532, 0.7978846
      %v4563 = vmul.f32 %v4533, 0.7978846
      %v4564 = vmul.f32 %v4534, 0.7978846
      %v4565 = vmul.f32 %v4535, 0.7978846
      %v4566 = vmul.f32 %v4536, 0.7978846
      %v4567 = vmul.f32 %v4537, 0.7978846
      %v4568 = vmul.f32 %v4538, 0.7978846
      %v4569 = vmul.f32 %v4539, 0.7978846
      %v4570 = vmul.f32 %v4540, 0.7978846
      %v4571 = vmul.f32 %v4541, 0.7978846
      %v4572 = vmul.f32 %v4542, 0.7978846
      %v4573 = vmul.f32 %v4543, 0.7978846
      %v4574 = vmul.f32 %v4544, 0.7978846
      %v4575 = vmul.f32 %v4545, 0.7978846
      %v4576 = vmul.f32 %v4546, 0.7978846
      %v4577 = vmul.f32 %v4547, 0.7978846
      %v4578 = vmul.f32 %v4548, 0.7978846
      %v4579 = vmul.f32 %v4549, 0.7978846
      %v4580 = vmul.f32 %v4550, 0.7978846
      %v4581 = vmul.f32 %v4551, 0.7978846
      %v4582 = vmul.f32 %v4552, 0.7978846
      %v4583 = vmul.f32 %v4553, 0.7978846
      %v4584 = vmul.f32 %v4554, 0.7978846
      %v4585 = vmul.f32 %v4555, 0.7978846
      %v4586 = vmul.f32 %v4556, 0.7978846
      %v4587 = vmul.f32 %v4557, 0.7978846
      %v4588 = vmul.f32 %v4558, 0.7978846
      %v4589 = vmul.f32 %v4559, 0.7978846
      %v4590 = vtanh.pop %v4560
      %v4591 = vtanh.pop %v4561
      %v4592 = vtanh.pop %v4562
      %v4593 = vtanh.pop %v4563
      %v4594 = vtanh.pop %v4564
      %v4595 = vtanh.pop %v4565
      %v4596 = vtanh.pop %v4566
      %v4597 = vtanh.pop %v4567
      %v4598 = vtanh.pop %v4568
      %v4599 = vtanh.pop %v4569
      %v4600 = vtanh.pop %v4570
      %v4601 = vtanh.pop %v4571
      %v4602 = vtanh.pop %v4572
      %v4603 = vtanh.pop %v4573
      %v4604 = vtanh.pop %v4574
      %v4605 = vtanh.pop %v4575
      %v4606 = vtanh.pop %v4576
      %v4607 = vtanh.pop %v4577
      %v4608 = vtanh.pop %v4578
      %v4609 = vtanh.pop %v4579
      %v4610 = vtanh.pop %v4580
      %v4611 = vtanh.pop %v4581
      %v4612 = vtanh.pop %v4582
      %v4613 = vtanh.pop %v4583
      %v4614 = vtanh.pop %v4584
      %v4615 = vtanh.pop %v4585
      %v4616 = vtanh.pop %v4586
      %v4617 = vtanh.pop %v4587
      %v4618 = vtanh.pop %v4588
      %v4619 = vtanh.pop %v4589
      %v4620 = vadd.f32 %v4590, 1.0
      %v4621 = vadd.f32 %v4591, 1.0
      %v4622 = vadd.f32 %v4592, 1.0
      %v4623 = vadd.f32 %v4593, 1.0
      %v4624 = vadd.f32 %v4594, 1.0
      %v4625 = vadd.f32 %v4595, 1.0
      %v4626 = vadd.f32 %v4596, 1.0
      %v4627 = vadd.f32 %v4597, 1.0
      %v4628 = vadd.f32 %v4598, 1.0
      %v4629 = vadd.f32 %v4599, 1.0
      %v4630 = vadd.f32 %v4600, 1.0
      %v4631 = vadd.f32 %v4601, 1.0
      %v4632 = vadd.f32 %v4602, 1.0
      %v4633 = vadd.f32 %v4603, 1.0
      %v4634 = vadd.f32 %v4604, 1.0
      %v4635 = vadd.f32 %v4605, 1.0
      %v4636 = vadd.f32 %v4606, 1.0
      %v4637 = vadd.f32 %v4607, 1.0
      %v4638 = vadd.f32 %v4608, 1.0
      %v4639 = vadd.f32 %v4609, 1.0
      %v4640 = vadd.f32 %v4610, 1.0
      %v4641 = vadd.f32 %v4611, 1.0
      %v4642 = vadd.f32 %v4612, 1.0
      %v4643 = vadd.f32 %v4613, 1.0
      %v4644 = vadd.f32 %v4614, 1.0
      %v4645 = vadd.f32 %v4615, 1.0
      %v4646 = vadd.f32 %v4616, 1.0
      %v4647 = vadd.f32 %v4617, 1.0
      %v4648 = vadd.f32 %v4618, 1.0
      %v4649 = vadd.f32 %v4619, 1.0
      %v4650 = vmul.f32 %v4410, %v4620
      %v4651 = vmul.f32 %v4411, %v4621
      %v4652 = vmul.f32 %v4412, %v4622
      %v4653 = vmul.f32 %v4413, %v4623
      %v4654 = vmul.f32 %v4414, %v4624
      %v4655 = vmul.f32 %v4415, %v4625
      %v4656 = vmul.f32 %v4416, %v4626
      %v4657 = vmul.f32 %v4417, %v4627
      %v4658 = vmul.f32 %v4418, %v4628
      %v4659 = vmul.f32 %v4419, %v4629
      %v4660 = vmul.f32 %v4420, %v4630
      %v4661 = vmul.f32 %v4421, %v4631
      %v4662 = vmul.f32 %v4422, %v4632
      %v4663 = vmul.f32 %v4423, %v4633
      %v4664 = vmul.f32 %v4424, %v4634
      %v4665 = vmul.f32 %v4425, %v4635
      %v4666 = vmul.f32 %v4426, %v4636
      %v4667 = vmul.f32 %v4427, %v4637
      %v4668 = vmul.f32 %v4428, %v4638
      %v4669 = vmul.f32 %v4429, %v4639
      %v4670 = vmul.f32 %v4430, %v4640
      %v4671 = vmul.f32 %v4431, %v4641
      %v4672 = vmul.f32 %v4432, %v4642
      %v4673 = vmul.f32 %v4433, %v4643
      %v4674 = vmul.f32 %v4434, %v4644
      %v4675 = vmul.f32 %v4435, %v4645
      %v4676 = vmul.f32 %v4436, %v4646
      %v4677 = vmul.f32 %v4437, %v4647
      %v4678 = vmul.f32 %v4438, %v4648
      %v4679 = vmul.f32 %v4439, %v4649
      %s4680 = ssub.s32 %s339, 1
      %v4681 = vstv %s4680
      %v4682 = vadd.s32 %v4681, 1
      %v4683 = vadd.s32 %v4681, 2
      %v4684 = vadd.s32 %v4681, 3
      %v4685 = vadd.s32 %v4681, 4
      %v4686 = vadd.s32 %v4681, 5
      %v4687 = vadd.s32 %v4681, 6
      %v4688 = vadd.s32 %v4681, 7
      %v4689 = vadd.s32 %v4681, 8
      %v4690 = vadd.s32 %v4681, 9
      %vm4691 = vcmp.ge.s32.totalorder %v4681, 0
      %vm4692 = vcmp.ge.s32.totalorder %v4682, 0
      %vm4693 = vcmp.ge.s32.totalorder %v4683, 0
      %vm4694 = vcmp.ge.s32.totalorder %v4684, 0
      %vm4695 = vcmp.ge.s32.totalorder %v4685, 0
      %vm4696 = vcmp.ge.s32.totalorder %v4686, 0
      %vm4697 = vcmp.ge.s32.totalorder %v4687, 0
      %vm4698 = vcmp.ge.s32.totalorder %v4688, 0
      %vm4699 = vcmp.ge.s32.totalorder %v4689, 0
      %vm4700 = vcmp.ge.s32.totalorder %v4690, 0
      %vm4701 = vcmp.lt.s32.totalorder %v4681, 16
      %vm4702 = vcmp.lt.s32.totalorder %v4682, 16
      %vm4703 = vcmp.lt.s32.totalorder %v4683, 16
      %vm4704 = vcmp.lt.s32.totalorder %v4684, 16
      %vm4705 = vcmp.lt.s32.totalorder %v4685, 16
      %vm4706 = vcmp.lt.s32.totalorder %v4686, 16
      %vm4707 = vcmp.lt.s32.totalorder %v4687, 16
      %vm4708 = vcmp.lt.s32.totalorder %v4688, 16
      %vm4709 = vcmp.lt.s32.totalorder %v4689, 16
      %vm4710 = vcmp.lt.s32.totalorder %v4690, 16
      %vm4711 = vmand %vm4691, %vm4701
      %vm4712 = vmand %vm4692, %vm4702
      %vm4713 = vmand %vm4693, %vm4703
      %vm4714 = vmand %vm4694, %vm4704
      %vm4715 = vmand %vm4695, %vm4705
      %vm4716 = vmand %vm4696, %vm4706
      %vm4717 = vmand %vm4697, %vm4707
      %vm4718 = vmand %vm4698, %vm4708
      %vm4719 = vmand %vm4699, %vm4709
      %vm4720 = vmand %vm4700, %vm4710
      %vm4721 = vmand %vm4711, %vm1463
      %vm4722 = vmand %vm4711, %vm1464
      %vm4723 = vmand %vm4711, %vm1465
      %vm4724 = vmand %vm4712, %vm1463
      %vm4725 = vmand %vm4712, %vm1464
      %vm4726 = vmand %vm4712, %vm1465
      %vm4727 = vmand %vm4713, %vm1463
      %vm4728 = vmand %vm4713, %vm1464
      %vm4729 = vmand %vm4713, %vm1465
      %vm4730 = vmand %vm4714, %vm1463
      %vm4731 = vmand %vm4714, %vm1464
      %vm4732 = vmand %vm4714, %vm1465
      %vm4733 = vmand %vm4715, %vm1463
      %vm4734 = vmand %vm4715, %vm1464
      %vm4735 = vmand %vm4715, %vm1465
      %vm4736 = vmand %vm4716, %vm1463
      %vm4737 = vmand %vm4716, %vm1464
      %vm4738 = vmand %vm4716, %vm1465
      %vm4739 = vmand %vm4717, %vm1463
      %vm4740 = vmand %vm4717, %vm1464
      %vm4741 = vmand %vm4717, %vm1465
      %vm4742 = vmand %vm4718, %vm1463
      %vm4743 = vmand %vm4718, %vm1464
      %vm4744 = vmand %vm4718, %vm1465
      %vm4745 = vmand %vm4719, %vm1463
      %vm4746 = vmand %vm4719, %vm1464
      %vm4747 = vmand %vm4719, %vm1465
      %vm4748 = vmand %vm4720, %vm1463
      %vm4749 = vmand %vm4720, %vm1464
      %vm4750 = vmand %vm4720, %vm1465
      %vm4751 = vmand %vm4721, %vm1502
      %vm4752 = vmand %vm4722, %vm1503
      %vm4753 = vmand %vm4723, %vm1504
      %vm4754 = vmand %vm4724, %vm1502
      %vm4755 = vmand %vm4725, %vm1503
      %vm4756 = vmand %vm4726, %vm1504
      %vm4757 = vmand %vm4727, %vm1502
      %vm4758 = vmand %vm4728, %vm1503
      %vm4759 = vmand %vm4729, %vm1504
      %vm4760 = vmand %vm4730, %vm1502
      %vm4761 = vmand %vm4731, %vm1503
      %vm4762 = vmand %vm4732, %vm1504
      %vm4763 = vmand %vm4733, %vm1502
      %vm4764 = vmand %vm4734, %vm1503
      %vm4765 = vmand %vm4735, %vm1504
      %vm4766 = vmand %vm4736, %vm1502
      %vm4767 = vmand %vm4737, %vm1503
      %vm4768 = vmand %vm4738, %vm1504
      %vm4769 = vmand %vm4739, %vm1502
      %vm4770 = vmand %vm4740, %vm1503
      %vm4771 = vmand %vm4741, %vm1504
      %vm4772 = vmand %vm4742, %vm1502
      %vm4773 = vmand %vm4743, %vm1503
      %vm4774 = vmand %vm4744, %vm1504
      %vm4775 = vmand %vm4745, %vm1502
      %vm4776 = vmand %vm4746, %vm1503
      %vm4777 = vmand %vm4747, %vm1504
      %vm4778 = vmand %vm4748, %vm1502
      %vm4779 = vmand %vm4749, %vm1503
      %vm4780 = vmand %vm4750, %vm1504
      %v4781 = vsel %vm4751, %v4650, 0.0
      %v4782 = vsel %vm4752, %v4651, 0.0
      %v4783 = vsel %vm4753, %v4652, 0.0
      %v4784 = vsel %vm4754, %v4653, 0.0
      %v4785 = vsel %vm4755, %v4654, 0.0
      %v4786 = vsel %vm4756, %v4655, 0.0
      %v4787 = vsel %vm4757, %v4656, 0.0
      %v4788 = vsel %vm4758, %v4657, 0.0
      %v4789 = vsel %vm4759, %v4658, 0.0
      %v4790 = vsel %vm4760, %v4659, 0.0
      %v4791 = vsel %vm4761, %v4660, 0.0
      %v4792 = vsel %vm4762, %v4661, 0.0
      %v4793 = vsel %vm4763, %v4662, 0.0
      %v4794 = vsel %vm4764, %v4663, 0.0
      %v4795 = vsel %vm4765, %v4664, 0.0
      %v4796 = vsel %vm4766, %v4665, 0.0
      %v4797 = vsel %vm4767, %v4666, 0.0
      %v4798 = vsel %vm4768, %v4667, 0.0
      %v4799 = vsel %vm4769, %v4668, 0.0
      %v4800 = vsel %vm4770, %v4669, 0.0
      %v4801 = vsel %vm4771, %v4670, 0.0
      %v4802 = vsel %vm4772, %v4671, 0.0
      %v4803 = vsel %vm4773, %v4672, 0.0
      %v4804 = vsel %vm4774, %v4673, 0.0
      %v4805 = vsel %vm4775, %v4674, 0.0
      %v4806 = vsel %vm4776, %v4675, 0.0
      %v4807 = vsel %vm4777, %v4676, 0.0
      %v4808 = vsel %vm4778, %v4677, 0.0
      %v4809 = vsel %vm4779, %v4678, 0.0
      %v4810 = vsel %vm4780, %v4679, 0.0
      %4811 = vst [vmem:[#allocation4] sm:$0xff] %v4781
      %4812 = vst [vmem:[#allocation4 + $0x8] sm:$0xff] %v4782
      %4813 = vst [vmem:[#allocation4 + $0x10] sm:$0xff] %v4783
      %4814 = vst [vmem:[#allocation4 + $0x18] sm:$0xff] %v4784
      %4815 = vst [vmem:[#allocation4 + $0x20] sm:$0xff] %v4785
      %4816 = vst [vmem:[#allocation4 + $0x28] sm:$0xff] %v4786
      %4817 = vst [vmem:[#allocation4 + $0x30] sm:$0xff] %v4787
      %4818 = vst [vmem:[#allocation4 + $0x38] sm:$0xff] %v4788
      %4819 = vst [vmem:[#allocation4 + $0x40] sm:$0xff] %v4789
      %4820 = vst [vmem:[#allocation4 + $0x48] sm:$0xff] %v4790
      %4821 = vst [vmem:[#allocation4 + $0x50] sm:$0xff] %v4791
      %4822 = vst [vmem:[#allocation4 + $0x58] sm:$0xff] %v4792
      %4823 = vst [vmem:[#allocation4 + $0x60] sm:$0xff] %v4793
      %4824 = vst [vmem:[#allocation4 + $0x68] sm:$0xff] %v4794
      %4825 = vst [vmem:[#allocation4 + $0x70] sm:$0xff] %v4795
      %4826 = vst [vmem:[#allocation4 + $0x78] sm:$0xff] %v4796
      %4827 = vst [vmem:[#allocation4 + $0x80] sm:$0xff] %v4797
      %4828 = vst [vmem:[#allocation4 + $0x88] sm:$0xff] %v4798
      %4829 = vst [vmem:[#allocation4 + $0x90] sm:$0xff] %v4799
      %4830 = vst [vmem:[#allocation4 + $0x98] sm:$0xff] %v4800
      %4831 = vst [vmem:[#allocation4 + $0xa0] sm:$0xff] %v4801
      %4832 = vst [vmem:[#allocation4 + $0xa8] sm:$0xff] %v4802
      %4833 = vst [vmem:[#allocation4 + $0xb0] sm:$0xff] %v4803
      %4834 = vst [vmem:[#allocation4 + $0xb8] sm:$0xff] %v4804
      %4835 = vst [vmem:[#allocation4 + $0xc0] sm:$0xff] %v4805
      %4836 = vst [vmem:[#allocation4 + $0xc8] sm:$0xff] %v4806
      %4837 = vst [vmem:[#allocation4 + $0xd0] sm:$0xff] %v4807
      %4838 = vst [vmem:[#allocation4 + $0xd8] sm:$0xff] %v4808
      %4839 = vst [vmem:[#allocation4 + $0xe0] sm:$0xff] %v4809
      %4840 = vst [vmem:[#allocation4 + $0xe8] sm:$0xff] %v4810
      %v4841 = vld [vmem:[#allocation4] sm:$0xff]
      %v4842 = vld [vmem:[#allocation4 + $0x8] sm:$0xff]
      %v4843 = vld [vmem:[#allocation4 + $0x10] sm:$0xff]
      %v4844 = vld [vmem:[#allocation4 + $0x18] sm:$0xff]
      %v4845 = vld [vmem:[#allocation4 + $0x20] sm:$0xff]
      %v4846 = vld [vmem:[#allocation4 + $0x28] sm:$0xff]
      %v4847 = vld [vmem:[#allocation4 + $0x30] sm:$0xff]
      %v4848 = vld [vmem:[#allocation4 + $0x38] sm:$0xff]
      %v4849 = vld [vmem:[#allocation4 + $0x40] sm:$0xff]
      %v4850 = vld [vmem:[#allocation4 + $0x48] sm:$0xff]
      %v4851 = vld [vmem:[#allocation4 + $0x50] sm:$0xff]
      %v4852 = vld [vmem:[#allocation4 + $0x58] sm:$0xff]
      %v4853 = vld [vmem:[#allocation4 + $0x60] sm:$0xff]
      %v4854 = vld [vmem:[#allocation4 + $0x68] sm:$0xff]
      %v4855 = vld [vmem:[#allocation4 + $0x70] sm:$0xff]
      %v4856 = vld [vmem:[#allocation4 + $0x78] sm:$0xff]
      %v4857 = vld [vmem:[#allocation4 + $0x80] sm:$0xff]
      %v4858 = vld [vmem:[#allocation4 + $0x88] sm:$0xff]
      %v4859 = vld [vmem:[#allocation4 + $0x90] sm:$0xff]
      %v4860 = vld [vmem:[#allocation4 + $0x98] sm:$0xff]
      %v4861 = vld [vmem:[#allocation4 + $0xa0] sm:$0xff]
      %v4862 = vld [vmem:[#allocation4 + $0xa8] sm:$0xff]
      %v4863 = vld [vmem:[#allocation4 + $0xb0] sm:$0xff]
      %v4864 = vld [vmem:[#allocation4 + $0xb8] sm:$0xff]
      %v4865 = vrot.slane %v4841, 7
      %v4866 = vrot.slane %v4842, 7
      %v4867 = vrot.slane %v4843, 7
      %v4868 = vrot.slane %v4844, 7
      %v4869 = vrot.slane %v4845, 7
      %v4870 = vrot.slane %v4846, 7
      %v4871 = vrot.slane %v4847, 7
      %v4872 = vrot.slane %v4848, 7
      %v4873 = vrot.slane %v4849, 7
      %v4874 = vrot.slane %v4850, 7
      %v4875 = vrot.slane %v4851, 7
      %v4876 = vrot.slane %v4852, 7
      %v4877 = vrot.slane %v4853, 7
      %v4878 = vrot.slane %v4854, 7
      %v4879 = vrot.slane %v4855, 7
      %v4880 = vrot.slane %v4856, 7
      %v4881 = vrot.slane %v4857, 7
      %v4882 = vrot.slane %v4858, 7
      %v4883 = vrot.slane %v4859, 7
      %v4884 = vrot.slane %v4860, 7
      %v4885 = vrot.slane %v4861, 7
      %v4886 = vrot.slane %v4862, 7
      %v4887 = vrot.slane %v4863, 7
      %v4888 = vrot.slane %v4864, 7
      %v4889 = vsel %vm1673, %v4887, %v4888
      %v4890 = vsel %vm1673, %v4886, %v4887
      %v4891 = vsel %vm1673, %v4885, %v4886
      %v4892 = vsel %vm1673, %v4884, %v4885
      %v4893 = vsel %vm1673, %v4883, %v4884
      %v4894 = vsel %vm1673, %v4882, %v4883
      %v4895 = vsel %vm1673, %v4881, %v4882
      %v4896 = vsel %vm1673, %v4880, %v4881
      %v4897 = vsel %vm1673, %v4879, %v4880
      %v4898 = vsel %vm1673, %v4878, %v4879
      %v4899 = vsel %vm1673, %v4877, %v4878
      %v4900 = vsel %vm1673, %v4876, %v4877
      %v4901 = vsel %vm1673, %v4875, %v4876
      %v4902 = vsel %vm1673, %v4874, %v4875
      %v4903 = vsel %vm1673, %v4873, %v4874
      %v4904 = vsel %vm1673, %v4872, %v4873
      %v4905 = vsel %vm1673, %v4871, %v4872
      %v4906 = vsel %vm1673, %v4870, %v4871
      %v4907 = vsel %vm1673, %v4869, %v4870
      %v4908 = vsel %vm1673, %v4868, %v4869
      %v4909 = vsel %vm1673, %v4867, %v4868
      %v4910 = vsel %vm1673, %v4866, %v4867
      %v4911 = vsel %vm1673, %v4865, %v4866
      %v4912 = vsel %vm1673, %v4888, %v4865
      %v4913 = vpack.c.bf16 %v4911, %v4912
      %v4914 = vpack.c.bf16 %v4909, %v4910
      %v4915 = vpack.c.bf16 %v4907, %v4908
      %v4916 = vpack.c.bf16 %v4905, %v4906
      %v4917 = vpack.c.bf16 %v4903, %v4904
      %v4918 = vpack.c.bf16 %v4901, %v4902
      %v4919 = vpack.c.bf16 %v4899, %v4900
      %v4920 = vpack.c.bf16 %v4897, %v4898
      %v4921 = vpack.c.bf16 %v4895, %v4896
      %v4922 = vpack.c.bf16 %v4893, %v4894
      %v4923 = vpack.c.bf16 %v4891, %v4892
      %v4924 = vpack.c.bf16 %v4889, %v4890
      %v4925 = vld [vmem:[%s5] sm:$0xf]
      %v4926 = vld [vmem:[%s5 + $0x4] sm:$0xf]
      %v4927 = vld [vmem:[%s5 + $0x8] sm:$0xf]
      %v4928 = vld [vmem:[%s5 + $0xc] sm:$0xf]
      %v4929 = vld [vmem:[%s5 + $0x10] sm:$0xf]
      %v4930 = vld [vmem:[%s5 + $0x14] sm:$0xf]
      %v4931 = vld [vmem:[%s5 + $0x18] sm:$0xf]
      %v4932 = vld [vmem:[%s5 + $0x1c] sm:$0xf]
      %v4933 = vld [vmem:[%s5 + $0x20] sm:$0xf]
      %v4934 = vld [vmem:[%s5 + $0x24] sm:$0xf]
      %v4935 = vld [vmem:[%s5 + $0x28] sm:$0xf]
      %v4936 = vld [vmem:[%s5 + $0x2c] sm:$0xf]
      %v4937 = vld [vmem:[%s5 + $0x30] sm:$0xf]
      %v4938 = vld [vmem:[%s5 + $0x34] sm:$0xf]
      %v4939 = vld [vmem:[%s5 + $0x38] sm:$0xf]
      %v4940 = vld [vmem:[%s5 + $0x3c] sm:$0xf]
      %v4941 = vpack.c.bf16 %v4842, %v4841
      %v4942 = vpack.c.bf16 %v4844, %v4843
      %v4943 = vpack.c.bf16 %v4846, %v4845
      %v4944 = vpack.c.bf16 %v4848, %v4847
      %v4945 = vpack.c.bf16 %v4850, %v4849
      %v4946 = vpack.c.bf16 %v4852, %v4851
      %v4947 = vpack.c.bf16 %v4854, %v4853
      %v4948 = vpack.c.bf16 %v4856, %v4855
      %v4949 = vpack.c.bf16 %v4858, %v4857
      %v4950 = vpack.c.bf16 %v4860, %v4859
      %v4951 = vpack.c.bf16 %v4862, %v4861
      %v4952 = vpack.c.bf16 %v4864, %v4863
      %s4953 = scalar_lea.vmem %s5, 64
      %v4954 = vld [vmem:[%s4953] sm:$0xf]
      %v4955 = vld [vmem:[%s4953 + $0x4] sm:$0xf]
      %v4956 = vld [vmem:[%s4953 + $0x8] sm:$0xf]
      %v4957 = vld [vmem:[%s4953 + $0xc] sm:$0xf]
      %v4958 = vld [vmem:[%s4953 + $0x10] sm:$0xf]
      %v4959 = vld [vmem:[%s4953 + $0x14] sm:$0xf]
      %v4960 = vld [vmem:[%s4953 + $0x18] sm:$0xf]
      %v4961 = vld [vmem:[%s4953 + $0x1c] sm:$0xf]
      %v4962 = vld [vmem:[%s4953 + $0x20] sm:$0xf]
      %v4963 = vld [vmem:[%s4953 + $0x24] sm:$0xf]
      %v4964 = vld [vmem:[%s4953 + $0x28] sm:$0xf]
      %v4965 = vld [vmem:[%s4953 + $0x2c] sm:$0xf]
      %v4966 = vld [vmem:[%s4953 + $0x30] sm:$0xf]
      %v4967 = vld [vmem:[%s4953 + $0x34] sm:$0xf]
      %v4968 = vld [vmem:[%s4953 + $0x38] sm:$0xf]
      %v4969 = vld [vmem:[%s4953 + $0x3c] sm:$0xf]
      %v4986 = vunpack.c.l.b16 %v4954
      %v4987 = vunpack.c.l.b16 %v4955
      %v4988 = vunpack.c.l.b16 %v4956
      %v4989 = vunpack.c.l.b16 %v4957
      %v4990 = vunpack.c.l.b16 %v4958
      %v4991 = vunpack.c.l.b16 %v4959
      %v4992 = vunpack.c.l.b16 %v4960
      %v4993 = vunpack.c.l.b16 %v4961
      %v4994 = vunpack.c.l.b16 %v4962
      %v4995 = vunpack.c.l.b16 %v4963
      %v4996 = vunpack.c.l.b16 %v4964
      %v4997 = vunpack.c.l.b16 %v4965
      %v4998 = vunpack.c.l.b16 %v4966
      %v4999 = vunpack.c.l.b16 %v4967
      %v5000 = vunpack.c.l.b16 %v4968
      %v5001 = vunpack.c.l.b16 %v4969
      %v5002 = vpack.c.b16 %v4987, %v4986
      %v5003 = vpack.c.b16 %v4989, %v4988
      %v5004 = vpack.c.b16 %v4991, %v4990
      %v5005 = vpack.c.b16 %v4993, %v4992
      %v5006 = vpack.c.b16 %v4995, %v4994
      %v5007 = vpack.c.b16 %v4997, %v4996
      %v5008 = vpack.c.b16 %v4999, %v4998
      %v5009 = vpack.c.b16 %v5001, %v5000
      %5018 = vmatprep.subr.bf16.mxu0 0
      %5019 = vmatpush1.bf16.msra.mxu0 %v5009
      %5020 = vmatprep.subr.bf16.mxu0 0
      %5021 = vmatpush1.bf16.msra.mxu0 %v5008
      %5022 = vmatprep.subr.bf16.mxu0 0
      %5023 = vmatpush1.bf16.msra.mxu0 %v5007
      %5024 = vmatprep.subr.bf16.mxu0 0
      %5025 = vmatpush1.bf16.msra.mxu0 %v5006
      %5026 = vmatprep.subr.bf16.mxu0 0
      %5027 = vmatpush1.bf16.msra.mxu0 %v5005
      %5028 = vmatprep.subr.bf16.mxu0 0
      %5029 = vmatpush1.bf16.msra.mxu0 %v5004
      %5030 = vmatprep.subr.bf16.mxu0 0
      %5031 = vmatpush1.bf16.msra.mxu0 %v5003
      %5032 = vmatprep.subr.bf16.mxu0 0
      %5033 = vmatpush1.bf16.msra.mxu0 %v5002
      %5034 = vmatprep.subr.bf16.mxu0 0
      %5035 = vmatpush2.bf16.msra.mxu0 0
      %5036 = vmatprep.subr.bf16.mxu0 0
      %5037 = vmatpush2.bf16.msra.mxu0 0
      %5038 = vmatprep.subr.bf16.mxu0 0
      %5039 = vmatpush2.bf16.msra.mxu0 0
      %5040 = vmatprep.subr.bf16.mxu0 0
      %5041 = vmatpush2.bf16.msra.mxu0 0
      %5042 = vmatprep.subr.bf16.mxu0 0
      %5043 = vmatpush2.bf16.msra.mxu0 0
      %5044 = vmatprep.subr.bf16.mxu0 0
      %5045 = vmatpush2.bf16.msra.mxu0 0
      %5046 = vmatprep.subr.bf16.mxu0 0
      %5047 = vmatpush2.bf16.msra.mxu0 0
      %5048 = vmatprep.subr.bf16.mxu0 0
      %5049 = vmatpush2.bf16.msra.mxu0 0
      %5050 = vmatprep.mubr.bf16.mxu0 0
      %5051 = vmatmul.mubr.bf16.gmra.mxu0 %v4941
      %v5052 = vpop.f32.mrf.mxu0
      %v5053 = vadd.f32 0.0, %v5052
      %v5054 = vpop.f32.mrf.mxu0
      %v5055 = vpop.f32.mrf.mxu0
      %v5056 = vadd.f32 0.0, %v5055
      %v5057 = vpop.f32.mrf.mxu0
      %5058 = vmatprep.mubr.bf16.mxu0 0
      %5059 = vmatmul.mubr.bf16.gmra.mxu0 %v4942
      %v5060 = vpop.f32.mrf.mxu0
      %v5061 = vadd.f32 0.0, %v5060
      %v5062 = vpop.f32.mrf.mxu0
      %v5063 = vpop.f32.mrf.mxu0
      %v5064 = vadd.f32 0.0, %v5063
      %v5065 = vpop.f32.mrf.mxu0
      %5066 = vmatprep.mubr.bf16.mxu0 0
      %5067 = vmatmul.mubr.bf16.gmra.mxu0 %v4943
      %v5068 = vpop.f32.mrf.mxu0
      %v5069 = vadd.f32 0.0, %v5068
      %v5070 = vpop.f32.mrf.mxu0
      %v5071 = vpop.f32.mrf.mxu0
      %v5072 = vadd.f32 0.0, %v5071
      %v5073 = vpop.f32.mrf.mxu0
      %5074 = vmatprep.mubr.bf16.mxu0 0
      %5075 = vmatmul.mubr.bf16.gmra.mxu0 %v4944
      %v5076 = vpop.f32.mrf.mxu0
      %v5077 = vadd.f32 0.0, %v5076
      %v5078 = vpop.f32.mrf.mxu0
      %v5079 = vpop.f32.mrf.mxu0
      %v5080 = vadd.f32 0.0, %v5079
      %v5081 = vpop.f32.mrf.mxu0
      %5082 = vmatprep.mubr.bf16.mxu0 0
      %5083 = vmatmul.mubr.bf16.gmra.mxu0 %v4945
      %v5084 = vpop.f32.mrf.mxu0
      %v5085 = vadd.f32 0.0, %v5084
      %v5086 = vpop.f32.mrf.mxu0
      %v5087 = vpop.f32.mrf.mxu0
      %v5088 = vadd.f32 0.0, %v5087
      %v5089 = vpop.f32.mrf.mxu0
      %5090 = vmatprep.mubr.bf16.mxu0 0
      %5091 = vmatmul.mubr.bf16.gmra.mxu0 %v4946
      %v5092 = vpop.f32.mrf.mxu0
      %v5093 = vadd.f32 0.0, %v5092
      %v5094 = vpop.f32.mrf.mxu0
      %v5095 = vpop.f32.mrf.mxu0
      %v5096 = vadd.f32 0.0, %v5095
      %v5097 = vpop.f32.mrf.mxu0
      %5098 = vmatprep.mubr.bf16.mxu0 0
      %5099 = vmatmul.mubr.bf16.gmra.mxu0 %v4947
      %v5100 = vpop.f32.mrf.mxu0
      %v5101 = vadd.f32 0.0, %v5100
      %v5102 = vpop.f32.mrf.mxu0
      %v5103 = vpop.f32.mrf.mxu0
      %v5104 = vadd.f32 0.0, %v5103
      %v5105 = vpop.f32.mrf.mxu0
      %5106 = vmatprep.mubr.bf16.mxu0 0
      %5107 = vmatmul.mubr.bf16.gmra.mxu0 %v4948
      %v5108 = vpop.f32.mrf.mxu0
      %v5109 = vadd.f32 0.0, %v5108
      %v5110 = vpop.f32.mrf.mxu0
      %v5111 = vpop.f32.mrf.mxu0
      %v5112 = vadd.f32 0.0, %v5111
      %v5113 = vpop.f32.mrf.mxu0
      %5114 = vmatprep.mubr.bf16.mxu0 0
      %5115 = vmatmul.mubr.bf16.gmra.mxu0 %v4949
      %v5116 = vpop.f32.mrf.mxu0
      %v5117 = vadd.f32 0.0, %v5116
      %v5118 = vpop.f32.mrf.mxu0
      %v5119 = vpop.f32.mrf.mxu0
      %v5120 = vadd.f32 0.0, %v5119
      %v5121 = vpop.f32.mrf.mxu0
      %5122 = vmatprep.mubr.bf16.mxu0 0
      %5123 = vmatmul.mubr.bf16.gmra.mxu0 %v4950
      %v5124 = vpop.f32.mrf.mxu0
      %v5125 = vadd.f32 0.0, %v5124
      %v5126 = vpop.f32.mrf.mxu0
      %v5127 = vpop.f32.mrf.mxu0
      %v5128 = vadd.f32 0.0, %v5127
      %v5129 = vpop.f32.mrf.mxu0
      %5130 = vmatprep.mubr.bf16.mxu0 0
      %5131 = vmatmul.mubr.bf16.gmra.mxu0 %v4951
      %v5132 = vpop.f32.mrf.mxu0
      %v5133 = vadd.f32 0.0, %v5132
      %v5134 = vpop.f32.mrf.mxu0
      %v5135 = vpop.f32.mrf.mxu0
      %v5136 = vadd.f32 0.0, %v5135
      %v5137 = vpop.f32.mrf.mxu0
      %5138 = vmatprep.mubr.bf16.mxu0 0
      %5139 = vmatmul.mubr.bf16.gmra.mxu0 %v4952
      %v5140 = vpop.f32.mrf.mxu0
      %v5141 = vadd.f32 0.0, %v5140
      %v5142 = vpop.f32.mrf.mxu0
      %v5143 = vpop.f32.mrf.mxu0
      %v5144 = vadd.f32 0.0, %v5143
      %v5145 = vpop.f32.mrf.mxu0
      %5146 = vdwg.mxu0
      %v5163 = vunpack.c.l.b16 %v4925
      %v5164 = vunpack.c.l.b16 %v4926
      %v5165 = vunpack.c.l.b16 %v4927
      %v5166 = vunpack.c.l.b16 %v4928
      %v5167 = vunpack.c.l.b16 %v4929
      %v5168 = vunpack.c.l.b16 %v4930
      %v5169 = vunpack.c.l.b16 %v4931
      %v5170 = vunpack.c.l.b16 %v4932
      %v5171 = vunpack.c.l.b16 %v4933
      %v5172 = vunpack.c.l.b16 %v4934
      %v5173 = vunpack.c.l.b16 %v4935
      %v5174 = vunpack.c.l.b16 %v4936
      %v5175 = vunpack.c.l.b16 %v4937
      %v5176 = vunpack.c.l.b16 %v4938
      %v5177 = vunpack.c.l.b16 %v4939
      %v5178 = vunpack.c.l.b16 %v4940
      %v5179 = vpack.c.b16 %v5164, %v5163
      %v5180 = vpack.c.b16 %v5166, %v5165
      %v5181 = vpack.c.b16 %v5168, %v5167
      %v5182 = vpack.c.b16 %v5170, %v5169
      %v5183 = vpack.c.b16 %v5172, %v5171
      %v5184 = vpack.c.b16 %v5174, %v5173
      %v5185 = vpack.c.b16 %v5176, %v5175
      %v5186 = vpack.c.b16 %v5178, %v5177
      %5195 = vmatprep.subr.bf16.mxu0 0
      %5196 = vmatpush1.bf16.msra.mxu0 %v5186
      %5197 = vmatprep.subr.bf16.mxu0 0
      %5198 = vmatpush1.bf16.msra.mxu0 %v5185
      %5199 = vmatprep.subr.bf16.mxu0 0
      %5200 = vmatpush1.bf16.msra.mxu0 %v5184
      %5201 = vmatprep.subr.bf16.mxu0 0
      %5202 = vmatpush1.bf16.msra.mxu0 %v5183
      %5203 = vmatprep.subr.bf16.mxu0 0
      %5204 = vmatpush1.bf16.msra.mxu0 %v5182
      %5205 = vmatprep.subr.bf16.mxu0 0
      %5206 = vmatpush1.bf16.msra.mxu0 %v5181
      %5207 = vmatprep.subr.bf16.mxu0 0
      %5208 = vmatpush1.bf16.msra.mxu0 %v5180
      %5209 = vmatprep.subr.bf16.mxu0 0
      %5210 = vmatpush1.bf16.msra.mxu0 %v5179
      %5211 = vmatprep.subr.bf16.mxu0 0
      %5212 = vmatpush2.bf16.msra.mxu0 0
      %5213 = vmatprep.subr.bf16.mxu0 0
      %5214 = vmatpush2.bf16.msra.mxu0 0
      %5215 = vmatprep.subr.bf16.mxu0 0
      %5216 = vmatpush2.bf16.msra.mxu0 0
      %5217 = vmatprep.subr.bf16.mxu0 0
      %5218 = vmatpush2.bf16.msra.mxu0 0
      %5219 = vmatprep.subr.bf16.mxu0 0
      %5220 = vmatpush2.bf16.msra.mxu0 0
      %5221 = vmatprep.subr.bf16.mxu0 0
      %5222 = vmatpush2.bf16.msra.mxu0 0
      %5223 = vmatprep.subr.bf16.mxu0 0
      %5224 = vmatpush2.bf16.msra.mxu0 0
      %5225 = vmatprep.subr.bf16.mxu0 0
      %5226 = vmatpush2.bf16.msra.mxu0 0
      %5227 = vmatprep.mubr.bf16.mxu0 0
      %5228 = vmatmul.mubr.bf16.gmra.mxu0 %v4913
      %v5229 = vpop.f32.mrf.mxu0
      %v5230 = vadd.f32 %v5053, %v5229
      %v5231 = vpop.f32.mrf.mxu0
      %v5232 = vpop.f32.mrf.mxu0
      %v5233 = vadd.f32 %v5056, %v5232
      %v5234 = vpop.f32.mrf.mxu0
      %5235 = vmatprep.mubr.bf16.mxu0 0
      %5236 = vmatmul.mubr.bf16.gmra.mxu0 %v4914
      %v5237 = vpop.f32.mrf.mxu0
      %v5238 = vadd.f32 %v5061, %v5237
      %v5239 = vpop.f32.mrf.mxu0
      %v5240 = vpop.f32.mrf.mxu0
      %v5241 = vadd.f32 %v5064, %v5240
      %v5242 = vpop.f32.mrf.mxu0
      %5243 = vmatprep.mubr.bf16.mxu0 0
      %5244 = vmatmul.mubr.bf16.gmra.mxu0 %v4915
      %v5245 = vpop.f32.mrf.mxu0
      %v5246 = vadd.f32 %v5069, %v5245
      %v5247 = vpop.f32.mrf.mxu0
      %v5248 = vpop.f32.mrf.mxu0
      %v5249 = vadd.f32 %v5072, %v5248
      %v5250 = vpop.f32.mrf.mxu0
      %5251 = vmatprep.mubr.bf16.mxu0 0
      %5252 = vmatmul.mubr.bf16.gmra.mxu0 %v4916
      %v5253 = vpop.f32.mrf.mxu0
      %v5254 = vadd.f32 %v5077, %v5253
      %v5255 = vpop.f32.mrf.mxu0
      %v5256 = vpop.f32.mrf.mxu0
      %v5257 = vadd.f32 %v5080, %v5256
      %v5258 = vpop.f32.mrf.mxu0
      %5259 = vmatprep.mubr.bf16.mxu0 0
      %5260 = vmatmul.mubr.bf16.gmra.mxu0 %v4917
      %v5261 = vpop.f32.mrf.mxu0
      %v5262 = vadd.f32 %v5085, %v5261
      %v5263 = vpop.f32.mrf.mxu0
      %v5264 = vpop.f32.mrf.mxu0
      %v5265 = vadd.f32 %v5088, %v5264
      %v5266 = vpop.f32.mrf.mxu0
      %5267 = vmatprep.mubr.bf16.mxu0 0
      %5268 = vmatmul.mubr.bf16.gmra.mxu0 %v4918
      %v5269 = vpop.f32.mrf.mxu0
      %v5270 = vadd.f32 %v5093, %v5269
      %v5271 = vpop.f32.mrf.mxu0
      %v5272 = vpop.f32.mrf.mxu0
      %v5273 = vadd.f32 %v5096, %v5272
      %v5274 = vpop.f32.mrf.mxu0
      %5275 = vmatprep.mubr.bf16.mxu0 0
      %5276 = vmatmul.mubr.bf16.gmra.mxu0 %v4919
      %v5277 = vpop.f32.mrf.mxu0
      %v5278 = vadd.f32 %v5101, %v5277
      %v5279 = vpop.f32.mrf.mxu0
      %v5280 = vpop.f32.mrf.mxu0
      %v5281 = vadd.f32 %v5104, %v5280
      %v5282 = vpop.f32.mrf.mxu0
      %5283 = vmatprep.mubr.bf16.mxu0 0
      %5284 = vmatmul.mubr.bf16.gmra.mxu0 %v4920
      %v5285 = vpop.f32.mrf.mxu0
      %v5286 = vadd.f32 %v5109, %v5285
      %v5287 = vpop.f32.mrf.mxu0
      %v5288 = vpop.f32.mrf.mxu0
      %v5289 = vadd.f32 %v5112, %v5288
      %v5290 = vpop.f32.mrf.mxu0
      %5291 = vmatprep.mubr.bf16.mxu0 0
      %5292 = vmatmul.mubr.bf16.gmra.mxu0 %v4921
      %v5293 = vpop.f32.mrf.mxu0
      %v5294 = vadd.f32 %v5117, %v5293
      %v5295 = vpop.f32.mrf.mxu0
      %v5296 = vpop.f32.mrf.mxu0
      %v5297 = vadd.f32 %v5120, %v5296
      %v5298 = vpop.f32.mrf.mxu0
      %5299 = vmatprep.mubr.bf16.mxu0 0
      %5300 = vmatmul.mubr.bf16.gmra.mxu0 %v4922
      %v5301 = vpop.f32.mrf.mxu0
      %v5302 = vadd.f32 %v5125, %v5301
      %v5303 = vpop.f32.mrf.mxu0
      %v5304 = vpop.f32.mrf.mxu0
      %v5305 = vadd.f32 %v5128, %v5304
      %v5306 = vpop.f32.mrf.mxu0
      %5307 = vmatprep.mubr.bf16.mxu0 0
      %5308 = vmatmul.mubr.bf16.gmra.mxu0 %v4923
      %v5309 = vpop.f32.mrf.mxu0
      %v5310 = vadd.f32 %v5133, %v5309
      %v5311 = vpop.f32.mrf.mxu0
      %v5312 = vpop.f32.mrf.mxu0
      %v5313 = vadd.f32 %v5136, %v5312
      %v5314 = vpop.f32.mrf.mxu0
      %5315 = vmatprep.mubr.bf16.mxu0 0
      %5316 = vmatmul.mubr.bf16.gmra.mxu0 %v4924
      %v5317 = vpop.f32.mrf.mxu0
      %v5318 = vadd.f32 %v5141, %v5317
      %v5319 = vpop.f32.mrf.mxu0
      %v5320 = vpop.f32.mrf.mxu0
      %v5321 = vadd.f32 %v5144, %v5320
      %v5322 = vpop.f32.mrf.mxu0
      %5323 = vdwg.mxu0
      %v5324 = vrot.slane %v4841, 1
      %v5325 = vrot.slane %v4842, 1
      %v5326 = vrot.slane %v4843, 1
      %v5327 = vrot.slane %v4844, 1
      %v5328 = vrot.slane %v4845, 1
      %v5329 = vrot.slane %v4846, 1
      %v5330 = vrot.slane %v4847, 1
      %v5331 = vrot.slane %v4848, 1
      %v5332 = vrot.slane %v4849, 1
      %v5333 = vrot.slane %v4850, 1
      %v5334 = vrot.slane %v4851, 1
      %v5335 = vrot.slane %v4852, 1
      %v5336 = vrot.slane %v4853, 1
      %v5337 = vrot.slane %v4854, 1
      %v5338 = vrot.slane %v4855, 1
      %v5339 = vrot.slane %v4856, 1
      %v5340 = vrot.slane %v4857, 1
      %v5341 = vrot.slane %v4858, 1
      %v5342 = vrot.slane %v4859, 1
      %v5343 = vrot.slane %v4860, 1
      %v5344 = vrot.slane %v4861, 1
      %v5345 = vrot.slane %v4862, 1
      %v5346 = vrot.slane %v4863, 1
      %v5347 = vrot.slane %v4864, 1
      %v5348 = vsel %vm2199, %v5346, %v5347
      %v5349 = vsel %vm2199, %v5345, %v5346
      %v5350 = vsel %vm2199, %v5344, %v5345
      %v5351 = vsel %vm2199, %v5343, %v5344
      %v5352 = vsel %vm2199, %v5342, %v5343
      %v5353 = vsel %vm2199, %v5341, %v5342
      %v5354 = vsel %vm2199, %v5340, %v5341
      %v5355 = vsel %vm2199, %v5339, %v5340
      %v5356 = vsel %vm2199, %v5338, %v5339
      %v5357 = vsel %vm2199, %v5337, %v5338
      %v5358 = vsel %vm2199, %v5336, %v5337
      %v5359 = vsel %vm2199, %v5335, %v5336
      %v5360 = vsel %vm2199, %v5334, %v5335
      %v5361 = vsel %vm2199, %v5333, %v5334
      %v5362 = vsel %vm2199, %v5332, %v5333
      %v5363 = vsel %vm2199, %v5331, %v5332
      %v5364 = vsel %vm2199, %v5330, %v5331
      %v5365 = vsel %vm2199, %v5329, %v5330
      %v5366 = vsel %vm2199, %v5328, %v5329
      %v5367 = vsel %vm2199, %v5327, %v5328
      %v5368 = vsel %vm2199, %v5326, %v5327
      %v5369 = vsel %vm2199, %v5325, %v5326
      %v5370 = vsel %vm2199, %v5324, %v5325
      %v5371 = vsel %vm2199, %v5347, %v5324
      %v5372 = vpack.c.bf16 %v5369, %v5370
      %v5373 = vpack.c.bf16 %v5367, %v5368
      %v5374 = vpack.c.bf16 %v5365, %v5366
      %v5375 = vpack.c.bf16 %v5363, %v5364
      %v5376 = vpack.c.bf16 %v5361, %v5362
      %v5377 = vpack.c.bf16 %v5359, %v5360
      %v5378 = vpack.c.bf16 %v5357, %v5358
      %v5379 = vpack.c.bf16 %v5355, %v5356
      %v5380 = vpack.c.bf16 %v5353, %v5354
      %v5381 = vpack.c.bf16 %v5351, %v5352
      %v5382 = vpack.c.bf16 %v5349, %v5350
      %v5383 = vpack.c.bf16 %v5371, %v5348
      %s5384 = scalar_lea.vmem %s5, 128
      %v5385 = vld [vmem:[%s5384] sm:$0xf]
      %v5386 = vld [vmem:[%s5384 + $0x4] sm:$0xf]
      %v5387 = vld [vmem:[%s5384 + $0x8] sm:$0xf]
      %v5388 = vld [vmem:[%s5384 + $0xc] sm:$0xf]
      %v5389 = vld [vmem:[%s5384 + $0x10] sm:$0xf]
      %v5390 = vld [vmem:[%s5384 + $0x14] sm:$0xf]
      %v5391 = vld [vmem:[%s5384 + $0x18] sm:$0xf]
      %v5392 = vld [vmem:[%s5384 + $0x1c] sm:$0xf]
      %v5393 = vld [vmem:[%s5384 + $0x20] sm:$0xf]
      %v5394 = vld [vmem:[%s5384 + $0x24] sm:$0xf]
      %v5395 = vld [vmem:[%s5384 + $0x28] sm:$0xf]
      %v5396 = vld [vmem:[%s5384 + $0x2c] sm:$0xf]
      %v5397 = vld [vmem:[%s5384 + $0x30] sm:$0xf]
      %v5398 = vld [vmem:[%s5384 + $0x34] sm:$0xf]
      %v5399 = vld [vmem:[%s5384 + $0x38] sm:$0xf]
      %v5400 = vld [vmem:[%s5384 + $0x3c] sm:$0xf]
      %v5417 = vunpack.c.l.b16 %v5385
      %v5418 = vunpack.c.l.b16 %v5386
      %v5419 = vunpack.c.l.b16 %v5387
      %v5420 = vunpack.c.l.b16 %v5388
      %v5421 = vunpack.c.l.b16 %v5389
      %v5422 = vunpack.c.l.b16 %v5390
      %v5423 = vunpack.c.l.b16 %v5391
      %v5424 = vunpack.c.l.b16 %v5392
      %v5425 = vunpack.c.l.b16 %v5393
      %v5426 = vunpack.c.l.b16 %v5394
      %v5427 = vunpack.c.l.b16 %v5395
      %v5428 = vunpack.c.l.b16 %v5396
      %v5429 = vunpack.c.l.b16 %v5397
      %v5430 = vunpack.c.l.b16 %v5398
      %v5431 = vunpack.c.l.b16 %v5399
      %v5432 = vunpack.c.l.b16 %v5400
      %v5433 = vpack.c.b16 %v5418, %v5417
      %v5434 = vpack.c.b16 %v5420, %v5419
      %v5435 = vpack.c.b16 %v5422, %v5421
      %v5436 = vpack.c.b16 %v5424, %v5423
      %v5437 = vpack.c.b16 %v5426, %v5425
      %v5438 = vpack.c.b16 %v5428, %v5427
      %v5439 = vpack.c.b16 %v5430, %v5429
      %v5440 = vpack.c.b16 %v5432, %v5431
      %5449 = vmatprep.subr.bf16.mxu0 0
      %5450 = vmatpush1.bf16.msra.mxu0 %v5440
      %5451 = vmatprep.subr.bf16.mxu0 0
      %5452 = vmatpush1.bf16.msra.mxu0 %v5439
      %5453 = vmatprep.subr.bf16.mxu0 0
      %5454 = vmatpush1.bf16.msra.mxu0 %v5438
      %5455 = vmatprep.subr.bf16.mxu0 0
      %5456 = vmatpush1.bf16.msra.mxu0 %v5437
      %5457 = vmatprep.subr.bf16.mxu0 0
      %5458 = vmatpush1.bf16.msra.mxu0 %v5436
      %5459 = vmatprep.subr.bf16.mxu0 0
      %5460 = vmatpush1.bf16.msra.mxu0 %v5435
      %5461 = vmatprep.subr.bf16.mxu0 0
      %5462 = vmatpush1.bf16.msra.mxu0 %v5434
      %5463 = vmatprep.subr.bf16.mxu0 0
      %5464 = vmatpush1.bf16.msra.mxu0 %v5433
      %5465 = vmatprep.subr.bf16.mxu0 0
      %5466 = vmatpush2.bf16.msra.mxu0 0
      %5467 = vmatprep.subr.bf16.mxu0 0
      %5468 = vmatpush2.bf16.msra.mxu0 0
      %5469 = vmatprep.subr.bf16.mxu0 0
      %5470 = vmatpush2.bf16.msra.mxu0 0
      %5471 = vmatprep.subr.bf16.mxu0 0
      %5472 = vmatpush2.bf16.msra.mxu0 0
      %5473 = vmatprep.subr.bf16.mxu0 0
      %5474 = vmatpush2.bf16.msra.mxu0 0
      %5475 = vmatprep.subr.bf16.mxu0 0
      %5476 = vmatpush2.bf16.msra.mxu0 0
      %5477 = vmatprep.subr.bf16.mxu0 0
      %5478 = vmatpush2.bf16.msra.mxu0 0
      %5479 = vmatprep.subr.bf16.mxu0 0
      %5480 = vmatpush2.bf16.msra.mxu0 0
      %5481 = vmatprep.mubr.bf16.mxu0 0
      %5482 = vmatmul.mubr.bf16.gmra.mxu0 %v5372
      %v5483 = vpop.f32.mrf.mxu0
      %v5484 = vadd.f32 0.0, %v5483
      %v5485 = vpop.f32.mrf.mxu0
      %v5486 = vpop.f32.mrf.mxu0
      %v5487 = vadd.f32 0.0, %v5486
      %v5488 = vpop.f32.mrf.mxu0
      %5489 = vmatprep.mubr.bf16.mxu0 0
      %5490 = vmatmul.mubr.bf16.gmra.mxu0 %v5373
      %v5491 = vpop.f32.mrf.mxu0
      %v5492 = vadd.f32 0.0, %v5491
      %v5493 = vpop.f32.mrf.mxu0
      %v5494 = vpop.f32.mrf.mxu0
      %v5495 = vadd.f32 0.0, %v5494
      %v5496 = vpop.f32.mrf.mxu0
      %5497 = vmatprep.mubr.bf16.mxu0 0
      %5498 = vmatmul.mubr.bf16.gmra.mxu0 %v5374
      %v5499 = vpop.f32.mrf.mxu0
      %v5500 = vadd.f32 0.0, %v5499
      %v5501 = vpop.f32.mrf.mxu0
      %v5502 = vpop.f32.mrf.mxu0
      %v5503 = vadd.f32 0.0, %v5502
      %v5504 = vpop.f32.mrf.mxu0
      %5505 = vmatprep.mubr.bf16.mxu0 0
      %5506 = vmatmul.mubr.bf16.gmra.mxu0 %v5375
      %v5507 = vpop.f32.mrf.mxu0
      %v5508 = vadd.f32 0.0, %v5507
      %v5509 = vpop.f32.mrf.mxu0
      %v5510 = vpop.f32.mrf.mxu0
      %v5511 = vadd.f32 0.0, %v5510
      %v5512 = vpop.f32.mrf.mxu0
      %5513 = vmatprep.mubr.bf16.mxu0 0
      %5514 = vmatmul.mubr.bf16.gmra.mxu0 %v5376
      %v5515 = vpop.f32.mrf.mxu0
      %v5516 = vadd.f32 0.0, %v5515
      %v5517 = vpop.f32.mrf.mxu0
      %v5518 = vpop.f32.mrf.mxu0
      %v5519 = vadd.f32 0.0, %v5518
      %v5520 = vpop.f32.mrf.mxu0
      %5521 = vmatprep.mubr.bf16.mxu0 0
      %5522 = vmatmul.mubr.bf16.gmra.mxu0 %v5377
      %v5523 = vpop.f32.mrf.mxu0
      %v5524 = vadd.f32 0.0, %v5523
      %v5525 = vpop.f32.mrf.mxu0
      %v5526 = vpop.f32.mrf.mxu0
      %v5527 = vadd.f32 0.0, %v5526
      %v5528 = vpop.f32.mrf.mxu0
      %5529 = vmatprep.mubr.bf16.mxu0 0
      %5530 = vmatmul.mubr.bf16.gmra.mxu0 %v5378
      %v5531 = vpop.f32.mrf.mxu0
      %v5532 = vadd.f32 0.0, %v5531
      %v5533 = vpop.f32.mrf.mxu0
      %v5534 = vpop.f32.mrf.mxu0
      %v5535 = vadd.f32 0.0, %v5534
      %v5536 = vpop.f32.mrf.mxu0
      %5537 = vmatprep.mubr.bf16.mxu0 0
      %5538 = vmatmul.mubr.bf16.gmra.mxu0 %v5379
      %v5539 = vpop.f32.mrf.mxu0
      %v5540 = vadd.f32 0.0, %v5539
      %v5541 = vpop.f32.mrf.mxu0
      %v5542 = vpop.f32.mrf.mxu0
      %v5543 = vadd.f32 0.0, %v5542
      %v5544 = vpop.f32.mrf.mxu0
      %5545 = vmatprep.mubr.bf16.mxu0 0
      %5546 = vmatmul.mubr.bf16.gmra.mxu0 %v5380
      %v5547 = vpop.f32.mrf.mxu0
      %v5548 = vadd.f32 0.0, %v5547
      %v5549 = vpop.f32.mrf.mxu0
      %v5550 = vpop.f32.mrf.mxu0
      %v5551 = vadd.f32 0.0, %v5550
      %v5552 = vpop.f32.mrf.mxu0
      %5553 = vmatprep.mubr.bf16.mxu0 0
      %5554 = vmatmul.mubr.bf16.gmra.mxu0 %v5381
      %v5555 = vpop.f32.mrf.mxu0
      %v5556 = vadd.f32 0.0, %v5555
      %v5557 = vpop.f32.mrf.mxu0
      %v5558 = vpop.f32.mrf.mxu0
      %v5559 = vadd.f32 0.0, %v5558
      %v5560 = vpop.f32.mrf.mxu0
      %5561 = vmatprep.mubr.bf16.mxu0 0
      %5562 = vmatmul.mubr.bf16.gmra.mxu0 %v5382
      %v5563 = vpop.f32.mrf.mxu0
      %v5564 = vadd.f32 0.0, %v5563
      %v5565 = vpop.f32.mrf.mxu0
      %v5566 = vpop.f32.mrf.mxu0
      %v5567 = vadd.f32 0.0, %v5566
      %v5568 = vpop.f32.mrf.mxu0
      %5569 = vmatprep.mubr.bf16.mxu0 0
      %5570 = vmatmul.mubr.bf16.gmra.mxu0 %v5383
      %v5571 = vpop.f32.mrf.mxu0
      %v5572 = vadd.f32 0.0, %v5571
      %v5573 = vpop.f32.mrf.mxu0
      %v5574 = vpop.f32.mrf.mxu0
      %v5575 = vadd.f32 0.0, %v5574
      %v5576 = vpop.f32.mrf.mxu0
      %5577 = vdwg.mxu0
      %v5578 = vadd.f32 %v5230, %v5484
      %v5579 = vadd.f32 %v5233, %v5487
      %v5580 = vadd.f32 %v5238, %v5492
      %v5581 = vadd.f32 %v5241, %v5495
      %v5582 = vadd.f32 %v5246, %v5500
      %v5583 = vadd.f32 %v5249, %v5503
      %v5584 = vadd.f32 %v5254, %v5508
      %v5585 = vadd.f32 %v5257, %v5511
      %v5586 = vadd.f32 %v5262, %v5516
      %v5587 = vadd.f32 %v5265, %v5519
      %v5588 = vadd.f32 %v5270, %v5524
      %v5589 = vadd.f32 %v5273, %v5527
      %v5590 = vadd.f32 %v5278, %v5532
      %v5591 = vadd.f32 %v5281, %v5535
      %v5592 = vadd.f32 %v5286, %v5540
      %v5593 = vadd.f32 %v5289, %v5543
      %v5594 = vadd.f32 %v5294, %v5548
      %v5595 = vadd.f32 %v5297, %v5551
      %v5596 = vadd.f32 %v5302, %v5556
      %v5597 = vadd.f32 %v5305, %v5559
      %v5598 = vadd.f32 %v5310, %v5564
      %v5599 = vadd.f32 %v5313, %v5567
      %v5600 = vadd.f32 %v5318, %v5572
      %v5601 = vadd.f32 %v5321, %v5575
      %s5602 = scalar_lea.vmem [#allocation4], 24
      %v5603 = vld [vmem:[%s5602] sm:$0xff]
      %v5604 = vld [vmem:[%s5602 + $0x8] sm:$0xff]
      %v5605 = vld [vmem:[%s5602 + $0x10] sm:$0xff]
      %v5606 = vld [vmem:[%s5602 + $0x18] sm:$0xff]
      %v5607 = vld [vmem:[%s5602 + $0x20] sm:$0xff]
      %v5608 = vld [vmem:[%s5602 + $0x28] sm:$0xff]
      %v5609 = vld [vmem:[%s5602 + $0x30] sm:$0xff]
      %v5610 = vld [vmem:[%s5602 + $0x38] sm:$0xff]
      %v5611 = vld [vmem:[%s5602 + $0x40] sm:$0xff]
      %v5612 = vld [vmem:[%s5602 + $0x48] sm:$0xff]
      %v5613 = vld [vmem:[%s5602 + $0x50] sm:$0xff]
      %v5614 = vld [vmem:[%s5602 + $0x58] sm:$0xff]
      %v5615 = vld [vmem:[%s5602 + $0x60] sm:$0xff]
      %v5616 = vld [vmem:[%s5602 + $0x68] sm:$0xff]
      %v5617 = vld [vmem:[%s5602 + $0x70] sm:$0xff]
      %v5618 = vld [vmem:[%s5602 + $0x78] sm:$0xff]
      %v5619 = vld [vmem:[%s5602 + $0x80] sm:$0xff]
      %v5620 = vld [vmem:[%s5602 + $0x88] sm:$0xff]
      %v5621 = vld [vmem:[%s5602 + $0x90] sm:$0xff]
      %v5622 = vld [vmem:[%s5602 + $0x98] sm:$0xff]
      %v5623 = vld [vmem:[%s5602 + $0xa0] sm:$0xff]
      %v5624 = vld [vmem:[%s5602 + $0xa8] sm:$0xff]
      %v5625 = vld [vmem:[%s5602 + $0xb0] sm:$0xff]
      %v5626 = vld [vmem:[%s5602 + $0xb8] sm:$0xff]
      %v5627 = vrot.slane %v5603, 7
      %v5628 = vrot.slane %v5604, 7
      %v5629 = vrot.slane %v5605, 7
      %v5630 = vrot.slane %v5606, 7
      %v5631 = vrot.slane %v5607, 7
      %v5632 = vrot.slane %v5608, 7
      %v5633 = vrot.slane %v5609, 7
      %v5634 = vrot.slane %v5610, 7
      %v5635 = vrot.slane %v5611, 7
      %v5636 = vrot.slane %v5612, 7
      %v5637 = vrot.slane %v5613, 7
      %v5638 = vrot.slane %v5614, 7
      %v5639 = vrot.slane %v5615, 7
      %v5640 = vrot.slane %v5616, 7
      %v5641 = vrot.slane %v5617, 7
      %v5642 = vrot.slane %v5618, 7
      %v5643 = vrot.slane %v5619, 7
      %v5644 = vrot.slane %v5620, 7
      %v5645 = vrot.slane %v5621, 7
      %v5646 = vrot.slane %v5622, 7
      %v5647 = vrot.slane %v5623, 7
      %v5648 = vrot.slane %v5624, 7
      %v5649 = vrot.slane %v5625, 7
      %v5650 = vrot.slane %v5626, 7
      %v5651 = vsel %vm1673, %v5649, %v5650
      %v5652 = vsel %vm1673, %v5648, %v5649
      %v5653 = vsel %vm1673, %v5647, %v5648
      %v5654 = vsel %vm1673, %v5646, %v5647
      %v5655 = vsel %vm1673, %v5645, %v5646
      %v5656 = vsel %vm1673, %v5644, %v5645
      %v5657 = vsel %vm1673, %v5643, %v5644
      %v5658 = vsel %vm1673, %v5642, %v5643
      %v5659 = vsel %vm1673, %v5641, %v5642
      %v5660 = vsel %vm1673, %v5640, %v5641
      %v5661 = vsel %vm1673, %v5639, %v5640
      %v5662 = vsel %vm1673, %v5638, %v5639
      %v5663 = vsel %vm1673, %v5637, %v5638
      %v5664 = vsel %vm1673, %v5636, %v5637
      %v5665 = vsel %vm1673, %v5635, %v5636
      %v5666 = vsel %vm1673, %v5634, %v5635
      %v5667 = vsel %vm1673, %v5633, %v5634
      %v5668 = vsel %vm1673, %v5632, %v5633
      %v5669 = vsel %vm1673, %v5631, %v5632
      %v5670 = vsel %vm1673, %v5630, %v5631
      %v5671 = vsel %vm1673, %v5629, %v5630
      %v5672 = vsel %vm1673, %v5628, %v5629
      %v5673 = vsel %vm1673, %v5627, %v5628
      %v5674 = vsel %vm1673, %v5650, %v5627
      %v5675 = vpack.c.bf16 %v5673, %v5674
      %v5676 = vpack.c.bf16 %v5671, %v5672
      %v5677 = vpack.c.bf16 %v5669, %v5670
      %v5678 = vpack.c.bf16 %v5667, %v5668
      %v5679 = vpack.c.bf16 %v5665, %v5666
      %v5680 = vpack.c.bf16 %v5663, %v5664
      %v5681 = vpack.c.bf16 %v5661, %v5662
      %v5682 = vpack.c.bf16 %v5659, %v5660
      %v5683 = vpack.c.bf16 %v5657, %v5658
      %v5684 = vpack.c.bf16 %v5655, %v5656
      %v5685 = vpack.c.bf16 %v5653, %v5654
      %v5686 = vpack.c.bf16 %v5651, %v5652
      %s5687 = scalar_lea.vmem %s5, 192
      %v5688 = vld [vmem:[%s5687] sm:$0xf]
      %v5689 = vld [vmem:[%s5687 + $0x4] sm:$0xf]
      %v5690 = vld [vmem:[%s5687 + $0x8] sm:$0xf]
      %v5691 = vld [vmem:[%s5687 + $0xc] sm:$0xf]
      %v5692 = vld [vmem:[%s5687 + $0x10] sm:$0xf]
      %v5693 = vld [vmem:[%s5687 + $0x14] sm:$0xf]
      %v5694 = vld [vmem:[%s5687 + $0x18] sm:$0xf]
      %v5695 = vld [vmem:[%s5687 + $0x1c] sm:$0xf]
      %v5696 = vld [vmem:[%s5687 + $0x20] sm:$0xf]
      %v5697 = vld [vmem:[%s5687 + $0x24] sm:$0xf]
      %v5698 = vld [vmem:[%s5687 + $0x28] sm:$0xf]
      %v5699 = vld [vmem:[%s5687 + $0x2c] sm:$0xf]
      %v5700 = vld [vmem:[%s5687 + $0x30] sm:$0xf]
      %v5701 = vld [vmem:[%s5687 + $0x34] sm:$0xf]
      %v5702 = vld [vmem:[%s5687 + $0x38] sm:$0xf]
      %v5703 = vld [vmem:[%s5687 + $0x3c] sm:$0xf]
      %v5720 = vunpack.c.l.b16 %v5688
      %v5721 = vunpack.c.l.b16 %v5689
      %v5722 = vunpack.c.l.b16 %v5690
      %v5723 = vunpack.c.l.b16 %v5691
      %v5724 = vunpack.c.l.b16 %v5692
      %v5725 = vunpack.c.l.b16 %v5693
      %v5726 = vunpack.c.l.b16 %v5694
      %v5727 = vunpack.c.l.b16 %v5695
      %v5728 = vunpack.c.l.b16 %v5696
      %v5729 = vunpack.c.l.b16 %v5697
      %v5730 = vunpack.c.l.b16 %v5698
      %v5731 = vunpack.c.l.b16 %v5699
      %v5732 = vunpack.c.l.b16 %v5700
      %v5733 = vunpack.c.l.b16 %v5701
      %v5734 = vunpack.c.l.b16 %v5702
      %v5735 = vunpack.c.l.b16 %v5703
      %v5736 = vpack.c.b16 %v5721, %v5720
      %v5737 = vpack.c.b16 %v5723, %v5722
      %v5738 = vpack.c.b16 %v5725, %v5724
      %v5739 = vpack.c.b16 %v5727, %v5726
      %v5740 = vpack.c.b16 %v5729, %v5728
      %v5741 = vpack.c.b16 %v5731, %v5730
      %v5742 = vpack.c.b16 %v5733, %v5732
      %v5743 = vpack.c.b16 %v5735, %v5734
      %5752 = vmatprep.subr.bf16.mxu0 0
      %5753 = vmatpush1.bf16.msra.mxu0 %v5743
      %5754 = vmatprep.subr.bf16.mxu0 0
      %5755 = vmatpush1.bf16.msra.mxu0 %v5742
      %5756 = vmatprep.subr.bf16.mxu0 0
      %5757 = vmatpush1.bf16.msra.mxu0 %v5741
      %5758 = vmatprep.subr.bf16.mxu0 0
      %5759 = vmatpush1.bf16.msra.mxu0 %v5740
      %5760 = vmatprep.subr.bf16.mxu0 0
      %5761 = vmatpush1.bf16.msra.mxu0 %v5739
      %5762 = vmatprep.subr.bf16.mxu0 0
      %5763 = vmatpush1.bf16.msra.mxu0 %v5738
      %5764 = vmatprep.subr.bf16.mxu0 0
      %5765 = vmatpush1.bf16.msra.mxu0 %v5737
      %5766 = vmatprep.subr.bf16.mxu0 0
      %5767 = vmatpush1.bf16.msra.mxu0 %v5736
      %5768 = vmatprep.subr.bf16.mxu0 0
      %5769 = vmatpush2.bf16.msra.mxu0 0
      %5770 = vmatprep.subr.bf16.mxu0 0
      %5771 = vmatpush2.bf16.msra.mxu0 0
      %5772 = vmatprep.subr.bf16.mxu0 0
      %5773 = vmatpush2.bf16.msra.mxu0 0
      %5774 = vmatprep.subr.bf16.mxu0 0
      %5775 = vmatpush2.bf16.msra.mxu0 0
      %5776 = vmatprep.subr.bf16.mxu0 0
      %5777 = vmatpush2.bf16.msra.mxu0 0
      %5778 = vmatprep.subr.bf16.mxu0 0
      %5779 = vmatpush2.bf16.msra.mxu0 0
      %5780 = vmatprep.subr.bf16.mxu0 0
      %5781 = vmatpush2.bf16.msra.mxu0 0
      %5782 = vmatprep.subr.bf16.mxu0 0
      %5783 = vmatpush2.bf16.msra.mxu0 0
      %5784 = vmatprep.mubr.bf16.mxu0 0
      %5785 = vmatmul.mubr.bf16.gmra.mxu0 %v5675
      %v5786 = vpop.f32.mrf.mxu0
      %v5787 = vadd.f32 0.0, %v5786
      %v5788 = vpop.f32.mrf.mxu0
      %v5789 = vpop.f32.mrf.mxu0
      %v5790 = vadd.f32 0.0, %v5789
      %v5791 = vpop.f32.mrf.mxu0
      %5792 = vmatprep.mubr.bf16.mxu0 0
      %5793 = vmatmul.mubr.bf16.gmra.mxu0 %v5676
      %v5794 = vpop.f32.mrf.mxu0
      %v5795 = vadd.f32 0.0, %v5794
      %v5796 = vpop.f32.mrf.mxu0
      %v5797 = vpop.f32.mrf.mxu0
      %v5798 = vadd.f32 0.0, %v5797
      %v5799 = vpop.f32.mrf.mxu0
      %5800 = vmatprep.mubr.bf16.mxu0 0
      %5801 = vmatmul.mubr.bf16.gmra.mxu0 %v5677
      %v5802 = vpop.f32.mrf.mxu0
      %v5803 = vadd.f32 0.0, %v5802
      %v5804 = vpop.f32.mrf.mxu0
      %v5805 = vpop.f32.mrf.mxu0
      %v5806 = vadd.f32 0.0, %v5805
      %v5807 = vpop.f32.mrf.mxu0
      %5808 = vmatprep.mubr.bf16.mxu0 0
      %5809 = vmatmul.mubr.bf16.gmra.mxu0 %v5678
      %v5810 = vpop.f32.mrf.mxu0
      %v5811 = vadd.f32 0.0, %v5810
      %v5812 = vpop.f32.mrf.mxu0
      %v5813 = vpop.f32.mrf.mxu0
      %v5814 = vadd.f32 0.0, %v5813
      %v5815 = vpop.f32.mrf.mxu0
      %5816 = vmatprep.mubr.bf16.mxu0 0
      %5817 = vmatmul.mubr.bf16.gmra.mxu0 %v5679
      %v5818 = vpop.f32.mrf.mxu0
      %v5819 = vadd.f32 0.0, %v5818
      %v5820 = vpop.f32.mrf.mxu0
      %v5821 = vpop.f32.mrf.mxu0
      %v5822 = vadd.f32 0.0, %v5821
      %v5823 = vpop.f32.mrf.mxu0
      %5824 = vmatprep.mubr.bf16.mxu0 0
      %5825 = vmatmul.mubr.bf16.gmra.mxu0 %v5680
      %v5826 = vpop.f32.mrf.mxu0
      %v5827 = vadd.f32 0.0, %v5826
      %v5828 = vpop.f32.mrf.mxu0
      %v5829 = vpop.f32.mrf.mxu0
      %v5830 = vadd.f32 0.0, %v5829
      %v5831 = vpop.f32.mrf.mxu0
      %5832 = vmatprep.mubr.bf16.mxu0 0
      %5833 = vmatmul.mubr.bf16.gmra.mxu0 %v5681
      %v5834 = vpop.f32.mrf.mxu0
      %v5835 = vadd.f32 0.0, %v5834
      %v5836 = vpop.f32.mrf.mxu0
      %v5837 = vpop.f32.mrf.mxu0
      %v5838 = vadd.f32 0.0, %v5837
      %v5839 = vpop.f32.mrf.mxu0
      %5840 = vmatprep.mubr.bf16.mxu0 0
      %5841 = vmatmul.mubr.bf16.gmra.mxu0 %v5682
      %v5842 = vpop.f32.mrf.mxu0
      %v5843 = vadd.f32 0.0, %v5842
      %v5844 = vpop.f32.mrf.mxu0
      %v5845 = vpop.f32.mrf.mxu0
      %v5846 = vadd.f32 0.0, %v5845
      %v5847 = vpop.f32.mrf.mxu0
      %5848 = vmatprep.mubr.bf16.mxu0 0
      %5849 = vmatmul.mubr.bf16.gmra.mxu0 %v5683
      %v5850 = vpop.f32.mrf.mxu0
      %v5851 = vadd.f32 0.0, %v5850
      %v5852 = vpop.f32.mrf.mxu0
      %v5853 = vpop.f32.mrf.mxu0
      %v5854 = vadd.f32 0.0, %v5853
      %v5855 = vpop.f32.mrf.mxu0
      %5856 = vmatprep.mubr.bf16.mxu0 0
      %5857 = vmatmul.mubr.bf16.gmra.mxu0 %v5684
      %v5858 = vpop.f32.mrf.mxu0
      %v5859 = vadd.f32 0.0, %v5858
      %v5860 = vpop.f32.mrf.mxu0
      %v5861 = vpop.f32.mrf.mxu0
      %v5862 = vadd.f32 0.0, %v5861
      %v5863 = vpop.f32.mrf.mxu0
      %5864 = vmatprep.mubr.bf16.mxu0 0
      %5865 = vmatmul.mubr.bf16.gmra.mxu0 %v5685
      %v5866 = vpop.f32.mrf.mxu0
      %v5867 = vadd.f32 0.0, %v5866
      %v5868 = vpop.f32.mrf.mxu0
      %v5869 = vpop.f32.mrf.mxu0
      %v5870 = vadd.f32 0.0, %v5869
      %v5871 = vpop.f32.mrf.mxu0
      %5872 = vmatprep.mubr.bf16.mxu0 0
      %5873 = vmatmul.mubr.bf16.gmra.mxu0 %v5686
      %v5874 = vpop.f32.mrf.mxu0
      %v5875 = vadd.f32 0.0, %v5874
      %v5876 = vpop.f32.mrf.mxu0
      %v5877 = vpop.f32.mrf.mxu0
      %v5878 = vadd.f32 0.0, %v5877
      %v5879 = vpop.f32.mrf.mxu0
      %5880 = vdwg.mxu0
      %v5881 = vadd.f32 %v5578, %v5787
      %v5882 = vadd.f32 %v5579, %v5790
      %v5883 = vadd.f32 %v5580, %v5795
      %v5884 = vadd.f32 %v5581, %v5798
      %v5885 = vadd.f32 %v5582, %v5803
      %v5886 = vadd.f32 %v5583, %v5806
      %v5887 = vadd.f32 %v5584, %v5811
      %v5888 = vadd.f32 %v5585, %v5814
      %v5889 = vadd.f32 %v5586, %v5819
      %v5890 = vadd.f32 %v5587, %v5822
      %v5891 = vadd.f32 %v5588, %v5827
      %v5892 = vadd.f32 %v5589, %v5830
      %v5893 = vadd.f32 %v5590, %v5835
      %v5894 = vadd.f32 %v5591, %v5838
      %v5895 = vadd.f32 %v5592, %v5843
      %v5896 = vadd.f32 %v5593, %v5846
      %v5897 = vadd.f32 %v5594, %v5851
      %v5898 = vadd.f32 %v5595, %v5854
      %v5899 = vadd.f32 %v5596, %v5859
      %v5900 = vadd.f32 %v5597, %v5862
      %v5901 = vadd.f32 %v5598, %v5867
      %v5902 = vadd.f32 %v5599, %v5870
      %v5903 = vadd.f32 %v5600, %v5875
      %v5904 = vadd.f32 %v5601, %v5878
      %v5905 = vpack.c.bf16 %v5604, %v5603
      %v5906 = vpack.c.bf16 %v5606, %v5605
      %v5907 = vpack.c.bf16 %v5608, %v5607
      %v5908 = vpack.c.bf16 %v5610, %v5609
      %v5909 = vpack.c.bf16 %v5612, %v5611
      %v5910 = vpack.c.bf16 %v5614, %v5613
      %v5911 = vpack.c.bf16 %v5616, %v5615
      %v5912 = vpack.c.bf16 %v5618, %v5617
      %v5913 = vpack.c.bf16 %v5620, %v5619
      %v5914 = vpack.c.bf16 %v5622, %v5621
      %v5915 = vpack.c.bf16 %v5624, %v5623
      %v5916 = vpack.c.bf16 %v5626, %v5625
      %s5917 = scalar_lea.vmem %s5, 256
      %v5918 = vld [vmem:[%s5917] sm:$0xf]
      %v5919 = vld [vmem:[%s5917 + $0x4] sm:$0xf]
      %v5920 = vld [vmem:[%s5917 + $0x8] sm:$0xf]
      %v5921 = vld [vmem:[%s5917 + $0xc] sm:$0xf]
      %v5922 = vld [vmem:[%s5917 + $0x10] sm:$0xf]
      %v5923 = vld [vmem:[%s5917 + $0x14] sm:$0xf]
      %v5924 = vld [vmem:[%s5917 + $0x18] sm:$0xf]
      %v5925 = vld [vmem:[%s5917 + $0x1c] sm:$0xf]
      %v5926 = vld [vmem:[%s5917 + $0x20] sm:$0xf]
      %v5927 = vld [vmem:[%s5917 + $0x24] sm:$0xf]
      %v5928 = vld [vmem:[%s5917 + $0x28] sm:$0xf]
      %v5929 = vld [vmem:[%s5917 + $0x2c] sm:$0xf]
      %v5930 = vld [vmem:[%s5917 + $0x30] sm:$0xf]
      %v5931 = vld [vmem:[%s5917 + $0x34] sm:$0xf]
      %v5932 = vld [vmem:[%s5917 + $0x38] sm:$0xf]
      %v5933 = vld [vmem:[%s5917 + $0x3c] sm:$0xf]
      %v5950 = vunpack.c.l.b16 %v5918
      %v5951 = vunpack.c.l.b16 %v5919
      %v5952 = vunpack.c.l.b16 %v5920
      %v5953 = vunpack.c.l.b16 %v5921
      %v5954 = vunpack.c.l.b16 %v5922
      %v5955 = vunpack.c.l.b16 %v5923
      %v5956 = vunpack.c.l.b16 %v5924
      %v5957 = vunpack.c.l.b16 %v5925
      %v5958 = vunpack.c.l.b16 %v5926
      %v5959 = vunpack.c.l.b16 %v5927
      %v5960 = vunpack.c.l.b16 %v5928
      %v5961 = vunpack.c.l.b16 %v5929
      %v5962 = vunpack.c.l.b16 %v5930
      %v5963 = vunpack.c.l.b16 %v5931
      %v5964 = vunpack.c.l.b16 %v5932
      %v5965 = vunpack.c.l.b16 %v5933
      %v5966 = vpack.c.b16 %v5951, %v5950
      %v5967 = vpack.c.b16 %v5953, %v5952
      %v5968 = vpack.c.b16 %v5955, %v5954
      %v5969 = vpack.c.b16 %v5957, %v5956
      %v5970 = vpack.c.b16 %v5959, %v5958
      %v5971 = vpack.c.b16 %v5961, %v5960
      %v5972 = vpack.c.b16 %v5963, %v5962
      %v5973 = vpack.c.b16 %v5965, %v5964
      %5982 = vmatprep.subr.bf16.mxu0 0
      %5983 = vmatpush1.bf16.msra.mxu0 %v5973
      %5984 = vmatprep.subr.bf16.mxu0 0
      %5985 = vmatpush1.bf16.msra.mxu0 %v5972
      %5986 = vmatprep.subr.bf16.mxu0 0
      %5987 = vmatpush1.bf16.msra.mxu0 %v5971
      %5988 = vmatprep.subr.bf16.mxu0 0
      %5989 = vmatpush1.bf16.msra.mxu0 %v5970
      %5990 = vmatprep.subr.bf16.mxu0 0
      %5991 = vmatpush1.bf16.msra.mxu0 %v5969
      %5992 = vmatprep.subr.bf16.mxu0 0
      %5993 = vmatpush1.bf16.msra.mxu0 %v5968
      %5994 = vmatprep.subr.bf16.mxu0 0
      %5995 = vmatpush1.bf16.msra.mxu0 %v5967
      %5996 = vmatprep.subr.bf16.mxu0 0
      %5997 = vmatpush1.bf16.msra.mxu0 %v5966
      %5998 = vmatprep.subr.bf16.mxu0 0
      %5999 = vmatpush2.bf16.msra.mxu0 0
      %6000 = vmatprep.subr.bf16.mxu0 0
      %6001 = vmatpush2.bf16.msra.mxu0 0
      %6002 = vmatprep.subr.bf16.mxu0 0
      %6003 = vmatpush2.bf16.msra.mxu0 0
      %6004 = vmatprep.subr.bf16.mxu0 0
      %6005 = vmatpush2.bf16.msra.mxu0 0
      %6006 = vmatprep.subr.bf16.mxu0 0
      %6007 = vmatpush2.bf16.msra.mxu0 0
      %6008 = vmatprep.subr.bf16.mxu0 0
      %6009 = vmatpush2.bf16.msra.mxu0 0
      %6010 = vmatprep.subr.bf16.mxu0 0
      %6011 = vmatpush2.bf16.msra.mxu0 0
      %6012 = vmatprep.subr.bf16.mxu0 0
      %6013 = vmatpush2.bf16.msra.mxu0 0
      %6014 = vmatprep.mubr.bf16.mxu0 0
      %6015 = vmatmul.mubr.bf16.gmra.mxu0 %v5905
      %v6016 = vpop.f32.mrf.mxu0
      %v6017 = vadd.f32 0.0, %v6016
      %v6018 = vpop.f32.mrf.mxu0
      %v6019 = vpop.f32.mrf.mxu0
      %v6020 = vadd.f32 0.0, %v6019
      %v6021 = vpop.f32.mrf.mxu0
      %6022 = vmatprep.mubr.bf16.mxu0 0
      %6023 = vmatmul.mubr.bf16.gmra.mxu0 %v5906
      %v6024 = vpop.f32.mrf.mxu0
      %v6025 = vadd.f32 0.0, %v6024
      %v6026 = vpop.f32.mrf.mxu0
      %v6027 = vpop.f32.mrf.mxu0
      %v6028 = vadd.f32 0.0, %v6027
      %v6029 = vpop.f32.mrf.mxu0
      %6030 = vmatprep.mubr.bf16.mxu0 0
      %6031 = vmatmul.mubr.bf16.gmra.mxu0 %v5907
      %v6032 = vpop.f32.mrf.mxu0
      %v6033 = vadd.f32 0.0, %v6032
      %v6034 = vpop.f32.mrf.mxu0
      %v6035 = vpop.f32.mrf.mxu0
      %v6036 = vadd.f32 0.0, %v6035
      %v6037 = vpop.f32.mrf.mxu0
      %6038 = vmatprep.mubr.bf16.mxu0 0
      %6039 = vmatmul.mubr.bf16.gmra.mxu0 %v5908
      %v6040 = vpop.f32.mrf.mxu0
      %v6041 = vadd.f32 0.0, %v6040
      %v6042 = vpop.f32.mrf.mxu0
      %v6043 = vpop.f32.mrf.mxu0
      %v6044 = vadd.f32 0.0, %v6043
      %v6045 = vpop.f32.mrf.mxu0
      %6046 = vmatprep.mubr.bf16.mxu0 0
      %6047 = vmatmul.mubr.bf16.gmra.mxu0 %v5909
      %v6048 = vpop.f32.mrf.mxu0
      %v6049 = vadd.f32 0.0, %v6048
      %v6050 = vpop.f32.mrf.mxu0
      %v6051 = vpop.f32.mrf.mxu0
      %v6052 = vadd.f32 0.0, %v6051
      %v6053 = vpop.f32.mrf.mxu0
      %6054 = vmatprep.mubr.bf16.mxu0 0
      %6055 = vmatmul.mubr.bf16.gmra.mxu0 %v5910
      %v6056 = vpop.f32.mrf.mxu0
      %v6057 = vadd.f32 0.0, %v6056
      %v6058 = vpop.f32.mrf.mxu0
      %v6059 = vpop.f32.mrf.mxu0
      %v6060 = vadd.f32 0.0, %v6059
      %v6061 = vpop.f32.mrf.mxu0
      %6062 = vmatprep.mubr.bf16.mxu0 0
      %6063 = vmatmul.mubr.bf16.gmra.mxu0 %v5911
      %v6064 = vpop.f32.mrf.mxu0
      %v6065 = vadd.f32 0.0, %v6064
      %v6066 = vpop.f32.mrf.mxu0
      %v6067 = vpop.f32.mrf.mxu0
      %v6068 = vadd.f32 0.0, %v6067
      %v6069 = vpop.f32.mrf.mxu0
      %6070 = vmatprep.mubr.bf16.mxu0 0
      %6071 = vmatmul.mubr.bf16.gmra.mxu0 %v5912
      %v6072 = vpop.f32.mrf.mxu0
      %v6073 = vadd.f32 0.0, %v6072
      %v6074 = vpop.f32.mrf.mxu0
      %v6075 = vpop.f32.mrf.mxu0
      %v6076 = vadd.f32 0.0, %v6075
      %v6077 = vpop.f32.mrf.mxu0
      %6078 = vmatprep.mubr.bf16.mxu0 0
      %6079 = vmatmul.mubr.bf16.gmra.mxu0 %v5913
      %v6080 = vpop.f32.mrf.mxu0
      %v6081 = vadd.f32 0.0, %v6080
      %v6082 = vpop.f32.mrf.mxu0
      %v6083 = vpop.f32.mrf.mxu0
      %v6084 = vadd.f32 0.0, %v6083
      %v6085 = vpop.f32.mrf.mxu0
      %6086 = vmatprep.mubr.bf16.mxu0 0
      %6087 = vmatmul.mubr.bf16.gmra.mxu0 %v5914
      %v6088 = vpop.f32.mrf.mxu0
      %v6089 = vadd.f32 0.0, %v6088
      %v6090 = vpop.f32.mrf.mxu0
      %v6091 = vpop.f32.mrf.mxu0
      %v6092 = vadd.f32 0.0, %v6091
      %v6093 = vpop.f32.mrf.mxu0
      %6094 = vmatprep.mubr.bf16.mxu0 0
      %6095 = vmatmul.mubr.bf16.gmra.mxu0 %v5915
      %v6096 = vpop.f32.mrf.mxu0
      %v6097 = vadd.f32 0.0, %v6096
      %v6098 = vpop.f32.mrf.mxu0
      %v6099 = vpop.f32.mrf.mxu0
      %v6100 = vadd.f32 0.0, %v6099
      %v6101 = vpop.f32.mrf.mxu0
      %6102 = vmatprep.mubr.bf16.mxu0 0
      %6103 = vmatmul.mubr.bf16.gmra.mxu0 %v5916
      %v6104 = vpop.f32.mrf.mxu0
      %v6105 = vadd.f32 0.0, %v6104
      %v6106 = vpop.f32.mrf.mxu0
      %v6107 = vpop.f32.mrf.mxu0
      %v6108 = vadd.f32 0.0, %v6107
      %v6109 = vpop.f32.mrf.mxu0
      %6110 = vdwg.mxu0
      %v6111 = vadd.f32 %v5881, %v6017
      %v6112 = vadd.f32 %v5882, %v6020
      %v6113 = vadd.f32 %v5883, %v6025
      %v6114 = vadd.f32 %v5884, %v6028
      %v6115 = vadd.f32 %v5885, %v6033
      %v6116 = vadd.f32 %v5886, %v6036
      %v6117 = vadd.f32 %v5887, %v6041
      %v6118 = vadd.f32 %v5888, %v6044
      %v6119 = vadd.f32 %v5889, %v6049
      %v6120 = vadd.f32 %v5890, %v6052
      %v6121 = vadd.f32 %v5891, %v6057
      %v6122 = vadd.f32 %v5892, %v6060
      %v6123 = vadd.f32 %v5893, %v6065
      %v6124 = vadd.f32 %v5894, %v6068
      %v6125 = vadd.f32 %v5895, %v6073
      %v6126 = vadd.f32 %v5896, %v6076
      %v6127 = vadd.f32 %v5897, %v6081
      %v6128 = vadd.f32 %v5898, %v6084
      %v6129 = vadd.f32 %v5899, %v6089
      %v6130 = vadd.f32 %v5900, %v6092
      %v6131 = vadd.f32 %v5901, %v6097
      %v6132 = vadd.f32 %v5902, %v6100
      %v6133 = vadd.f32 %v5903, %v6105
      %v6134 = vadd.f32 %v5904, %v6108
      %v6135 = vrot.slane %v5603, 1
      %v6136 = vrot.slane %v5604, 1
      %v6137 = vrot.slane %v5605, 1
      %v6138 = vrot.slane %v5606, 1
      %v6139 = vrot.slane %v5607, 1
      %v6140 = vrot.slane %v5608, 1
      %v6141 = vrot.slane %v5609, 1
      %v6142 = vrot.slane %v5610, 1
      %v6143 = vrot.slane %v5611, 1
      %v6144 = vrot.slane %v5612, 1
      %v6145 = vrot.slane %v5613, 1
      %v6146 = vrot.slane %v5614, 1
      %v6147 = vrot.slane %v5615, 1
      %v6148 = vrot.slane %v5616, 1
      %v6149 = vrot.slane %v5617, 1
      %v6150 = vrot.slane %v5618, 1
      %v6151 = vrot.slane %v5619, 1
      %v6152 = vrot.slane %v5620, 1
      %v6153 = vrot.slane %v5621, 1
      %v6154 = vrot.slane %v5622, 1
      %v6155 = vrot.slane %v5623, 1
      %v6156 = vrot.slane %v5624, 1
      %v6157 = vrot.slane %v5625, 1
      %v6158 = vrot.slane %v5626, 1
      %v6159 = vsel %vm2199, %v6157, %v6158
      %v6160 = vsel %vm2199, %v6156, %v6157
      %v6161 = vsel %vm2199, %v6155, %v6156
      %v6162 = vsel %vm2199, %v6154, %v6155
      %v6163 = vsel %vm2199, %v6153, %v6154
      %v6164 = vsel %vm2199, %v6152, %v6153
      %v6165 = vsel %vm2199, %v6151, %v6152
      %v6166 = vsel %vm2199, %v6150, %v6151
      %v6167 = vsel %vm2199, %v6149, %v6150
      %v6168 = vsel %vm2199, %v6148, %v6149
      %v6169 = vsel %vm2199, %v6147, %v6148
      %v6170 = vsel %vm2199, %v6146, %v6147
      %v6171 = vsel %vm2199, %v6145, %v6146
      %v6172 = vsel %vm2199, %v6144, %v6145
      %v6173 = vsel %vm2199, %v6143, %v6144
      %v6174 = vsel %vm2199, %v6142, %v6143
      %v6175 = vsel %vm2199, %v6141, %v6142
      %v6176 = vsel %vm2199, %v6140, %v6141
      %v6177 = vsel %vm2199, %v6139, %v6140
      %v6178 = vsel %vm2199, %v6138, %v6139
      %v6179 = vsel %vm2199, %v6137, %v6138
      %v6180 = vsel %vm2199, %v6136, %v6137
      %v6181 = vsel %vm2199, %v6135, %v6136
      %v6182 = vsel %vm2199, %v6158, %v6135
      %v6183 = vpack.c.bf16 %v6180, %v6181
      %v6184 = vpack.c.bf16 %v6178, %v6179
      %v6185 = vpack.c.bf16 %v6176, %v6177
      %v6186 = vpack.c.bf16 %v6174, %v6175
      %v6187 = vpack.c.bf16 %v6172, %v6173
      %v6188 = vpack.c.bf16 %v6170, %v6171
      %v6189 = vpack.c.bf16 %v6168, %v6169
      %v6190 = vpack.c.bf16 %v6166, %v6167
      %v6191 = vpack.c.bf16 %v6164, %v6165
      %v6192 = vpack.c.bf16 %v6162, %v6163
      %v6193 = vpack.c.bf16 %v6160, %v6161
      %v6194 = vpack.c.bf16 %v6182, %v6159
      %s6195 = scalar_lea.vmem %s5, 320
      %v6196 = vld [vmem:[%s6195] sm:$0xf]
      %v6197 = vld [vmem:[%s6195 + $0x4] sm:$0xf]
      %v6198 = vld [vmem:[%s6195 + $0x8] sm:$0xf]
      %v6199 = vld [vmem:[%s6195 + $0xc] sm:$0xf]
      %v6200 = vld [vmem:[%s6195 + $0x10] sm:$0xf]
      %v6201 = vld [vmem:[%s6195 + $0x14] sm:$0xf]
      %v6202 = vld [vmem:[%s6195 + $0x18] sm:$0xf]
      %v6203 = vld [vmem:[%s6195 + $0x1c] sm:$0xf]
      %v6204 = vld [vmem:[%s6195 + $0x20] sm:$0xf]
      %v6205 = vld [vmem:[%s6195 + $0x24] sm:$0xf]
      %v6206 = vld [vmem:[%s6195 + $0x28] sm:$0xf]
      %v6207 = vld [vmem:[%s6195 + $0x2c] sm:$0xf]
      %v6208 = vld [vmem:[%s6195 + $0x30] sm:$0xf]
      %v6209 = vld [vmem:[%s6195 + $0x34] sm:$0xf]
      %v6210 = vld [vmem:[%s6195 + $0x38] sm:$0xf]
      %v6211 = vld [vmem:[%s6195 + $0x3c] sm:$0xf]
      %v6228 = vunpack.c.l.b16 %v6196
      %v6229 = vunpack.c.l.b16 %v6197
      %v6230 = vunpack.c.l.b16 %v6198
      %v6231 = vunpack.c.l.b16 %v6199
      %v6232 = vunpack.c.l.b16 %v6200
      %v6233 = vunpack.c.l.b16 %v6201
      %v6234 = vunpack.c.l.b16 %v6202
      %v6235 = vunpack.c.l.b16 %v6203
      %v6236 = vunpack.c.l.b16 %v6204
      %v6237 = vunpack.c.l.b16 %v6205
      %v6238 = vunpack.c.l.b16 %v6206
      %v6239 = vunpack.c.l.b16 %v6207
      %v6240 = vunpack.c.l.b16 %v6208
      %v6241 = vunpack.c.l.b16 %v6209
      %v6242 = vunpack.c.l.b16 %v6210
      %v6243 = vunpack.c.l.b16 %v6211
      %v6244 = vpack.c.b16 %v6229, %v6228
      %v6245 = vpack.c.b16 %v6231, %v6230
      %v6246 = vpack.c.b16 %v6233, %v6232
      %v6247 = vpack.c.b16 %v6235, %v6234
      %v6248 = vpack.c.b16 %v6237, %v6236
      %v6249 = vpack.c.b16 %v6239, %v6238
      %v6250 = vpack.c.b16 %v6241, %v6240
      %v6251 = vpack.c.b16 %v6243, %v6242
      %6260 = vmatprep.subr.bf16.mxu0 0
      %6261 = vmatpush1.bf16.msra.mxu0 %v6251
      %6262 = vmatprep.subr.bf16.mxu0 0
      %6263 = vmatpush1.bf16.msra.mxu0 %v6250
      %6264 = vmatprep.subr.bf16.mxu0 0
      %6265 = vmatpush1.bf16.msra.mxu0 %v6249
      %6266 = vmatprep.subr.bf16.mxu0 0
      %6267 = vmatpush1.bf16.msra.mxu0 %v6248
      %6268 = vmatprep.subr.bf16.mxu0 0
      %6269 = vmatpush1.bf16.msra.mxu0 %v6247
      %6270 = vmatprep.subr.bf16.mxu0 0
      %6271 = vmatpush1.bf16.msra.mxu0 %v6246
      %6272 = vmatprep.subr.bf16.mxu0 0
      %6273 = vmatpush1.bf16.msra.mxu0 %v6245
      %6274 = vmatprep.subr.bf16.mxu0 0
      %6275 = vmatpush1.bf16.msra.mxu0 %v6244
      %6276 = vmatprep.subr.bf16.mxu0 0
      %6277 = vmatpush2.bf16.msra.mxu0 0
      %6278 = vmatprep.subr.bf16.mxu0 0
      %6279 = vmatpush2.bf16.msra.mxu0 0
      %6280 = vmatprep.subr.bf16.mxu0 0
      %6281 = vmatpush2.bf16.msra.mxu0 0
      %6282 = vmatprep.subr.bf16.mxu0 0
      %6283 = vmatpush2.bf16.msra.mxu0 0
      %6284 = vmatprep.subr.bf16.mxu0 0
      %6285 = vmatpush2.bf16.msra.mxu0 0
      %6286 = vmatprep.subr.bf16.mxu0 0
      %6287 = vmatpush2.bf16.msra.mxu0 0
      %6288 = vmatprep.subr.bf16.mxu0 0
      %6289 = vmatpush2.bf16.msra.mxu0 0
      %6290 = vmatprep.subr.bf16.mxu0 0
      %6291 = vmatpush2.bf16.msra.mxu0 0
      %6292 = vmatprep.mubr.bf16.mxu0 0
      %6293 = vmatmul.mubr.bf16.gmra.mxu0 %v6183
      %v6294 = vpop.f32.mrf.mxu0
      %v6295 = vadd.f32 0.0, %v6294
      %v6296 = vpop.f32.mrf.mxu0
      %v6297 = vpop.f32.mrf.mxu0
      %v6298 = vadd.f32 0.0, %v6297
      %v6299 = vpop.f32.mrf.mxu0
      %6300 = vmatprep.mubr.bf16.mxu0 0
      %6301 = vmatmul.mubr.bf16.gmra.mxu0 %v6184
      %v6302 = vpop.f32.mrf.mxu0
      %v6303 = vadd.f32 0.0, %v6302
      %v6304 = vpop.f32.mrf.mxu0
      %v6305 = vpop.f32.mrf.mxu0
      %v6306 = vadd.f32 0.0, %v6305
      %v6307 = vpop.f32.mrf.mxu0
      %6308 = vmatprep.mubr.bf16.mxu0 0
      %6309 = vmatmul.mubr.bf16.gmra.mxu0 %v6185
      %v6310 = vpop.f32.mrf.mxu0
      %v6311 = vadd.f32 0.0, %v6310
      %v6312 = vpop.f32.mrf.mxu0
      %v6313 = vpop.f32.mrf.mxu0
      %v6314 = vadd.f32 0.0, %v6313
      %v6315 = vpop.f32.mrf.mxu0
      %6316 = vmatprep.mubr.bf16.mxu0 0
      %6317 = vmatmul.mubr.bf16.gmra.mxu0 %v6186
      %v6318 = vpop.f32.mrf.mxu0
      %v6319 = vadd.f32 0.0, %v6318
      %v6320 = vpop.f32.mrf.mxu0
      %v6321 = vpop.f32.mrf.mxu0
      %v6322 = vadd.f32 0.0, %v6321
      %v6323 = vpop.f32.mrf.mxu0
      %6324 = vmatprep.mubr.bf16.mxu0 0
      %6325 = vmatmul.mubr.bf16.gmra.mxu0 %v6187
      %v6326 = vpop.f32.mrf.mxu0
      %v6327 = vadd.f32 0.0, %v6326
      %v6328 = vpop.f32.mrf.mxu0
      %v6329 = vpop.f32.mrf.mxu0
      %v6330 = vadd.f32 0.0, %v6329
      %v6331 = vpop.f32.mrf.mxu0
      %6332 = vmatprep.mubr.bf16.mxu0 0
      %6333 = vmatmul.mubr.bf16.gmra.mxu0 %v6188
      %v6334 = vpop.f32.mrf.mxu0
      %v6335 = vadd.f32 0.0, %v6334
      %v6336 = vpop.f32.mrf.mxu0
      %v6337 = vpop.f32.mrf.mxu0
      %v6338 = vadd.f32 0.0, %v6337
      %v6339 = vpop.f32.mrf.mxu0
      %6340 = vmatprep.mubr.bf16.mxu0 0
      %6341 = vmatmul.mubr.bf16.gmra.mxu0 %v6189
      %v6342 = vpop.f32.mrf.mxu0
      %v6343 = vadd.f32 0.0, %v6342
      %v6344 = vpop.f32.mrf.mxu0
      %v6345 = vpop.f32.mrf.mxu0
      %v6346 = vadd.f32 0.0, %v6345
      %v6347 = vpop.f32.mrf.mxu0
      %6348 = vmatprep.mubr.bf16.mxu0 0
      %6349 = vmatmul.mubr.bf16.gmra.mxu0 %v6190
      %v6350 = vpop.f32.mrf.mxu0
      %v6351 = vadd.f32 0.0, %v6350
      %v6352 = vpop.f32.mrf.mxu0
      %v6353 = vpop.f32.mrf.mxu0
      %v6354 = vadd.f32 0.0, %v6353
      %v6355 = vpop.f32.mrf.mxu0
      %6356 = vmatprep.mubr.bf16.mxu0 0
      %6357 = vmatmul.mubr.bf16.gmra.mxu0 %v6191
      %v6358 = vpop.f32.mrf.mxu0
      %v6359 = vadd.f32 0.0, %v6358
      %v6360 = vpop.f32.mrf.mxu0
      %v6361 = vpop.f32.mrf.mxu0
      %v6362 = vadd.f32 0.0, %v6361
      %v6363 = vpop.f32.mrf.mxu0
      %6364 = vmatprep.mubr.bf16.mxu0 0
      %6365 = vmatmul.mubr.bf16.gmra.mxu0 %v6192
      %v6366 = vpop.f32.mrf.mxu0
      %v6367 = vadd.f32 0.0, %v6366
      %v6368 = vpop.f32.mrf.mxu0
      %v6369 = vpop.f32.mrf.mxu0
      %v6370 = vadd.f32 0.0, %v6369
      %v6371 = vpop.f32.mrf.mxu0
      %6372 = vmatprep.mubr.bf16.mxu0 0
      %6373 = vmatmul.mubr.bf16.gmra.mxu0 %v6193
      %v6374 = vpop.f32.mrf.mxu0
      %v6375 = vadd.f32 0.0, %v6374
      %v6376 = vpop.f32.mrf.mxu0
      %v6377 = vpop.f32.mrf.mxu0
      %v6378 = vadd.f32 0.0, %v6377
      %v6379 = vpop.f32.mrf.mxu0
      %6380 = vmatprep.mubr.bf16.mxu0 0
      %6381 = vmatmul.mubr.bf16.gmra.mxu0 %v6194
      %v6382 = vpop.f32.mrf.mxu0
      %v6383 = vadd.f32 0.0, %v6382
      %v6384 = vpop.f32.mrf.mxu0
      %v6385 = vpop.f32.mrf.mxu0
      %v6386 = vadd.f32 0.0, %v6385
      %v6387 = vpop.f32.mrf.mxu0
      %6388 = vdwg.mxu0
      %v6389 = vadd.f32 %v6111, %v6295
      %v6390 = vadd.f32 %v6112, %v6298
      %v6391 = vadd.f32 %v6113, %v6303
      %v6392 = vadd.f32 %v6114, %v6306
      %v6393 = vadd.f32 %v6115, %v6311
      %v6394 = vadd.f32 %v6116, %v6314
      %v6395 = vadd.f32 %v6117, %v6319
      %v6396 = vadd.f32 %v6118, %v6322
      %v6397 = vadd.f32 %v6119, %v6327
      %v6398 = vadd.f32 %v6120, %v6330
      %v6399 = vadd.f32 %v6121, %v6335
      %v6400 = vadd.f32 %v6122, %v6338
      %v6401 = vadd.f32 %v6123, %v6343
      %v6402 = vadd.f32 %v6124, %v6346
      %v6403 = vadd.f32 %v6125, %v6351
      %v6404 = vadd.f32 %v6126, %v6354
      %v6405 = vadd.f32 %v6127, %v6359
      %v6406 = vadd.f32 %v6128, %v6362
      %v6407 = vadd.f32 %v6129, %v6367
      %v6408 = vadd.f32 %v6130, %v6370
      %v6409 = vadd.f32 %v6131, %v6375
      %v6410 = vadd.f32 %v6132, %v6378
      %v6411 = vadd.f32 %v6133, %v6383
      %v6412 = vadd.f32 %v6134, %v6386
      %s6413 = scalar_lea.vmem [#allocation4], 48
      %v6414 = vld [vmem:[%s6413] sm:$0xff]
      %v6415 = vld [vmem:[%s6413 + $0x8] sm:$0xff]
      %v6416 = vld [vmem:[%s6413 + $0x10] sm:$0xff]
      %v6417 = vld [vmem:[%s6413 + $0x18] sm:$0xff]
      %v6418 = vld [vmem:[%s6413 + $0x20] sm:$0xff]
      %v6419 = vld [vmem:[%s6413 + $0x28] sm:$0xff]
      %v6420 = vld [vmem:[%s6413 + $0x30] sm:$0xff]
      %v6421 = vld [vmem:[%s6413 + $0x38] sm:$0xff]
      %v6422 = vld [vmem:[%s6413 + $0x40] sm:$0xff]
      %v6423 = vld [vmem:[%s6413 + $0x48] sm:$0xff]
      %v6424 = vld [vmem:[%s6413 + $0x50] sm:$0xff]
      %v6425 = vld [vmem:[%s6413 + $0x58] sm:$0xff]
      %v6426 = vld [vmem:[%s6413 + $0x60] sm:$0xff]
      %v6427 = vld [vmem:[%s6413 + $0x68] sm:$0xff]
      %v6428 = vld [vmem:[%s6413 + $0x70] sm:$0xff]
      %v6429 = vld [vmem:[%s6413 + $0x78] sm:$0xff]
      %v6430 = vld [vmem:[%s6413 + $0x80] sm:$0xff]
      %v6431 = vld [vmem:[%s6413 + $0x88] sm:$0xff]
      %v6432 = vld [vmem:[%s6413 + $0x90] sm:$0xff]
      %v6433 = vld [vmem:[%s6413 + $0x98] sm:$0xff]
      %v6434 = vld [vmem:[%s6413 + $0xa0] sm:$0xff]
      %v6435 = vld [vmem:[%s6413 + $0xa8] sm:$0xff]
      %v6436 = vld [vmem:[%s6413 + $0xb0] sm:$0xff]
      %v6437 = vld [vmem:[%s6413 + $0xb8] sm:$0xff]
      %v6438 = vrot.slane %v6414, 7
      %v6439 = vrot.slane %v6415, 7
      %v6440 = vrot.slane %v6416, 7
      %v6441 = vrot.slane %v6417, 7
      %v6442 = vrot.slane %v6418, 7
      %v6443 = vrot.slane %v6419, 7
      %v6444 = vrot.slane %v6420, 7
      %v6445 = vrot.slane %v6421, 7
      %v6446 = vrot.slane %v6422, 7
      %v6447 = vrot.slane %v6423, 7
      %v6448 = vrot.slane %v6424, 7
      %v6449 = vrot.slane %v6425, 7
      %v6450 = vrot.slane %v6426, 7
      %v6451 = vrot.slane %v6427, 7
      %v6452 = vrot.slane %v6428, 7
      %v6453 = vrot.slane %v6429, 7
      %v6454 = vrot.slane %v6430, 7
      %v6455 = vrot.slane %v6431, 7
      %v6456 = vrot.slane %v6432, 7
      %v6457 = vrot.slane %v6433, 7
      %v6458 = vrot.slane %v6434, 7
      %v6459 = vrot.slane %v6435, 7
      %v6460 = vrot.slane %v6436, 7
      %v6461 = vrot.slane %v6437, 7
      %v6462 = vsel %vm1673, %v6460, %v6461
      %v6463 = vsel %vm1673, %v6459, %v6460
      %v6464 = vsel %vm1673, %v6458, %v6459
      %v6465 = vsel %vm1673, %v6457, %v6458
      %v6466 = vsel %vm1673, %v6456, %v6457
      %v6467 = vsel %vm1673, %v6455, %v6456
      %v6468 = vsel %vm1673, %v6454, %v6455
      %v6469 = vsel %vm1673, %v6453, %v6454
      %v6470 = vsel %vm1673, %v6452, %v6453
      %v6471 = vsel %vm1673, %v6451, %v6452
      %v6472 = vsel %vm1673, %v6450, %v6451
      %v6473 = vsel %vm1673, %v6449, %v6450
      %v6474 = vsel %vm1673, %v6448, %v6449
      %v6475 = vsel %vm1673, %v6447, %v6448
      %v6476 = vsel %vm1673, %v6446, %v6447
      %v6477 = vsel %vm1673, %v6445, %v6446
      %v6478 = vsel %vm1673, %v6444, %v6445
      %v6479 = vsel %vm1673, %v6443, %v6444
      %v6480 = vsel %vm1673, %v6442, %v6443
      %v6481 = vsel %vm1673, %v6441, %v6442
      %v6482 = vsel %vm1673, %v6440, %v6441
      %v6483 = vsel %vm1673, %v6439, %v6440
      %v6484 = vsel %vm1673, %v6438, %v6439
      %v6485 = vsel %vm1673, %v6461, %v6438
      %v6486 = vpack.c.bf16 %v6484, %v6485
      %v6487 = vpack.c.bf16 %v6482, %v6483
      %v6488 = vpack.c.bf16 %v6480, %v6481
      %v6489 = vpack.c.bf16 %v6478, %v6479
      %v6490 = vpack.c.bf16 %v6476, %v6477
      %v6491 = vpack.c.bf16 %v6474, %v6475
      %v6492 = vpack.c.bf16 %v6472, %v6473
      %v6493 = vpack.c.bf16 %v6470, %v6471
      %v6494 = vpack.c.bf16 %v6468, %v6469
      %v6495 = vpack.c.bf16 %v6466, %v6467
      %v6496 = vpack.c.bf16 %v6464, %v6465
      %v6497 = vpack.c.bf16 %v6462, %v6463
      %s6498 = scalar_lea.vmem %s5, 384
      %v6499 = vld [vmem:[%s6498] sm:$0xf]
      %v6500 = vld [vmem:[%s6498 + $0x4] sm:$0xf]
      %v6501 = vld [vmem:[%s6498 + $0x8] sm:$0xf]
      %v6502 = vld [vmem:[%s6498 + $0xc] sm:$0xf]
      %v6503 = vld [vmem:[%s6498 + $0x10] sm:$0xf]
      %v6504 = vld [vmem:[%s6498 + $0x14] sm:$0xf]
      %v6505 = vld [vmem:[%s6498 + $0x18] sm:$0xf]
      %v6506 = vld [vmem:[%s6498 + $0x1c] sm:$0xf]
      %v6507 = vld [vmem:[%s6498 + $0x20] sm:$0xf]
      %v6508 = vld [vmem:[%s6498 + $0x24] sm:$0xf]
      %v6509 = vld [vmem:[%s6498 + $0x28] sm:$0xf]
      %v6510 = vld [vmem:[%s6498 + $0x2c] sm:$0xf]
      %v6511 = vld [vmem:[%s6498 + $0x30] sm:$0xf]
      %v6512 = vld [vmem:[%s6498 + $0x34] sm:$0xf]
      %v6513 = vld [vmem:[%s6498 + $0x38] sm:$0xf]
      %v6514 = vld [vmem:[%s6498 + $0x3c] sm:$0xf]
      %v6531 = vunpack.c.l.b16 %v6499
      %v6532 = vunpack.c.l.b16 %v6500
      %v6533 = vunpack.c.l.b16 %v6501
      %v6534 = vunpack.c.l.b16 %v6502
      %v6535 = vunpack.c.l.b16 %v6503
      %v6536 = vunpack.c.l.b16 %v6504
      %v6537 = vunpack.c.l.b16 %v6505
      %v6538 = vunpack.c.l.b16 %v6506
      %v6539 = vunpack.c.l.b16 %v6507
      %v6540 = vunpack.c.l.b16 %v6508
      %v6541 = vunpack.c.l.b16 %v6509
      %v6542 = vunpack.c.l.b16 %v6510
      %v6543 = vunpack.c.l.b16 %v6511
      %v6544 = vunpack.c.l.b16 %v6512
      %v6545 = vunpack.c.l.b16 %v6513
      %v6546 = vunpack.c.l.b16 %v6514
      %v6547 = vpack.c.b16 %v6532, %v6531
      %v6548 = vpack.c.b16 %v6534, %v6533
      %v6549 = vpack.c.b16 %v6536, %v6535
      %v6550 = vpack.c.b16 %v6538, %v6537
      %v6551 = vpack.c.b16 %v6540, %v6539
      %v6552 = vpack.c.b16 %v6542, %v6541
      %v6553 = vpack.c.b16 %v6544, %v6543
      %v6554 = vpack.c.b16 %v6546, %v6545
      %6563 = vmatprep.subr.bf16.mxu0 0
      %6564 = vmatpush1.bf16.msra.mxu0 %v6554
      %6565 = vmatprep.subr.bf16.mxu0 0
      %6566 = vmatpush1.bf16.msra.mxu0 %v6553
      %6567 = vmatprep.subr.bf16.mxu0 0
      %6568 = vmatpush1.bf16.msra.mxu0 %v6552
      %6569 = vmatprep.subr.bf16.mxu0 0
      %6570 = vmatpush1.bf16.msra.mxu0 %v6551
      %6571 = vmatprep.subr.bf16.mxu0 0
      %6572 = vmatpush1.bf16.msra.mxu0 %v6550
      %6573 = vmatprep.subr.bf16.mxu0 0
      %6574 = vmatpush1.bf16.msra.mxu0 %v6549
      %6575 = vmatprep.subr.bf16.mxu0 0
      %6576 = vmatpush1.bf16.msra.mxu0 %v6548
      %6577 = vmatprep.subr.bf16.mxu0 0
      %6578 = vmatpush1.bf16.msra.mxu0 %v6547
      %6579 = vmatprep.subr.bf16.mxu0 0
      %6580 = vmatpush2.bf16.msra.mxu0 0
      %6581 = vmatprep.subr.bf16.mxu0 0
      %6582 = vmatpush2.bf16.msra.mxu0 0
      %6583 = vmatprep.subr.bf16.mxu0 0
      %6584 = vmatpush2.bf16.msra.mxu0 0
      %6585 = vmatprep.subr.bf16.mxu0 0
      %6586 = vmatpush2.bf16.msra.mxu0 0
      %6587 = vmatprep.subr.bf16.mxu0 0
      %6588 = vmatpush2.bf16.msra.mxu0 0
      %6589 = vmatprep.subr.bf16.mxu0 0
      %6590 = vmatpush2.bf16.msra.mxu0 0
      %6591 = vmatprep.subr.bf16.mxu0 0
      %6592 = vmatpush2.bf16.msra.mxu0 0
      %6593 = vmatprep.subr.bf16.mxu0 0
      %6594 = vmatpush2.bf16.msra.mxu0 0
      %6595 = vmatprep.mubr.bf16.mxu0 0
      %6596 = vmatmul.mubr.bf16.gmra.mxu0 %v6486
      %v6597 = vpop.f32.mrf.mxu0
      %v6598 = vadd.f32 0.0, %v6597
      %v6599 = vpop.f32.mrf.mxu0
      %v6600 = vpop.f32.mrf.mxu0
      %v6601 = vadd.f32 0.0, %v6600
      %v6602 = vpop.f32.mrf.mxu0
      %6603 = vmatprep.mubr.bf16.mxu0 0
      %6604 = vmatmul.mubr.bf16.gmra.mxu0 %v6487
      %v6605 = vpop.f32.mrf.mxu0
      %v6606 = vadd.f32 0.0, %v6605
      %v6607 = vpop.f32.mrf.mxu0
      %v6608 = vpop.f32.mrf.mxu0
      %v6609 = vadd.f32 0.0, %v6608
      %v6610 = vpop.f32.mrf.mxu0
      %6611 = vmatprep.mubr.bf16.mxu0 0
      %6612 = vmatmul.mubr.bf16.gmra.mxu0 %v6488
      %v6613 = vpop.f32.mrf.mxu0
      %v6614 = vadd.f32 0.0, %v6613
      %v6615 = vpop.f32.mrf.mxu0
      %v6616 = vpop.f32.mrf.mxu0
      %v6617 = vadd.f32 0.0, %v6616
      %v6618 = vpop.f32.mrf.mxu0
      %6619 = vmatprep.mubr.bf16.mxu0 0
      %6620 = vmatmul.mubr.bf16.gmra.mxu0 %v6489
      %v6621 = vpop.f32.mrf.mxu0
      %v6622 = vadd.f32 0.0, %v6621
      %v6623 = vpop.f32.mrf.mxu0
      %v6624 = vpop.f32.mrf.mxu0
      %v6625 = vadd.f32 0.0, %v6624
      %v6626 = vpop.f32.mrf.mxu0
      %6627 = vmatprep.mubr.bf16.mxu0 0
      %6628 = vmatmul.mubr.bf16.gmra.mxu0 %v6490
      %v6629 = vpop.f32.mrf.mxu0
      %v6630 = vadd.f32 0.0, %v6629
      %v6631 = vpop.f32.mrf.mxu0
      %v6632 = vpop.f32.mrf.mxu0
      %v6633 = vadd.f32 0.0, %v6632
      %v6634 = vpop.f32.mrf.mxu0
      %6635 = vmatprep.mubr.bf16.mxu0 0
      %6636 = vmatmul.mubr.bf16.gmra.mxu0 %v6491
      %v6637 = vpop.f32.mrf.mxu0
      %v6638 = vadd.f32 0.0, %v6637
      %v6639 = vpop.f32.mrf.mxu0
      %v6640 = vpop.f32.mrf.mxu0
      %v6641 = vadd.f32 0.0, %v6640
      %v6642 = vpop.f32.mrf.mxu0
      %6643 = vmatprep.mubr.bf16.mxu0 0
      %6644 = vmatmul.mubr.bf16.gmra.mxu0 %v6492
      %v6645 = vpop.f32.mrf.mxu0
      %v6646 = vadd.f32 0.0, %v6645
      %v6647 = vpop.f32.mrf.mxu0
      %v6648 = vpop.f32.mrf.mxu0
      %v6649 = vadd.f32 0.0, %v6648
      %v6650 = vpop.f32.mrf.mxu0
      %6651 = vmatprep.mubr.bf16.mxu0 0
      %6652 = vmatmul.mubr.bf16.gmra.mxu0 %v6493
      %v6653 = vpop.f32.mrf.mxu0
      %v6654 = vadd.f32 0.0, %v6653
      %v6655 = vpop.f32.mrf.mxu0
      %v6656 = vpop.f32.mrf.mxu0
      %v6657 = vadd.f32 0.0, %v6656
      %v6658 = vpop.f32.mrf.mxu0
      %6659 = vmatprep.mubr.bf16.mxu0 0
      %6660 = vmatmul.mubr.bf16.gmra.mxu0 %v6494
      %v6661 = vpop.f32.mrf.mxu0
      %v6662 = vadd.f32 0.0, %v6661
      %v6663 = vpop.f32.mrf.mxu0
      %v6664 = vpop.f32.mrf.mxu0
      %v6665 = vadd.f32 0.0, %v6664
      %v6666 = vpop.f32.mrf.mxu0
      %6667 = vmatprep.mubr.bf16.mxu0 0
      %6668 = vmatmul.mubr.bf16.gmra.mxu0 %v6495
      %v6669 = vpop.f32.mrf.mxu0
      %v6670 = vadd.f32 0.0, %v6669
      %v6671 = vpop.f32.mrf.mxu0
      %v6672 = vpop.f32.mrf.mxu0
      %v6673 = vadd.f32 0.0, %v6672
      %v6674 = vpop.f32.mrf.mxu0
      %6675 = vmatprep.mubr.bf16.mxu0 0
      %6676 = vmatmul.mubr.bf16.gmra.mxu0 %v6496
      %v6677 = vpop.f32.mrf.mxu0
      %v6678 = vadd.f32 0.0, %v6677
      %v6679 = vpop.f32.mrf.mxu0
      %v6680 = vpop.f32.mrf.mxu0
      %v6681 = vadd.f32 0.0, %v6680
      %v6682 = vpop.f32.mrf.mxu0
      %6683 = vmatprep.mubr.bf16.mxu0 0
      %6684 = vmatmul.mubr.bf16.gmra.mxu0 %v6497
      %v6685 = vpop.f32.mrf.mxu0
      %v6686 = vadd.f32 0.0, %v6685
      %v6687 = vpop.f32.mrf.mxu0
      %v6688 = vpop.f32.mrf.mxu0
      %v6689 = vadd.f32 0.0, %v6688
      %v6690 = vpop.f32.mrf.mxu0
      %6691 = vdwg.mxu0
      %v6692 = vadd.f32 %v6389, %v6598
      %v6693 = vadd.f32 %v6390, %v6601
      %v6694 = vadd.f32 %v6391, %v6606
      %v6695 = vadd.f32 %v6392, %v6609
      %v6696 = vadd.f32 %v6393, %v6614
      %v6697 = vadd.f32 %v6394, %v6617
      %v6698 = vadd.f32 %v6395, %v6622
      %v6699 = vadd.f32 %v6396, %v6625
      %v6700 = vadd.f32 %v6397, %v6630
      %v6701 = vadd.f32 %v6398, %v6633
      %v6702 = vadd.f32 %v6399, %v6638
      %v6703 = vadd.f32 %v6400, %v6641
      %v6704 = vadd.f32 %v6401, %v6646
      %v6705 = vadd.f32 %v6402, %v6649
      %v6706 = vadd.f32 %v6403, %v6654
      %v6707 = vadd.f32 %v6404, %v6657
      %v6708 = vadd.f32 %v6405, %v6662
      %v6709 = vadd.f32 %v6406, %v6665
      %v6710 = vadd.f32 %v6407, %v6670
      %v6711 = vadd.f32 %v6408, %v6673
      %v6712 = vadd.f32 %v6409, %v6678
      %v6713 = vadd.f32 %v6410, %v6681
      %v6714 = vadd.f32 %v6411, %v6686
      %v6715 = vadd.f32 %v6412, %v6689
      %v6716 = vpack.c.bf16 %v6415, %v6414
      %v6717 = vpack.c.bf16 %v6417, %v6416
      %v6718 = vpack.c.bf16 %v6419, %v6418
      %v6719 = vpack.c.bf16 %v6421, %v6420
      %v6720 = vpack.c.bf16 %v6423, %v6422
      %v6721 = vpack.c.bf16 %v6425, %v6424
      %v6722 = vpack.c.bf16 %v6427, %v6426
      %v6723 = vpack.c.bf16 %v6429, %v6428
      %v6724 = vpack.c.bf16 %v6431, %v6430
      %v6725 = vpack.c.bf16 %v6433, %v6432
      %v6726 = vpack.c.bf16 %v6435, %v6434
      %v6727 = vpack.c.bf16 %v6437, %v6436
      %s6728 = scalar_lea.vmem %s5, 448
      %v6729 = vld [vmem:[%s6728] sm:$0xf]
      %v6730 = vld [vmem:[%s6728 + $0x4] sm:$0xf]
      %v6731 = vld [vmem:[%s6728 + $0x8] sm:$0xf]
      %v6732 = vld [vmem:[%s6728 + $0xc] sm:$0xf]
      %v6733 = vld [vmem:[%s6728 + $0x10] sm:$0xf]
      %v6734 = vld [vmem:[%s6728 + $0x14] sm:$0xf]
      %v6735 = vld [vmem:[%s6728 + $0x18] sm:$0xf]
      %v6736 = vld [vmem:[%s6728 + $0x1c] sm:$0xf]
      %v6737 = vld [vmem:[%s6728 + $0x20] sm:$0xf]
      %v6738 = vld [vmem:[%s6728 + $0x24] sm:$0xf]
      %v6739 = vld [vmem:[%s6728 + $0x28] sm:$0xf]
      %v6740 = vld [vmem:[%s6728 + $0x2c] sm:$0xf]
      %v6741 = vld [vmem:[%s6728 + $0x30] sm:$0xf]
      %v6742 = vld [vmem:[%s6728 + $0x34] sm:$0xf]
      %v6743 = vld [vmem:[%s6728 + $0x38] sm:$0xf]
      %v6744 = vld [vmem:[%s6728 + $0x3c] sm:$0xf]
      %v6761 = vunpack.c.l.b16 %v6729
      %v6762 = vunpack.c.l.b16 %v6730
      %v6763 = vunpack.c.l.b16 %v6731
      %v6764 = vunpack.c.l.b16 %v6732
      %v6765 = vunpack.c.l.b16 %v6733
      %v6766 = vunpack.c.l.b16 %v6734
      %v6767 = vunpack.c.l.b16 %v6735
      %v6768 = vunpack.c.l.b16 %v6736
      %v6769 = vunpack.c.l.b16 %v6737
      %v6770 = vunpack.c.l.b16 %v6738
      %v6771 = vunpack.c.l.b16 %v6739
      %v6772 = vunpack.c.l.b16 %v6740
      %v6773 = vunpack.c.l.b16 %v6741
      %v6774 = vunpack.c.l.b16 %v6742
      %v6775 = vunpack.c.l.b16 %v6743
      %v6776 = vunpack.c.l.b16 %v6744
      %v6777 = vpack.c.b16 %v6762, %v6761
      %v6778 = vpack.c.b16 %v6764, %v6763
      %v6779 = vpack.c.b16 %v6766, %v6765
      %v6780 = vpack.c.b16 %v6768, %v6767
      %v6781 = vpack.c.b16 %v6770, %v6769
      %v6782 = vpack.c.b16 %v6772, %v6771
      %v6783 = vpack.c.b16 %v6774, %v6773
      %v6784 = vpack.c.b16 %v6776, %v6775
      %6793 = vmatprep.subr.bf16.mxu0 0
      %6794 = vmatpush1.bf16.msra.mxu0 %v6784
      %6795 = vmatprep.subr.bf16.mxu0 0
      %6796 = vmatpush1.bf16.msra.mxu0 %v6783
      %6797 = vmatprep.subr.bf16.mxu0 0
      %6798 = vmatpush1.bf16.msra.mxu0 %v6782
      %6799 = vmatprep.subr.bf16.mxu0 0
      %6800 = vmatpush1.bf16.msra.mxu0 %v6781
      %6801 = vmatprep.subr.bf16.mxu0 0
      %6802 = vmatpush1.bf16.msra.mxu0 %v6780
      %6803 = vmatprep.subr.bf16.mxu0 0
      %6804 = vmatpush1.bf16.msra.mxu0 %v6779
      %6805 = vmatprep.subr.bf16.mxu0 0
      %6806 = vmatpush1.bf16.msra.mxu0 %v6778
      %6807 = vmatprep.subr.bf16.mxu0 0
      %6808 = vmatpush1.bf16.msra.mxu0 %v6777
      %6809 = vmatprep.subr.bf16.mxu0 0
      %6810 = vmatpush2.bf16.msra.mxu0 0
      %6811 = vmatprep.subr.bf16.mxu0 0
      %6812 = vmatpush2.bf16.msra.mxu0 0
      %6813 = vmatprep.subr.bf16.mxu0 0
      %6814 = vmatpush2.bf16.msra.mxu0 0
      %6815 = vmatprep.subr.bf16.mxu0 0
      %6816 = vmatpush2.bf16.msra.mxu0 0
      %6817 = vmatprep.subr.bf16.mxu0 0
      %6818 = vmatpush2.bf16.msra.mxu0 0
      %6819 = vmatprep.subr.bf16.mxu0 0
      %6820 = vmatpush2.bf16.msra.mxu0 0
      %6821 = vmatprep.subr.bf16.mxu0 0
      %6822 = vmatpush2.bf16.msra.mxu0 0
      %6823 = vmatprep.subr.bf16.mxu0 0
      %6824 = vmatpush2.bf16.msra.mxu0 0
      %6825 = vmatprep.mubr.bf16.mxu0 0
      %6826 = vmatmul.mubr.bf16.gmra.mxu0 %v6716
      %v6827 = vpop.f32.mrf.mxu0
      %v6828 = vadd.f32 0.0, %v6827
      %v6829 = vpop.f32.mrf.mxu0
      %v6830 = vpop.f32.mrf.mxu0
      %v6831 = vadd.f32 0.0, %v6830
      %v6832 = vpop.f32.mrf.mxu0
      %6833 = vmatprep.mubr.bf16.mxu0 0
      %6834 = vmatmul.mubr.bf16.gmra.mxu0 %v6717
      %v6835 = vpop.f32.mrf.mxu0
      %v6836 = vadd.f32 0.0, %v6835
      %v6837 = vpop.f32.mrf.mxu0
      %v6838 = vpop.f32.mrf.mxu0
      %v6839 = vadd.f32 0.0, %v6838
      %v6840 = vpop.f32.mrf.mxu0
      %6841 = vmatprep.mubr.bf16.mxu0 0
      %6842 = vmatmul.mubr.bf16.gmra.mxu0 %v6718
      %v6843 = vpop.f32.mrf.mxu0
      %v6844 = vadd.f32 0.0, %v6843
      %v6845 = vpop.f32.mrf.mxu0
      %v6846 = vpop.f32.mrf.mxu0
      %v6847 = vadd.f32 0.0, %v6846
      %v6848 = vpop.f32.mrf.mxu0
      %6849 = vmatprep.mubr.bf16.mxu0 0
      %6850 = vmatmul.mubr.bf16.gmra.mxu0 %v6719
      %v6851 = vpop.f32.mrf.mxu0
      %v6852 = vadd.f32 0.0, %v6851
      %v6853 = vpop.f32.mrf.mxu0
      %v6854 = vpop.f32.mrf.mxu0
      %v6855 = vadd.f32 0.0, %v6854
      %v6856 = vpop.f32.mrf.mxu0
      %6857 = vmatprep.mubr.bf16.mxu0 0
      %6858 = vmatmul.mubr.bf16.gmra.mxu0 %v6720
      %v6859 = vpop.f32.mrf.mxu0
      %v6860 = vadd.f32 0.0, %v6859
      %v6861 = vpop.f32.mrf.mxu0
      %v6862 = vpop.f32.mrf.mxu0
      %v6863 = vadd.f32 0.0, %v6862
      %v6864 = vpop.f32.mrf.mxu0
      %6865 = vmatprep.mubr.bf16.mxu0 0
      %6866 = vmatmul.mubr.bf16.gmra.mxu0 %v6721
      %v6867 = vpop.f32.mrf.mxu0
      %v6868 = vadd.f32 0.0, %v6867
      %v6869 = vpop.f32.mrf.mxu0
      %v6870 = vpop.f32.mrf.mxu0
      %v6871 = vadd.f32 0.0, %v6870
      %v6872 = vpop.f32.mrf.mxu0
      %6873 = vmatprep.mubr.bf16.mxu0 0
      %6874 = vmatmul.mubr.bf16.gmra.mxu0 %v6722
      %v6875 = vpop.f32.mrf.mxu0
      %v6876 = vadd.f32 0.0, %v6875
      %v6877 = vpop.f32.mrf.mxu0
      %v6878 = vpop.f32.mrf.mxu0
      %v6879 = vadd.f32 0.0, %v6878
      %v6880 = vpop.f32.mrf.mxu0
      %6881 = vmatprep.mubr.bf16.mxu0 0
      %6882 = vmatmul.mubr.bf16.gmra.mxu0 %v6723
      %v6883 = vpop.f32.mrf.mxu0
      %v6884 = vadd.f32 0.0, %v6883
      %v6885 = vpop.f32.mrf.mxu0
      %v6886 = vpop.f32.mrf.mxu0
      %v6887 = vadd.f32 0.0, %v6886
      %v6888 = vpop.f32.mrf.mxu0
      %6889 = vmatprep.mubr.bf16.mxu0 0
      %6890 = vmatmul.mubr.bf16.gmra.mxu0 %v6724
      %v6891 = vpop.f32.mrf.mxu0
      %v6892 = vadd.f32 0.0, %v6891
      %v6893 = vpop.f32.mrf.mxu0
      %v6894 = vpop.f32.mrf.mxu0
      %v6895 = vadd.f32 0.0, %v6894
      %v6896 = vpop.f32.mrf.mxu0
      %6897 = vmatprep.mubr.bf16.mxu0 0
      %6898 = vmatmul.mubr.bf16.gmra.mxu0 %v6725
      %v6899 = vpop.f32.mrf.mxu0
      %v6900 = vadd.f32 0.0, %v6899
      %v6901 = vpop.f32.mrf.mxu0
      %v6902 = vpop.f32.mrf.mxu0
      %v6903 = vadd.f32 0.0, %v6902
      %v6904 = vpop.f32.mrf.mxu0
      %6905 = vmatprep.mubr.bf16.mxu0 0
      %6906 = vmatmul.mubr.bf16.gmra.mxu0 %v6726
      %v6907 = vpop.f32.mrf.mxu0
      %v6908 = vadd.f32 0.0, %v6907
      %v6909 = vpop.f32.mrf.mxu0
      %v6910 = vpop.f32.mrf.mxu0
      %v6911 = vadd.f32 0.0, %v6910
      %v6912 = vpop.f32.mrf.mxu0
      %6913 = vmatprep.mubr.bf16.mxu0 0
      %6914 = vmatmul.mubr.bf16.gmra.mxu0 %v6727
      %v6915 = vpop.f32.mrf.mxu0
      %v6916 = vadd.f32 0.0, %v6915
      %v6917 = vpop.f32.mrf.mxu0
      %v6918 = vpop.f32.mrf.mxu0
      %v6919 = vadd.f32 0.0, %v6918
      %v6920 = vpop.f32.mrf.mxu0
      %6921 = vdwg.mxu0
      %v6922 = vadd.f32 %v6692, %v6828
      %v6923 = vadd.f32 %v6693, %v6831
      %v6924 = vadd.f32 %v6694, %v6836
      %v6925 = vadd.f32 %v6695, %v6839
      %v6926 = vadd.f32 %v6696, %v6844
      %v6927 = vadd.f32 %v6697, %v6847
      %v6928 = vadd.f32 %v6698, %v6852
      %v6929 = vadd.f32 %v6699, %v6855
      %v6930 = vadd.f32 %v6700, %v6860
      %v6931 = vadd.f32 %v6701, %v6863
      %v6932 = vadd.f32 %v6702, %v6868
      %v6933 = vadd.f32 %v6703, %v6871
      %v6934 = vadd.f32 %v6704, %v6876
      %v6935 = vadd.f32 %v6705, %v6879
      %v6936 = vadd.f32 %v6706, %v6884
      %v6937 = vadd.f32 %v6707, %v6887
      %v6938 = vadd.f32 %v6708, %v6892
      %v6939 = vadd.f32 %v6709, %v6895
      %v6940 = vadd.f32 %v6710, %v6900
      %v6941 = vadd.f32 %v6711, %v6903
      %v6942 = vadd.f32 %v6712, %v6908
      %v6943 = vadd.f32 %v6713, %v6911
      %v6944 = vadd.f32 %v6714, %v6916
      %v6945 = vadd.f32 %v6715, %v6919
      %v6946 = vrot.slane %v6414, 1
      %v6947 = vrot.slane %v6415, 1
      %v6948 = vrot.slane %v6416, 1
      %v6949 = vrot.slane %v6417, 1
      %v6950 = vrot.slane %v6418, 1
      %v6951 = vrot.slane %v6419, 1
      %v6952 = vrot.slane %v6420, 1
      %v6953 = vrot.slane %v6421, 1
      %v6954 = vrot.slane %v6422, 1
      %v6955 = vrot.slane %v6423, 1
      %v6956 = vrot.slane %v6424, 1
      %v6957 = vrot.slane %v6425, 1
      %v6958 = vrot.slane %v6426, 1
      %v6959 = vrot.slane %v6427, 1
      %v6960 = vrot.slane %v6428, 1
      %v6961 = vrot.slane %v6429, 1
      %v6962 = vrot.slane %v6430, 1
      %v6963 = vrot.slane %v6431, 1
      %v6964 = vrot.slane %v6432, 1
      %v6965 = vrot.slane %v6433, 1
      %v6966 = vrot.slane %v6434, 1
      %v6967 = vrot.slane %v6435, 1
      %v6968 = vrot.slane %v6436, 1
      %v6969 = vrot.slane %v6437, 1
      %v6970 = vsel %vm2199, %v6968, %v6969
      %v6971 = vsel %vm2199, %v6967, %v6968
      %v6972 = vsel %vm2199, %v6966, %v6967
      %v6973 = vsel %vm2199, %v6965, %v6966
      %v6974 = vsel %vm2199, %v6964, %v6965
      %v6975 = vsel %vm2199, %v6963, %v6964
      %v6976 = vsel %vm2199, %v6962, %v6963
      %v6977 = vsel %vm2199, %v6961, %v6962
      %v6978 = vsel %vm2199, %v6960, %v6961
      %v6979 = vsel %vm2199, %v6959, %v6960
      %v6980 = vsel %vm2199, %v6958, %v6959
      %v6981 = vsel %vm2199, %v6957, %v6958
      %v6982 = vsel %vm2199, %v6956, %v6957
      %v6983 = vsel %vm2199, %v6955, %v6956
      %v6984 = vsel %vm2199, %v6954, %v6955
      %v6985 = vsel %vm2199, %v6953, %v6954
      %v6986 = vsel %vm2199, %v6952, %v6953
      %v6987 = vsel %vm2199, %v6951, %v6952
      %v6988 = vsel %vm2199, %v6950, %v6951
      %v6989 = vsel %vm2199, %v6949, %v6950
      %v6990 = vsel %vm2199, %v6948, %v6949
      %v6991 = vsel %vm2199, %v6947, %v6948
      %v6992 = vsel %vm2199, %v6946, %v6947
      %v6993 = vsel %vm2199, %v6969, %v6946
      %v6994 = vpack.c.bf16 %v6991, %v6992
      %v6995 = vpack.c.bf16 %v6989, %v6990
      %v6996 = vpack.c.bf16 %v6987, %v6988
      %v6997 = vpack.c.bf16 %v6985, %v6986
      %v6998 = vpack.c.bf16 %v6983, %v6984
      %v6999 = vpack.c.bf16 %v6981, %v6982
      %v7000 = vpack.c.bf16 %v6979, %v6980
      %v7001 = vpack.c.bf16 %v6977, %v6978
      %v7002 = vpack.c.bf16 %v6975, %v6976
      %v7003 = vpack.c.bf16 %v6973, %v6974
      %v7004 = vpack.c.bf16 %v6971, %v6972
      %v7005 = vpack.c.bf16 %v6993, %v6970
      %s7006 = scalar_lea.vmem %s5, 512
      %v7007 = vld [vmem:[%s7006] sm:$0xf]
      %v7008 = vld [vmem:[%s7006 + $0x4] sm:$0xf]
      %v7009 = vld [vmem:[%s7006 + $0x8] sm:$0xf]
      %v7010 = vld [vmem:[%s7006 + $0xc] sm:$0xf]
      %v7011 = vld [vmem:[%s7006 + $0x10] sm:$0xf]
      %v7012 = vld [vmem:[%s7006 + $0x14] sm:$0xf]
      %v7013 = vld [vmem:[%s7006 + $0x18] sm:$0xf]
      %v7014 = vld [vmem:[%s7006 + $0x1c] sm:$0xf]
      %v7015 = vld [vmem:[%s7006 + $0x20] sm:$0xf]
      %v7016 = vld [vmem:[%s7006 + $0x24] sm:$0xf]
      %v7017 = vld [vmem:[%s7006 + $0x28] sm:$0xf]
      %v7018 = vld [vmem:[%s7006 + $0x2c] sm:$0xf]
      %v7019 = vld [vmem:[%s7006 + $0x30] sm:$0xf]
      %v7020 = vld [vmem:[%s7006 + $0x34] sm:$0xf]
      %v7021 = vld [vmem:[%s7006 + $0x38] sm:$0xf]
      %v7022 = vld [vmem:[%s7006 + $0x3c] sm:$0xf]
      %v7039 = vunpack.c.l.b16 %v7007
      %v7040 = vunpack.c.l.b16 %v7008
      %v7041 = vunpack.c.l.b16 %v7009
      %v7042 = vunpack.c.l.b16 %v7010
      %v7043 = vunpack.c.l.b16 %v7011
      %v7044 = vunpack.c.l.b16 %v7012
      %v7045 = vunpack.c.l.b16 %v7013
      %v7046 = vunpack.c.l.b16 %v7014
      %v7047 = vunpack.c.l.b16 %v7015
      %v7048 = vunpack.c.l.b16 %v7016
      %v7049 = vunpack.c.l.b16 %v7017
      %v7050 = vunpack.c.l.b16 %v7018
      %v7051 = vunpack.c.l.b16 %v7019
      %v7052 = vunpack.c.l.b16 %v7020
      %v7053 = vunpack.c.l.b16 %v7021
      %v7054 = vunpack.c.l.b16 %v7022
      %v7055 = vpack.c.b16 %v7040, %v7039
      %v7056 = vpack.c.b16 %v7042, %v7041
      %v7057 = vpack.c.b16 %v7044, %v7043
      %v7058 = vpack.c.b16 %v7046, %v7045
      %v7059 = vpack.c.b16 %v7048, %v7047
      %v7060 = vpack.c.b16 %v7050, %v7049
      %v7061 = vpack.c.b16 %v7052, %v7051
      %v7062 = vpack.c.b16 %v7054, %v7053
      %7071 = vmatprep.subr.bf16.mxu0 0
      %7072 = vmatpush1.bf16.msra.mxu0 %v7062
      %7073 = vmatprep.subr.bf16.mxu0 0
      %7074 = vmatpush1.bf16.msra.mxu0 %v7061
      %7075 = vmatprep.subr.bf16.mxu0 0
      %7076 = vmatpush1.bf16.msra.mxu0 %v7060
      %7077 = vmatprep.subr.bf16.mxu0 0
      %7078 = vmatpush1.bf16.msra.mxu0 %v7059
      %7079 = vmatprep.subr.bf16.mxu0 0
      %7080 = vmatpush1.bf16.msra.mxu0 %v7058
      %7081 = vmatprep.subr.bf16.mxu0 0
      %7082 = vmatpush1.bf16.msra.mxu0 %v7057
      %7083 = vmatprep.subr.bf16.mxu0 0
      %7084 = vmatpush1.bf16.msra.mxu0 %v7056
      %7085 = vmatprep.subr.bf16.mxu0 0
      %7086 = vmatpush1.bf16.msra.mxu0 %v7055
      %7087 = vmatprep.subr.bf16.mxu0 0
      %7088 = vmatpush2.bf16.msra.mxu0 0
      %7089 = vmatprep.subr.bf16.mxu0 0
      %7090 = vmatpush2.bf16.msra.mxu0 0
      %7091 = vmatprep.subr.bf16.mxu0 0
      %7092 = vmatpush2.bf16.msra.mxu0 0
      %7093 = vmatprep.subr.bf16.mxu0 0
      %7094 = vmatpush2.bf16.msra.mxu0 0
      %7095 = vmatprep.subr.bf16.mxu0 0
      %7096 = vmatpush2.bf16.msra.mxu0 0
      %7097 = vmatprep.subr.bf16.mxu0 0
      %7098 = vmatpush2.bf16.msra.mxu0 0
      %7099 = vmatprep.subr.bf16.mxu0 0
      %7100 = vmatpush2.bf16.msra.mxu0 0
      %7101 = vmatprep.subr.bf16.mxu0 0
      %7102 = vmatpush2.bf16.msra.mxu0 0
      %7103 = vmatprep.mubr.bf16.mxu0 0
      %7104 = vmatmul.mubr.bf16.gmra.mxu0 %v6994
      %v7105 = vpop.f32.mrf.mxu0
      %v7106 = vadd.f32 0.0, %v7105
      %v7107 = vpop.f32.mrf.mxu0
      %v7108 = vpop.f32.mrf.mxu0
      %v7109 = vadd.f32 0.0, %v7108
      %v7110 = vpop.f32.mrf.mxu0
      %7111 = vmatprep.mubr.bf16.mxu0 0
      %7112 = vmatmul.mubr.bf16.gmra.mxu0 %v6995
      %v7113 = vpop.f32.mrf.mxu0
      %v7114 = vadd.f32 0.0, %v7113
      %v7115 = vpop.f32.mrf.mxu0
      %v7116 = vpop.f32.mrf.mxu0
      %v7117 = vadd.f32 0.0, %v7116
      %v7118 = vpop.f32.mrf.mxu0
      %7119 = vmatprep.mubr.bf16.mxu0 0
      %7120 = vmatmul.mubr.bf16.gmra.mxu0 %v6996
      %v7121 = vpop.f32.mrf.mxu0
      %v7122 = vadd.f32 0.0, %v7121
      %v7123 = vpop.f32.mrf.mxu0
      %v7124 = vpop.f32.mrf.mxu0
      %v7125 = vadd.f32 0.0, %v7124
      %v7126 = vpop.f32.mrf.mxu0
      %7127 = vmatprep.mubr.bf16.mxu0 0
      %7128 = vmatmul.mubr.bf16.gmra.mxu0 %v6997
      %v7129 = vpop.f32.mrf.mxu0
      %v7130 = vadd.f32 0.0, %v7129
      %v7131 = vpop.f32.mrf.mxu0
      %v7132 = vpop.f32.mrf.mxu0
      %v7133 = vadd.f32 0.0, %v7132
      %v7134 = vpop.f32.mrf.mxu0
      %7135 = vmatprep.mubr.bf16.mxu0 0
      %7136 = vmatmul.mubr.bf16.gmra.mxu0 %v6998
      %v7137 = vpop.f32.mrf.mxu0
      %v7138 = vadd.f32 0.0, %v7137
      %v7139 = vpop.f32.mrf.mxu0
      %v7140 = vpop.f32.mrf.mxu0
      %v7141 = vadd.f32 0.0, %v7140
      %v7142 = vpop.f32.mrf.mxu0
      %7143 = vmatprep.mubr.bf16.mxu0 0
      %7144 = vmatmul.mubr.bf16.gmra.mxu0 %v6999
      %v7145 = vpop.f32.mrf.mxu0
      %v7146 = vadd.f32 0.0, %v7145
      %v7147 = vpop.f32.mrf.mxu0
      %v7148 = vpop.f32.mrf.mxu0
      %v7149 = vadd.f32 0.0, %v7148
      %v7150 = vpop.f32.mrf.mxu0
      %7151 = vmatprep.mubr.bf16.mxu0 0
      %7152 = vmatmul.mubr.bf16.gmra.mxu0 %v7000
      %v7153 = vpop.f32.mrf.mxu0
      %v7154 = vadd.f32 0.0, %v7153
      %v7155 = vpop.f32.mrf.mxu0
      %v7156 = vpop.f32.mrf.mxu0
      %v7157 = vadd.f32 0.0, %v7156
      %v7158 = vpop.f32.mrf.mxu0
      %7159 = vmatprep.mubr.bf16.mxu0 0
      %7160 = vmatmul.mubr.bf16.gmra.mxu0 %v7001
      %v7161 = vpop.f32.mrf.mxu0
      %v7162 = vadd.f32 0.0, %v7161
      %v7163 = vpop.f32.mrf.mxu0
      %v7164 = vpop.f32.mrf.mxu0
      %v7165 = vadd.f32 0.0, %v7164
      %v7166 = vpop.f32.mrf.mxu0
      %7167 = vmatprep.mubr.bf16.mxu0 0
      %7168 = vmatmul.mubr.bf16.gmra.mxu0 %v7002
      %v7169 = vpop.f32.mrf.mxu0
      %v7170 = vadd.f32 0.0, %v7169
      %v7171 = vpop.f32.mrf.mxu0
      %v7172 = vpop.f32.mrf.mxu0
      %v7173 = vadd.f32 0.0, %v7172
      %v7174 = vpop.f32.mrf.mxu0
      %7175 = vmatprep.mubr.bf16.mxu0 0
      %7176 = vmatmul.mubr.bf16.gmra.mxu0 %v7003
      %v7177 = vpop.f32.mrf.mxu0
      %v7178 = vadd.f32 0.0, %v7177
      %v7179 = vpop.f32.mrf.mxu0
      %v7180 = vpop.f32.mrf.mxu0
      %v7181 = vadd.f32 0.0, %v7180
      %v7182 = vpop.f32.mrf.mxu0
      %7183 = vmatprep.mubr.bf16.mxu0 0
      %7184 = vmatmul.mubr.bf16.gmra.mxu0 %v7004
      %v7185 = vpop.f32.mrf.mxu0
      %v7186 = vadd.f32 0.0, %v7185
      %v7187 = vpop.f32.mrf.mxu0
      %v7188 = vpop.f32.mrf.mxu0
      %v7189 = vadd.f32 0.0, %v7188
      %v7190 = vpop.f32.mrf.mxu0
      %7191 = vmatprep.mubr.bf16.mxu0 0
      %7192 = vmatmul.mubr.bf16.gmra.mxu0 %v7005
      %v7193 = vpop.f32.mrf.mxu0
      %v7194 = vadd.f32 0.0, %v7193
      %v7195 = vpop.f32.mrf.mxu0
      %v7196 = vpop.f32.mrf.mxu0
      %v7197 = vadd.f32 0.0, %v7196
      %v7198 = vpop.f32.mrf.mxu0
      %7199 = vdwg.mxu0
      %v7200 = vadd.f32 %v6922, %v7106
      %v7201 = vadd.f32 %v6923, %v7109
      %v7202 = vadd.f32 %v6924, %v7114
      %v7203 = vadd.f32 %v6925, %v7117
      %v7204 = vadd.f32 %v6926, %v7122
      %v7205 = vadd.f32 %v6927, %v7125
      %v7206 = vadd.f32 %v6928, %v7130
      %v7207 = vadd.f32 %v6929, %v7133
      %v7208 = vadd.f32 %v6930, %v7138
      %v7209 = vadd.f32 %v6931, %v7141
      %v7210 = vadd.f32 %v6932, %v7146
      %v7211 = vadd.f32 %v6933, %v7149
      %v7212 = vadd.f32 %v6934, %v7154
      %v7213 = vadd.f32 %v6935, %v7157
      %v7214 = vadd.f32 %v6936, %v7162
      %v7215 = vadd.f32 %v6937, %v7165
      %v7216 = vadd.f32 %v6938, %v7170
      %v7217 = vadd.f32 %v6939, %v7173
      %v7218 = vadd.f32 %v6940, %v7178
      %v7219 = vadd.f32 %v6941, %v7181
      %v7220 = vadd.f32 %v6942, %v7186
      %v7221 = vadd.f32 %v6943, %v7189
      %v7222 = vadd.f32 %v6944, %v7194
      %v7223 = vadd.f32 %v6945, %v7197
      %v7224 = vld [vmem:[%s6] sm:$0x1]
      %v7226 = vlaneseq
      %v7227 = vshrl.u32 %v7226, 7
      %v7228 = vsub.s32 0, %v7227
      %v7229 = vrot.slane %v7224, %v7228
      %v7231 = vadd.f32 %v7200, %v7229
      %v7232 = vadd.f32 %v7201, %v7229
      %v7233 = vadd.f32 %v7202, %v7229
      %v7234 = vadd.f32 %v7203, %v7229
      %v7235 = vadd.f32 %v7204, %v7229
      %v7236 = vadd.f32 %v7205, %v7229
      %v7237 = vadd.f32 %v7206, %v7229
      %v7238 = vadd.f32 %v7207, %v7229
      %v7239 = vadd.f32 %v7208, %v7229
      %v7240 = vadd.f32 %v7209, %v7229
      %v7241 = vadd.f32 %v7210, %v7229
      %v7242 = vadd.f32 %v7211, %v7229
      %v7243 = vadd.f32 %v7212, %v7229
      %v7244 = vadd.f32 %v7213, %v7229
      %v7245 = vadd.f32 %v7214, %v7229
      %v7246 = vadd.f32 %v7215, %v7229
      %v7247 = vadd.f32 %v7216, %v7229
      %v7248 = vadd.f32 %v7217, %v7229
      %v7249 = vadd.f32 %v7218, %v7229
      %v7250 = vadd.f32 %v7219, %v7229
      %v7251 = vadd.f32 %v7220, %v7229
      %v7252 = vadd.f32 %v7221, %v7229
      %v7253 = vadd.f32 %v7222, %v7229
      %v7254 = vadd.f32 %v7223, %v7229
      %v7255 = vmul.f32 %v7231, 0.5
      %v7256 = vmul.f32 %v7232, 0.5
      %v7257 = vmul.f32 %v7233, 0.5
      %v7258 = vmul.f32 %v7234, 0.5
      %v7259 = vmul.f32 %v7235, 0.5
      %v7260 = vmul.f32 %v7236, 0.5
      %v7261 = vmul.f32 %v7237, 0.5
      %v7262 = vmul.f32 %v7238, 0.5
      %v7263 = vmul.f32 %v7239, 0.5
      %v7264 = vmul.f32 %v7240, 0.5
      %v7265 = vmul.f32 %v7241, 0.5
      %v7266 = vmul.f32 %v7242, 0.5
      %v7267 = vmul.f32 %v7243, 0.5
      %v7268 = vmul.f32 %v7244, 0.5
      %v7269 = vmul.f32 %v7245, 0.5
      %v7270 = vmul.f32 %v7246, 0.5
      %v7271 = vmul.f32 %v7247, 0.5
      %v7272 = vmul.f32 %v7248, 0.5
      %v7273 = vmul.f32 %v7249, 0.5
      %v7274 = vmul.f32 %v7250, 0.5
      %v7275 = vmul.f32 %v7251, 0.5
      %v7276 = vmul.f32 %v7252, 0.5
      %v7277 = vmul.f32 %v7253, 0.5
      %v7278 = vmul.f32 %v7254, 0.5
      %v7279 = vmul.f32 %v7231, 0.044715
      %v7280 = vmul.f32 %v7232, 0.044715
      %v7281 = vmul.f32 %v7233, 0.044715
      %v7282 = vmul.f32 %v7234, 0.044715
      %v7283 = vmul.f32 %v7235, 0.044715
      %v7284 = vmul.f32 %v7236, 0.044715
      %v7285 = vmul.f32 %v7237, 0.044715
      %v7286 = vmul.f32 %v7238, 0.044715
      %v7287 = vmul.f32 %v7239, 0.044715
      %v7288 = vmul.f32 %v7240, 0.044715
      %v7289 = vmul.f32 %v7241, 0.044715
      %v7290 = vmul.f32 %v7242, 0.044715
      %v7291 = vmul.f32 %v7243, 0.044715
      %v7292 = vmul.f32 %v7244, 0.044715
      %v7293 = vmul.f32 %v7245, 0.044715
      %v7294 = vmul.f32 %v7246, 0.044715
      %v7295 = vmul.f32 %v7247, 0.044715
      %v7296 = vmul.f32 %v7248, 0.044715
      %v7297 = vmul.f32 %v7249, 0.044715
      %v7298 = vmul.f32 %v7250, 0.044715
      %v7299 = vmul.f32 %v7251, 0.044715
      %v7300 = vmul.f32 %v7252, 0.044715
      %v7301 = vmul.f32 %v7253, 0.044715
      %v7302 = vmul.f32 %v7254, 0.044715
      %v7303 = vmul.f32 %v7279, %v7231
      %v7304 = vmul.f32 %v7280, %v7232
      %v7305 = vmul.f32 %v7281, %v7233
      %v7306 = vmul.f32 %v7282, %v7234
      %v7307 = vmul.f32 %v7283, %v7235
      %v7308 = vmul.f32 %v7284, %v7236
      %v7309 = vmul.f32 %v7285, %v7237
      %v7310 = vmul.f32 %v7286, %v7238
      %v7311 = vmul.f32 %v7287, %v7239
      %v7312 = vmul.f32 %v7288, %v7240
      %v7313 = vmul.f32 %v7289, %v7241
      %v7314 = vmul.f32 %v7290, %v7242
      %v7315 = vmul.f32 %v7291, %v7243
      %v7316 = vmul.f32 %v7292, %v7244
      %v7317 = vmul.f32 %v7293, %v7245
      %v7318 = vmul.f32 %v7294, %v7246
      %v7319 = vmul.f32 %v7295, %v7247
      %v7320 = vmul.f32 %v7296, %v7248
      %v7321 = vmul.f32 %v7297, %v7249
      %v7322 = vmul.f32 %v7298, %v7250
      %v7323 = vmul.f32 %v7299, %v7251
      %v7324 = vmul.f32 %v7300, %v7252
      %v7325 = vmul.f32 %v7301, %v7253
      %v7326 = vmul.f32 %v7302, %v7254
      %v7327 = vmul.f32 %v7303, %v7231
      %v7328 = vmul.f32 %v7304, %v7232
      %v7329 = vmul.f32 %v7305, %v7233
      %v7330 = vmul.f32 %v7306, %v7234
      %v7331 = vmul.f32 %v7307, %v7235
      %v7332 = vmul.f32 %v7308, %v7236
      %v7333 = vmul.f32 %v7309, %v7237
      %v7334 = vmul.f32 %v7310, %v7238
      %v7335 = vmul.f32 %v7311, %v7239
      %v7336 = vmul.f32 %v7312, %v7240
      %v7337 = vmul.f32 %v7313, %v7241
      %v7338 = vmul.f32 %v7314, %v7242
      %v7339 = vmul.f32 %v7315, %v7243
      %v7340 = vmul.f32 %v7316, %v7244
      %v7341 = vmul.f32 %v7317, %v7245
      %v7342 = vmul.f32 %v7318, %v7246
      %v7343 = vmul.f32 %v7319, %v7247
      %v7344 = vmul.f32 %v7320, %v7248
      %v7345 = vmul.f32 %v7321, %v7249
      %v7346 = vmul.f32 %v7322, %v7250
      %v7347 = vmul.f32 %v7323, %v7251
      %v7348 = vmul.f32 %v7324, %v7252
      %v7349 = vmul.f32 %v7325, %v7253
      %v7350 = vmul.f32 %v7326, %v7254
      %v7351 = vadd.f32 %v7231, %v7327
      %v7352 = vadd.f32 %v7232, %v7328
      %v7353 = vadd.f32 %v7233, %v7329
      %v7354 = vadd.f32 %v7234, %v7330
      %v7355 = vadd.f32 %v7235, %v7331
      %v7356 = vadd.f32 %v7236, %v7332
      %v7357 = vadd.f32 %v7237, %v7333
      %v7358 = vadd.f32 %v7238, %v7334
      %v7359 = vadd.f32 %v7239, %v7335
      %v7360 = vadd.f32 %v7240, %v7336
      %v7361 = vadd.f32 %v7241, %v7337
      %v7362 = vadd.f32 %v7242, %v7338
      %v7363 = vadd.f32 %v7243, %v7339
      %v7364 = vadd.f32 %v7244, %v7340
      %v7365 = vadd.f32 %v7245, %v7341
      %v7366 = vadd.f32 %v7246, %v7342
      %v7367 = vadd.f32 %v7247, %v7343
      %v7368 = vadd.f32 %v7248, %v7344
      %v7369 = vadd.f32 %v7249, %v7345
      %v7370 = vadd.f32 %v7250, %v7346
      %v7371 = vadd.f32 %v7251, %v7347
      %v7372 = vadd.f32 %v7252, %v7348
      %v7373 = vadd.f32 %v7253, %v7349
      %v7374 = vadd.f32 %v7254, %v7350
      %v7375 = vmul.f32 %v7351, 0.7978846
      %v7376 = vmul.f32 %v7352, 0.7978846
      %v7377 = vmul.f32 %v7353, 0.7978846
      %v7378 = vmul.f32 %v7354, 0.7978846
      %v7379 = vmul.f32 %v7355, 0.7978846
      %v7380 = vmul.f32 %v7356, 0.7978846
      %v7381 = vmul.f32 %v7357, 0.7978846
      %v7382 = vmul.f32 %v7358, 0.7978846
      %v7383 = vmul.f32 %v7359, 0.7978846
      %v7384 = vmul.f32 %v7360, 0.7978846
      %v7385 = vmul.f32 %v7361, 0.7978846
      %v7386 = vmul.f32 %v7362, 0.7978846
      %v7387 = vmul.f32 %v7363, 0.7978846
      %v7388 = vmul.f32 %v7364, 0.7978846
      %v7389 = vmul.f32 %v7365, 0.7978846
      %v7390 = vmul.f32 %v7366, 0.7978846
      %v7391 = vmul.f32 %v7367, 0.7978846
      %v7392 = vmul.f32 %v7368, 0.7978846
      %v7393 = vmul.f32 %v7369, 0.7978846
      %v7394 = vmul.f32 %v7370, 0.7978846
      %v7395 = vmul.f32 %v7371, 0.7978846
      %v7396 = vmul.f32 %v7372, 0.7978846
      %v7397 = vmul.f32 %v7373, 0.7978846
      %v7398 = vmul.f32 %v7374, 0.7978846
      %v7399 = vtanh.pop %v7375
      %v7400 = vtanh.pop %v7376
      %v7401 = vtanh.pop %v7377
      %v7402 = vtanh.pop %v7378
      %v7403 = vtanh.pop %v7379
      %v7404 = vtanh.pop %v7380
      %v7405 = vtanh.pop %v7381
      %v7406 = vtanh.pop %v7382
      %v7407 = vtanh.pop %v7383
      %v7408 = vtanh.pop %v7384
      %v7409 = vtanh.pop %v7385
      %v7410 = vtanh.pop %v7386
      %v7411 = vtanh.pop %v7387
      %v7412 = vtanh.pop %v7388
      %v7413 = vtanh.pop %v7389
      %v7414 = vtanh.pop %v7390
      %v7415 = vtanh.pop %v7391
      %v7416 = vtanh.pop %v7392
      %v7417 = vtanh.pop %v7393
      %v7418 = vtanh.pop %v7394
      %v7419 = vtanh.pop %v7395
      %v7420 = vtanh.pop %v7396
      %v7421 = vtanh.pop %v7397
      %v7422 = vtanh.pop %v7398
      %v7423 = vadd.f32 %v7399, 1.0
      %v7424 = vadd.f32 %v7400, 1.0
      %v7425 = vadd.f32 %v7401, 1.0
      %v7426 = vadd.f32 %v7402, 1.0
      %v7427 = vadd.f32 %v7403, 1.0
      %v7428 = vadd.f32 %v7404, 1.0
      %v7429 = vadd.f32 %v7405, 1.0
      %v7430 = vadd.f32 %v7406, 1.0
      %v7431 = vadd.f32 %v7407, 1.0
      %v7432 = vadd.f32 %v7408, 1.0
      %v7433 = vadd.f32 %v7409, 1.0
      %v7434 = vadd.f32 %v7410, 1.0
      %v7435 = vadd.f32 %v7411, 1.0
      %v7436 = vadd.f32 %v7412, 1.0
      %v7437 = vadd.f32 %v7413, 1.0
      %v7438 = vadd.f32 %v7414, 1.0
      %v7439 = vadd.f32 %v7415, 1.0
      %v7440 = vadd.f32 %v7416, 1.0
      %v7441 = vadd.f32 %v7417, 1.0
      %v7442 = vadd.f32 %v7418, 1.0
      %v7443 = vadd.f32 %v7419, 1.0
      %v7444 = vadd.f32 %v7420, 1.0
      %v7445 = vadd.f32 %v7421, 1.0
      %v7446 = vadd.f32 %v7422, 1.0
      %v7447 = vmul.f32 %v7255, %v7423
      %v7448 = vmul.f32 %v7256, %v7424
      %v7449 = vmul.f32 %v7257, %v7425
      %v7450 = vmul.f32 %v7258, %v7426
      %v7451 = vmul.f32 %v7259, %v7427
      %v7452 = vmul.f32 %v7260, %v7428
      %v7453 = vmul.f32 %v7261, %v7429
      %v7454 = vmul.f32 %v7262, %v7430
      %v7455 = vmul.f32 %v7263, %v7431
      %v7456 = vmul.f32 %v7264, %v7432
      %v7457 = vmul.f32 %v7265, %v7433
      %v7458 = vmul.f32 %v7266, %v7434
      %v7459 = vmul.f32 %v7267, %v7435
      %v7460 = vmul.f32 %v7268, %v7436
      %v7461 = vmul.f32 %v7269, %v7437
      %v7462 = vmul.f32 %v7270, %v7438
      %v7463 = vmul.f32 %v7271, %v7439
      %v7464 = vmul.f32 %v7272, %v7440
      %v7465 = vmul.f32 %v7273, %v7441
      %v7466 = vmul.f32 %v7274, %v7442
      %v7467 = vmul.f32 %v7275, %v7443
      %v7468 = vmul.f32 %v7276, %v7444
      %v7469 = vmul.f32 %v7277, %v7445
      %v7470 = vmul.f32 %v7278, %v7446
      %v7471 = vpack.c.bf16 %v7448, %v7447
      %v7472 = vpack.c.bf16 %v7450, %v7449
      %v7473 = vpack.c.bf16 %v7452, %v7451
      %v7474 = vpack.c.bf16 %v7454, %v7453
      %v7475 = vpack.c.bf16 %v7456, %v7455
      %v7476 = vpack.c.bf16 %v7458, %v7457
      %v7477 = vpack.c.bf16 %v7460, %v7459
      %v7478 = vpack.c.bf16 %v7462, %v7461
      %v7479 = vpack.c.bf16 %v7464, %v7463
      %v7480 = vpack.c.bf16 %v7466, %v7465
      %v7481 = vpack.c.bf16 %v7468, %v7467
      %v7482 = vpack.c.bf16 %v7470, %v7469
      %v7483 = vld [vmem:[%s7] sm:$0xf]
      %v7484 = vld [vmem:[%s7 + $0x4] sm:$0xf]
      %v7485 = vld [vmem:[%s7 + $0x8] sm:$0xf]
      %v7486 = vld [vmem:[%s7 + $0xc] sm:$0xf]
      %v7487 = vld [vmem:[%s7 + $0x10] sm:$0xf]
      %v7488 = vld [vmem:[%s7 + $0x14] sm:$0xf]
      %v7489 = vld [vmem:[%s7 + $0x18] sm:$0xf]
      %v7490 = vld [vmem:[%s7 + $0x1c] sm:$0xf]
      %v7491 = vld [vmem:[%s7 + $0x20] sm:$0xf]
      %v7492 = vld [vmem:[%s7 + $0x24] sm:$0xf]
      %v7493 = vld [vmem:[%s7 + $0x28] sm:$0xf]
      %v7494 = vld [vmem:[%s7 + $0x2c] sm:$0xf]
      %v7495 = vld [vmem:[%s7 + $0x30] sm:$0xf]
      %v7496 = vld [vmem:[%s7 + $0x34] sm:$0xf]
      %v7497 = vld [vmem:[%s7 + $0x38] sm:$0xf]
      %v7498 = vld [vmem:[%s7 + $0x3c] sm:$0xf]
      %v7499 = vld [vmem:[%s8] sm:$0x1]
      %v7501 = vlaneseq
      %v7502 = vshrl.u32 %v7501, 7
      %v7503 = vsub.s32 0, %v7502
      %v7504 = vrot.slane %v7499, %v7503
      %v7522 = vunpack.c.l.b16 %v7483
      %v7523 = vunpack.c.l.b16 %v7484
      %v7524 = vunpack.c.l.b16 %v7485
      %v7525 = vunpack.c.l.b16 %v7486
      %v7526 = vunpack.c.l.b16 %v7487
      %v7527 = vunpack.c.l.b16 %v7488
      %v7528 = vunpack.c.l.b16 %v7489
      %v7529 = vunpack.c.l.b16 %v7490
      %v7530 = vunpack.c.l.b16 %v7491
      %v7531 = vunpack.c.l.b16 %v7492
      %v7532 = vunpack.c.l.b16 %v7493
      %v7533 = vunpack.c.l.b16 %v7494
      %v7534 = vunpack.c.l.b16 %v7495
      %v7535 = vunpack.c.l.b16 %v7496
      %v7536 = vunpack.c.l.b16 %v7497
      %v7537 = vunpack.c.l.b16 %v7498
      %v7538 = vpack.c.b16 %v7523, %v7522
      %v7539 = vpack.c.b16 %v7525, %v7524
      %v7540 = vpack.c.b16 %v7527, %v7526
      %v7541 = vpack.c.b16 %v7529, %v7528
      %v7542 = vpack.c.b16 %v7531, %v7530
      %v7543 = vpack.c.b16 %v7533, %v7532
      %v7544 = vpack.c.b16 %v7535, %v7534
      %v7545 = vpack.c.b16 %v7537, %v7536
      %7554 = vmatprep.subr.bf16.mxu0 0
      %7555 = vmatpush1.bf16.msra.mxu0 %v7545
      %7556 = vmatprep.subr.bf16.mxu0 0
      %7557 = vmatpush1.bf16.msra.mxu0 %v7544
      %7558 = vmatprep.subr.bf16.mxu0 0
      %7559 = vmatpush1.bf16.msra.mxu0 %v7543
      %7560 = vmatprep.subr.bf16.mxu0 0
      %7561 = vmatpush1.bf16.msra.mxu0 %v7542
      %7562 = vmatprep.subr.bf16.mxu0 0
      %7563 = vmatpush1.bf16.msra.mxu0 %v7541
      %7564 = vmatprep.subr.bf16.mxu0 0
      %7565 = vmatpush1.bf16.msra.mxu0 %v7540
      %7566 = vmatprep.subr.bf16.mxu0 0
      %7567 = vmatpush1.bf16.msra.mxu0 %v7539
      %7568 = vmatprep.subr.bf16.mxu0 0
      %7569 = vmatpush1.bf16.msra.mxu0 %v7538
      %7570 = vmatprep.subr.bf16.mxu0 0
      %7571 = vmatpush2.bf16.msra.mxu0 0
      %7572 = vmatprep.subr.bf16.mxu0 0
      %7573 = vmatpush2.bf16.msra.mxu0 0
      %7574 = vmatprep.subr.bf16.mxu0 0
      %7575 = vmatpush2.bf16.msra.mxu0 0
      %7576 = vmatprep.subr.bf16.mxu0 0
      %7577 = vmatpush2.bf16.msra.mxu0 0
      %7578 = vmatprep.subr.bf16.mxu0 0
      %7579 = vmatpush2.bf16.msra.mxu0 0
      %7580 = vmatprep.subr.bf16.mxu0 0
      %7581 = vmatpush2.bf16.msra.mxu0 0
      %7582 = vmatprep.subr.bf16.mxu0 0
      %7583 = vmatpush2.bf16.msra.mxu0 0
      %7584 = vmatprep.subr.bf16.mxu0 0
      %7585 = vmatpush2.bf16.msra.mxu0 0
      %7586 = vmatprep.mubr.bf16.mxu0 0
      %7587 = vmatmul.mubr.bf16.gmra.mxu0 %v7471
      %v7588 = vpop.f32.mrf.mxu0
      %v7589 = vadd.f32 %v7504, %v7588
      %v7590 = vpop.f32.mrf.mxu0
      %v7591 = vpop.f32.mrf.mxu0
      %v7592 = vadd.f32 %v7504, %v7591
      %v7593 = vpop.f32.mrf.mxu0
      %7594 = vmatprep.mubr.bf16.mxu0 0
      %7595 = vmatmul.mubr.bf16.gmra.mxu0 %v7472
      %v7596 = vpop.f32.mrf.mxu0
      %v7597 = vadd.f32 %v7504, %v7596
      %v7598 = vpop.f32.mrf.mxu0
      %v7599 = vpop.f32.mrf.mxu0
      %v7600 = vadd.f32 %v7504, %v7599
      %v7601 = vpop.f32.mrf.mxu0
      %7602 = vmatprep.mubr.bf16.mxu0 0
      %7603 = vmatmul.mubr.bf16.gmra.mxu0 %v7473
      %v7604 = vpop.f32.mrf.mxu0
      %v7605 = vadd.f32 %v7504, %v7604
      %v7606 = vpop.f32.mrf.mxu0
      %v7607 = vpop.f32.mrf.mxu0
      %v7608 = vadd.f32 %v7504, %v7607
      %v7609 = vpop.f32.mrf.mxu0
      %7610 = vmatprep.mubr.bf16.mxu0 0
      %7611 = vmatmul.mubr.bf16.gmra.mxu0 %v7474
      %v7612 = vpop.f32.mrf.mxu0
      %v7613 = vadd.f32 %v7504, %v7612
      %v7614 = vpop.f32.mrf.mxu0
      %v7615 = vpop.f32.mrf.mxu0
      %v7616 = vadd.f32 %v7504, %v7615
      %v7617 = vpop.f32.mrf.mxu0
      %7618 = vmatprep.mubr.bf16.mxu0 0
      %7619 = vmatmul.mubr.bf16.gmra.mxu0 %v7475
      %v7620 = vpop.f32.mrf.mxu0
      %v7621 = vadd.f32 %v7504, %v7620
      %v7622 = vpop.f32.mrf.mxu0
      %v7623 = vpop.f32.mrf.mxu0
      %v7624 = vadd.f32 %v7504, %v7623
      %v7625 = vpop.f32.mrf.mxu0
      %7626 = vmatprep.mubr.bf16.mxu0 0
      %7627 = vmatmul.mubr.bf16.gmra.mxu0 %v7476
      %v7628 = vpop.f32.mrf.mxu0
      %v7629 = vadd.f32 %v7504, %v7628
      %v7630 = vpop.f32.mrf.mxu0
      %v7631 = vpop.f32.mrf.mxu0
      %v7632 = vadd.f32 %v7504, %v7631
      %v7633 = vpop.f32.mrf.mxu0
      %7634 = vmatprep.mubr.bf16.mxu0 0
      %7635 = vmatmul.mubr.bf16.gmra.mxu0 %v7477
      %v7636 = vpop.f32.mrf.mxu0
      %v7637 = vadd.f32 %v7504, %v7636
      %v7638 = vpop.f32.mrf.mxu0
      %v7639 = vpop.f32.mrf.mxu0
      %v7640 = vadd.f32 %v7504, %v7639
      %v7641 = vpop.f32.mrf.mxu0
      %7642 = vmatprep.mubr.bf16.mxu0 0
      %7643 = vmatmul.mubr.bf16.gmra.mxu0 %v7478
      %v7644 = vpop.f32.mrf.mxu0
      %v7645 = vadd.f32 %v7504, %v7644
      %v7646 = vpop.f32.mrf.mxu0
      %v7647 = vpop.f32.mrf.mxu0
      %v7648 = vadd.f32 %v7504, %v7647
      %v7649 = vpop.f32.mrf.mxu0
      %7650 = vmatprep.mubr.bf16.mxu0 0
      %7651 = vmatmul.mubr.bf16.gmra.mxu0 %v7479
      %v7652 = vpop.f32.mrf.mxu0
      %v7653 = vadd.f32 %v7504, %v7652
      %v7654 = vpop.f32.mrf.mxu0
      %v7655 = vpop.f32.mrf.mxu0
      %v7656 = vadd.f32 %v7504, %v7655
      %v7657 = vpop.f32.mrf.mxu0
      %7658 = vmatprep.mubr.bf16.mxu0 0
      %7659 = vmatmul.mubr.bf16.gmra.mxu0 %v7480
      %v7660 = vpop.f32.mrf.mxu0
      %v7661 = vadd.f32 %v7504, %v7660
      %v7662 = vpop.f32.mrf.mxu0
      %v7663 = vpop.f32.mrf.mxu0
      %v7664 = vadd.f32 %v7504, %v7663
      %v7665 = vpop.f32.mrf.mxu0
      %7666 = vmatprep.mubr.bf16.mxu0 0
      %7667 = vmatmul.mubr.bf16.gmra.mxu0 %v7481
      %v7668 = vpop.f32.mrf.mxu0
      %v7669 = vadd.f32 %v7504, %v7668
      %v7670 = vpop.f32.mrf.mxu0
      %v7671 = vpop.f32.mrf.mxu0
      %v7672 = vadd.f32 %v7504, %v7671
      %v7673 = vpop.f32.mrf.mxu0
      %7674 = vmatprep.mubr.bf16.mxu0 0
      %7675 = vmatmul.mubr.bf16.gmra.mxu0 %v7482
      %v7676 = vpop.f32.mrf.mxu0
      %v7677 = vadd.f32 %v7504, %v7676
      %v7678 = vpop.f32.mrf.mxu0
      %v7679 = vpop.f32.mrf.mxu0
      %v7680 = vadd.f32 %v7504, %v7679
      %v7681 = vpop.f32.mrf.mxu0
      %7682 = vdwg.mxu0
      %v7683 = vadd.f32 %v7589, %v466
      %v7684 = vadd.f32 %v7592, %v467
      %v7685 = vadd.f32 %v7597, %v468
      %v7686 = vadd.f32 %v7600, %v469
      %v7687 = vadd.f32 %v7605, %v470
      %v7688 = vadd.f32 %v7608, %v471
      %v7689 = vadd.f32 %v7613, %v472
      %v7690 = vadd.f32 %v7616, %v473
      %v7691 = vadd.f32 %v7621, %v474
      %v7692 = vadd.f32 %v7624, %v475
      %v7693 = vadd.f32 %v7629, %v476
      %v7694 = vadd.f32 %v7632, %v477
      %v7695 = vadd.f32 %v7637, %v478
      %v7696 = vadd.f32 %v7640, %v479
      %v7697 = vadd.f32 %v7645, %v480
      %v7698 = vadd.f32 %v7648, %v481
      %v7699 = vadd.f32 %v7653, %v482
      %v7700 = vadd.f32 %v7656, %v483
      %v7701 = vadd.f32 %v7661, %v484
      %v7702 = vadd.f32 %v7664, %v485
      %v7703 = vadd.f32 %v7669, %v486
      %v7704 = vadd.f32 %v7672, %v487
      %v7705 = vadd.f32 %v7677, %v488
      %v7706 = vadd.f32 %v7680, %v489
      %v7707 = vld [vmem:[%s9] sm:$0xff]
      %v7708 = vld [vmem:[%s9 + $0x8] sm:$0xff]
      %v7709 = vld [vmem:[%s9 + $0x10] sm:$0xff]
      %v7710 = vld [vmem:[%s9 + $0x18] sm:$0xff]
      %v7711 = vld [vmem:[%s9 + $0x20] sm:$0xff]
      %v7712 = vld [vmem:[%s9 + $0x28] sm:$0xff]
      %v7713 = vld [vmem:[%s9 + $0x30] sm:$0xff]
      %v7714 = vld [vmem:[%s9 + $0x38] sm:$0xff]
      %vm7715 = vcmask 523264
      %v7717 = vsel %vm7715, %v7708, 0
      %v7720 = vsel %vm7715, %v7710, 0
      %v7723 = vsel %vm7715, %v7712, 0
      %v7726 = vsel %vm7715, %v7714, 0
      %7728 = vmatprep.subr.mxu0 0.0
      %7729 = vmatpush1.msra.mxu0 %v7698
      %7730 = vmatprep.subr.mxu0 0.0
      %7731 = vmatpush1.msra.mxu0 %v7697
      %7732 = vmatprep.subr.mxu0 0.0
      %7733 = vmatpush1.msra.mxu0 %v7696
      %7734 = vmatprep.subr.mxu0 0.0
      %7735 = vmatpush1.msra.mxu0 %v7695
      %7736 = vmatprep.subr.mxu0 0.0
      %7737 = vmatpush1.msra.mxu0 %v7694
      %7738 = vmatprep.subr.mxu0 0.0
      %7739 = vmatpush1.msra.mxu0 %v7693
      %7740 = vmatprep.subr.mxu0 0.0
      %7741 = vmatpush1.msra.mxu0 %v7692
      %7742 = vmatprep.subr.mxu0 0.0
      %7743 = vmatpush1.msra.mxu0 %v7691
      %7744 = vmatprep.subr.mxu0 0.0
      %7745 = vmatpush1.msra.mxu0 %v7690
      %7746 = vmatprep.subr.mxu0 0.0
      %7747 = vmatpush1.msra.mxu0 %v7689
      %7748 = vmatprep.subr.mxu0 0.0
      %7749 = vmatpush1.msra.mxu0 %v7688
      %7750 = vmatprep.subr.mxu0 0.0
      %7751 = vmatpush1.msra.mxu0 %v7687
      %7752 = vmatprep.subr.mxu0 0.0
      %7753 = vmatpush1.msra.mxu0 %v7686
      %7754 = vmatprep.subr.mxu0 0.0
      %7755 = vmatpush1.msra.mxu0 %v7685
      %7756 = vmatprep.subr.mxu0 0.0
      %7757 = vmatpush1.msra.mxu0 %v7684
      %7758 = vmatprep.subr.mxu0 0.0
      %7759 = vmatpush1.msra.mxu0 %v7683
      %7760 = vmatprep.subr.mxu0 0.0
      %7761 = vmatpush2.msra.mxu0 0.0
      %7762 = vmatprep.subr.mxu0 0.0
      %7763 = vmatpush2.msra.mxu0 0.0
      %7764 = vmatprep.subr.mxu0 0.0
      %7765 = vmatpush2.msra.mxu0 0.0
      %7766 = vmatprep.subr.mxu0 0.0
      %7767 = vmatpush2.msra.mxu0 0.0
      %7768 = vmatprep.subr.mxu0 0.0
      %7769 = vmatpush2.msra.mxu0 0.0
      %7770 = vmatprep.subr.mxu0 0.0
      %7771 = vmatpush2.msra.mxu0 0.0
      %7772 = vmatprep.subr.mxu0 0.0
      %7773 = vmatpush2.msra.mxu0 0.0
      %7774 = vmatprep.subr.mxu0 0.0
      %7775 = vmatpush2.msra.mxu0 0.0
      %7776 = vmatprep.subr.mxu0 0.0
      %7777 = vmatpush2.msra.mxu0 %v7706
      %7778 = vmatprep.subr.mxu0 0.0
      %7779 = vmatpush2.msra.mxu0 %v7705
      %7780 = vmatprep.subr.mxu0 0.0
      %7781 = vmatpush2.msra.mxu0 %v7704
      %7782 = vmatprep.subr.mxu0 0.0
      %7783 = vmatpush2.msra.mxu0 %v7703
      %7784 = vmatprep.subr.mxu0 0.0
      %7785 = vmatpush2.msra.mxu0 %v7702
      %7786 = vmatprep.subr.mxu0 0.0
      %7787 = vmatpush2.msra.mxu0 %v7701
      %7788 = vmatprep.subr.mxu0 0.0
      %7789 = vmatpush2.msra.mxu0 %v7700
      %7790 = vmatprep.subr.mxu0 0.0
      %7791 = vmatpush2.msra.mxu0 %v7699
      %7792 = vmatprep.mubr.f32.mxu0 %v7717
      %7793 = vmatmul.mubr.f32.gmra.mxu0 %v7707
      %v7794 = vpop.f32.mrf.mxu0
      %v7795 = vadd.f32 0.0, %v7794
      %v7796 = vpop.f32.mrf.mxu0
      %7797 = vmatprep.mubr.f32.mxu0 %v7720
      %7798 = vmatmul.mubr.f32.gmra.mxu0 %v7709
      %v7799 = vpop.f32.mrf.mxu0
      %v7800 = vadd.f32 0.0, %v7799
      %v7801 = vpop.f32.mrf.mxu0
      %7802 = vmatprep.mubr.f32.mxu0 %v7723
      %7803 = vmatmul.mubr.f32.gmra.mxu0 %v7711
      %v7804 = vpop.f32.mrf.mxu0
      %v7805 = vadd.f32 0.0, %v7804
      %v7806 = vpop.f32.mrf.mxu0
      %7807 = vmatprep.mubr.f32.mxu0 %v7726
      %7808 = vmatmul.mubr.f32.gmra.mxu0 %v7713
      %v7809 = vpop.f32.mrf.mxu0
      %v7810 = vadd.f32 0.0, %v7809
      %v7811 = vpop.f32.mrf.mxu0
      %7812 = vdwg.mxu0
      %7813 = vst [vmem:[%s335] sm:$0xff] %v7795
      %7814 = vst [vmem:[%s335 + $0x8] sm:$0xff] %v7800
      %7815 = vst [vmem:[%s335 + $0x10] sm:$0xff] %v7805
      %7816 = vst [vmem:[%s335 + $0x18] sm:$0xff] %v7810
      %s7817 = smul.u32 4, %s26
      %p7818 = scmp.lt.s32.totalorder %s25, 1
      %s7819 = scalar_select %p7818, %s25, 1
      %p7820 = scmp.lt.s32.totalorder %s7817, 7
      %s7821 = scalar_select %p7820, %s7817, 7
      %s7822 = smul.addr %s7819, 8
      %s7823 = sadd.s32 %s7821, %s7822
      %s7824 = smul.addr %s7823, 8
      %s7825 = scalar_lea.vmem %s10, %s7824
      // Predicated region
      $region92: #{block_forward.1} parent=55 // pred_check
        %p7826 = pneg %p242
      $region93: #{block_forward.1} parent=55 // pred_check_branch
        %7828 = sbr.rel (%p7826) target = $region95
      $region94: #{block_forward.1} parent=55 // pred_region
        %s7829 = smul.u32 4, %s26
      $region95: #{block_forward.1} parent=55 // pred_fallthru
        _
    $region56: #{block_forward.1} parent=5 // pred_fallthru
      _
    %p7830 = scmp.le.s32.totalorder 2, %s16
    // Predicated region
    $region96: #{block_forward.1} parent=5 // pred_check
      %p7831 = pneg %p7830
    $region97: #{block_forward.1} parent=5 // pred_check_branch
      %7833 = sbr.rel (%p7831) target = $region99
    $region98: #{block_forward.1} parent=5 // pred_region
      %s7834 = ssub.s32 %s16, 2
      // Predicated region
      $region100: #{block_forward.1} parent=98 // pred_check
        %p7835 = pneg %p248
      $region101: #{block_forward.1} parent=98 // pred_check_branch
        %7837 = sbr.rel (%p7835) target = $region103
      $region102: #{block_forward.1} parent=98 // pred_region
        %s7838 = smul.u32 4, %s28
        %p7839 = scmp.lt.s32.totalorder %s27, 1
        %s7840 = scalar_select %p7839, %s27, 1
        %p7841 = scmp.lt.s32.totalorder %s7838, 7
        %s7842 = scalar_select %p7841, %s7838, 7
        %s7843 = smul.addr %s7840, 8
        %s7844 = sadd.s32 %s7842, %s7843
        %s7845 = smul.addr %s7844, 8
        %s7846 = scalar_lea.vmem %s10, %s7845
      $region103: #{block_forward.1} parent=98 // pred_fallthru
        _
    $region99: #{block_forward.1} parent=5 // pred_fallthru
      _
  $region6: #{block_forward.1} parent=0 // loop_footer
    %s20 = sadd.s32 1, %s16
  $region7: #{block_forward.1} parent=0 // loop_footer_branch
    %15 = sbr.rel target = $region3
  $region8: #{block_forward.1} parent=0 // loop_exit
    _

</llo_original>
